<compile_context>
chip_gen: v6e
topology: v6e:2x2x1
jax: 0.10.0
libtpu: 0.0.40
codegen_flags: <defaults>
</compile_context>

<pallas_src>
import functools

import jax
import jax.numpy as jnp
from jax import lax
from jax.experimental import pallas as pl
from jax.experimental.pallas import tpu as pltpu

POOL_OUT = 313   # hard-coded in the PyTorch forward
BN_EPS = 1e-5
HALO = 8         # x-window halo per side (>= 3 needed; 8 keeps sublane alignment)
GL = 2           # left halo of the h1 slab needed by the dilated conv2


def _make_kernel(B, Cin, Cout, L, Lt, win, nw, cdtype):
    Lg = Lt + 8                       # h1 slab width: interior [-2 .. +6) halo
    n_total = float(B * L)

    def kernel(x_ref, w1_ref, w2_ref, o_ref,
               m1_ref, M21_ref, m2_ref, M22_ref, w1s_ref, shift1_ref):
        phase = pl.program_id(0)
        i = pl.program_id(1)
        last = pl.num_programs(1) - 1

        # Only the last tile may be ragged (padded beyond the true length L).
        nvalid = jnp.minimum(L - i * Lt, Lt)
        nt = (B * nvalid).astype(jnp.float32)
        n_prev = (B * Lt * i).astype(jnp.float32)

        xw = x_ref[...]                                   # (B, Lt + 2*HALO, Cin)

        def conv1(lo, n, w):
            """conv1 (k=3, pad=1) on window columns [lo, lo+n): 3 per-tap matmuls."""
            acc = None
            for k in range(3):
                a = xw[:, lo + k - 1:lo + k - 1 + n, :].reshape(B * n, Cin)
                d = jnp.dot(a.astype(cdtype), w[k * Cin:(k + 1) * Cin, :],
                            preferred_element_type=jnp.float32)
                acc = d if acc is None else acc + d
            return acc.reshape(B, n, Cout)

        def tile_stats(v, mask):
            """Per-channel (mean, centered M2) of the masked tile values."""
            vm = jnp.where(mask, v, 0.0)
            mean_t = (jnp.sum(vm, axis=(0, 1), keepdims=True) / nt).reshape(1, Cout)
            d = jnp.where(mask, v - mean_t.reshape(1, 1, Cout), 0.0)
            M2_t = jnp.sum(d * d, axis=(0, 1), keepdims=True).reshape(1, Cout)
            return mean_t, M2_t

        def merge(m_ref, M2_ref, mean_t, M2_t):
            """Chan/Welford merge of tile stats into the running (mean, M2)."""
            n_new = n_prev + nt
            delta = mean_t - m_ref[...]
            m_ref[...] = m_ref[...] + delta * (nt / n_new)
            M2_ref[...] = M2_ref[...] + M2_t + delta * delta * (n_prev * nt / n_new)

        col = lax.broadcasted_iota(jnp.int32, (1, Lt, 1), 1)
        valid = (i * Lt + col) < L                        # masks the ragged last tile

        @pl.when(jnp.logical_and(phase == 0, i == 0))
        def _init():
            m1_ref[...] = jnp.zeros_like(m1_ref)
            M21_ref[...] = jnp.zeros_like(M21_ref)
            m2_ref[...] = jnp.zeros_like(m2_ref)
            M22_ref[...] = jnp.zeros_like(M22_ref)

        # -------------- phase 0: conv1 -> BN1 batch statistics ------------------
        @pl.when(phase == 0)
        def _phase0():
            acc1 = conv1(HALO, Lt, w1_ref[...].astype(cdtype))
            mean_t, M2_t = tile_stats(acc1, valid)
            merge(m1_ref, M21_ref, mean_t, M2_t)

        # ------- phase transition: fold BN1 scale into conv1 weights (once) -----
        @pl.when(jnp.logical_and(phase == 1, i == 0))
        def _fold_bn1():
            s1 = lax.rsqrt(M21_ref[...] / n_total + BN_EPS)        # (1, Cout) > 0
            w1s_ref[...] = (w1_ref[...].astype(jnp.float32) * s1).astype(cdtype)
            shift1_ref[...] = m1_ref[...] * s1

        # -- phase 1: conv1(+halo) -> BN1+ReLU -> conv2 -> BN2 stats -> max-pool --
        @pl.when(phase == 1)
        def _phase1():
            # h1 on slab columns; slab col c <-> global position i*Lt + c - GL.
            acc1 = conv1(HALO - GL, Lg, w1s_ref[...])              # (B, Lg, Cout)
            gcol = lax.broadcasted_iota(jnp.int32, (1, Lg, 1), 1)
            gpos = i * Lt + gcol - GL
            inside = jnp.logical_and(gpos >= 0, gpos < L)          # conv2 zero-pad
            h1 = jnp.where(
                inside,
                jnp.maximum(acc1 - shift1_ref[...].reshape(1, 1, Cout), 0.0),
                0.0).astype(cdtype)

            # conv2 (k=3, dilation=2, pad=2) as 3 accumulating per-tap matmuls.
            w2 = w2_ref[...].astype(cdtype)
            acc2 = None
            for k in range(3):
                a = h1[:, 2 * k:2 * k + Lt, :].reshape(B * Lt, Cout)
                d = jnp.dot(a, w2[k * Cout:(k + 1) * Cout, :],
                            preferred_element_type=jnp.float32)
                acc2 = d if acc2 is None else acc2 + d
            y2 = acc2.reshape(B, Lt, Cout)

            mean_t, M2_t = tile_stats(y2, valid)
            merge(m2_ref, M22_ref, mean_t, M2_t)

            # Raw max-pool; BN2 affine + ReLU are applied post-pool (monotone).
            pooled = jnp.max(y2.reshape(B, nw, win, Cout), axis=2)
            start = i * nw
            if nw % 8 == 0:
                start = pl.multiple_of(start, 8)
            o_ref[:, pl.ds(start, nw), :] = pooled

        # -------------- finalize: BN2 affine + ReLU on the pooled block ---------
        @pl.when(jnp.logical_and(phase == 1, i == last))
        def _finalize():
            s2 = lax.rsqrt(M22_ref[...] / n_total + BN_EPS)
            shift2 = m2_ref[...] * s2
            o_ref[...] = jnp.maximum(
                o_ref[...] * s2.reshape(1, 1, Cout) - shift2.reshape(1, 1, Cout),
                0.0)

    return kernel


@functools.partial(jax.jit, static_argnames=("max_tile_cols", "compute_dtype"))
def conv_pre_wav_block(x_ncw, w1_oik, w2_oik, *, max_tile_cols=1024,
                       compute_dtype=jnp.bfloat16):
    """ConvPreWavBlockqt forward.  x_ncw: (B, Cin, L) f32 NCW -> (B, Cout, 313)."""
    B, Cin, L = x_ncw.shape
    Cout = w1_oik.shape[0]
    assert L >= POOL_OUT and L % POOL_OUT == 0, (
        "adaptive_max_pool1d implemented for uniform windows (L % 313 == 0)")
    # TODO(synk): general non-uniform adaptive_max_pool1d windows when L % 313 != 0.

    win = L // POOL_OUT
    nw = min(POOL_OUT, max(1, max_tile_cols // win))     # pool windows per L tile
    if nw < POOL_OUT and nw >= 8:
        nw = (nw // 8) * 8                               # sublane-aligned pool writes
    Lt = nw * win                                        # tile length (window aligned)
    T = pl.cdiv(POOL_OUT, nw)                            # number of L tiles
    Lp = T * Lt                                          # padded length (>= L)
    Wt = Lt + 2 * HALO

    cdtype = jnp.dtype(compute_dtype)

    # Single fused HBM pre-pass: NCW -> NLC, zero-pad, halo-window gather, cast.
    x_nlc = jnp.transpose(x_ncw, (0, 2, 1)).astype(cdtype)            # (B, L, Cin)
    x_pad = jnp.pad(x_nlc, ((0, 0), (HALO, Lp - L + HALO), (0, 0)))
    idx = jnp.arange(T)[:, None] * Lt + jnp.arange(Wt)[None, :]       # (T, Wt)
    x_win = jnp.transpose(x_pad[:, idx, :], (1, 0, 2, 3))             # (T, B, Wt, Cin)

    # Conv weights (Cout, Cin, K) -> tap-major im2col layout (K*Cin, Cout).
    w1f = jnp.transpose(w1_oik, (2, 1, 0)).reshape(3 * Cin, Cout).astype(cdtype)
    w2f = jnp.transpose(w2_oik, (2, 1, 0)).reshape(3 * Cout, Cout).astype(cdtype)

    # Generation-aware VMEM budget (<= ~85% of physical; 64 MiB v7x, 128 MiB v5e/v6e).
    esize = cdtype.itemsize
    est = (2 * B * Wt * Cin * esize                      # double-buffered x window
           + B * T * nw * Cout * 4                       # resident pooled output
           + 3 * (Cin + Cout) * Cout * (esize + 4)       # weights + folded copy
           + B * (Lt + 8) * (14 * Cout + 6 * Cin) * esize
           + (1 << 16))
    try:
        vmem_cap = pltpu.get_tpu_info().vmem_capacity_bytes
    except Exception:
        vmem_cap = 128 * 2 ** 20
    vmem_limit = int(min(0.85 * vmem_cap, max(32 * 2 ** 20, 4 * est)))

    kernel = _make_kernel(B, Cin, Cout, L, Lt, win, nw, cdtype)

    out = pl.pallas_call(
        kernel,
        out_shape=jax.ShapeDtypeStruct((B, T * nw, Cout), jnp.float32),
        grid=(2, T),                                     # (phase, L-tile)
        in_specs=[
            pl.BlockSpec((None, B, Wt, Cin), lambda p, i: (i, 0, 0, 0)),
            pl.BlockSpec((3 * Cin, Cout), lambda p, i: (0, 0)),
            pl.BlockSpec((3 * Cout, Cout), lambda p, i: (0, 0)),
        ],
        out_specs=pl.BlockSpec((B, T * nw, Cout), lambda p, i: (0, 0, 0)),
        scratch_shapes=[
            pltpu.VMEM((1, Cout), jnp.float32),          # BN1 running mean
            pltpu.VMEM((1, Cout), jnp.float32),          # BN1 running centered M2
            pltpu.VMEM((1, Cout), jnp.float32),          # BN2 running mean
            pltpu.VMEM((1, Cout), jnp.float32),          # BN2 running centered M2
            pltpu.VMEM((3 * Cin, Cout), cdtype),         # BN1-folded conv1 weights
            pltpu.VMEM((1, Cout), jnp.float32),          # BN1 shift (mean1*scale1)
        ],
        compiler_params=pltpu.CompilerParams(
            # BN statistics accumulate across both grid axes -> "arbitrary".
            dimension_semantics=("arbitrary", "arbitrary"),
            vmem_limit_bytes=vmem_limit),
    )(x_win, w1f, w2f)

    # Drop padded pool windows; tiny layout transpose back to PyTorch NCW.
    return jnp.transpose(out[:, :POOL_OUT, :], (0, 2, 1))


def _reference(x_ncw, w1_oik, w2_oik):
    """Pure-JAX reference matching the PyTorch forward (training-mode BN)."""
    dn = ("NCH", "OIH", "NCH")
    hp = lax.Precision.HIGHEST
    y1 = lax.conv_general_dilated(x_ncw, w1_oik, (1,), [(1, 1)],
                                  dimension_numbers=dn, precision=hp)
    m1 = y1.mean(axis=(0, 2), keepdims=True)
    v1 = y1.var(axis=(0, 2), keepdims=True)
    h1 = jnp.maximum((y1 - m1) / jnp.sqrt(v1 + BN_EPS), 0.0)
    y2 = lax.conv_general_dilated(h1, w2_oik, (1,), [(2, 2)],
                                  rhs_dilation=(2,), dimension_numbers=dn,
                                  precision=hp)
    m2 = y2.mean(axis=(0, 2), keepdims=True)
    v2 = y2.var(axis=(0, 2), keepdims=True)
    h2 = jnp.maximum((y2 - m2) / jnp.sqrt(v2 + BN_EPS), 0.0)
    B, C, L = h2.shape
    return h2.reshape(B, C, POOL_OUT, L // POOL_OUT).max(axis=-1)


def _xavier_uniform(key, shape):
    cout, cin, k = shape
    bound = (6.0 / (cin * k + cout * k)) ** 0.5
    return jax.random.uniform(key, shape, jnp.float32, -bound, bound)


if __name__ == "__main__":
    B, Cin, Cout = 2, 4, 8
    L = 2 * POOL_OUT  # 626 -> uniform pool windows of 2

    key = jax.random.PRNGKey(0)
    kx, k1, k2 = jax.random.split(key, 3)
    x = jax.random.normal(kx, (B, Cin, L), jnp.float32)       # NCW input
    w1 = _xavier_uniform(k1, (Cout, Cin, 3))                   # conv1 weight
    w2 = _xavier_uniform(k2, (Cout, Cout, 3))                  # conv2 weight

    ref = _reference(x, w1, w2)

    # Structural check: f32 MXU path, 5 L-tiles (exercises halo / ragged tile / BN).
    out32 = jax.block_until_ready(
        conv_pre_wav_block(x, w1, w2, max_tile_cols=128,
                           compute_dtype=jnp.float32))
    assert out32.shape == (B, Cout, POOL_OUT), out32.shape
    assert jnp.allclose(out32, ref, atol=2e-2, rtol=2e-2), float(
        jnp.max(jnp.abs(out32 - ref)))

    # Fast path: bf16 MXU operands, f32 accumulation (looser, bf16-level tolerance).
    out16 = jax.block_until_ready(
        conv_pre_wav_block(x, w1, w2, max_tile_cols=128))
    assert out16.shape == (B, Cout, POOL_OUT), out16.shape
    assert jnp.allclose(out16, ref, atol=1e-1, rtol=1e-1), float(
        jnp.max(jnp.abs(out16 - ref)))

    print("KERNEL_OK")
</pallas_src>

<mosaic_0001>
module attributes {stable_mosaic.version = 11 : i64} {
  func.func @kernel(%arg0: i32, %arg1: i32, %arg2: memref<1x2x144x4xf32, #tpu.memory_space<vmem>>, %arg3: memref<12x8xf32, #tpu.memory_space<vmem>>, %arg4: memref<24x8xf32, #tpu.memory_space<vmem>>, %arg5: memref<2x320x8xf32, #tpu.memory_space<vmem>>, %arg6: memref<1x8xf32, #tpu.memory_space<vmem>>, %arg7: memref<1x8xf32, #tpu.memory_space<vmem>>, %arg8: memref<1x8xf32, #tpu.memory_space<vmem>>, %arg9: memref<1x8xf32, #tpu.memory_space<vmem>>, %arg10: memref<12x8xf32, #tpu.memory_space<vmem>>, %arg11: memref<1x8xf32, #tpu.memory_space<vmem>>) attributes {dimension_semantics = [#tpu.dimension_semantics<arbitrary>, #tpu.dimension_semantics<arbitrary>], iteration_bounds = array<i64: 2, 5>, scalar_prefetch = 0 : i64, scratch_operands = 6 : i64, tpu.core_type = #tpu.core_type<tc>, window_params = [{transform_indices = @transform_0, window_bounds = array<i64: 1, 2, 144, 4>}, {pipeline_mode = #tpu.pipeline_mode<synchronous>, transform_indices = @transform_1, window_bounds = array<i64: 12, 8>}, {pipeline_mode = #tpu.pipeline_mode<synchronous>, transform_indices = @transform_2, window_bounds = array<i64: 24, 8>}, {pipeline_mode = #tpu.pipeline_mode<synchronous>, transform_indices = @transform_3, window_bounds = array<i64: 2, 320, 8>}]} {
    %c128_i32 = arith.constant 128 : i32
    %0 = arith.muli %arg1, %c128_i32 : i32
    %c626_i32 = arith.constant 626 : i32
    %1 = arith.subi %c626_i32, %0 : i32
    %c128_i32_0 = arith.constant 128 : i32
    %2 = arith.minsi %1, %c128_i32_0 : i32
    %c2_i32 = arith.constant 2 : i32
    %3 = arith.muli %c2_i32, %2 : i32
    %4 = arith.sitofp %3 : i32 to f32
    %c256_i32 = arith.constant 256 : i32
    %5 = arith.muli %c256_i32, %arg1 : i32
    %6 = arith.sitofp %5 : i32 to f32
    %c0 = arith.constant 0 : index
    %c0_1 = arith.constant 0 : index
    %c0_2 = arith.constant 0 : index
    %c0_3 = arith.constant 0 : index
    %7 = vector.load %arg2[%c0, %c0_1, %c0_2, %c0_3] : memref<1x2x144x4xf32, #tpu.memory_space<vmem>>, vector<1x2x144x4xf32>
    %8 = vector.shape_cast %7 : vector<1x2x144x4xf32> to vector<2x144x4xf32>
    %9 = tpu.iota {dimensions = array<i32: 1>} : vector<1x128x1xi32>
    %c128_i32_4 = arith.constant 128 : i32
    %10 = arith.muli %arg1, %c128_i32_4 : i32
    %11 = vector.broadcast %10 : i32 to vector<1x128x1xi32>
    %12 = arith.addi %11, %9 : vector<1x128x1xi32>
    %c626_i32_5 = arith.constant 626 : i32
    %13 = vector.broadcast %c626_i32_5 : i32 to vector<1x128x1xi32>
    %14 = arith.cmpi slt, %12, %13 : vector<1x128x1xi32>
    %c0_i32 = arith.constant 0 : i32
    %15 = arith.cmpi eq, %arg0, %c0_i32 : i32
    %c0_i32_6 = arith.constant 0 : i32
    %16 = arith.cmpi eq, %arg1, %c0_i32_6 : i32
    %17 = arith.andi %15, %16 : i1
    %18 = arith.extui %17 : i1 to i32
    %c0_i32_7 = arith.constant 0 : i32
    %19 = arith.cmpi ne, %18, %c0_i32_7 : i32
    scf.if %19 {
      %cst = arith.constant 0.000000e+00 : f32
      %36 = vector.broadcast %cst : f32 to vector<1x8xf32>
      %c0_16 = arith.constant 0 : index
      %c0_17 = arith.constant 0 : index
      %37 = vector.load %arg6[%c0_16, %c0_17] : memref<1x8xf32, #tpu.memory_space<vmem>>, vector<1x8xf32>
      tpu.vector_store %arg6[%c0_16, %c0_17], %36 {strides = array<i32>} : memref<1x8xf32, #tpu.memory_space<vmem>>, vector<1x8xf32>,
      %cst_18 = arith.constant 0.000000e+00 : f32
      %38 = vector.broadcast %cst_18 : f32 to vector<1x8xf32>
      %c0_19 = arith.constant 0 : index
      %c0_20 = arith.constant 0 : index
      %39 = vector.load %arg7[%c0_19, %c0_20] : memref<1x8xf32, #tpu.memory_space<vmem>>, vector<1x8xf32>
      tpu.vector_store %arg7[%c0_19, %c0_20], %38 {strides = array<i32>} : memref<1x8xf32, #tpu.memory_space<vmem>>, vector<1x8xf32>,
      %cst_21 = arith.constant 0.000000e+00 : f32
      %40 = vector.broadcast %cst_21 : f32 to vector<1x8xf32>
      %c0_22 = arith.constant 0 : index
      %c0_23 = arith.constant 0 : index
      %41 = vector.load %arg8[%c0_22, %c0_23] : memref<1x8xf32, #tpu.memory_space<vmem>>, vector<1x8xf32>
      tpu.vector_store %arg8[%c0_22, %c0_23], %40 {strides = array<i32>} : memref<1x8xf32, #tpu.memory_space<vmem>>, vector<1x8xf32>,
      %cst_24 = arith.constant 0.000000e+00 : f32
      %42 = vector.broadcast %cst_24 : f32 to vector<1x8xf32>
      %c0_25 = arith.constant 0 : index
      %c0_26 = arith.constant 0 : index
      %43 = vector.load %arg9[%c0_25, %c0_26] : memref<1x8xf32, #tpu.memory_space<vmem>>, vector<1x8xf32>
      tpu.vector_store %arg9[%c0_25, %c0_26], %42 {strides = array<i32>} : memref<1x8xf32, #tpu.memory_space<vmem>>, vector<1x8xf32>,
    } else {
    }
    %c0_i32_8 = arith.constant 0 : i32
    %20 = arith.cmpi eq, %arg0, %c0_i32_8 : i32
    %21 = arith.extui %20 : i1 to i32
    %c0_i32_9 = arith.constant 0 : i32
    %22 = arith.cmpi ne, %21, %c0_i32_9 : i32
    scf.if %22 {
      %c0_16 = arith.constant 0 : index
      %c0_17 = arith.constant 0 : index
      %36 = vector.load %arg3[%c0_16, %c0_17] : memref<12x8xf32, #tpu.memory_space<vmem>>, vector<12x8xf32>
      %37 = vector.extract_strided_slice %8 {offsets = [0, 7, 0], sizes = [2, 128, 4], strides = [1, 1, 1]} : vector<2x144x4xf32> to vector<2x128x4xf32>
      %38 = vector.shape_cast %37 : vector<2x128x4xf32> to vector<256x4xf32>
      %39 = vector.extract_strided_slice %36 {offsets = [0, 0], sizes = [4, 8], strides = [1, 1]} : vector<12x8xf32> to vector<4x8xf32>
      %cst = arith.constant dense<0.000000e+00> : vector<256x8xf32>
      %40 = tpu.matmul %38, %39, %cst {dimension_numbers = #tpu.dot_dimension_numbers<[1], [0], [0], [1], [0, 0, 1, 1], [], []>} : vector<256x4xf32>, vector<4x8xf32>, vector<256x8xf32> -> vector<256x8xf32>
      %41 = vector.extract_strided_slice %8 {offsets = [0, 8, 0], sizes = [2, 128, 4], strides = [1, 1, 1]} : vector<2x144x4xf32> to vector<2x128x4xf32>
      %42 = vector.shape_cast %41 : vector<2x128x4xf32> to vector<256x4xf32>
      %43 = vector.extract_strided_slice %36 {offsets = [4, 0], sizes = [4, 8], strides = [1, 1]} : vector<12x8xf32> to vector<4x8xf32>
      %cst_18 = arith.constant dense<0.000000e+00> : vector<256x8xf32>
      %44 = tpu.matmul %42, %43, %cst_18 {dimension_numbers = #tpu.dot_dimension_numbers<[1], [0], [0], [1], [0, 0, 1, 1], [], []>} : vector<256x4xf32>, vector<4x8xf32>, vector<256x8xf32> -> vector<256x8xf32>
      %45 = arith.addf %40, %44 : vector<256x8xf32>
      %46 = vector.extract_strided_slice %8 {offsets = [0, 9, 0], sizes = [2, 128, 4], strides = [1, 1, 1]} : vector<2x144x4xf32> to vector<2x128x4xf32>
      %47 = vector.shape_cast %46 : vector<2x128x4xf32> to vector<256x4xf32>
      %48 = vector.extract_strided_slice %36 {offsets = [8, 0], sizes = [4, 8], strides = [1, 1]} : vector<12x8xf32> to vector<4x8xf32>
      %cst_19 = arith.constant dense<0.000000e+00> : vector<256x8xf32>
      %49 = tpu.matmul %47, %48, %cst_19 {dimension_numbers = #tpu.dot_dimension_numbers<[1], [0], [0], [1], [0, 0, 1, 1], [], []>} : vector<256x4xf32>, vector<4x8xf32>, vector<256x8xf32> -> vector<256x8xf32>
      %50 = arith.addf %45, %49 : vector<256x8xf32>
      %51 = vector.shape_cast %50 : vector<256x8xf32> to vector<2x128x8xf32>
      %cst_20 = arith.constant 0.000000e+00 : f32
      %52 = vector.shape_cast %14 : vector<1x128x1xi1> to vector<1x128x1xi1>
      %53 = vector.broadcast %52 : vector<1x128x1xi1> to vector<2x128x8xi1>
      %54 = vector.broadcast %cst_20 : f32 to vector<2x128x8xf32>
      %55 = arith.select %53, %51, %54 : vector<2x128x8xi1>, vector<2x128x8xf32>
      %cst_21 = arith.constant dense<0.000000e+00> : vector<8xf32>
      %56 = vector.multi_reduction <add>, %55, %cst_21 [0, 1] : vector<2x128x8xf32> to vector<8xf32>
      %57 = vector.shape_cast %56 : vector<8xf32> to vector<1x1x8xf32>
      %58 = vector.broadcast %4 : f32 to vector<1x1x8xf32>
      %59 = arith.divf %57, %58 : vector<1x1x8xf32>
      %60 = vector.shape_cast %59 : vector<1x1x8xf32> to vector<1x8xf32>
      %61 = vector.shape_cast %60 : vector<1x8xf32> to vector<1x1x8xf32>
      %62 = vector.broadcast %61 : vector<1x1x8xf32> to vector<2x128x8xf32>
      %63 = arith.subf %51, %62 : vector<2x128x8xf32>
      %cst_22 = arith.constant 0.000000e+00 : f32
      %64 = vector.shape_cast %14 : vector<1x128x1xi1> to vector<1x128x1xi1>
      %65 = vector.broadcast %64 : vector<1x128x1xi1> to vector<2x128x8xi1>
      %66 = vector.broadcast %cst_22 : f32 to vector<2x128x8xf32>
      %67 = arith.select %65, %63, %66 : vector<2x128x8xi1>, vector<2x128x8xf32>
      %68 = arith.mulf %67, %67 : vector<2x128x8xf32>
      %cst_23 = arith.constant dense<0.000000e+00> : vector<8xf32>
      %69 = vector.multi_reduction <add>, %68, %cst_23 [0, 1] : vector<2x128x8xf32> to vector<8xf32>
      %70 = vector.shape_cast %69 : vector<8xf32> to vector<1x1x8xf32>
      %71 = vector.shape_cast %70 : vector<1x1x8xf32> to vector<1x8xf32>
      %72 = arith.addf %6, %4 : f32
      %c0_24 = arith.constant 0 : index
      %c0_25 = arith.constant 0 : index
      %73 = vector.load %arg6[%c0_24, %c0_25] : memref<1x8xf32, #tpu.memory_space<vmem>>, vector<1x8xf32>
      %74 = arith.subf %60, %73 : vector<1x8xf32>
      %c0_26 = arith.constant 0 : index
      %c0_27 = arith.constant 0 : index
      %75 = vector.load %arg6[%c0_26, %c0_27] : memref<1x8xf32, #tpu.memory_space<vmem>>, vector<1x8xf32>
      %76 = arith.divf %4, %72 : f32
      %77 = vector.broadcast %76 : f32 to vector<1x8xf32>
      %78 = arith.mulf %74, %77 : vector<1x8xf32>
      %79 = arith.addf %75, %78 : vector<1x8xf32>
      %c0_28 = arith.constant 0 : index
      %c0_29 = arith.constant 0 : index
      %80 = vector.load %arg6[%c0_28, %c0_29] : memref<1x8xf32, #tpu.memory_space<vmem>>, vector<1x8xf32>
      tpu.vector_store %arg6[%c0_28, %c0_29], %79 {strides = array<i32>} : memref<1x8xf32, #tpu.memory_space<vmem>>, vector<1x8xf32>,
      %c0_30 = arith.constant 0 : index
      %c0_31 = arith.constant 0 : index
      %81 = vector.load %arg7[%c0_30, %c0_31] : memref<1x8xf32, #tpu.memory_space<vmem>>, vector<1x8xf32>
      %82 = arith.addf %81, %71 : vector<1x8xf32>
      %83 = arith.mulf %74, %74 : vector<1x8xf32>
      %84 = arith.mulf %6, %4 : f32
      %85 = arith.divf %84, %72 : f32
      %86 = vector.broadcast %85 : f32 to vector<1x8xf32>
      %87 = arith.mulf %83, %86 : vector<1x8xf32>
      %88 = arith.addf %82, %87 : vector<1x8xf32>
      %c0_32 = arith.constant 0 : index
      %c0_33 = arith.constant 0 : index
      %89 = vector.load %arg7[%c0_32, %c0_33] : memref<1x8xf32, #tpu.memory_space<vmem>>, vector<1x8xf32>
      tpu.vector_store %arg7[%c0_32, %c0_33], %88 {strides = array<i32>} : memref<1x8xf32, #tpu.memory_space<vmem>>, vector<1x8xf32>,
    } else {
    }
    %c1_i32 = arith.constant 1 : i32
    %23 = arith.cmpi eq, %arg0, %c1_i32 : i32
    %c0_i32_10 = arith.constant 0 : i32
    %24 = arith.cmpi eq, %arg1, %c0_i32_10 : i32
    %25 = arith.andi %23, %24 : i1
    %26 = arith.extui %25 : i1 to i32
    %c0_i32_11 = arith.constant 0 : i32
    %27 = arith.cmpi ne, %26, %c0_i32_11 : i32
    scf.if %27 {
      %c0_16 = arith.constant 0 : index
      %c0_17 = arith.constant 0 : index
      %36 = vector.load %arg7[%c0_16, %c0_17] : memref<1x8xf32, #tpu.memory_space<vmem>>, vector<1x8xf32>
      %cst = arith.constant 1.252000e+03 : f32
      %37 = vector.broadcast %cst : f32 to vector<1x8xf32>
      %38 = arith.divf %36, %37 : vector<1x8xf32>
      %cst_18 = arith.constant 9.99999974E-6 : f32
      %39 = vector.broadcast %cst_18 : f32 to vector<1x8xf32>
      %40 = arith.addf %38, %39 : vector<1x8xf32>
      %41 = math.rsqrt %40 : vector<1x8xf32>
      %c0_19 = arith.constant 0 : index
      %c0_20 = arith.constant 0 : index
      %42 = vector.load %arg3[%c0_19, %c0_20] : memref<12x8xf32, #tpu.memory_space<vmem>>, vector<12x8xf32>
      %43 = vector.broadcast %41 : vector<1x8xf32> to vector<12x8xf32>
      %44 = arith.mulf %42, %43 : vector<12x8xf32>
      %c0_21 = arith.constant 0 : index
      %c0_22 = arith.constant 0 : index
      %45 = vector.load %arg10[%c0_21, %c0_22] : memref<12x8xf32, #tpu.memory_space<vmem>>, vector<12x8xf32>
      tpu.vector_store %arg10[%c0_21, %c0_22], %44 {strides = array<i32>} : memref<12x8xf32, #tpu.memory_space<vmem>>, vector<12x8xf32>,
      %c0_23 = arith.constant 0 : index
      %c0_24 = arith.constant 0 : index
      %46 = vector.load %arg6[%c0_23, %c0_24] : memref<1x8xf32, #tpu.memory_space<vmem>>, vector<1x8xf32>
      %47 = arith.mulf %46, %41 : vector<1x8xf32>
      %c0_25 = arith.constant 0 : index
      %c0_26 = arith.constant 0 : index
      %48 = vector.load %arg11[%c0_25, %c0_26] : memref<1x8xf32, #tpu.memory_space<vmem>>, vector<1x8xf32>
      tpu.vector_store %arg11[%c0_25, %c0_26], %47 {strides = array<i32>} : memref<1x8xf32, #tpu.memory_space<vmem>>, vector<1x8xf32>,
    } else {
    }
    %c1_i32_12 = arith.constant 1 : i32
    %28 = arith.cmpi eq, %arg0, %c1_i32_12 : i32
    %29 = arith.extui %28 : i1 to i32
    %c0_i32_13 = arith.constant 0 : i32
    %30 = arith.cmpi ne, %29, %c0_i32_13 : i32
    scf.if %30 {
      %c0_16 = arith.constant 0 : index
      %c0_17 = arith.constant 0 : index
      %36 = vector.load %arg10[%c0_16, %c0_17] : memref<12x8xf32, #tpu.memory_space<vmem>>, vector<12x8xf32>
      %37 = vector.extract_strided_slice %8 {offsets = [0, 5, 0], sizes = [2, 136, 4], strides = [1, 1, 1]} : vector<2x144x4xf32> to vector<2x136x4xf32>
      %38 = vector.shape_cast %37 : vector<2x136x4xf32> to vector<272x4xf32>
      %39 = vector.extract_strided_slice %36 {offsets = [0, 0], sizes = [4, 8], strides = [1, 1]} : vector<12x8xf32> to vector<4x8xf32>
      %cst = arith.constant dense<0.000000e+00> : vector<272x8xf32>
      %40 = tpu.matmul %38, %39, %cst {dimension_numbers = #tpu.dot_dimension_numbers<[1], [0], [0], [1], [0, 0, 1, 1], [], []>} : vector<272x4xf32>, vector<4x8xf32>, vector<272x8xf32> -> vector<272x8xf32>
      %41 = vector.extract_strided_slice %8 {offsets = [0, 6, 0], sizes = [2, 136, 4], strides = [1, 1, 1]} : vector<2x144x4xf32> to vector<2x136x4xf32>
      %42 = vector.shape_cast %41 : vector<2x136x4xf32> to vector<272x4xf32>
      %43 = vector.extract_strided_slice %36 {offsets = [4, 0], sizes = [4, 8], strides = [1, 1]} : vector<12x8xf32> to vector<4x8xf32>
      %cst_18 = arith.constant dense<0.000000e+00> : vector<272x8xf32>
      %44 = tpu.matmul %42, %43, %cst_18 {dimension_numbers = #tpu.dot_dimension_numbers<[1], [0], [0], [1], [0, 0, 1, 1], [], []>} : vector<272x4xf32>, vector<4x8xf32>, vector<272x8xf32> -> vector<272x8xf32>
      %45 = arith.addf %40, %44 : vector<272x8xf32>
      %46 = vector.extract_strided_slice %8 {offsets = [0, 7, 0], sizes = [2, 136, 4], strides = [1, 1, 1]} : vector<2x144x4xf32> to vector<2x136x4xf32>
      %47 = vector.shape_cast %46 : vector<2x136x4xf32> to vector<272x4xf32>
      %48 = vector.extract_strided_slice %36 {offsets = [8, 0], sizes = [4, 8], strides = [1, 1]} : vector<12x8xf32> to vector<4x8xf32>
      %cst_19 = arith.constant dense<0.000000e+00> : vector<272x8xf32>
      %49 = tpu.matmul %47, %48, %cst_19 {dimension_numbers = #tpu.dot_dimension_numbers<[1], [0], [0], [1], [0, 0, 1, 1], [], []>} : vector<272x4xf32>, vector<4x8xf32>, vector<272x8xf32> -> vector<272x8xf32>
      %50 = arith.addf %45, %49 : vector<272x8xf32>
      %51 = vector.shape_cast %50 : vector<272x8xf32> to vector<2x136x8xf32>
      %52 = tpu.iota {dimensions = array<i32: 1>} : vector<1x136x1xi32>
      %c128_i32_20 = arith.constant 128 : i32
      %53 = arith.muli %arg1, %c128_i32_20 : i32
      %54 = vector.broadcast %53 : i32 to vector<1x136x1xi32>
      %55 = arith.addi %54, %52 : vector<1x136x1xi32>
      %c2_i32_21 = arith.constant 2 : i32
      %56 = vector.broadcast %c2_i32_21 : i32 to vector<1x136x1xi32>
      %57 = arith.subi %55, %56 : vector<1x136x1xi32>
      %c0_i32_22 = arith.constant 0 : i32
      %58 = vector.broadcast %c0_i32_22 : i32 to vector<1x136x1xi32>
      %59 = arith.cmpi sge, %57, %58 : vector<1x136x1xi32>
      %c626_i32_23 = arith.constant 626 : i32
      %60 = vector.broadcast %c626_i32_23 : i32 to vector<1x136x1xi32>
      %61 = arith.cmpi slt, %57, %60 : vector<1x136x1xi32>
      %62 = arith.andi %59, %61 : vector<1x136x1xi1>
      %c0_24 = arith.constant 0 : index
      %c0_25 = arith.constant 0 : index
      %63 = vector.load %arg11[%c0_24, %c0_25] : memref<1x8xf32, #tpu.memory_space<vmem>>, vector<1x8xf32>
      %64 = vector.shape_cast %63 : vector<1x8xf32> to vector<1x1x8xf32>
      %65 = vector.broadcast %64 : vector<1x1x8xf32> to vector<2x136x8xf32>
      %66 = arith.subf %51, %65 : vector<2x136x8xf32>
      %cst_26 = arith.constant 0.000000e+00 : f32
      %67 = vector.broadcast %cst_26 : f32 to vector<2x136x8xf32>
      %68 = arith.maximumf %66, %67 : vector<2x136x8xf32>
      %cst_27 = arith.constant 0.000000e+00 : f32
      %69 = vector.shape_cast %62 : vector<1x136x1xi1> to vector<1x136x1xi1>
      %70 = vector.broadcast %69 : vector<1x136x1xi1> to vector<2x136x8xi1>
      %71 = vector.broadcast %cst_27 : f32 to vector<2x136x8xf32>
      %72 = arith.select %70, %68, %71 : vector<2x136x8xi1>, vector<2x136x8xf32>
      %c0_28 = arith.constant 0 : index
      %c0_29 = arith.constant 0 : index
      %73 = vector.load %arg4[%c0_28, %c0_29] : memref<24x8xf32, #tpu.memory_space<vmem>>, vector<24x8xf32>
      %74 = vector.extract_strided_slice %72 {offsets = [0, 0, 0], sizes = [2, 128, 8], strides = [1, 1, 1]} : vector<2x136x8xf32> to vector<2x128x8xf32>
      %75 = vector.shape_cast %74 : vector<2x128x8xf32> to vector<256x8xf32>
      %76 = vector.extract_strided_slice %73 {offsets = [0, 0], sizes = [8, 8], strides = [1, 1]} : vector<24x8xf32> to vector<8x8xf32>
      %cst_30 = arith.constant dense<0.000000e+00> : vector<256x8xf32>
      %77 = tpu.matmul %75, %76, %cst_30 {dimension_numbers = #tpu.dot_dimension_numbers<[1], [0], [0], [1], [0, 0, 1, 1], [], []>} : vector<256x8xf32>, vector<8x8xf32>, vector<256x8xf32> -> vector<256x8xf32>
      %78 = vector.extract_strided_slice %72 {offsets = [0, 2, 0], sizes = [2, 128, 8], strides = [1, 1, 1]} : vector<2x136x8xf32> to vector<2x128x8xf32>
      %79 = vector.shape_cast %78 : vector<2x128x8xf32> to vector<256x8xf32>
      %80 = vector.extract_strided_slice %73 {offsets = [8, 0], sizes = [8, 8], strides = [1, 1]} : vector<24x8xf32> to vector<8x8xf32>
      %cst_31 = arith.constant dense<0.000000e+00> : vector<256x8xf32>
      %81 = tpu.matmul %79, %80, %cst_31 {dimension_numbers = #tpu.dot_dimension_numbers<[1], [0], [0], [1], [0, 0, 1, 1], [], []>} : vector<256x8xf32>, vector<8x8xf32>, vector<256x8xf32> -> vector<256x8xf32>
      %82 = arith.addf %77, %81 : vector<256x8xf32>
      %83 = vector.extract_strided_slice %72 {offsets = [0, 4, 0], sizes = [2, 128, 8], strides = [1, 1, 1]} : vector<2x136x8xf32> to vector<2x128x8xf32>
      %84 = vector.shape_cast %83 : vector<2x128x8xf32> to vector<256x8xf32>
      %85 = vector.extract_strided_slice %73 {offsets = [16, 0], sizes = [8, 8], strides = [1, 1]} : vector<24x8xf32> to vector<8x8xf32>
      %cst_32 = arith.constant dense<0.000000e+00> : vector<256x8xf32>
      %86 = tpu.matmul %84, %85, %cst_32 {dimension_numbers = #tpu.dot_dimension_numbers<[1], [0], [0], [1], [0, 0, 1, 1], [], []>} : vector<256x8xf32>, vector<8x8xf32>, vector<256x8xf32> -> vector<256x8xf32>
      %87 = arith.addf %82, %86 : vector<256x8xf32>
      %88 = vector.shape_cast %87 : vector<256x8xf32> to vector<2x128x8xf32>
      %cst_33 = arith.constant 0.000000e+00 : f32
      %89 = vector.shape_cast %14 : vector<1x128x1xi1> to vector<1x128x1xi1>
      %90 = vector.broadcast %89 : vector<1x128x1xi1> to vector<2x128x8xi1>
      %91 = vector.broadcast %cst_33 : f32 to vector<2x128x8xf32>
      %92 = arith.select %90, %88, %91 : vector<2x128x8xi1>, vector<2x128x8xf32>
      %cst_34 = arith.constant dense<0.000000e+00> : vector<8xf32>
      %93 = vector.multi_reduction <add>, %92, %cst_34 [0, 1] : vector<2x128x8xf32> to vector<8xf32>
      %94 = vector.shape_cast %93 : vector<8xf32> to vector<1x1x8xf32>
      %95 = vector.broadcast %4 : f32 to vector<1x1x8xf32>
      %96 = arith.divf %94, %95 : vector<1x1x8xf32>
      %97 = vector.shape_cast %96 : vector<1x1x8xf32> to vector<1x8xf32>
      %98 = vector.shape_cast %97 : vector<1x8xf32> to vector<1x1x8xf32>
      %99 = vector.broadcast %98 : vector<1x1x8xf32> to vector<2x128x8xf32>
      %100 = arith.subf %88, %99 : vector<2x128x8xf32>
      %cst_35 = arith.constant 0.000000e+00 : f32
      %101 = vector.shape_cast %14 : vector<1x128x1xi1> to vector<1x128x1xi1>
      %102 = vector.broadcast %101 : vector<1x128x1xi1> to vector<2x128x8xi1>
      %103 = vector.broadcast %cst_35 : f32 to vector<2x128x8xf32>
      %104 = arith.select %102, %100, %103 : vector<2x128x8xi1>, vector<2x128x8xf32>
      %105 = arith.mulf %104, %104 : vector<2x128x8xf32>
      %cst_36 = arith.constant dense<0.000000e+00> : vector<8xf32>
      %106 = vector.multi_reduction <add>, %105, %cst_36 [0, 1] : vector<2x128x8xf32> to vector<8xf32>
      %107 = vector.shape_cast %106 : vector<8xf32> to vector<1x1x8xf32>
      %108 = vector.shape_cast %107 : vector<1x1x8xf32> to vector<1x8xf32>
      %109 = arith.addf %6, %4 : f32
      %c0_37 = arith.constant 0 : index
      %c0_38 = arith.constant 0 : index
      %110 = vector.load %arg8[%c0_37, %c0_38] : memref<1x8xf32, #tpu.memory_space<vmem>>, vector<1x8xf32>
      %111 = arith.subf %97, %110 : vector<1x8xf32>
      %c0_39 = arith.constant 0 : index
      %c0_40 = arith.constant 0 : index
      %112 = vector.load %arg8[%c0_39, %c0_40] : memref<1x8xf32, #tpu.memory_space<vmem>>, vector<1x8xf32>
      %113 = arith.divf %4, %109 : f32
      %114 = vector.broadcast %113 : f32 to vector<1x8xf32>
      %115 = arith.mulf %111, %114 : vector<1x8xf32>
      %116 = arith.addf %112, %115 : vector<1x8xf32>
      %c0_41 = arith.constant 0 : index
      %c0_42 = arith.constant 0 : index
      %117 = vector.load %arg8[%c0_41, %c0_42] : memref<1x8xf32, #tpu.memory_space<vmem>>, vector<1x8xf32>
      tpu.vector_store %arg8[%c0_41, %c0_42], %116 {strides = array<i32>} : memref<1x8xf32, #tpu.memory_space<vmem>>, vector<1x8xf32>,
      %c0_43 = arith.constant 0 : index
      %c0_44 = arith.constant 0 : index
      %118 = vector.load %arg9[%c0_43, %c0_44] : memref<1x8xf32, #tpu.memory_space<vmem>>, vector<1x8xf32>
      %119 = arith.addf %118, %108 : vector<1x8xf32>
      %120 = arith.mulf %111, %111 : vector<1x8xf32>
      %121 = arith.mulf %6, %4 : f32
      %122 = arith.divf %121, %109 : f32
      %123 = vector.broadcast %122 : f32 to vector<1x8xf32>
      %124 = arith.mulf %120, %123 : vector<1x8xf32>
      %125 = arith.addf %119, %124 : vector<1x8xf32>
      %c0_45 = arith.constant 0 : index
      %c0_46 = arith.constant 0 : index
      %126 = vector.load %arg9[%c0_45, %c0_46] : memref<1x8xf32, #tpu.memory_space<vmem>>, vector<1x8xf32>
      tpu.vector_store %arg9[%c0_45, %c0_46], %125 {strides = array<i32>} : memref<1x8xf32, #tpu.memory_space<vmem>>, vector<1x8xf32>,
      %127 = vector.shape_cast %88 : vector<2x128x8xf32> to vector<2x64x2x8xf32>
      %cst_47 = arith.constant dense<0xFF800000> : vector<2x64x8xf32>
      %128 = vector.multi_reduction <maximumf>, %127, %cst_47 [2] : vector<2x64x2x8xf32> to vector<2x64x8xf32>
      %c64_i32 = arith.constant 64 : i32
      %129 = arith.muli %arg1, %c64_i32 : i32
      %130 = tpu.assume_multiple %129, 8 : i32
      %c0_48 = arith.constant 0 : index
      %131 = arith.index_cast %130 : i32 to index
      %c0_49 = arith.constant 0 : index
      %132 = vector.load %arg5[%c0_48, %131, %c0_49] : memref<2x320x8xf32, #tpu.memory_space<vmem>>, vector<2x64x8xf32>
      tpu.vector_store %arg5[%c0_48, %131, %c0_49], %128 {strides = array<i32>} : memref<2x320x8xf32, #tpu.memory_space<vmem>>, vector<2x64x8xf32>,
    } else {
    }
    %c1_i32_14 = arith.constant 1 : i32
    %31 = arith.cmpi eq, %arg0, %c1_i32_14 : i32
    %c4_i32 = arith.constant 4 : i32
    %32 = arith.cmpi eq, %arg1, %c4_i32 : i32
    %33 = arith.andi %31, %32 : i1
    %34 = arith.extui %33 : i1 to i32
    %c0_i32_15 = arith.constant 0 : i32
    %35 = arith.cmpi ne, %34, %c0_i32_15 : i32
    scf.if %35 {
      %c0_16 = arith.constant 0 : index
      %c0_17 = arith.constant 0 : index
      %36 = vector.load %arg9[%c0_16, %c0_17] : memref<1x8xf32, #tpu.memory_space<vmem>>, vector<1x8xf32>
      %cst = arith.constant 1.252000e+03 : f32
      %37 = vector.broadcast %cst : f32 to vector<1x8xf32>
      %38 = arith.divf %36, %37 : vector<1x8xf32>
      %cst_18 = arith.constant 9.99999974E-6 : f32
      %39 = vector.broadcast %cst_18 : f32 to vector<1x8xf32>
      %40 = arith.addf %38, %39 : vector<1x8xf32>
      %41 = math.rsqrt %40 : vector<1x8xf32>
      %c0_19 = arith.constant 0 : index
      %c0_20 = arith.constant 0 : index
      %42 = vector.load %arg8[%c0_19, %c0_20] : memref<1x8xf32, #tpu.memory_space<vmem>>, vector<1x8xf32>
      %43 = arith.mulf %42, %41 : vector<1x8xf32>
      %c0_21 = arith.constant 0 : index
      %c0_22 = arith.constant 0 : index
      %c0_23 = arith.constant 0 : index
      %44 = vector.load %arg5[%c0_21, %c0_22, %c0_23] : memref<2x320x8xf32, #tpu.memory_space<vmem>>, vector<2x320x8xf32>
      %45 = vector.shape_cast %41 : vector<1x8xf32> to vector<1x1x8xf32>
      %46 = vector.broadcast %45 : vector<1x1x8xf32> to vector<2x320x8xf32>
      %47 = arith.mulf %44, %46 : vector<2x320x8xf32>
      %48 = vector.shape_cast %43 : vector<1x8xf32> to vector<1x1x8xf32>
      %49 = vector.broadcast %48 : vector<1x1x8xf32> to vector<2x320x8xf32>
      %50 = arith.subf %47, %49 : vector<2x320x8xf32>
      %cst_24 = arith.constant 0.000000e+00 : f32
      %51 = vector.broadcast %cst_24 : f32 to vector<2x320x8xf32>
      %52 = arith.maximumf %50, %51 : vector<2x320x8xf32>
      %c0_25 = arith.constant 0 : index
      %c0_26 = arith.constant 0 : index
      %c0_27 = arith.constant 0 : index
      %53 = vector.load %arg5[%c0_25, %c0_26, %c0_27] : memref<2x320x8xf32, #tpu.memory_space<vmem>>, vector<2x320x8xf32>
      tpu.vector_store %arg5[%c0_25, %c0_26, %c0_27], %52 {strides = array<i32>} : memref<2x320x8xf32, #tpu.memory_space<vmem>>, vector<2x320x8xf32>,
    } else {
    }
    return
  }
  func.func @transform_0(%arg0: i32, %arg1: i32) -> (i32, i32, i32, i32) {
    %c0_i32 = arith.constant 0 : i32
    %c0_i32_0 = arith.constant 0 : i32
    %c0_i32_1 = arith.constant 0 : i32
    %c0_i32_2 = arith.constant 0 : i32
    return %arg1, %c0_i32, %c0_i32_0, %c0_i32_1 : i32, i32, i32, i32
  }
  func.func @transform_1(%arg0: i32, %arg1: i32) -> (i32, i32) {
    %c0_i32 = arith.constant 0 : i32
    %c0_i32_0 = arith.constant 0 : i32
    %c0_i32_1 = arith.constant 0 : i32
    return %c0_i32, %c0_i32_0 : i32, i32
  }
  func.func @transform_2(%arg0: i32, %arg1: i32) -> (i32, i32) {
    %c0_i32 = arith.constant 0 : i32
    %c0_i32_0 = arith.constant 0 : i32
    %c0_i32_1 = arith.constant 0 : i32
    return %c0_i32, %c0_i32_0 : i32, i32
  }
  func.func @transform_3(%arg0: i32, %arg1: i32) -> (i32, i32, i32) {
    %c0_i32 = arith.constant 0 : i32
    %c0_i32_0 = arith.constant 0 : i32
    %c0_i32_1 = arith.constant 0 : i32
    %c0_i32_2 = arith.constant 0 : i32
    return %c0_i32, %c0_i32_0, %c0_i32_1 : i32, i32, i32
  }
}

</mosaic_0001>

<llo_original>
// kernel: conv_pre_wav_block.1
$region0: #{conv_pre_wav_block.1}
  #allocation0 [shape = 'u32[]', space=smem, size = 0x4, offset = 0x4, fixed_abs, tag = 'smem constant byte address 0x4 - core index']
  #allocation1 [shape = 'u32[144,128]{1,0:T(1,128)}', space=vmem, size = 0x12000, scoped, tag = 'internal scratch']
  #allocation2 [shape = 'f32[1,8]{1,0:T(1,128)}', space=vmem, size = 0x200, scoped, tag = 'scratch operand']
  #allocation3 [shape = 'f32[1,8]{1,0:T(1,128)}', space=vmem, size = 0x200, scoped, tag = 'scratch operand']
  #allocation4 [shape = 'f32[1,8]{1,0:T(1,128)}', space=vmem, size = 0x200, scoped, tag = 'scratch operand']
  #allocation5 [shape = 'f32[1,8]{1,0:T(1,128)}', space=vmem, size = 0x200, scoped, tag = 'scratch operand']
  #allocation6 [shape = 'f32[12,8]{1,0:T(8,128)}', space=vmem, size = 0x2000, scoped, tag = 'scratch operand']
  #allocation7 [shape = 'f32[1,8]{1,0:T(1,128)}', space=vmem, size = 0x200, scoped, tag = 'scratch operand']
  %s0 = inlined_call_operand.vmem [shape: f32[5,2,144,4], index: 0, kind: input, shape index: {}]
  %s1 = inlined_call_operand.vmem [shape: f32[12,8], index: 1, kind: input, shape index: {}]
  %s2 = inlined_call_operand.vmem [shape: f32[24,8], index: 2, kind: input, shape index: {}]
  %s3 = inlined_call_operand.vmem [shape: f32[2,320,8], index: 3, kind: output, shape index: {}]
  %s4 = sld [smem:[#allocation0]]
  $region65: #{conv_pre_wav_block.1} parent=0
    _
  %s6 = ssub.s32 1, %s4
  %s7 = scalar_select 0, %s6, %s4
  loop: start=0, step=1, limit=12
  $region2: #{conv_pre_wav_block.1} parent=0 // loop_pre_header
    _
  $region3: #{conv_pre_wav_block.1} parent=0 // loop_header
    %s9 = sphi 0, %s13
    %p10 = scmp.ge.s32.totalorder %s9, 12
    %s16 = sphi 0, %s28
    %s17 = sphi 0, %s24
    %s18 = sphi 0, %s16
    %s19 = sphi 0, %s17
    %s20 = sphi 0, %s18
    %s21 = sphi 0, %s19
    %s31 = sphi 0, %s33
    %s34 = sphi 0, %s31
    %s35 = sphi 0, %s34
    %s51 = sphi 0, %s35
    %s55 = sphi 0, %s55
    %s57 = sphi 0, %s55
    %s58 = sphi 0, %s57
    %s72 = sphi 0, %s58
    %s76 = sphi 0, %s76
    %s78 = sphi 0, %s76
    %s79 = sphi 0, %s78
    %s93 = sphi 0, %s79
    %s97 = sphi 0, %s97
    %s99 = sphi 0, %s97
    %s100 = sphi 0, %s99
    %s114 = sphi 0, %s100
  $region4: #{conv_pre_wav_block.1} parent=0 // loop_header_branch
    %12 = sbr.rel (%p10) target = $region8
  $region5: #{conv_pre_wav_block.1} parent=0 // loop_body
    %s14 = ssub.s32 %s9, 1
    %s15 = ssub.s32 %s9, 2
    %s22 = sadd.s32 1, %s17
    %p23 = scmp.ge.s32.totalorder %s22, 5
    %s24 = scalar_select %p23, 0, %s22
    %s25 = sadd.s32 1, %s16
    %s26 = scalar_select %p23, %s25, %s16
    %p27 = scmp.ge.s32.totalorder %s26, 2
    %s28 = scalar_select %p27, 0, %s26
    %s29 = ssub.s32 %s17, %s24
    %p30 = scmp.eq.s32.totalorder %s29, 0
    %s32 = sadd.s32 %s31, 1
    %s33 = scalar_select %p30, %s31, %s32
    %p36 = pneg %p30
    %p37 = scmp.eq.s32.totalorder %s9, 9
    %p38 = por %p36, %p37
    %p39 = scmp.ne.s32.totalorder %s31, %s34
    %p40 = scmp.eq.s32.totalorder %s9, 0
    %p41 = por %p39, %p40
    %p42 = scmp.ne.s32.totalorder %s31, %s34
    %p43 = scmp.eq.s32.totalorder %s14, 9
    %p44 = por %p42, %p43
    %p45 = scmp.ne.s32.totalorder %s34, %s35
    %p46 = scmp.eq.s32.totalorder %s14, 0
    %p47 = por %p45, %p46
    %p48 = scmp.ne.s32.totalorder %s34, %s35
    %p49 = scmp.eq.s32.totalorder %s15, 9
    %p50 = por %p48, %p49
    %p52 = scmp.ne.s32.totalorder %s35, %s51
    %p53 = scmp.eq.s32.totalorder %s15, 0
    %p54 = por %p52, %p53
    %s56 = sadd.s32 %s55, 1
    %p59 = scmp.eq.s32.totalorder %s9, 9
    %p60 = scmp.ne.s32.totalorder %s55, %s57
    %p61 = scmp.eq.s32.totalorder %s9, 0
    %p62 = por %p60, %p61
    %p63 = scmp.ne.s32.totalorder %s55, %s57
    %p64 = scmp.eq.s32.totalorder %s14, 9
    %p65 = por %p63, %p64
    %p66 = scmp.ne.s32.totalorder %s57, %s58
    %p67 = scmp.eq.s32.totalorder %s14, 0
    %p68 = por %p66, %p67
    %p69 = scmp.ne.s32.totalorder %s57, %s58
    %p70 = scmp.eq.s32.totalorder %s15, 9
    %p71 = por %p69, %p70
    %p73 = scmp.ne.s32.totalorder %s58, %s72
    %p74 = scmp.eq.s32.totalorder %s15, 0
    %p75 = por %p73, %p74
    %s77 = sadd.s32 %s76, 1
    %p80 = scmp.eq.s32.totalorder %s9, 9
    %p81 = scmp.ne.s32.totalorder %s76, %s78
    %p82 = scmp.eq.s32.totalorder %s9, 0
    %p83 = por %p81, %p82
    %p84 = scmp.ne.s32.totalorder %s76, %s78
    %p85 = scmp.eq.s32.totalorder %s14, 9
    %p86 = por %p84, %p85
    %p87 = scmp.ne.s32.totalorder %s78, %s79
    %p88 = scmp.eq.s32.totalorder %s14, 0
    %p89 = por %p87, %p88
    %p90 = scmp.ne.s32.totalorder %s78, %s79
    %p91 = scmp.eq.s32.totalorder %s15, 9
    %p92 = por %p90, %p91
    %p94 = scmp.ne.s32.totalorder %s79, %s93
    %p95 = scmp.eq.s32.totalorder %s15, 0
    %p96 = por %p94, %p95
    %s98 = sadd.s32 %s97, 1
    %p101 = scmp.eq.s32.totalorder %s9, 9
    %p102 = scmp.ne.s32.totalorder %s97, %s99
    %p103 = scmp.eq.s32.totalorder %s9, 0
    %p104 = por %p102, %p103
    %p105 = scmp.ne.s32.totalorder %s97, %s99
    %p106 = scmp.eq.s32.totalorder %s14, 9
    %p107 = por %p105, %p106
    %p108 = scmp.ne.s32.totalorder %s99, %s100
    %p109 = scmp.eq.s32.totalorder %s14, 0
    %p110 = por %p108, %p109
    %p111 = scmp.ne.s32.totalorder %s99, %s100
    %p112 = scmp.eq.s32.totalorder %s15, 9
    %p113 = por %p111, %p112
    %p115 = scmp.ne.s32.totalorder %s100, %s114
    %p116 = scmp.eq.s32.totalorder %s15, 0
    %p117 = por %p115, %p116
    %p118 = scmp.le.s32.totalorder 1, %s9
    %p119 = scmp.lt.s32.totalorder %s9, 11
    %p120 = pnand %p118, %p119
    %p121 = pneg %p120
    // Predicated region
    $region9: #{conv_pre_wav_block.1} parent=5 // pred_check
      _
    $region10: #{conv_pre_wav_block.1} parent=5 // pred_check_branch
      %123 = sbr.rel (%p120) target = $region12
    $region11: #{conv_pre_wav_block.1} parent=5 // pred_region
      %s124 = ssub.s32 %s9, 1
      // Predicated region
      $region13: #{conv_pre_wav_block.1} parent=11 // pred_check
        %p125 = pneg %p68
      $region14: #{conv_pre_wav_block.1} parent=11 // pred_check_branch
        %127 = sbr.rel (%p125) target = $region16
      $region15: #{conv_pre_wav_block.1} parent=11 // pred_region
        _
      $region16: #{conv_pre_wav_block.1} parent=11 // pred_fallthru
        _
      // Predicated region
      $region17: #{conv_pre_wav_block.1} parent=11 // pred_check
        %p128 = pneg %p89
      $region18: #{conv_pre_wav_block.1} parent=11 // pred_check_branch
        %130 = sbr.rel (%p128) target = $region20
      $region19: #{conv_pre_wav_block.1} parent=11 // pred_region
        _
      $region20: #{conv_pre_wav_block.1} parent=11 // pred_fallthru
        _
    $region12: #{conv_pre_wav_block.1} parent=5 // pred_fallthru
      _
    %p131 = scmp.lt.s32.totalorder %s9, 10
    // Predicated region
    $region21: #{conv_pre_wav_block.1} parent=5 // pred_check
      %p132 = pneg %p131
    $region22: #{conv_pre_wav_block.1} parent=5 // pred_check_branch
      %134 = sbr.rel (%p132) target = $region24
    $region23: #{conv_pre_wav_block.1} parent=5 // pred_region
      // Predicated region
      $region25: #{conv_pre_wav_block.1} parent=23 // pred_check
        %p135 = pneg %p41
      $region26: #{conv_pre_wav_block.1} parent=23 // pred_check_branch
        %137 = sbr.rel (%p135) target = $region28
      $region27: #{conv_pre_wav_block.1} parent=23 // pred_region
        %p138 = scmp.lt.s32.totalorder %s17, 4
        %s139 = scalar_select %p138, %s17, 4
        %s140 = smul.addr %s139, 36
        %s141 = smul.addr %s140, 8
        %s142 = scalar_lea.vmem %s0, %s141
      $region28: #{conv_pre_wav_block.1} parent=23 // pred_fallthru
        _
    $region24: #{conv_pre_wav_block.1} parent=5 // pred_fallthru
      _
    %p143 = scmp.le.s32.totalorder 1, %s9
    %p144 = scmp.lt.s32.totalorder %s9, 11
    %p145 = pnand %p143, %p144
    %p146 = pneg %p145
    // Predicated region
    $region29: #{conv_pre_wav_block.1} parent=5 // pred_check
      _
    $region30: #{conv_pre_wav_block.1} parent=5 // pred_check_branch
      %148 = sbr.rel (%p145) target = $region32
    $region31: #{conv_pre_wav_block.1} parent=5 // pred_region
      %s149 = ssub.s32 %s9, 1
      %p150 = scmp.lt.s32.totalorder %s19, 4
      %s151 = scalar_select %p150, %s19, 4
      %s152 = smul.addr %s151, 36
      %s153 = smul.addr %s152, 8
      %s154 = scalar_lea.vmem %s0, %s153
      %p155 = pneg %p47
      %p156 = pneg %p44
      %p157 = pneg %p68
      %p158 = pneg %p65
      %p159 = pneg %p89
      %p160 = pneg %p86
      %p161 = pneg %p110
      %p162 = pneg %p107
      %p163 = scmp.lt.s32.totalorder %s19, 4
      %s164 = scalar_select %p163, %s19, 4
      %s165 = smul.addr %s164, 36
      %s166 = smul.addr %s165, 8
      %s167 = scalar_lea.vmem %s0, %s166
      %s168 = smul.u32 %s19, 128
      %s169 = ssub.s32 626, %s168
      %p170 = scmp.lt.s32.totalorder %s169, 128
      %s171 = scalar_select %p170, %s169, 128
      %s172 = smul.u32 %s171, 2
      %s173 = scvt.s32.f32 %s172
      %s174 = smul.u32 %s19, 256
      %s175 = scvt.s32.f32 %s174
      %v176 = vld [vmem:[%s167] sm:$0xff]
      %v177 = vld [vmem:[%s167 + $0x8] sm:$0xff]
      %v178 = vld [vmem:[%s167 + $0x10] sm:$0xff]
      %v179 = vld [vmem:[%s167 + $0x18] sm:$0xff]
      %v180 = vld [vmem:[%s167 + $0x20] sm:$0xff]
      %v181 = vld [vmem:[%s167 + $0x28] sm:$0xff]
      %v182 = vld [vmem:[%s167 + $0x30] sm:$0xff]
      %v183 = vld [vmem:[%s167 + $0x38] sm:$0xff]
      %v184 = vld [vmem:[%s167 + $0x40] sm:$0xff]
      %v185 = vld [vmem:[%s167 + $0x48] sm:$0xff]
      %v186 = vld [vmem:[%s167 + $0x50] sm:$0xff]
      %v187 = vld [vmem:[%s167 + $0x58] sm:$0xff]
      %v188 = vld [vmem:[%s167 + $0x60] sm:$0xff]
      %v189 = vld [vmem:[%s167 + $0x68] sm:$0xff]
      %v190 = vld [vmem:[%s167 + $0x70] sm:$0xff]
      %v191 = vld [vmem:[%s167 + $0x78] sm:$0xff]
      %v192 = vld [vmem:[%s167 + $0x80] sm:$0xff]
      %v193 = vld [vmem:[%s167 + $0x88] sm:$0xff]
      %v194 = vld [vmem:[%s167 + $0x90] sm:$0xff]
      %v195 = vld [vmem:[%s167 + $0x98] sm:$0xff]
      %v196 = vld [vmem:[%s167 + $0xa0] sm:$0xff]
      %v197 = vld [vmem:[%s167 + $0xa8] sm:$0xff]
      %v198 = vld [vmem:[%s167 + $0xb0] sm:$0xff]
      %v199 = vld [vmem:[%s167 + $0xb8] sm:$0xff]
      %v200 = vld [vmem:[%s167 + $0xc0] sm:$0xff]
      %v201 = vld [vmem:[%s167 + $0xc8] sm:$0xff]
      %v202 = vld [vmem:[%s167 + $0xd0] sm:$0xff]
      %v203 = vld [vmem:[%s167 + $0xd8] sm:$0xff]
      %v204 = vld [vmem:[%s167 + $0xe0] sm:$0xff]
      %v205 = vld [vmem:[%s167 + $0xe8] sm:$0xff]
      %v206 = vld [vmem:[%s167 + $0xf0] sm:$0xff]
      %v207 = vld [vmem:[%s167 + $0xf8] sm:$0xff]
      %v208 = vld [vmem:[%s167 + $0x100] sm:$0xff]
      %v209 = vld [vmem:[%s167 + $0x108] sm:$0xff]
      %v210 = vld [vmem:[%s167 + $0x110] sm:$0xff]
      %v211 = vld [vmem:[%s167 + $0x118] sm:$0xff]
      %v212 = vlaneseq
      %v213 = vshrl.u32 %v212, 7
      %v214 = vadd.s32 %v213, 8
      %v215 = vadd.s32 %v213, 16
      %v216 = vadd.s32 %v213, 24
      %v217 = vadd.s32 %v213, 32
      %v218 = vadd.s32 %v213, 40
      %v219 = vadd.s32 %v213, 48
      %v220 = vadd.s32 %v213, 56
      %v221 = vadd.s32 %v213, 64
      %v222 = vadd.s32 %v213, 72
      %v223 = vadd.s32 %v213, 80
      %v224 = vadd.s32 %v213, 88
      %v225 = vadd.s32 %v213, 96
      %v226 = vadd.s32 %v213, 104
      %v227 = vadd.s32 %v213, 112
      %v228 = vadd.s32 %v213, 120
      %v229 = vstv %s168
      %v230 = vadd.s32 %v229, %v213
      %v231 = vadd.s32 %v229, %v214
      %v232 = vadd.s32 %v229, %v215
      %v233 = vadd.s32 %v229, %v216
      %v234 = vadd.s32 %v229, %v217
      %v235 = vadd.s32 %v229, %v218
      %v236 = vadd.s32 %v229, %v219
      %v237 = vadd.s32 %v229, %v220
      %v238 = vadd.s32 %v229, %v221
      %v239 = vadd.s32 %v229, %v222
      %v240 = vadd.s32 %v229, %v223
      %v241 = vadd.s32 %v229, %v224
      %v242 = vadd.s32 %v229, %v225
      %v243 = vadd.s32 %v229, %v226
      %v244 = vadd.s32 %v229, %v227
      %v245 = vadd.s32 %v229, %v228
      %vm246 = vcmp.lt.s32.totalorder %v230, 626
      %vm247 = vcmp.lt.s32.totalorder %v231, 626
      %vm248 = vcmp.lt.s32.totalorder %v232, 626
      %vm249 = vcmp.lt.s32.totalorder %v233, 626
      %vm250 = vcmp.lt.s32.totalorder %v234, 626
      %vm251 = vcmp.lt.s32.totalorder %v235, 626
      %vm252 = vcmp.lt.s32.totalorder %v236, 626
      %vm253 = vcmp.lt.s32.totalorder %v237, 626
      %vm254 = vcmp.lt.s32.totalorder %v238, 626
      %vm255 = vcmp.lt.s32.totalorder %v239, 626
      %vm256 = vcmp.lt.s32.totalorder %v240, 626
      %vm257 = vcmp.lt.s32.totalorder %v241, 626
      %vm258 = vcmp.lt.s32.totalorder %v242, 626
      %vm259 = vcmp.lt.s32.totalorder %v243, 626
      %vm260 = vcmp.lt.s32.totalorder %v244, 626
      %vm261 = vcmp.lt.s32.totalorder %v245, 626
      %p262 = scmp.eq.s32.totalorder %s18, 0
      %p263 = scmp.eq.s32.totalorder %s19, 0
      %p264 = pnand %p262, %p263
      %p265 = pneg %p264
      // Predicated region
      $region33: #{conv_pre_wav_block.1} parent=31 // pred_check
        _
      $region34: #{conv_pre_wav_block.1} parent=31 // pred_check_branch
        %267 = sbr.rel (%p264) target = $region36
      $region35: #{conv_pre_wav_block.1} parent=31 // pred_region
        %vm268 = vcmask 57344
        %269 = vst.msk [vmem:[#allocation2] sm:$0x1] %vm268, 0.0
        %270 = vst.msk [vmem:[#allocation3] sm:$0x1] %vm268, 0.0
        %271 = vst.msk [vmem:[#allocation4] sm:$0x1] %vm268, 0.0
        %272 = vst.msk [vmem:[#allocation5] sm:$0x1] %vm268, 0.0
      $region36: #{conv_pre_wav_block.1} parent=31 // pred_fallthru
        _
      // Predicated region
      $region37: #{conv_pre_wav_block.1} parent=31 // pred_check
        %p273 = pneg %p262
      $region38: #{conv_pre_wav_block.1} parent=31 // pred_check_branch
        %275 = sbr.rel (%p273) target = $region40
      $region39: #{conv_pre_wav_block.1} parent=31 // pred_region
        %v276 = vld [vmem:[%s1] sm:$0xff]
        %v277 = vld [vmem:[%s1 + $0x8] sm:$0xf]
        %vm312 = vcmask 1040384
        %v313 = vrot.slane %v176, 7
        %v314 = vrot.slane %v177, 7
        %v315 = vsel %vm312, %v313, %v314
        %v316 = vrot.slane %v178, 7
        %v317 = vsel %vm312, %v314, %v316
        %v318 = vrot.slane %v179, 7
        %v319 = vsel %vm312, %v316, %v318
        %v320 = vrot.slane %v180, 7
        %v321 = vsel %vm312, %v318, %v320
        %v322 = vrot.slane %v181, 7
        %v323 = vsel %vm312, %v320, %v322
        %v324 = vrot.slane %v182, 7
        %v325 = vsel %vm312, %v322, %v324
        %v326 = vrot.slane %v183, 7
        %v327 = vsel %vm312, %v324, %v326
        %v328 = vrot.slane %v184, 7
        %v329 = vsel %vm312, %v326, %v328
        %v330 = vrot.slane %v185, 7
        %v331 = vsel %vm312, %v328, %v330
        %v332 = vrot.slane %v186, 7
        %v333 = vsel %vm312, %v330, %v332
        %v334 = vrot.slane %v187, 7
        %v335 = vsel %vm312, %v332, %v334
        %v336 = vrot.slane %v188, 7
        %v337 = vsel %vm312, %v334, %v336
        %v338 = vrot.slane %v189, 7
        %v339 = vsel %vm312, %v336, %v338
        %v340 = vrot.slane %v190, 7
        %v341 = vsel %vm312, %v338, %v340
        %v342 = vrot.slane %v191, 7
        %v343 = vsel %vm312, %v340, %v342
        %v344 = vrot.slane %v192, 7
        %v345 = vsel %vm312, %v342, %v344
        %v346 = vrot.slane %v194, 7
        %v347 = vrot.slane %v195, 7
        %v348 = vsel %vm312, %v346, %v347
        %v349 = vrot.slane %v196, 7
        %v350 = vsel %vm312, %v347, %v349
        %v351 = vrot.slane %v197, 7
        %v352 = vsel %vm312, %v349, %v351
        %v353 = vrot.slane %v198, 7
        %v354 = vsel %vm312, %v351, %v353
        %v355 = vrot.slane %v199, 7
        %v356 = vsel %vm312, %v353, %v355
        %v357 = vrot.slane %v200, 7
        %v358 = vsel %vm312, %v355, %v357
        %v359 = vrot.slane %v201, 7
        %v360 = vsel %vm312, %v357, %v359
        %v361 = vrot.slane %v202, 7
        %v362 = vsel %vm312, %v359, %v361
        %v363 = vrot.slane %v203, 7
        %v364 = vsel %vm312, %v361, %v363
        %v365 = vrot.slane %v204, 7
        %v366 = vsel %vm312, %v363, %v365
        %v367 = vrot.slane %v205, 7
        %v368 = vsel %vm312, %v365, %v367
        %v369 = vrot.slane %v206, 7
        %v370 = vsel %vm312, %v367, %v369
        %v371 = vrot.slane %v207, 7
        %v372 = vsel %vm312, %v369, %v371
        %v373 = vrot.slane %v208, 7
        %v374 = vsel %vm312, %v371, %v373
        %v375 = vrot.slane %v209, 7
        %v376 = vsel %vm312, %v373, %v375
        %v377 = vrot.slane %v210, 7
        %v378 = vsel %vm312, %v375, %v377
        %v380 = vrot.slane %v276, 4
        %vm381 = vcmask 31744
        %v382 = vsel %vm381, %v177, 0
        %v384 = vsel %vm381, %v178, 0
        %v386 = vsel %vm381, %v179, 0
        %v388 = vsel %vm381, %v180, 0
        %v390 = vsel %vm381, %v181, 0
        %v392 = vsel %vm381, %v182, 0
        %v394 = vsel %vm381, %v183, 0
        %v396 = vsel %vm381, %v184, 0
        %v398 = vsel %vm381, %v185, 0
        %v400 = vsel %vm381, %v186, 0
        %v402 = vsel %vm381, %v187, 0
        %v404 = vsel %vm381, %v188, 0
        %v406 = vsel %vm381, %v189, 0
        %v408 = vsel %vm381, %v190, 0
        %v410 = vsel %vm381, %v191, 0
        %v412 = vsel %vm381, %v192, 0
        %v414 = vsel %vm381, %v195, 0
        %v416 = vsel %vm381, %v196, 0
        %v418 = vsel %vm381, %v197, 0
        %v420 = vsel %vm381, %v198, 0
        %v422 = vsel %vm381, %v199, 0
        %v424 = vsel %vm381, %v200, 0
        %v426 = vsel %vm381, %v201, 0
        %v428 = vsel %vm381, %v202, 0
        %v430 = vsel %vm381, %v203, 0
        %v432 = vsel %vm381, %v204, 0
        %v434 = vsel %vm381, %v205, 0
        %v436 = vsel %vm381, %v206, 0
        %v438 = vsel %vm381, %v207, 0
        %v440 = vsel %vm381, %v208, 0
        %v442 = vsel %vm381, %v209, 0
        %v444 = vsel %vm381, %v210, 0
        %vm446 = vcmask 1043456
        %v447 = vsel %vm446, %v380, 0
        %449 = vmatprep.subr.mxu0 0.0
        %450 = vmatpush1.msra.mxu0 0.0
        %451 = vmatprep.subr.mxu0 0.0
        %452 = vmatpush1.msra.mxu0 0.0
        %453 = vmatprep.subr.mxu0 0.0
        %454 = vmatpush1.msra.mxu0 0.0
        %455 = vmatprep.subr.mxu0 0.0
        %456 = vmatpush1.msra.mxu0 0.0
        %457 = vmatprep.subr.mxu0 0.0
        %458 = vmatpush1.msra.mxu0 0.0
        %459 = vmatprep.subr.mxu0 0.0
        %460 = vmatpush1.msra.mxu0 0.0
        %461 = vmatprep.subr.mxu0 0.0
        %462 = vmatpush1.msra.mxu0 0.0
        %463 = vmatprep.subr.mxu0 0.0
        %464 = vmatpush1.msra.mxu0 0.0
        %465 = vmatprep.subr.mxu0 0.0
        %466 = vmatpush1.msra.mxu0 0.0
        %467 = vmatprep.subr.mxu0 0.0
        %468 = vmatpush1.msra.mxu0 0.0
        %469 = vmatprep.subr.mxu0 0.0
        %470 = vmatpush1.msra.mxu0 0.0
        %471 = vmatprep.subr.mxu0 0.0
        %472 = vmatpush1.msra.mxu0 0.0
        %473 = vmatprep.subr.mxu0 0.0
        %474 = vmatpush1.msra.mxu0 0.0
        %475 = vmatprep.subr.mxu0 0.0
        %476 = vmatpush1.msra.mxu0 0.0
        %477 = vmatprep.subr.mxu0 0.0
        %478 = vmatpush1.msra.mxu0 0.0
        %479 = vmatprep.subr.mxu0 0.0
        %480 = vmatpush1.msra.mxu0 %v447
        %481 = vmatprep.subr.mxu0 0.0
        %482 = vmatpush2.msra.mxu0 0.0
        %483 = vmatprep.subr.mxu0 0.0
        %484 = vmatpush2.msra.mxu0 0.0
        %485 = vmatprep.subr.mxu0 0.0
        %486 = vmatpush2.msra.mxu0 0.0
        %487 = vmatprep.subr.mxu0 0.0
        %488 = vmatpush2.msra.mxu0 0.0
        %489 = vmatprep.subr.mxu0 0.0
        %490 = vmatpush2.msra.mxu0 0.0
        %491 = vmatprep.subr.mxu0 0.0
        %492 = vmatpush2.msra.mxu0 0.0
        %493 = vmatprep.subr.mxu0 0.0
        %494 = vmatpush2.msra.mxu0 0.0
        %495 = vmatprep.subr.mxu0 0.0
        %496 = vmatpush2.msra.mxu0 0.0
        %497 = vmatprep.subr.mxu0 0.0
        %498 = vmatpush2.msra.mxu0 0.0
        %499 = vmatprep.subr.mxu0 0.0
        %500 = vmatpush2.msra.mxu0 0.0
        %501 = vmatprep.subr.mxu0 0.0
        %502 = vmatpush2.msra.mxu0 0.0
        %503 = vmatprep.subr.mxu0 0.0
        %504 = vmatpush2.msra.mxu0 0.0
        %505 = vmatprep.subr.mxu0 0.0
        %506 = vmatpush2.msra.mxu0 0.0
        %507 = vmatprep.subr.mxu0 0.0
        %508 = vmatpush2.msra.mxu0 0.0
        %509 = vmatprep.subr.mxu0 0.0
        %510 = vmatpush2.msra.mxu0 0.0
        %511 = vmatprep.subr.mxu0 0.0
        %512 = vmatpush2.msra.mxu0 0.0
        %513 = vmatprep.mubr.f32.mxu0 0.0
        %514 = vmatmul.mubr.f32.gmra.mxu0 %v382
        %v515 = vpop.f32.mrf.mxu0
        %v516 = vadd.f32 0.0, %v515
        %v517 = vpop.f32.mrf.mxu0
        %518 = vmatprep.mubr.f32.mxu0 0.0
        %519 = vmatmul.mubr.f32.gmra.mxu0 %v384
        %v520 = vpop.f32.mrf.mxu0
        %v521 = vadd.f32 0.0, %v520
        %v522 = vpop.f32.mrf.mxu0
        %523 = vmatprep.mubr.f32.mxu0 0.0
        %524 = vmatmul.mubr.f32.gmra.mxu0 %v386
        %v525 = vpop.f32.mrf.mxu0
        %v526 = vadd.f32 0.0, %v525
        %v527 = vpop.f32.mrf.mxu0
        %528 = vmatprep.mubr.f32.mxu0 0.0
        %529 = vmatmul.mubr.f32.gmra.mxu0 %v388
        %v530 = vpop.f32.mrf.mxu0
        %v531 = vadd.f32 0.0, %v530
        %v532 = vpop.f32.mrf.mxu0
        %533 = vmatprep.mubr.f32.mxu0 0.0
        %534 = vmatmul.mubr.f32.gmra.mxu0 %v390
        %v535 = vpop.f32.mrf.mxu0
        %v536 = vadd.f32 0.0, %v535
        %v537 = vpop.f32.mrf.mxu0
        %538 = vmatprep.mubr.f32.mxu0 0.0
        %539 = vmatmul.mubr.f32.gmra.mxu0 %v392
        %v540 = vpop.f32.mrf.mxu0
        %v541 = vadd.f32 0.0, %v540
        %v542 = vpop.f32.mrf.mxu0
        %543 = vmatprep.mubr.f32.mxu0 0.0
        %544 = vmatmul.mubr.f32.gmra.mxu0 %v394
        %v545 = vpop.f32.mrf.mxu0
        %v546 = vadd.f32 0.0, %v545
        %v547 = vpop.f32.mrf.mxu0
        %548 = vmatprep.mubr.f32.mxu0 0.0
        %549 = vmatmul.mubr.f32.gmra.mxu0 %v396
        %v550 = vpop.f32.mrf.mxu0
        %v551 = vadd.f32 0.0, %v550
        %v552 = vpop.f32.mrf.mxu0
        %553 = vmatprep.mubr.f32.mxu0 0.0
        %554 = vmatmul.mubr.f32.gmra.mxu0 %v398
        %v555 = vpop.f32.mrf.mxu0
        %v556 = vadd.f32 0.0, %v555
        %v557 = vpop.f32.mrf.mxu0
        %558 = vmatprep.mubr.f32.mxu0 0.0
        %559 = vmatmul.mubr.f32.gmra.mxu0 %v400
        %v560 = vpop.f32.mrf.mxu0
        %v561 = vadd.f32 0.0, %v560
        %v562 = vpop.f32.mrf.mxu0
        %563 = vmatprep.mubr.f32.mxu0 0.0
        %564 = vmatmul.mubr.f32.gmra.mxu0 %v402
        %v565 = vpop.f32.mrf.mxu0
        %v566 = vadd.f32 0.0, %v565
        %v567 = vpop.f32.mrf.mxu0
        %568 = vmatprep.mubr.f32.mxu0 0.0
        %569 = vmatmul.mubr.f32.gmra.mxu0 %v404
        %v570 = vpop.f32.mrf.mxu0
        %v571 = vadd.f32 0.0, %v570
        %v572 = vpop.f32.mrf.mxu0
        %573 = vmatprep.mubr.f32.mxu0 0.0
        %574 = vmatmul.mubr.f32.gmra.mxu0 %v406
        %v575 = vpop.f32.mrf.mxu0
        %v576 = vadd.f32 0.0, %v575
        %v577 = vpop.f32.mrf.mxu0
        %578 = vmatprep.mubr.f32.mxu0 0.0
        %579 = vmatmul.mubr.f32.gmra.mxu0 %v408
        %v580 = vpop.f32.mrf.mxu0
        %v581 = vadd.f32 0.0, %v580
        %v582 = vpop.f32.mrf.mxu0
        %583 = vmatprep.mubr.f32.mxu0 0.0
        %584 = vmatmul.mubr.f32.gmra.mxu0 %v410
        %v585 = vpop.f32.mrf.mxu0
        %v586 = vadd.f32 0.0, %v585
        %v587 = vpop.f32.mrf.mxu0
        %588 = vmatprep.mubr.f32.mxu0 0.0
        %589 = vmatmul.mubr.f32.gmra.mxu0 %v412
        %v590 = vpop.f32.mrf.mxu0
        %v591 = vadd.f32 0.0, %v590
        %v592 = vpop.f32.mrf.mxu0
        %593 = vmatprep.mubr.f32.mxu0 0.0
        %594 = vmatmul.mubr.f32.gmra.mxu0 %v414
        %v595 = vpop.f32.mrf.mxu0
        %v596 = vadd.f32 0.0, %v595
        %v597 = vpop.f32.mrf.mxu0
        %598 = vmatprep.mubr.f32.mxu0 0.0
        %599 = vmatmul.mubr.f32.gmra.mxu0 %v416
        %v600 = vpop.f32.mrf.mxu0
        %v601 = vadd.f32 0.0, %v600
        %v602 = vpop.f32.mrf.mxu0
        %603 = vmatprep.mubr.f32.mxu0 0.0
        %604 = vmatmul.mubr.f32.gmra.mxu0 %v418
        %v605 = vpop.f32.mrf.mxu0
        %v606 = vadd.f32 0.0, %v605
        %v607 = vpop.f32.mrf.mxu0
        %608 = vmatprep.mubr.f32.mxu0 0.0
        %609 = vmatmul.mubr.f32.gmra.mxu0 %v420
        %v610 = vpop.f32.mrf.mxu0
        %v611 = vadd.f32 0.0, %v610
        %v612 = vpop.f32.mrf.mxu0
        %613 = vmatprep.mubr.f32.mxu0 0.0
        %614 = vmatmul.mubr.f32.gmra.mxu0 %v422
        %v615 = vpop.f32.mrf.mxu0
        %v616 = vadd.f32 0.0, %v615
        %v617 = vpop.f32.mrf.mxu0
        %618 = vmatprep.mubr.f32.mxu0 0.0
        %619 = vmatmul.mubr.f32.gmra.mxu0 %v424
        %v620 = vpop.f32.mrf.mxu0
        %v621 = vadd.f32 0.0, %v620
        %v622 = vpop.f32.mrf.mxu0
        %623 = vmatprep.mubr.f32.mxu0 0.0
        %624 = vmatmul.mubr.f32.gmra.mxu0 %v426
        %v625 = vpop.f32.mrf.mxu0
        %v626 = vadd.f32 0.0, %v625
        %v627 = vpop.f32.mrf.mxu0
        %628 = vmatprep.mubr.f32.mxu0 0.0
        %629 = vmatmul.mubr.f32.gmra.mxu0 %v428
        %v630 = vpop.f32.mrf.mxu0
        %v631 = vadd.f32 0.0, %v630
        %v632 = vpop.f32.mrf.mxu0
        %633 = vmatprep.mubr.f32.mxu0 0.0
        %634 = vmatmul.mubr.f32.gmra.mxu0 %v430
        %v635 = vpop.f32.mrf.mxu0
        %v636 = vadd.f32 0.0, %v635
        %v637 = vpop.f32.mrf.mxu0
        %638 = vmatprep.mubr.f32.mxu0 0.0
        %639 = vmatmul.mubr.f32.gmra.mxu0 %v432
        %v640 = vpop.f32.mrf.mxu0
        %v641 = vadd.f32 0.0, %v640
        %v642 = vpop.f32.mrf.mxu0
        %643 = vmatprep.mubr.f32.mxu0 0.0
        %644 = vmatmul.mubr.f32.gmra.mxu0 %v434
        %v645 = vpop.f32.mrf.mxu0
        %v646 = vadd.f32 0.0, %v645
        %v647 = vpop.f32.mrf.mxu0
        %648 = vmatprep.mubr.f32.mxu0 0.0
        %649 = vmatmul.mubr.f32.gmra.mxu0 %v436
        %v650 = vpop.f32.mrf.mxu0
        %v651 = vadd.f32 0.0, %v650
        %v652 = vpop.f32.mrf.mxu0
        %653 = vmatprep.mubr.f32.mxu0 0.0
        %654 = vmatmul.mubr.f32.gmra.mxu0 %v438
        %v655 = vpop.f32.mrf.mxu0
        %v656 = vadd.f32 0.0, %v655
        %v657 = vpop.f32.mrf.mxu0
        %658 = vmatprep.mubr.f32.mxu0 0.0
        %659 = vmatmul.mubr.f32.gmra.mxu0 %v440
        %v660 = vpop.f32.mrf.mxu0
        %v661 = vadd.f32 0.0, %v660
        %v662 = vpop.f32.mrf.mxu0
        %663 = vmatprep.mubr.f32.mxu0 0.0
        %664 = vmatmul.mubr.f32.gmra.mxu0 %v442
        %v665 = vpop.f32.mrf.mxu0
        %v666 = vadd.f32 0.0, %v665
        %v667 = vpop.f32.mrf.mxu0
        %668 = vmatprep.mubr.f32.mxu0 0.0
        %669 = vmatmul.mubr.f32.gmra.mxu0 %v444
        %v670 = vpop.f32.mrf.mxu0
        %v671 = vadd.f32 0.0, %v670
        %v672 = vpop.f32.mrf.mxu0
        %673 = vdwg.mxu0
        %v674 = vsel %vm381, %v315, 0
        %v676 = vsel %vm381, %v317, 0
        %v678 = vsel %vm381, %v319, 0
        %v680 = vsel %vm381, %v321, 0
        %v682 = vsel %vm381, %v323, 0
        %v684 = vsel %vm381, %v325, 0
        %v686 = vsel %vm381, %v327, 0
        %v688 = vsel %vm381, %v329, 0
        %v690 = vsel %vm381, %v331, 0
        %v692 = vsel %vm381, %v333, 0
        %v694 = vsel %vm381, %v335, 0
        %v696 = vsel %vm381, %v337, 0
        %v698 = vsel %vm381, %v339, 0
        %v700 = vsel %vm381, %v341, 0
        %v702 = vsel %vm381, %v343, 0
        %v704 = vsel %vm381, %v345, 0
        %v706 = vsel %vm381, %v348, 0
        %v708 = vsel %vm381, %v350, 0
        %v710 = vsel %vm381, %v352, 0
        %v712 = vsel %vm381, %v354, 0
        %v714 = vsel %vm381, %v356, 0
        %v716 = vsel %vm381, %v358, 0
        %v718 = vsel %vm381, %v360, 0
        %v720 = vsel %vm381, %v362, 0
        %v722 = vsel %vm381, %v364, 0
        %v724 = vsel %vm381, %v366, 0
        %v726 = vsel %vm381, %v368, 0
        %v728 = vsel %vm381, %v370, 0
        %v730 = vsel %vm381, %v372, 0
        %v732 = vsel %vm381, %v374, 0
        %v734 = vsel %vm381, %v376, 0
        %v736 = vsel %vm381, %v378, 0
        %v738 = vsel %vm446, %v276, 0
        %740 = vmatprep.subr.mxu0 0.0
        %741 = vmatpush1.msra.mxu0 0.0
        %742 = vmatprep.subr.mxu0 0.0
        %743 = vmatpush1.msra.mxu0 0.0
        %744 = vmatprep.subr.mxu0 0.0
        %745 = vmatpush1.msra.mxu0 0.0
        %746 = vmatprep.subr.mxu0 0.0
        %747 = vmatpush1.msra.mxu0 0.0
        %748 = vmatprep.subr.mxu0 0.0
        %749 = vmatpush1.msra.mxu0 0.0
        %750 = vmatprep.subr.mxu0 0.0
        %751 = vmatpush1.msra.mxu0 0.0
        %752 = vmatprep.subr.mxu0 0.0
        %753 = vmatpush1.msra.mxu0 0.0
        %754 = vmatprep.subr.mxu0 0.0
        %755 = vmatpush1.msra.mxu0 0.0
        %756 = vmatprep.subr.mxu0 0.0
        %757 = vmatpush1.msra.mxu0 0.0
        %758 = vmatprep.subr.mxu0 0.0
        %759 = vmatpush1.msra.mxu0 0.0
        %760 = vmatprep.subr.mxu0 0.0
        %761 = vmatpush1.msra.mxu0 0.0
        %762 = vmatprep.subr.mxu0 0.0
        %763 = vmatpush1.msra.mxu0 0.0
        %764 = vmatprep.subr.mxu0 0.0
        %765 = vmatpush1.msra.mxu0 0.0
        %766 = vmatprep.subr.mxu0 0.0
        %767 = vmatpush1.msra.mxu0 0.0
        %768 = vmatprep.subr.mxu0 0.0
        %769 = vmatpush1.msra.mxu0 0.0
        %770 = vmatprep.subr.mxu0 0.0
        %771 = vmatpush1.msra.mxu0 %v738
        %772 = vmatprep.subr.mxu0 0.0
        %773 = vmatpush2.msra.mxu0 0.0
        %774 = vmatprep.subr.mxu0 0.0
        %775 = vmatpush2.msra.mxu0 0.0
        %776 = vmatprep.subr.mxu0 0.0
        %777 = vmatpush2.msra.mxu0 0.0
        %778 = vmatprep.subr.mxu0 0.0
        %779 = vmatpush2.msra.mxu0 0.0
        %780 = vmatprep.subr.mxu0 0.0
        %781 = vmatpush2.msra.mxu0 0.0
        %782 = vmatprep.subr.mxu0 0.0
        %783 = vmatpush2.msra.mxu0 0.0
        %784 = vmatprep.subr.mxu0 0.0
        %785 = vmatpush2.msra.mxu0 0.0
        %786 = vmatprep.subr.mxu0 0.0
        %787 = vmatpush2.msra.mxu0 0.0
        %788 = vmatprep.subr.mxu0 0.0
        %789 = vmatpush2.msra.mxu0 0.0
        %790 = vmatprep.subr.mxu0 0.0
        %791 = vmatpush2.msra.mxu0 0.0
        %792 = vmatprep.subr.mxu0 0.0
        %793 = vmatpush2.msra.mxu0 0.0
        %794 = vmatprep.subr.mxu0 0.0
        %795 = vmatpush2.msra.mxu0 0.0
        %796 = vmatprep.subr.mxu0 0.0
        %797 = vmatpush2.msra.mxu0 0.0
        %798 = vmatprep.subr.mxu0 0.0
        %799 = vmatpush2.msra.mxu0 0.0
        %800 = vmatprep.subr.mxu0 0.0
        %801 = vmatpush2.msra.mxu0 0.0
        %802 = vmatprep.subr.mxu0 0.0
        %803 = vmatpush2.msra.mxu0 0.0
        %804 = vmatprep.mubr.f32.mxu0 0.0
        %805 = vmatmul.mubr.f32.gmra.mxu0 %v674
        %v806 = vpop.f32.mrf.mxu0
        %v807 = vadd.f32 %v516, %v806
        %v808 = vpop.f32.mrf.mxu0
        %809 = vmatprep.mubr.f32.mxu0 0.0
        %810 = vmatmul.mubr.f32.gmra.mxu0 %v676
        %v811 = vpop.f32.mrf.mxu0
        %v812 = vadd.f32 %v521, %v811
        %v813 = vpop.f32.mrf.mxu0
        %814 = vmatprep.mubr.f32.mxu0 0.0
        %815 = vmatmul.mubr.f32.gmra.mxu0 %v678
        %v816 = vpop.f32.mrf.mxu0
        %v817 = vadd.f32 %v526, %v816
        %v818 = vpop.f32.mrf.mxu0
        %819 = vmatprep.mubr.f32.mxu0 0.0
        %820 = vmatmul.mubr.f32.gmra.mxu0 %v680
        %v821 = vpop.f32.mrf.mxu0
        %v822 = vadd.f32 %v531, %v821
        %v823 = vpop.f32.mrf.mxu0
        %824 = vmatprep.mubr.f32.mxu0 0.0
        %825 = vmatmul.mubr.f32.gmra.mxu0 %v682
        %v826 = vpop.f32.mrf.mxu0
        %v827 = vadd.f32 %v536, %v826
        %v828 = vpop.f32.mrf.mxu0
        %829 = vmatprep.mubr.f32.mxu0 0.0
        %830 = vmatmul.mubr.f32.gmra.mxu0 %v684
        %v831 = vpop.f32.mrf.mxu0
        %v832 = vadd.f32 %v541, %v831
        %v833 = vpop.f32.mrf.mxu0
        %834 = vmatprep.mubr.f32.mxu0 0.0
        %835 = vmatmul.mubr.f32.gmra.mxu0 %v686
        %v836 = vpop.f32.mrf.mxu0
        %v837 = vadd.f32 %v546, %v836
        %v838 = vpop.f32.mrf.mxu0
        %839 = vmatprep.mubr.f32.mxu0 0.0
        %840 = vmatmul.mubr.f32.gmra.mxu0 %v688
        %v841 = vpop.f32.mrf.mxu0
        %v842 = vadd.f32 %v551, %v841
        %v843 = vpop.f32.mrf.mxu0
        %844 = vmatprep.mubr.f32.mxu0 0.0
        %845 = vmatmul.mubr.f32.gmra.mxu0 %v690
        %v846 = vpop.f32.mrf.mxu0
        %v847 = vadd.f32 %v556, %v846
        %v848 = vpop.f32.mrf.mxu0
        %849 = vmatprep.mubr.f32.mxu0 0.0
        %850 = vmatmul.mubr.f32.gmra.mxu0 %v692
        %v851 = vpop.f32.mrf.mxu0
        %v852 = vadd.f32 %v561, %v851
        %v853 = vpop.f32.mrf.mxu0
        %854 = vmatprep.mubr.f32.mxu0 0.0
        %855 = vmatmul.mubr.f32.gmra.mxu0 %v694
        %v856 = vpop.f32.mrf.mxu0
        %v857 = vadd.f32 %v566, %v856
        %v858 = vpop.f32.mrf.mxu0
        %859 = vmatprep.mubr.f32.mxu0 0.0
        %860 = vmatmul.mubr.f32.gmra.mxu0 %v696
        %v861 = vpop.f32.mrf.mxu0
        %v862 = vadd.f32 %v571, %v861
        %v863 = vpop.f32.mrf.mxu0
        %864 = vmatprep.mubr.f32.mxu0 0.0
        %865 = vmatmul.mubr.f32.gmra.mxu0 %v698
        %v866 = vpop.f32.mrf.mxu0
        %v867 = vadd.f32 %v576, %v866
        %v868 = vpop.f32.mrf.mxu0
        %869 = vmatprep.mubr.f32.mxu0 0.0
        %870 = vmatmul.mubr.f32.gmra.mxu0 %v700
        %v871 = vpop.f32.mrf.mxu0
        %v872 = vadd.f32 %v581, %v871
        %v873 = vpop.f32.mrf.mxu0
        %874 = vmatprep.mubr.f32.mxu0 0.0
        %875 = vmatmul.mubr.f32.gmra.mxu0 %v702
        %v876 = vpop.f32.mrf.mxu0
        %v877 = vadd.f32 %v586, %v876
        %v878 = vpop.f32.mrf.mxu0
        %879 = vmatprep.mubr.f32.mxu0 0.0
        %880 = vmatmul.mubr.f32.gmra.mxu0 %v704
        %v881 = vpop.f32.mrf.mxu0
        %v882 = vadd.f32 %v591, %v881
        %v883 = vpop.f32.mrf.mxu0
        %884 = vmatprep.mubr.f32.mxu0 0.0
        %885 = vmatmul.mubr.f32.gmra.mxu0 %v706
        %v886 = vpop.f32.mrf.mxu0
        %v887 = vadd.f32 %v596, %v886
        %v888 = vpop.f32.mrf.mxu0
        %889 = vmatprep.mubr.f32.mxu0 0.0
        %890 = vmatmul.mubr.f32.gmra.mxu0 %v708
        %v891 = vpop.f32.mrf.mxu0
        %v892 = vadd.f32 %v601, %v891
        %v893 = vpop.f32.mrf.mxu0
        %894 = vmatprep.mubr.f32.mxu0 0.0
        %895 = vmatmul.mubr.f32.gmra.mxu0 %v710
        %v896 = vpop.f32.mrf.mxu0
        %v897 = vadd.f32 %v606, %v896
        %v898 = vpop.f32.mrf.mxu0
        %899 = vmatprep.mubr.f32.mxu0 0.0
        %900 = vmatmul.mubr.f32.gmra.mxu0 %v712
        %v901 = vpop.f32.mrf.mxu0
        %v902 = vadd.f32 %v611, %v901
        %v903 = vpop.f32.mrf.mxu0
        %904 = vmatprep.mubr.f32.mxu0 0.0
        %905 = vmatmul.mubr.f32.gmra.mxu0 %v714
        %v906 = vpop.f32.mrf.mxu0
        %v907 = vadd.f32 %v616, %v906
        %v908 = vpop.f32.mrf.mxu0
        %909 = vmatprep.mubr.f32.mxu0 0.0
        %910 = vmatmul.mubr.f32.gmra.mxu0 %v716
        %v911 = vpop.f32.mrf.mxu0
        %v912 = vadd.f32 %v621, %v911
        %v913 = vpop.f32.mrf.mxu0
        %914 = vmatprep.mubr.f32.mxu0 0.0
        %915 = vmatmul.mubr.f32.gmra.mxu0 %v718
        %v916 = vpop.f32.mrf.mxu0
        %v917 = vadd.f32 %v626, %v916
        %v918 = vpop.f32.mrf.mxu0
        %919 = vmatprep.mubr.f32.mxu0 0.0
        %920 = vmatmul.mubr.f32.gmra.mxu0 %v720
        %v921 = vpop.f32.mrf.mxu0
        %v922 = vadd.f32 %v631, %v921
        %v923 = vpop.f32.mrf.mxu0
        %924 = vmatprep.mubr.f32.mxu0 0.0
        %925 = vmatmul.mubr.f32.gmra.mxu0 %v722
        %v926 = vpop.f32.mrf.mxu0
        %v927 = vadd.f32 %v636, %v926
        %v928 = vpop.f32.mrf.mxu0
        %929 = vmatprep.mubr.f32.mxu0 0.0
        %930 = vmatmul.mubr.f32.gmra.mxu0 %v724
        %v931 = vpop.f32.mrf.mxu0
        %v932 = vadd.f32 %v641, %v931
        %v933 = vpop.f32.mrf.mxu0
        %934 = vmatprep.mubr.f32.mxu0 0.0
        %935 = vmatmul.mubr.f32.gmra.mxu0 %v726
        %v936 = vpop.f32.mrf.mxu0
        %v937 = vadd.f32 %v646, %v936
        %v938 = vpop.f32.mrf.mxu0
        %939 = vmatprep.mubr.f32.mxu0 0.0
        %940 = vmatmul.mubr.f32.gmra.mxu0 %v728
        %v941 = vpop.f32.mrf.mxu0
        %v942 = vadd.f32 %v651, %v941
        %v943 = vpop.f32.mrf.mxu0
        %944 = vmatprep.mubr.f32.mxu0 0.0
        %945 = vmatmul.mubr.f32.gmra.mxu0 %v730
        %v946 = vpop.f32.mrf.mxu0
        %v947 = vadd.f32 %v656, %v946
        %v948 = vpop.f32.mrf.mxu0
        %949 = vmatprep.mubr.f32.mxu0 0.0
        %950 = vmatmul.mubr.f32.gmra.mxu0 %v732
        %v951 = vpop.f32.mrf.mxu0
        %v952 = vadd.f32 %v661, %v951
        %v953 = vpop.f32.mrf.mxu0
        %954 = vmatprep.mubr.f32.mxu0 0.0
        %955 = vmatmul.mubr.f32.gmra.mxu0 %v734
        %v956 = vpop.f32.mrf.mxu0
        %v957 = vadd.f32 %v666, %v956
        %v958 = vpop.f32.mrf.mxu0
        %959 = vmatprep.mubr.f32.mxu0 0.0
        %960 = vmatmul.mubr.f32.gmra.mxu0 %v736
        %v961 = vpop.f32.mrf.mxu0
        %v962 = vadd.f32 %v671, %v961
        %v963 = vpop.f32.mrf.mxu0
        %964 = vdwg.mxu0
        %vm967 = vcmask 1046528
        %v968 = vrot.slane %v177, 1
        %v969 = vrot.slane %v178, 1
        %v970 = vsel %vm967, %v968, %v969
        %v971 = vrot.slane %v179, 1
        %v972 = vsel %vm967, %v969, %v971
        %v973 = vrot.slane %v180, 1
        %v974 = vsel %vm967, %v971, %v973
        %v975 = vrot.slane %v181, 1
        %v976 = vsel %vm967, %v973, %v975
        %v977 = vrot.slane %v182, 1
        %v978 = vsel %vm967, %v975, %v977
        %v979 = vrot.slane %v183, 1
        %v980 = vsel %vm967, %v977, %v979
        %v981 = vrot.slane %v184, 1
        %v982 = vsel %vm967, %v979, %v981
        %v983 = vrot.slane %v185, 1
        %v984 = vsel %vm967, %v981, %v983
        %v985 = vrot.slane %v186, 1
        %v986 = vsel %vm967, %v983, %v985
        %v987 = vrot.slane %v187, 1
        %v988 = vsel %vm967, %v985, %v987
        %v989 = vrot.slane %v188, 1
        %v990 = vsel %vm967, %v987, %v989
        %v991 = vrot.slane %v189, 1
        %v992 = vsel %vm967, %v989, %v991
        %v993 = vrot.slane %v190, 1
        %v994 = vsel %vm967, %v991, %v993
        %v995 = vrot.slane %v191, 1
        %v996 = vsel %vm967, %v993, %v995
        %v997 = vrot.slane %v192, 1
        %v998 = vsel %vm967, %v995, %v997
        %v999 = vrot.slane %v193, 1
        %v1000 = vsel %vm967, %v997, %v999
        %v1001 = vrot.slane %v195, 1
        %v1002 = vrot.slane %v196, 1
        %v1003 = vsel %vm967, %v1001, %v1002
        %v1004 = vrot.slane %v197, 1
        %v1005 = vsel %vm967, %v1002, %v1004
        %v1006 = vrot.slane %v198, 1
        %v1007 = vsel %vm967, %v1004, %v1006
        %v1008 = vrot.slane %v199, 1
        %v1009 = vsel %vm967, %v1006, %v1008
        %v1010 = vrot.slane %v200, 1
        %v1011 = vsel %vm967, %v1008, %v1010
        %v1012 = vrot.slane %v201, 1
        %v1013 = vsel %vm967, %v1010, %v1012
        %v1014 = vrot.slane %v202, 1
        %v1015 = vsel %vm967, %v1012, %v1014
        %v1016 = vrot.slane %v203, 1
        %v1017 = vsel %vm967, %v1014, %v1016
        %v1018 = vrot.slane %v204, 1
        %v1019 = vsel %vm967, %v1016, %v1018
        %v1020 = vrot.slane %v205, 1
        %v1021 = vsel %vm967, %v1018, %v1020
        %v1022 = vrot.slane %v206, 1
        %v1023 = vsel %vm967, %v1020, %v1022
        %v1024 = vrot.slane %v207, 1
        %v1025 = vsel %vm967, %v1022, %v1024
        %v1026 = vrot.slane %v208, 1
        %v1027 = vsel %vm967, %v1024, %v1026
        %v1028 = vrot.slane %v209, 1
        %v1029 = vsel %vm967, %v1026, %v1028
        %v1030 = vrot.slane %v210, 1
        %v1031 = vsel %vm967, %v1028, %v1030
        %v1032 = vrot.slane %v211, 1
        %v1033 = vsel %vm967, %v1030, %v1032
        %v1034 = vsel %vm381, %v970, 0
        %v1036 = vsel %vm381, %v972, 0
        %v1038 = vsel %vm381, %v974, 0
        %v1040 = vsel %vm381, %v976, 0
        %v1042 = vsel %vm381, %v978, 0
        %v1044 = vsel %vm381, %v980, 0
        %v1046 = vsel %vm381, %v982, 0
        %v1048 = vsel %vm381, %v984, 0
        %v1050 = vsel %vm381, %v986, 0
        %v1052 = vsel %vm381, %v988, 0
        %v1054 = vsel %vm381, %v990, 0
        %v1056 = vsel %vm381, %v992, 0
        %v1058 = vsel %vm381, %v994, 0
        %v1060 = vsel %vm381, %v996, 0
        %v1062 = vsel %vm381, %v998, 0
        %v1064 = vsel %vm381, %v1000, 0
        %v1066 = vsel %vm381, %v1003, 0
        %v1068 = vsel %vm381, %v1005, 0
        %v1070 = vsel %vm381, %v1007, 0
        %v1072 = vsel %vm381, %v1009, 0
        %v1074 = vsel %vm381, %v1011, 0
        %v1076 = vsel %vm381, %v1013, 0
        %v1078 = vsel %vm381, %v1015, 0
        %v1080 = vsel %vm381, %v1017, 0
        %v1082 = vsel %vm381, %v1019, 0
        %v1084 = vsel %vm381, %v1021, 0
        %v1086 = vsel %vm381, %v1023, 0
        %v1088 = vsel %vm381, %v1025, 0
        %v1090 = vsel %vm381, %v1027, 0
        %v1092 = vsel %vm381, %v1029, 0
        %v1094 = vsel %vm381, %v1031, 0
        %v1096 = vsel %vm381, %v1033, 0
        %v1099 = vsel %vm446, %v277, 0
        %1101 = vmatprep.subr.mxu0 0.0
        %1102 = vmatpush1.msra.mxu0 0.0
        %1103 = vmatprep.subr.mxu0 0.0
        %1104 = vmatpush1.msra.mxu0 0.0
        %1105 = vmatprep.subr.mxu0 0.0
        %1106 = vmatpush1.msra.mxu0 0.0
        %1107 = vmatprep.subr.mxu0 0.0
        %1108 = vmatpush1.msra.mxu0 0.0
        %1109 = vmatprep.subr.mxu0 0.0
        %1110 = vmatpush1.msra.mxu0 0.0
        %1111 = vmatprep.subr.mxu0 0.0
        %1112 = vmatpush1.msra.mxu0 0.0
        %1113 = vmatprep.subr.mxu0 0.0
        %1114 = vmatpush1.msra.mxu0 0.0
        %1115 = vmatprep.subr.mxu0 0.0
        %1116 = vmatpush1.msra.mxu0 0.0
        %1117 = vmatprep.subr.mxu0 0.0
        %1118 = vmatpush1.msra.mxu0 0.0
        %1119 = vmatprep.subr.mxu0 0.0
        %1120 = vmatpush1.msra.mxu0 0.0
        %1121 = vmatprep.subr.mxu0 0.0
        %1122 = vmatpush1.msra.mxu0 0.0
        %1123 = vmatprep.subr.mxu0 0.0
        %1124 = vmatpush1.msra.mxu0 0.0
        %1125 = vmatprep.subr.mxu0 0.0
        %1126 = vmatpush1.msra.mxu0 0.0
        %1127 = vmatprep.subr.mxu0 0.0
        %1128 = vmatpush1.msra.mxu0 0.0
        %1129 = vmatprep.subr.mxu0 0.0
        %1130 = vmatpush1.msra.mxu0 0.0
        %1131 = vmatprep.subr.mxu0 0.0
        %1132 = vmatpush1.msra.mxu0 %v1099
        %1133 = vmatprep.subr.mxu0 0.0
        %1134 = vmatpush2.msra.mxu0 0.0
        %1135 = vmatprep.subr.mxu0 0.0
        %1136 = vmatpush2.msra.mxu0 0.0
        %1137 = vmatprep.subr.mxu0 0.0
        %1138 = vmatpush2.msra.mxu0 0.0
        %1139 = vmatprep.subr.mxu0 0.0
        %1140 = vmatpush2.msra.mxu0 0.0
        %1141 = vmatprep.subr.mxu0 0.0
        %1142 = vmatpush2.msra.mxu0 0.0
        %1143 = vmatprep.subr.mxu0 0.0
        %1144 = vmatpush2.msra.mxu0 0.0
        %1145 = vmatprep.subr.mxu0 0.0
        %1146 = vmatpush2.msra.mxu0 0.0
        %1147 = vmatprep.subr.mxu0 0.0
        %1148 = vmatpush2.msra.mxu0 0.0
        %1149 = vmatprep.subr.mxu0 0.0
        %1150 = vmatpush2.msra.mxu0 0.0
        %1151 = vmatprep.subr.mxu0 0.0
        %1152 = vmatpush2.msra.mxu0 0.0
        %1153 = vmatprep.subr.mxu0 0.0
        %1154 = vmatpush2.msra.mxu0 0.0
        %1155 = vmatprep.subr.mxu0 0.0
        %1156 = vmatpush2.msra.mxu0 0.0
        %1157 = vmatprep.subr.mxu0 0.0
        %1158 = vmatpush2.msra.mxu0 0.0
        %1159 = vmatprep.subr.mxu0 0.0
        %1160 = vmatpush2.msra.mxu0 0.0
        %1161 = vmatprep.subr.mxu0 0.0
        %1162 = vmatpush2.msra.mxu0 0.0
        %1163 = vmatprep.subr.mxu0 0.0
        %1164 = vmatpush2.msra.mxu0 0.0
        %1165 = vmatprep.mubr.f32.mxu0 0.0
        %1166 = vmatmul.mubr.f32.gmra.mxu0 %v1034
        %v1167 = vpop.f32.mrf.mxu0
        %v1168 = vadd.f32 0.0, %v1167
        %v1169 = vpop.f32.mrf.mxu0
        %1170 = vmatprep.mubr.f32.mxu0 0.0
        %1171 = vmatmul.mubr.f32.gmra.mxu0 %v1036
        %v1172 = vpop.f32.mrf.mxu0
        %v1173 = vadd.f32 0.0, %v1172
        %v1174 = vpop.f32.mrf.mxu0
        %1175 = vmatprep.mubr.f32.mxu0 0.0
        %1176 = vmatmul.mubr.f32.gmra.mxu0 %v1038
        %v1177 = vpop.f32.mrf.mxu0
        %v1178 = vadd.f32 0.0, %v1177
        %v1179 = vpop.f32.mrf.mxu0
        %1180 = vmatprep.mubr.f32.mxu0 0.0
        %1181 = vmatmul.mubr.f32.gmra.mxu0 %v1040
        %v1182 = vpop.f32.mrf.mxu0
        %v1183 = vadd.f32 0.0, %v1182
        %v1184 = vpop.f32.mrf.mxu0
        %1185 = vmatprep.mubr.f32.mxu0 0.0
        %1186 = vmatmul.mubr.f32.gmra.mxu0 %v1042
        %v1187 = vpop.f32.mrf.mxu0
        %v1188 = vadd.f32 0.0, %v1187
        %v1189 = vpop.f32.mrf.mxu0
        %1190 = vmatprep.mubr.f32.mxu0 0.0
        %1191 = vmatmul.mubr.f32.gmra.mxu0 %v1044
        %v1192 = vpop.f32.mrf.mxu0
        %v1193 = vadd.f32 0.0, %v1192
        %v1194 = vpop.f32.mrf.mxu0
        %1195 = vmatprep.mubr.f32.mxu0 0.0
        %1196 = vmatmul.mubr.f32.gmra.mxu0 %v1046
        %v1197 = vpop.f32.mrf.mxu0
        %v1198 = vadd.f32 0.0, %v1197
        %v1199 = vpop.f32.mrf.mxu0
        %1200 = vmatprep.mubr.f32.mxu0 0.0
        %1201 = vmatmul.mubr.f32.gmra.mxu0 %v1048
        %v1202 = vpop.f32.mrf.mxu0
        %v1203 = vadd.f32 0.0, %v1202
        %v1204 = vpop.f32.mrf.mxu0
        %1205 = vmatprep.mubr.f32.mxu0 0.0
        %1206 = vmatmul.mubr.f32.gmra.mxu0 %v1050
        %v1207 = vpop.f32.mrf.mxu0
        %v1208 = vadd.f32 0.0, %v1207
        %v1209 = vpop.f32.mrf.mxu0
        %1210 = vmatprep.mubr.f32.mxu0 0.0
        %1211 = vmatmul.mubr.f32.gmra.mxu0 %v1052
        %v1212 = vpop.f32.mrf.mxu0
        %v1213 = vadd.f32 0.0, %v1212
        %v1214 = vpop.f32.mrf.mxu0
        %1215 = vmatprep.mubr.f32.mxu0 0.0
        %1216 = vmatmul.mubr.f32.gmra.mxu0 %v1054
        %v1217 = vpop.f32.mrf.mxu0
        %v1218 = vadd.f32 0.0, %v1217
        %v1219 = vpop.f32.mrf.mxu0
        %1220 = vmatprep.mubr.f32.mxu0 0.0
        %1221 = vmatmul.mubr.f32.gmra.mxu0 %v1056
        %v1222 = vpop.f32.mrf.mxu0
        %v1223 = vadd.f32 0.0, %v1222
        %v1224 = vpop.f32.mrf.mxu0
        %1225 = vmatprep.mubr.f32.mxu0 0.0
        %1226 = vmatmul.mubr.f32.gmra.mxu0 %v1058
        %v1227 = vpop.f32.mrf.mxu0
        %v1228 = vadd.f32 0.0, %v1227
        %v1229 = vpop.f32.mrf.mxu0
        %1230 = vmatprep.mubr.f32.mxu0 0.0
        %1231 = vmatmul.mubr.f32.gmra.mxu0 %v1060
        %v1232 = vpop.f32.mrf.mxu0
        %v1233 = vadd.f32 0.0, %v1232
        %v1234 = vpop.f32.mrf.mxu0
        %1235 = vmatprep.mubr.f32.mxu0 0.0
        %1236 = vmatmul.mubr.f32.gmra.mxu0 %v1062
        %v1237 = vpop.f32.mrf.mxu0
        %v1238 = vadd.f32 0.0, %v1237
        %v1239 = vpop.f32.mrf.mxu0
        %1240 = vmatprep.mubr.f32.mxu0 0.0
        %1241 = vmatmul.mubr.f32.gmra.mxu0 %v1064
        %v1242 = vpop.f32.mrf.mxu0
        %v1243 = vadd.f32 0.0, %v1242
        %v1244 = vpop.f32.mrf.mxu0
        %1245 = vmatprep.mubr.f32.mxu0 0.0
        %1246 = vmatmul.mubr.f32.gmra.mxu0 %v1066
        %v1247 = vpop.f32.mrf.mxu0
        %v1248 = vadd.f32 0.0, %v1247
        %v1249 = vpop.f32.mrf.mxu0
        %1250 = vmatprep.mubr.f32.mxu0 0.0
        %1251 = vmatmul.mubr.f32.gmra.mxu0 %v1068
        %v1252 = vpop.f32.mrf.mxu0
        %v1253 = vadd.f32 0.0, %v1252
        %v1254 = vpop.f32.mrf.mxu0
        %1255 = vmatprep.mubr.f32.mxu0 0.0
        %1256 = vmatmul.mubr.f32.gmra.mxu0 %v1070
        %v1257 = vpop.f32.mrf.mxu0
        %v1258 = vadd.f32 0.0, %v1257
        %v1259 = vpop.f32.mrf.mxu0
        %1260 = vmatprep.mubr.f32.mxu0 0.0
        %1261 = vmatmul.mubr.f32.gmra.mxu0 %v1072
        %v1262 = vpop.f32.mrf.mxu0
        %v1263 = vadd.f32 0.0, %v1262
        %v1264 = vpop.f32.mrf.mxu0
        %1265 = vmatprep.mubr.f32.mxu0 0.0
        %1266 = vmatmul.mubr.f32.gmra.mxu0 %v1074
        %v1267 = vpop.f32.mrf.mxu0
        %v1268 = vadd.f32 0.0, %v1267
        %v1269 = vpop.f32.mrf.mxu0
        %1270 = vmatprep.mubr.f32.mxu0 0.0
        %1271 = vmatmul.mubr.f32.gmra.mxu0 %v1076
        %v1272 = vpop.f32.mrf.mxu0
        %v1273 = vadd.f32 0.0, %v1272
        %v1274 = vpop.f32.mrf.mxu0
        %1275 = vmatprep.mubr.f32.mxu0 0.0
        %1276 = vmatmul.mubr.f32.gmra.mxu0 %v1078
        %v1277 = vpop.f32.mrf.mxu0
        %v1278 = vadd.f32 0.0, %v1277
        %v1279 = vpop.f32.mrf.mxu0
        %1280 = vmatprep.mubr.f32.mxu0 0.0
        %1281 = vmatmul.mubr.f32.gmra.mxu0 %v1080
        %v1282 = vpop.f32.mrf.mxu0
        %v1283 = vadd.f32 0.0, %v1282
        %v1284 = vpop.f32.mrf.mxu0
        %1285 = vmatprep.mubr.f32.mxu0 0.0
        %1286 = vmatmul.mubr.f32.gmra.mxu0 %v1082
        %v1287 = vpop.f32.mrf.mxu0
        %v1288 = vadd.f32 0.0, %v1287
        %v1289 = vpop.f32.mrf.mxu0
        %1290 = vmatprep.mubr.f32.mxu0 0.0
        %1291 = vmatmul.mubr.f32.gmra.mxu0 %v1084
        %v1292 = vpop.f32.mrf.mxu0
        %v1293 = vadd.f32 0.0, %v1292
        %v1294 = vpop.f32.mrf.mxu0
        %1295 = vmatprep.mubr.f32.mxu0 0.0
        %1296 = vmatmul.mubr.f32.gmra.mxu0 %v1086
        %v1297 = vpop.f32.mrf.mxu0
        %v1298 = vadd.f32 0.0, %v1297
        %v1299 = vpop.f32.mrf.mxu0
        %1300 = vmatprep.mubr.f32.mxu0 0.0
        %1301 = vmatmul.mubr.f32.gmra.mxu0 %v1088
        %v1302 = vpop.f32.mrf.mxu0
        %v1303 = vadd.f32 0.0, %v1302
        %v1304 = vpop.f32.mrf.mxu0
        %1305 = vmatprep.mubr.f32.mxu0 0.0
        %1306 = vmatmul.mubr.f32.gmra.mxu0 %v1090
        %v1307 = vpop.f32.mrf.mxu0
        %v1308 = vadd.f32 0.0, %v1307
        %v1309 = vpop.f32.mrf.mxu0
        %1310 = vmatprep.mubr.f32.mxu0 0.0
        %1311 = vmatmul.mubr.f32.gmra.mxu0 %v1092
        %v1312 = vpop.f32.mrf.mxu0
        %v1313 = vadd.f32 0.0, %v1312
        %v1314 = vpop.f32.mrf.mxu0
        %1315 = vmatprep.mubr.f32.mxu0 0.0
        %1316 = vmatmul.mubr.f32.gmra.mxu0 %v1094
        %v1317 = vpop.f32.mrf.mxu0
        %v1318 = vadd.f32 0.0, %v1317
        %v1319 = vpop.f32.mrf.mxu0
        %1320 = vmatprep.mubr.f32.mxu0 0.0
        %1321 = vmatmul.mubr.f32.gmra.mxu0 %v1096
        %v1322 = vpop.f32.mrf.mxu0
        %v1323 = vadd.f32 0.0, %v1322
        %v1324 = vpop.f32.mrf.mxu0
        %1325 = vdwg.mxu0
        %v1326 = vadd.f32 %v807, %v1168
        %v1327 = vadd.f32 %v812, %v1173
        %v1328 = vadd.f32 %v817, %v1178
        %v1329 = vadd.f32 %v822, %v1183
        %v1330 = vadd.f32 %v827, %v1188
        %v1331 = vadd.f32 %v832, %v1193
        %v1332 = vadd.f32 %v837, %v1198
        %v1333 = vadd.f32 %v842, %v1203
        %v1334 = vadd.f32 %v847, %v1208
        %v1335 = vadd.f32 %v852, %v1213
        %v1336 = vadd.f32 %v857, %v1218
        %v1337 = vadd.f32 %v862, %v1223
        %v1338 = vadd.f32 %v867, %v1228
        %v1339 = vadd.f32 %v872, %v1233
        %v1340 = vadd.f32 %v877, %v1238
        %v1341 = vadd.f32 %v882, %v1243
        %v1342 = vadd.f32 %v887, %v1248
        %v1343 = vadd.f32 %v892, %v1253
        %v1344 = vadd.f32 %v897, %v1258
        %v1345 = vadd.f32 %v902, %v1263
        %v1346 = vadd.f32 %v907, %v1268
        %v1347 = vadd.f32 %v912, %v1273
        %v1348 = vadd.f32 %v917, %v1278
        %v1349 = vadd.f32 %v922, %v1283
        %v1350 = vadd.f32 %v927, %v1288
        %v1351 = vadd.f32 %v932, %v1293
        %v1352 = vadd.f32 %v937, %v1298
        %v1353 = vadd.f32 %v942, %v1303
        %v1354 = vadd.f32 %v947, %v1308
        %v1355 = vadd.f32 %v952, %v1313
        %v1356 = vadd.f32 %v957, %v1318
        %v1357 = vadd.f32 %v962, %v1323
        %v1358 = vsel %vm246, 1, 0
        %v1359 = vsel %vm247, 1, 0
        %v1360 = vsel %vm248, 1, 0
        %v1361 = vsel %vm249, 1, 0
        %v1362 = vsel %vm250, 1, 0
        %v1363 = vsel %vm251, 1, 0
        %v1364 = vsel %vm252, 1, 0
        %v1365 = vsel %vm253, 1, 0
        %v1366 = vsel %vm254, 1, 0
        %v1367 = vsel %vm255, 1, 0
        %v1368 = vsel %vm256, 1, 0
        %v1369 = vsel %vm257, 1, 0
        %v1370 = vsel %vm258, 1, 0
        %v1371 = vsel %vm259, 1, 0
        %v1372 = vsel %vm260, 1, 0
        %v1373 = vsel %vm261, 1, 0
        %vm1374 = vcmp.eq.s32.totalorder %v1358, 1
        %vm1375 = vcmp.eq.s32.totalorder %v1359, 1
        %vm1376 = vcmp.eq.s32.totalorder %v1360, 1
        %vm1377 = vcmp.eq.s32.totalorder %v1361, 1
        %vm1378 = vcmp.eq.s32.totalorder %v1362, 1
        %vm1379 = vcmp.eq.s32.totalorder %v1363, 1
        %vm1380 = vcmp.eq.s32.totalorder %v1364, 1
        %vm1381 = vcmp.eq.s32.totalorder %v1365, 1
        %vm1382 = vcmp.eq.s32.totalorder %v1366, 1
        %vm1383 = vcmp.eq.s32.totalorder %v1367, 1
        %vm1384 = vcmp.eq.s32.totalorder %v1368, 1
        %vm1385 = vcmp.eq.s32.totalorder %v1369, 1
        %vm1386 = vcmp.eq.s32.totalorder %v1370, 1
        %vm1387 = vcmp.eq.s32.totalorder %v1371, 1
        %vm1388 = vcmp.eq.s32.totalorder %v1372, 1
        %vm1389 = vcmp.eq.s32.totalorder %v1373, 1
        %v1390 = vsel %vm1374, %v1326, 0.0
        %v1391 = vsel %vm1375, %v1327, 0.0
        %v1392 = vsel %vm1376, %v1328, 0.0
        %v1393 = vsel %vm1377, %v1329, 0.0
        %v1394 = vsel %vm1378, %v1330, 0.0
        %v1395 = vsel %vm1379, %v1331, 0.0
        %v1396 = vsel %vm1380, %v1332, 0.0
        %v1397 = vsel %vm1381, %v1333, 0.0
        %v1398 = vsel %vm1382, %v1334, 0.0
        %v1399 = vsel %vm1383, %v1335, 0.0
        %v1400 = vsel %vm1384, %v1336, 0.0
        %v1401 = vsel %vm1385, %v1337, 0.0
        %v1402 = vsel %vm1386, %v1338, 0.0
        %v1403 = vsel %vm1387, %v1339, 0.0
        %v1404 = vsel %vm1388, %v1340, 0.0
        %v1405 = vsel %vm1389, %v1341, 0.0
        %v1406 = vsel %vm1374, %v1342, 0.0
        %v1407 = vsel %vm1375, %v1343, 0.0
        %v1408 = vsel %vm1376, %v1344, 0.0
        %v1409 = vsel %vm1377, %v1345, 0.0
        %v1410 = vsel %vm1378, %v1346, 0.0
        %v1411 = vsel %vm1379, %v1347, 0.0
        %v1412 = vsel %vm1380, %v1348, 0.0
        %v1413 = vsel %vm1381, %v1349, 0.0
        %v1414 = vsel %vm1382, %v1350, 0.0
        %v1415 = vsel %vm1383, %v1351, 0.0
        %v1416 = vsel %vm1384, %v1352, 0.0
        %v1417 = vsel %vm1385, %v1353, 0.0
        %v1418 = vsel %vm1386, %v1354, 0.0
        %v1419 = vsel %vm1387, %v1355, 0.0
        %v1420 = vsel %vm1388, %v1356, 0.0
        %v1421 = vsel %vm1389, %v1357, 0.0
        %vm1422 = vcmask 64512
        %v1423 = vsel %vm1422, %v1390, 0.0
        %v1424 = vsel %vm1422, %v1391, 0.0
        %v1425 = vadd.f32 %v1423, %v1424
        %v1426 = vsel %vm1422, %v1392, 0.0
        %v1427 = vadd.f32 %v1425, %v1426
        %v1428 = vsel %vm1422, %v1393, 0.0
        %v1429 = vadd.f32 %v1427, %v1428
        %v1430 = vsel %vm1422, %v1394, 0.0
        %v1431 = vadd.f32 %v1429, %v1430
        %v1432 = vsel %vm1422, %v1395, 0.0
        %v1433 = vadd.f32 %v1431, %v1432
        %v1434 = vsel %vm1422, %v1396, 0.0
        %v1435 = vadd.f32 %v1433, %v1434
        %v1436 = vsel %vm1422, %v1397, 0.0
        %v1437 = vadd.f32 %v1435, %v1436
        %v1438 = vsel %vm1422, %v1398, 0.0
        %v1439 = vadd.f32 %v1437, %v1438
        %v1440 = vsel %vm1422, %v1399, 0.0
        %v1441 = vadd.f32 %v1439, %v1440
        %v1442 = vsel %vm1422, %v1400, 0.0
        %v1443 = vadd.f32 %v1441, %v1442
        %v1444 = vsel %vm1422, %v1401, 0.0
        %v1445 = vadd.f32 %v1443, %v1444
        %v1446 = vsel %vm1422, %v1402, 0.0
        %v1447 = vadd.f32 %v1445, %v1446
        %v1448 = vsel %vm1422, %v1403, 0.0
        %v1449 = vadd.f32 %v1447, %v1448
        %v1450 = vsel %vm1422, %v1404, 0.0
        %v1451 = vadd.f32 %v1449, %v1450
        %v1452 = vsel %vm1422, %v1405, 0.0
        %v1453 = vadd.f32 %v1451, %v1452
        %v1454 = vsel %vm1422, %v1406, 0.0
        %v1455 = vadd.f32 %v1453, %v1454
        %v1456 = vsel %vm1422, %v1407, 0.0
        %v1457 = vadd.f32 %v1455, %v1456
        %v1458 = vsel %vm1422, %v1408, 0.0
        %v1459 = vadd.f32 %v1457, %v1458
        %v1460 = vsel %vm1422, %v1409, 0.0
        %v1461 = vadd.f32 %v1459, %v1460
        %v1462 = vsel %vm1422, %v1410, 0.0
        %v1463 = vadd.f32 %v1461, %v1462
        %v1464 = vsel %vm1422, %v1411, 0.0
        %v1465 = vadd.f32 %v1463, %v1464
        %v1466 = vsel %vm1422, %v1412, 0.0
        %v1467 = vadd.f32 %v1465, %v1466
        %v1468 = vsel %vm1422, %v1413, 0.0
        %v1469 = vadd.f32 %v1467, %v1468
        %v1470 = vsel %vm1422, %v1414, 0.0
        %v1471 = vadd.f32 %v1469, %v1470
        %v1472 = vsel %vm1422, %v1415, 0.0
        %v1473 = vadd.f32 %v1471, %v1472
        %v1474 = vsel %vm1422, %v1416, 0.0
        %v1475 = vadd.f32 %v1473, %v1474
        %v1476 = vsel %vm1422, %v1417, 0.0
        %v1477 = vadd.f32 %v1475, %v1476
        %v1478 = vsel %vm1422, %v1418, 0.0
        %v1479 = vadd.f32 %v1477, %v1478
        %v1480 = vsel %vm1422, %v1419, 0.0
        %v1481 = vadd.f32 %v1479, %v1480
        %v1482 = vsel %vm1422, %v1420, 0.0
        %v1483 = vadd.f32 %v1481, %v1482
        %v1484 = vsel %vm1422, %v1421, 0.0
        %v1485 = vadd.f32 %v1483, %v1484
        %v1486 = vrot.slane %v1485, 4
        %v1487 = vadd.f32 %v1485, %v1486
        %v1488 = vrot.slane %v1487, 2
        %v1489 = vadd.f32 %v1487, %v1488
        %v1490 = vrot.slane %v1489, 1
        %v1491 = vadd.f32 %v1489, %v1490
        %v1492 = vstv %s173
        %v1493 = vrcp.pop %v1492
        %v1494 = vmul.f32 %v1491, %v1493
        %v1495 = vsub.f32 %v1326, %v1494
        %v1496 = vsub.f32 %v1327, %v1494
        %v1497 = vsub.f32 %v1328, %v1494
        %v1498 = vsub.f32 %v1329, %v1494
        %v1499 = vsub.f32 %v1330, %v1494
        %v1500 = vsub.f32 %v1331, %v1494
        %v1501 = vsub.f32 %v1332, %v1494
        %v1502 = vsub.f32 %v1333, %v1494
        %v1503 = vsub.f32 %v1334, %v1494
        %v1504 = vsub.f32 %v1335, %v1494
        %v1505 = vsub.f32 %v1336, %v1494
        %v1506 = vsub.f32 %v1337, %v1494
        %v1507 = vsub.f32 %v1338, %v1494
        %v1508 = vsub.f32 %v1339, %v1494
        %v1509 = vsub.f32 %v1340, %v1494
        %v1510 = vsub.f32 %v1341, %v1494
        %v1511 = vsub.f32 %v1342, %v1494
        %v1512 = vsub.f32 %v1343, %v1494
        %v1513 = vsub.f32 %v1344, %v1494
        %v1514 = vsub.f32 %v1345, %v1494
        %v1515 = vsub.f32 %v1346, %v1494
        %v1516 = vsub.f32 %v1347, %v1494
        %v1517 = vsub.f32 %v1348, %v1494
        %v1518 = vsub.f32 %v1349, %v1494
        %v1519 = vsub.f32 %v1350, %v1494
        %v1520 = vsub.f32 %v1351, %v1494
        %v1521 = vsub.f32 %v1352, %v1494
        %v1522 = vsub.f32 %v1353, %v1494
        %v1523 = vsub.f32 %v1354, %v1494
        %v1524 = vsub.f32 %v1355, %v1494
        %v1525 = vsub.f32 %v1356, %v1494
        %v1526 = vsub.f32 %v1357, %v1494
        %v1527 = vsel %vm1374, %v1495, 0.0
        %v1528 = vsel %vm1375, %v1496, 0.0
        %v1529 = vsel %vm1376, %v1497, 0.0
        %v1530 = vsel %vm1377, %v1498, 0.0
        %v1531 = vsel %vm1378, %v1499, 0.0
        %v1532 = vsel %vm1379, %v1500, 0.0
        %v1533 = vsel %vm1380, %v1501, 0.0
        %v1534 = vsel %vm1381, %v1502, 0.0
        %v1535 = vsel %vm1382, %v1503, 0.0
        %v1536 = vsel %vm1383, %v1504, 0.0
        %v1537 = vsel %vm1384, %v1505, 0.0
        %v1538 = vsel %vm1385, %v1506, 0.0
        %v1539 = vsel %vm1386, %v1507, 0.0
        %v1540 = vsel %vm1387, %v1508, 0.0
        %v1541 = vsel %vm1388, %v1509, 0.0
        %v1542 = vsel %vm1389, %v1510, 0.0
        %v1543 = vsel %vm1374, %v1511, 0.0
        %v1544 = vsel %vm1375, %v1512, 0.0
        %v1545 = vsel %vm1376, %v1513, 0.0
        %v1546 = vsel %vm1377, %v1514, 0.0
        %v1547 = vsel %vm1378, %v1515, 0.0
        %v1548 = vsel %vm1379, %v1516, 0.0
        %v1549 = vsel %vm1380, %v1517, 0.0
        %v1550 = vsel %vm1381, %v1518, 0.0
        %v1551 = vsel %vm1382, %v1519, 0.0
        %v1552 = vsel %vm1383, %v1520, 0.0
        %v1553 = vsel %vm1384, %v1521, 0.0
        %v1554 = vsel %vm1385, %v1522, 0.0
        %v1555 = vsel %vm1386, %v1523, 0.0
        %v1556 = vsel %vm1387, %v1524, 0.0
        %v1557 = vsel %vm1388, %v1525, 0.0
        %v1558 = vsel %vm1389, %v1526, 0.0
        %v1559 = vmul.f32 %v1527, %v1527
        %v1560 = vmul.f32 %v1528, %v1528
        %v1561 = vmul.f32 %v1529, %v1529
        %v1562 = vmul.f32 %v1530, %v1530
        %v1563 = vmul.f32 %v1531, %v1531
        %v1564 = vmul.f32 %v1532, %v1532
        %v1565 = vmul.f32 %v1533, %v1533
        %v1566 = vmul.f32 %v1534, %v1534
        %v1567 = vmul.f32 %v1535, %v1535
        %v1568 = vmul.f32 %v1536, %v1536
        %v1569 = vmul.f32 %v1537, %v1537
        %v1570 = vmul.f32 %v1538, %v1538
        %v1571 = vmul.f32 %v1539, %v1539
        %v1572 = vmul.f32 %v1540, %v1540
        %v1573 = vmul.f32 %v1541, %v1541
        %v1574 = vmul.f32 %v1542, %v1542
        %v1575 = vmul.f32 %v1543, %v1543
        %v1576 = vmul.f32 %v1544, %v1544
        %v1577 = vmul.f32 %v1545, %v1545
        %v1578 = vmul.f32 %v1546, %v1546
        %v1579 = vmul.f32 %v1547, %v1547
        %v1580 = vmul.f32 %v1548, %v1548
        %v1581 = vmul.f32 %v1549, %v1549
        %v1582 = vmul.f32 %v1550, %v1550
        %v1583 = vmul.f32 %v1551, %v1551
        %v1584 = vmul.f32 %v1552, %v1552
        %v1585 = vmul.f32 %v1553, %v1553
        %v1586 = vmul.f32 %v1554, %v1554
        %v1587 = vmul.f32 %v1555, %v1555
        %v1588 = vmul.f32 %v1556, %v1556
        %v1589 = vmul.f32 %v1557, %v1557
        %v1590 = vmul.f32 %v1558, %v1558
        %v1591 = vsel %vm1422, %v1559, 0.0
        %v1592 = vsel %vm1422, %v1560, 0.0
        %v1593 = vadd.f32 %v1591, %v1592
        %v1594 = vsel %vm1422, %v1561, 0.0
        %v1595 = vadd.f32 %v1593, %v1594
        %v1596 = vsel %vm1422, %v1562, 0.0
        %v1597 = vadd.f32 %v1595, %v1596
        %v1598 = vsel %vm1422, %v1563, 0.0
        %v1599 = vadd.f32 %v1597, %v1598
        %v1600 = vsel %vm1422, %v1564, 0.0
        %v1601 = vadd.f32 %v1599, %v1600
        %v1602 = vsel %vm1422, %v1565, 0.0
        %v1603 = vadd.f32 %v1601, %v1602
        %v1604 = vsel %vm1422, %v1566, 0.0
        %v1605 = vadd.f32 %v1603, %v1604
        %v1606 = vsel %vm1422, %v1567, 0.0
        %v1607 = vadd.f32 %v1605, %v1606
        %v1608 = vsel %vm1422, %v1568, 0.0
        %v1609 = vadd.f32 %v1607, %v1608
        %v1610 = vsel %vm1422, %v1569, 0.0
        %v1611 = vadd.f32 %v1609, %v1610
        %v1612 = vsel %vm1422, %v1570, 0.0
        %v1613 = vadd.f32 %v1611, %v1612
        %v1614 = vsel %vm1422, %v1571, 0.0
        %v1615 = vadd.f32 %v1613, %v1614
        %v1616 = vsel %vm1422, %v1572, 0.0
        %v1617 = vadd.f32 %v1615, %v1616
        %v1618 = vsel %vm1422, %v1573, 0.0
        %v1619 = vadd.f32 %v1617, %v1618
        %v1620 = vsel %vm1422, %v1574, 0.0
        %v1621 = vadd.f32 %v1619, %v1620
        %v1622 = vsel %vm1422, %v1575, 0.0
        %v1623 = vadd.f32 %v1621, %v1622
        %v1624 = vsel %vm1422, %v1576, 0.0
        %v1625 = vadd.f32 %v1623, %v1624
        %v1626 = vsel %vm1422, %v1577, 0.0
        %v1627 = vadd.f32 %v1625, %v1626
        %v1628 = vsel %vm1422, %v1578, 0.0
        %v1629 = vadd.f32 %v1627, %v1628
        %v1630 = vsel %vm1422, %v1579, 0.0
        %v1631 = vadd.f32 %v1629, %v1630
        %v1632 = vsel %vm1422, %v1580, 0.0
        %v1633 = vadd.f32 %v1631, %v1632
        %v1634 = vsel %vm1422, %v1581, 0.0
        %v1635 = vadd.f32 %v1633, %v1634
        %v1636 = vsel %vm1422, %v1582, 0.0
        %v1637 = vadd.f32 %v1635, %v1636
        %v1638 = vsel %vm1422, %v1583, 0.0
        %v1639 = vadd.f32 %v1637, %v1638
        %v1640 = vsel %vm1422, %v1584, 0.0
        %v1641 = vadd.f32 %v1639, %v1640
        %v1642 = vsel %vm1422, %v1585, 0.0
        %v1643 = vadd.f32 %v1641, %v1642
        %v1644 = vsel %vm1422, %v1586, 0.0
        %v1645 = vadd.f32 %v1643, %v1644
        %v1646 = vsel %vm1422, %v1587, 0.0
        %v1647 = vadd.f32 %v1645, %v1646
        %v1648 = vsel %vm1422, %v1588, 0.0
        %v1649 = vadd.f32 %v1647, %v1648
        %v1650 = vsel %vm1422, %v1589, 0.0
        %v1651 = vadd.f32 %v1649, %v1650
        %v1652 = vsel %vm1422, %v1590, 0.0
        %v1653 = vadd.f32 %v1651, %v1652
        %v1654 = vrot.slane %v1653, 4
        %v1655 = vadd.f32 %v1653, %v1654
        %v1656 = vrot.slane %v1655, 2
        %v1657 = vadd.f32 %v1655, %v1656
        %v1658 = vrot.slane %v1657, 1
        %v1659 = vadd.f32 %v1657, %v1658
        %s1660 = sadd.f32 %s175, %s173
        %v1661 = vld [vmem:[#allocation2] sm:$0x1]
        %v1662 = vsub.f32 %v1494, %v1661
        %v1663 = vstv %s1660
        %v1664 = vrcp.pop %v1663
        %s1665 = vtos %v1664
        %s1666 = smul.f32 %s173, %s1665
        %v1667 = vstv %s1666
        %v1668 = vmul.f32 %v1662, %v1667
        %v1669 = vadd.f32 %v1661, %v1668
        %vm1670 = vcmask 57344
        %1671 = vst.msk [vmem:[#allocation2] sm:$0x1] %vm1670, %v1669
        %v1672 = vld [vmem:[#allocation3] sm:$0x1]
        %v1673 = vadd.f32 %v1672, %v1659
        %v1674 = vmul.f32 %v1662, %v1662
        %s1675 = smul.f32 %s175, %s173
        %v1676 = vstv %s1660
        %v1677 = vrcp.pop %v1676
        %s1678 = vtos %v1677
        %s1679 = smul.f32 %s1675, %s1678
        %v1680 = vstv %s1679
        %v1681 = vmul.f32 %v1674, %v1680
        %v1682 = vadd.f32 %v1673, %v1681
        %1683 = vst.msk [vmem:[#allocation3] sm:$0x1] %vm1670, %v1682
      $region40: #{conv_pre_wav_block.1} parent=31 // pred_fallthru
        _
      %p1684 = scmp.eq.s32.totalorder %s18, 1
      %p1685 = pnand %p1684, %p263
      %p1686 = pneg %p1685
      // Predicated region
      $region41: #{conv_pre_wav_block.1} parent=31 // pred_check
        _
      $region42: #{conv_pre_wav_block.1} parent=31 // pred_check_branch
        %1688 = sbr.rel (%p1685) target = $region44
      $region43: #{conv_pre_wav_block.1} parent=31 // pred_region
        %v1689 = vld [vmem:[#allocation3] sm:$0x1]
        %v1690 = vrcp.pop 1252.0
        %v1691 = vmul.f32 %v1689, %v1690
        %v1692 = vadd.f32 %v1691, 1e-05
        %v1693 = vrsqrt.pop %v1692
        %v1694 = vld [vmem:[%s1] sm:$0xff]
        %v1695 = vld [vmem:[%s1 + $0x8] sm:$0xf]
        %v1697 = vlaneseq
        %v1698 = vshrl.u32 %v1697, 7
        %v1699 = vsub.s32 0, %v1698
        %v1700 = vrot.slane %v1693, %v1699
        %v1702 = vmul.f32 %v1694, %v1700
        %v1703 = vmul.f32 %v1695, %v1700
        %vm1704 = vcmask 64512
        %1705 = vst.msk [vmem:[#allocation6] sm:$0xff] %vm1704, %v1702
        %vm1706 = vcmask 60416
        %1707 = vst.msk [vmem:[#allocation6 + $0x8] sm:$0xf] %vm1706, %v1703
        %v1708 = vld [vmem:[#allocation2] sm:$0x1]
        %v1709 = vmul.f32 %v1708, %v1693
        %vm1710 = vcmask 57344
        %1711 = vst.msk [vmem:[#allocation7] sm:$0x1] %vm1710, %v1709
      $region44: #{conv_pre_wav_block.1} parent=31 // pred_fallthru
        _
      // Predicated region
      $region45: #{conv_pre_wav_block.1} parent=31 // pred_check
        %p1712 = pneg %p1684
      $region46: #{conv_pre_wav_block.1} parent=31 // pred_check_branch
        %1714 = sbr.rel (%p1712) target = $region48
      $region47: #{conv_pre_wav_block.1} parent=31 // pred_region
        %v1715 = vld [vmem:[#allocation6] sm:$0xff]
        %v1716 = vld [vmem:[#allocation6 + $0x8] sm:$0xf]
        %vm1753 = vcmask 1042432
        %v1754 = vrot.slane %v176, 5
        %v1755 = vrot.slane %v177, 5
        %v1756 = vsel %vm1753, %v1754, %v1755
        %v1757 = vrot.slane %v178, 5
        %v1758 = vsel %vm1753, %v1755, %v1757
        %v1759 = vrot.slane %v179, 5
        %v1760 = vsel %vm1753, %v1757, %v1759
        %v1761 = vrot.slane %v180, 5
        %v1762 = vsel %vm1753, %v1759, %v1761
        %v1763 = vrot.slane %v181, 5
        %v1764 = vsel %vm1753, %v1761, %v1763
        %v1765 = vrot.slane %v182, 5
        %v1766 = vsel %vm1753, %v1763, %v1765
        %v1767 = vrot.slane %v183, 5
        %v1768 = vsel %vm1753, %v1765, %v1767
        %v1769 = vrot.slane %v184, 5
        %v1770 = vsel %vm1753, %v1767, %v1769
        %v1771 = vrot.slane %v185, 5
        %v1772 = vsel %vm1753, %v1769, %v1771
        %v1773 = vrot.slane %v186, 5
        %v1774 = vsel %vm1753, %v1771, %v1773
        %v1775 = vrot.slane %v187, 5
        %v1776 = vsel %vm1753, %v1773, %v1775
        %v1777 = vrot.slane %v188, 5
        %v1778 = vsel %vm1753, %v1775, %v1777
        %v1779 = vrot.slane %v189, 5
        %v1780 = vsel %vm1753, %v1777, %v1779
        %v1781 = vrot.slane %v190, 5
        %v1782 = vsel %vm1753, %v1779, %v1781
        %v1783 = vrot.slane %v191, 5
        %v1784 = vsel %vm1753, %v1781, %v1783
        %v1785 = vrot.slane %v192, 5
        %v1786 = vsel %vm1753, %v1783, %v1785
        %v1787 = vrot.slane %v193, 5
        %v1788 = vsel %vm1753, %v1785, %v1787
        %v1789 = vrot.slane %v194, 5
        %v1790 = vrot.slane %v195, 5
        %v1791 = vsel %vm1753, %v1789, %v1790
        %v1792 = vrot.slane %v196, 5
        %v1793 = vsel %vm1753, %v1790, %v1792
        %v1794 = vrot.slane %v197, 5
        %v1795 = vsel %vm1753, %v1792, %v1794
        %v1796 = vrot.slane %v198, 5
        %v1797 = vsel %vm1753, %v1794, %v1796
        %v1798 = vrot.slane %v199, 5
        %v1799 = vsel %vm1753, %v1796, %v1798
        %v1800 = vrot.slane %v200, 5
        %v1801 = vsel %vm1753, %v1798, %v1800
        %v1802 = vrot.slane %v201, 5
        %v1803 = vsel %vm1753, %v1800, %v1802
        %v1804 = vrot.slane %v202, 5
        %v1805 = vsel %vm1753, %v1802, %v1804
        %v1806 = vrot.slane %v203, 5
        %v1807 = vsel %vm1753, %v1804, %v1806
        %v1808 = vrot.slane %v204, 5
        %v1809 = vsel %vm1753, %v1806, %v1808
        %v1810 = vrot.slane %v205, 5
        %v1811 = vsel %vm1753, %v1808, %v1810
        %v1812 = vrot.slane %v206, 5
        %v1813 = vsel %vm1753, %v1810, %v1812
        %v1814 = vrot.slane %v207, 5
        %v1815 = vsel %vm1753, %v1812, %v1814
        %v1816 = vrot.slane %v208, 5
        %v1817 = vsel %vm1753, %v1814, %v1816
        %v1818 = vrot.slane %v209, 5
        %v1819 = vsel %vm1753, %v1816, %v1818
        %v1820 = vrot.slane %v210, 5
        %v1821 = vsel %vm1753, %v1818, %v1820
        %v1822 = vrot.slane %v211, 5
        %v1823 = vsel %vm1753, %v1820, %v1822
        %vm1824 = vcmask 1041408
        %v1825 = vrot.slane %v176, 6
        %v1826 = vrot.slane %v177, 6
        %v1827 = vsel %vm1824, %v1825, %v1826
        %v1828 = vrot.slane %v178, 6
        %v1829 = vsel %vm1824, %v1826, %v1828
        %v1830 = vrot.slane %v179, 6
        %v1831 = vsel %vm1824, %v1828, %v1830
        %v1832 = vrot.slane %v180, 6
        %v1833 = vsel %vm1824, %v1830, %v1832
        %v1834 = vrot.slane %v181, 6
        %v1835 = vsel %vm1824, %v1832, %v1834
        %v1836 = vrot.slane %v182, 6
        %v1837 = vsel %vm1824, %v1834, %v1836
        %v1838 = vrot.slane %v183, 6
        %v1839 = vsel %vm1824, %v1836, %v1838
        %v1840 = vrot.slane %v184, 6
        %v1841 = vsel %vm1824, %v1838, %v1840
        %v1842 = vrot.slane %v185, 6
        %v1843 = vsel %vm1824, %v1840, %v1842
        %v1844 = vrot.slane %v186, 6
        %v1845 = vsel %vm1824, %v1842, %v1844
        %v1846 = vrot.slane %v187, 6
        %v1847 = vsel %vm1824, %v1844, %v1846
        %v1848 = vrot.slane %v188, 6
        %v1849 = vsel %vm1824, %v1846, %v1848
        %v1850 = vrot.slane %v189, 6
        %v1851 = vsel %vm1824, %v1848, %v1850
        %v1852 = vrot.slane %v190, 6
        %v1853 = vsel %vm1824, %v1850, %v1852
        %v1854 = vrot.slane %v191, 6
        %v1855 = vsel %vm1824, %v1852, %v1854
        %v1856 = vrot.slane %v192, 6
        %v1857 = vsel %vm1824, %v1854, %v1856
        %v1858 = vrot.slane %v193, 6
        %v1859 = vsel %vm1824, %v1856, %v1858
        %v1860 = vrot.slane %v194, 6
        %v1861 = vrot.slane %v195, 6
        %v1862 = vsel %vm1824, %v1860, %v1861
        %v1863 = vrot.slane %v196, 6
        %v1864 = vsel %vm1824, %v1861, %v1863
        %v1865 = vrot.slane %v197, 6
        %v1866 = vsel %vm1824, %v1863, %v1865
        %v1867 = vrot.slane %v198, 6
        %v1868 = vsel %vm1824, %v1865, %v1867
        %v1869 = vrot.slane %v199, 6
        %v1870 = vsel %vm1824, %v1867, %v1869
        %v1871 = vrot.slane %v200, 6
        %v1872 = vsel %vm1824, %v1869, %v1871
        %v1873 = vrot.slane %v201, 6
        %v1874 = vsel %vm1824, %v1871, %v1873
        %v1875 = vrot.slane %v202, 6
        %v1876 = vsel %vm1824, %v1873, %v1875
        %v1877 = vrot.slane %v203, 6
        %v1878 = vsel %vm1824, %v1875, %v1877
        %v1879 = vrot.slane %v204, 6
        %v1880 = vsel %vm1824, %v1877, %v1879
        %v1881 = vrot.slane %v205, 6
        %v1882 = vsel %vm1824, %v1879, %v1881
        %v1883 = vrot.slane %v206, 6
        %v1884 = vsel %vm1824, %v1881, %v1883
        %v1885 = vrot.slane %v207, 6
        %v1886 = vsel %vm1824, %v1883, %v1885
        %v1887 = vrot.slane %v208, 6
        %v1888 = vsel %vm1824, %v1885, %v1887
        %v1889 = vrot.slane %v209, 6
        %v1890 = vsel %vm1824, %v1887, %v1889
        %v1891 = vrot.slane %v210, 6
        %v1892 = vsel %vm1824, %v1889, %v1891
        %v1893 = vrot.slane %v211, 6
        %v1894 = vsel %vm1824, %v1891, %v1893
        %v1896 = vrot.slane %v1715, 4
        %vm1897 = vcmask 31744
        %v1898 = vsel %vm1897, %v1827, 0
        %v1900 = vsel %vm1897, %v1829, 0
        %v1902 = vsel %vm1897, %v1831, 0
        %v1904 = vsel %vm1897, %v1833, 0
        %v1906 = vsel %vm1897, %v1835, 0
        %v1908 = vsel %vm1897, %v1837, 0
        %v1910 = vsel %vm1897, %v1839, 0
        %v1912 = vsel %vm1897, %v1841, 0
        %v1914 = vsel %vm1897, %v1843, 0
        %v1916 = vsel %vm1897, %v1845, 0
        %v1918 = vsel %vm1897, %v1847, 0
        %v1920 = vsel %vm1897, %v1849, 0
        %v1922 = vsel %vm1897, %v1851, 0
        %v1924 = vsel %vm1897, %v1853, 0
        %v1926 = vsel %vm1897, %v1855, 0
        %v1928 = vsel %vm1897, %v1857, 0
        %v1930 = vsel %vm1897, %v1859, 0
        %v1932 = vsel %vm1897, %v1862, 0
        %v1934 = vsel %vm1897, %v1864, 0
        %v1936 = vsel %vm1897, %v1866, 0
        %v1938 = vsel %vm1897, %v1868, 0
        %v1940 = vsel %vm1897, %v1870, 0
        %v1942 = vsel %vm1897, %v1872, 0
        %v1944 = vsel %vm1897, %v1874, 0
        %v1946 = vsel %vm1897, %v1876, 0
        %v1948 = vsel %vm1897, %v1878, 0
        %v1950 = vsel %vm1897, %v1880, 0
        %v1952 = vsel %vm1897, %v1882, 0
        %v1954 = vsel %vm1897, %v1884, 0
        %v1956 = vsel %vm1897, %v1886, 0
        %v1958 = vsel %vm1897, %v1888, 0
        %v1960 = vsel %vm1897, %v1890, 0
        %v1962 = vsel %vm1897, %v1892, 0
        %v1964 = vsel %vm1897, %v1894, 0
        %vm1966 = vcmask 1043456
        %v1967 = vsel %vm1966, %v1896, 0
        %1969 = vmatprep.subr.mxu0 0.0
        %1970 = vmatpush1.msra.mxu0 0.0
        %1971 = vmatprep.subr.mxu0 0.0
        %1972 = vmatpush1.msra.mxu0 0.0
        %1973 = vmatprep.subr.mxu0 0.0
        %1974 = vmatpush1.msra.mxu0 0.0
        %1975 = vmatprep.subr.mxu0 0.0
        %1976 = vmatpush1.msra.mxu0 0.0
        %1977 = vmatprep.subr.mxu0 0.0
        %1978 = vmatpush1.msra.mxu0 0.0
        %1979 = vmatprep.subr.mxu0 0.0
        %1980 = vmatpush1.msra.mxu0 0.0
        %1981 = vmatprep.subr.mxu0 0.0
        %1982 = vmatpush1.msra.mxu0 0.0
        %1983 = vmatprep.subr.mxu0 0.0
        %1984 = vmatpush1.msra.mxu0 0.0
        %1985 = vmatprep.subr.mxu0 0.0
        %1986 = vmatpush1.msra.mxu0 0.0
        %1987 = vmatprep.subr.mxu0 0.0
        %1988 = vmatpush1.msra.mxu0 0.0
        %1989 = vmatprep.subr.mxu0 0.0
        %1990 = vmatpush1.msra.mxu0 0.0
        %1991 = vmatprep.subr.mxu0 0.0
        %1992 = vmatpush1.msra.mxu0 0.0
        %1993 = vmatprep.subr.mxu0 0.0
        %1994 = vmatpush1.msra.mxu0 0.0
        %1995 = vmatprep.subr.mxu0 0.0
        %1996 = vmatpush1.msra.mxu0 0.0
        %1997 = vmatprep.subr.mxu0 0.0
        %1998 = vmatpush1.msra.mxu0 0.0
        %1999 = vmatprep.subr.mxu0 0.0
        %2000 = vmatpush1.msra.mxu0 %v1967
        %2001 = vmatprep.subr.mxu0 0.0
        %2002 = vmatpush2.msra.mxu0 0.0
        %2003 = vmatprep.subr.mxu0 0.0
        %2004 = vmatpush2.msra.mxu0 0.0
        %2005 = vmatprep.subr.mxu0 0.0
        %2006 = vmatpush2.msra.mxu0 0.0
        %2007 = vmatprep.subr.mxu0 0.0
        %2008 = vmatpush2.msra.mxu0 0.0
        %2009 = vmatprep.subr.mxu0 0.0
        %2010 = vmatpush2.msra.mxu0 0.0
        %2011 = vmatprep.subr.mxu0 0.0
        %2012 = vmatpush2.msra.mxu0 0.0
        %2013 = vmatprep.subr.mxu0 0.0
        %2014 = vmatpush2.msra.mxu0 0.0
        %2015 = vmatprep.subr.mxu0 0.0
        %2016 = vmatpush2.msra.mxu0 0.0
        %2017 = vmatprep.subr.mxu0 0.0
        %2018 = vmatpush2.msra.mxu0 0.0
        %2019 = vmatprep.subr.mxu0 0.0
        %2020 = vmatpush2.msra.mxu0 0.0
        %2021 = vmatprep.subr.mxu0 0.0
        %2022 = vmatpush2.msra.mxu0 0.0
        %2023 = vmatprep.subr.mxu0 0.0
        %2024 = vmatpush2.msra.mxu0 0.0
        %2025 = vmatprep.subr.mxu0 0.0
        %2026 = vmatpush2.msra.mxu0 0.0
        %2027 = vmatprep.subr.mxu0 0.0
        %2028 = vmatpush2.msra.mxu0 0.0
        %2029 = vmatprep.subr.mxu0 0.0
        %2030 = vmatpush2.msra.mxu0 0.0
        %2031 = vmatprep.subr.mxu0 0.0
        %2032 = vmatpush2.msra.mxu0 0.0
        %2033 = vmatprep.mubr.f32.mxu0 0.0
        %2034 = vmatmul.mubr.f32.gmra.mxu0 %v1898
        %v2035 = vpop.f32.mrf.mxu0
        %v2036 = vadd.f32 0.0, %v2035
        %v2037 = vpop.f32.mrf.mxu0
        %2038 = vmatprep.mubr.f32.mxu0 0.0
        %2039 = vmatmul.mubr.f32.gmra.mxu0 %v1900
        %v2040 = vpop.f32.mrf.mxu0
        %v2041 = vadd.f32 0.0, %v2040
        %v2042 = vpop.f32.mrf.mxu0
        %2043 = vmatprep.mubr.f32.mxu0 0.0
        %2044 = vmatmul.mubr.f32.gmra.mxu0 %v1902
        %v2045 = vpop.f32.mrf.mxu0
        %v2046 = vadd.f32 0.0, %v2045
        %v2047 = vpop.f32.mrf.mxu0
        %2048 = vmatprep.mubr.f32.mxu0 0.0
        %2049 = vmatmul.mubr.f32.gmra.mxu0 %v1904
        %v2050 = vpop.f32.mrf.mxu0
        %v2051 = vadd.f32 0.0, %v2050
        %v2052 = vpop.f32.mrf.mxu0
        %2053 = vmatprep.mubr.f32.mxu0 0.0
        %2054 = vmatmul.mubr.f32.gmra.mxu0 %v1906
        %v2055 = vpop.f32.mrf.mxu0
        %v2056 = vadd.f32 0.0, %v2055
        %v2057 = vpop.f32.mrf.mxu0
        %2058 = vmatprep.mubr.f32.mxu0 0.0
        %2059 = vmatmul.mubr.f32.gmra.mxu0 %v1908
        %v2060 = vpop.f32.mrf.mxu0
        %v2061 = vadd.f32 0.0, %v2060
        %v2062 = vpop.f32.mrf.mxu0
        %2063 = vmatprep.mubr.f32.mxu0 0.0
        %2064 = vmatmul.mubr.f32.gmra.mxu0 %v1910
        %v2065 = vpop.f32.mrf.mxu0
        %v2066 = vadd.f32 0.0, %v2065
        %v2067 = vpop.f32.mrf.mxu0
        %2068 = vmatprep.mubr.f32.mxu0 0.0
        %2069 = vmatmul.mubr.f32.gmra.mxu0 %v1912
        %v2070 = vpop.f32.mrf.mxu0
        %v2071 = vadd.f32 0.0, %v2070
        %v2072 = vpop.f32.mrf.mxu0
        %2073 = vmatprep.mubr.f32.mxu0 0.0
        %2074 = vmatmul.mubr.f32.gmra.mxu0 %v1914
        %v2075 = vpop.f32.mrf.mxu0
        %v2076 = vadd.f32 0.0, %v2075
        %v2077 = vpop.f32.mrf.mxu0
        %2078 = vmatprep.mubr.f32.mxu0 0.0
        %2079 = vmatmul.mubr.f32.gmra.mxu0 %v1916
        %v2080 = vpop.f32.mrf.mxu0
        %v2081 = vadd.f32 0.0, %v2080
        %v2082 = vpop.f32.mrf.mxu0
        %2083 = vmatprep.mubr.f32.mxu0 0.0
        %2084 = vmatmul.mubr.f32.gmra.mxu0 %v1918
        %v2085 = vpop.f32.mrf.mxu0
        %v2086 = vadd.f32 0.0, %v2085
        %v2087 = vpop.f32.mrf.mxu0
        %2088 = vmatprep.mubr.f32.mxu0 0.0
        %2089 = vmatmul.mubr.f32.gmra.mxu0 %v1920
        %v2090 = vpop.f32.mrf.mxu0
        %v2091 = vadd.f32 0.0, %v2090
        %v2092 = vpop.f32.mrf.mxu0
        %2093 = vmatprep.mubr.f32.mxu0 0.0
        %2094 = vmatmul.mubr.f32.gmra.mxu0 %v1922
        %v2095 = vpop.f32.mrf.mxu0
        %v2096 = vadd.f32 0.0, %v2095
        %v2097 = vpop.f32.mrf.mxu0
        %2098 = vmatprep.mubr.f32.mxu0 0.0
        %2099 = vmatmul.mubr.f32.gmra.mxu0 %v1924
        %v2100 = vpop.f32.mrf.mxu0
        %v2101 = vadd.f32 0.0, %v2100
        %v2102 = vpop.f32.mrf.mxu0
        %2103 = vmatprep.mubr.f32.mxu0 0.0
        %2104 = vmatmul.mubr.f32.gmra.mxu0 %v1926
        %v2105 = vpop.f32.mrf.mxu0
        %v2106 = vadd.f32 0.0, %v2105
        %v2107 = vpop.f32.mrf.mxu0
        %2108 = vmatprep.mubr.f32.mxu0 0.0
        %2109 = vmatmul.mubr.f32.gmra.mxu0 %v1928
        %v2110 = vpop.f32.mrf.mxu0
        %v2111 = vadd.f32 0.0, %v2110
        %v2112 = vpop.f32.mrf.mxu0
        %2113 = vmatprep.mubr.f32.mxu0 0.0
        %2114 = vmatmul.mubr.f32.gmra.mxu0 %v1930
        %v2115 = vpop.f32.mrf.mxu0
        %v2116 = vadd.f32 0.0, %v2115
        %v2117 = vpop.f32.mrf.mxu0
        %2118 = vmatprep.mubr.f32.mxu0 0.0
        %2119 = vmatmul.mubr.f32.gmra.mxu0 %v1932
        %v2120 = vpop.f32.mrf.mxu0
        %v2121 = vadd.f32 0.0, %v2120
        %v2122 = vpop.f32.mrf.mxu0
        %2123 = vmatprep.mubr.f32.mxu0 0.0
        %2124 = vmatmul.mubr.f32.gmra.mxu0 %v1934
        %v2125 = vpop.f32.mrf.mxu0
        %v2126 = vadd.f32 0.0, %v2125
        %v2127 = vpop.f32.mrf.mxu0
        %2128 = vmatprep.mubr.f32.mxu0 0.0
        %2129 = vmatmul.mubr.f32.gmra.mxu0 %v1936
        %v2130 = vpop.f32.mrf.mxu0
        %v2131 = vadd.f32 0.0, %v2130
        %v2132 = vpop.f32.mrf.mxu0
        %2133 = vmatprep.mubr.f32.mxu0 0.0
        %2134 = vmatmul.mubr.f32.gmra.mxu0 %v1938
        %v2135 = vpop.f32.mrf.mxu0
        %v2136 = vadd.f32 0.0, %v2135
        %v2137 = vpop.f32.mrf.mxu0
        %2138 = vmatprep.mubr.f32.mxu0 0.0
        %2139 = vmatmul.mubr.f32.gmra.mxu0 %v1940
        %v2140 = vpop.f32.mrf.mxu0
        %v2141 = vadd.f32 0.0, %v2140
        %v2142 = vpop.f32.mrf.mxu0
        %2143 = vmatprep.mubr.f32.mxu0 0.0
        %2144 = vmatmul.mubr.f32.gmra.mxu0 %v1942
        %v2145 = vpop.f32.mrf.mxu0
        %v2146 = vadd.f32 0.0, %v2145
        %v2147 = vpop.f32.mrf.mxu0
        %2148 = vmatprep.mubr.f32.mxu0 0.0
        %2149 = vmatmul.mubr.f32.gmra.mxu0 %v1944
        %v2150 = vpop.f32.mrf.mxu0
        %v2151 = vadd.f32 0.0, %v2150
        %v2152 = vpop.f32.mrf.mxu0
        %2153 = vmatprep.mubr.f32.mxu0 0.0
        %2154 = vmatmul.mubr.f32.gmra.mxu0 %v1946
        %v2155 = vpop.f32.mrf.mxu0
        %v2156 = vadd.f32 0.0, %v2155
        %v2157 = vpop.f32.mrf.mxu0
        %2158 = vmatprep.mubr.f32.mxu0 0.0
        %2159 = vmatmul.mubr.f32.gmra.mxu0 %v1948
        %v2160 = vpop.f32.mrf.mxu0
        %v2161 = vadd.f32 0.0, %v2160
        %v2162 = vpop.f32.mrf.mxu0
        %2163 = vmatprep.mubr.f32.mxu0 0.0
        %2164 = vmatmul.mubr.f32.gmra.mxu0 %v1950
        %v2165 = vpop.f32.mrf.mxu0
        %v2166 = vadd.f32 0.0, %v2165
        %v2167 = vpop.f32.mrf.mxu0
        %2168 = vmatprep.mubr.f32.mxu0 0.0
        %2169 = vmatmul.mubr.f32.gmra.mxu0 %v1952
        %v2170 = vpop.f32.mrf.mxu0
        %v2171 = vadd.f32 0.0, %v2170
        %v2172 = vpop.f32.mrf.mxu0
        %2173 = vmatprep.mubr.f32.mxu0 0.0
        %2174 = vmatmul.mubr.f32.gmra.mxu0 %v1954
        %v2175 = vpop.f32.mrf.mxu0
        %v2176 = vadd.f32 0.0, %v2175
        %v2177 = vpop.f32.mrf.mxu0
        %2178 = vmatprep.mubr.f32.mxu0 0.0
        %2179 = vmatmul.mubr.f32.gmra.mxu0 %v1956
        %v2180 = vpop.f32.mrf.mxu0
        %v2181 = vadd.f32 0.0, %v2180
        %v2182 = vpop.f32.mrf.mxu0
        %2183 = vmatprep.mubr.f32.mxu0 0.0
        %2184 = vmatmul.mubr.f32.gmra.mxu0 %v1958
        %v2185 = vpop.f32.mrf.mxu0
        %v2186 = vadd.f32 0.0, %v2185
        %v2187 = vpop.f32.mrf.mxu0
        %2188 = vmatprep.mubr.f32.mxu0 0.0
        %2189 = vmatmul.mubr.f32.gmra.mxu0 %v1960
        %v2190 = vpop.f32.mrf.mxu0
        %v2191 = vadd.f32 0.0, %v2190
        %v2192 = vpop.f32.mrf.mxu0
        %2193 = vmatprep.mubr.f32.mxu0 0.0
        %2194 = vmatmul.mubr.f32.gmra.mxu0 %v1962
        %v2195 = vpop.f32.mrf.mxu0
        %v2196 = vadd.f32 0.0, %v2195
        %v2197 = vpop.f32.mrf.mxu0
        %2198 = vmatprep.mubr.f32.mxu0 0.0
        %2199 = vmatmul.mubr.f32.gmra.mxu0 %v1964
        %v2200 = vpop.f32.mrf.mxu0
        %v2201 = vadd.f32 0.0, %v2200
        %v2202 = vpop.f32.mrf.mxu0
        %2203 = vdwg.mxu0
        %v2204 = vsel %vm1897, %v1756, 0
        %v2206 = vsel %vm1897, %v1758, 0
        %v2208 = vsel %vm1897, %v1760, 0
        %v2210 = vsel %vm1897, %v1762, 0
        %v2212 = vsel %vm1897, %v1764, 0
        %v2214 = vsel %vm1897, %v1766, 0
        %v2216 = vsel %vm1897, %v1768, 0
        %v2218 = vsel %vm1897, %v1770, 0
        %v2220 = vsel %vm1897, %v1772, 0
        %v2222 = vsel %vm1897, %v1774, 0
        %v2224 = vsel %vm1897, %v1776, 0
        %v2226 = vsel %vm1897, %v1778, 0
        %v2228 = vsel %vm1897, %v1780, 0
        %v2230 = vsel %vm1897, %v1782, 0
        %v2232 = vsel %vm1897, %v1784, 0
        %v2234 = vsel %vm1897, %v1786, 0
        %v2236 = vsel %vm1897, %v1788, 0
        %v2238 = vsel %vm1897, %v1791, 0
        %v2240 = vsel %vm1897, %v1793, 0
        %v2242 = vsel %vm1897, %v1795, 0
        %v2244 = vsel %vm1897, %v1797, 0
        %v2246 = vsel %vm1897, %v1799, 0
        %v2248 = vsel %vm1897, %v1801, 0
        %v2250 = vsel %vm1897, %v1803, 0
        %v2252 = vsel %vm1897, %v1805, 0
        %v2254 = vsel %vm1897, %v1807, 0
        %v2256 = vsel %vm1897, %v1809, 0
        %v2258 = vsel %vm1897, %v1811, 0
        %v2260 = vsel %vm1897, %v1813, 0
        %v2262 = vsel %vm1897, %v1815, 0
        %v2264 = vsel %vm1897, %v1817, 0
        %v2266 = vsel %vm1897, %v1819, 0
        %v2268 = vsel %vm1897, %v1821, 0
        %v2270 = vsel %vm1897, %v1823, 0
        %v2272 = vsel %vm1966, %v1715, 0
        %2274 = vmatprep.subr.mxu0 0.0
        %2275 = vmatpush1.msra.mxu0 0.0
        %2276 = vmatprep.subr.mxu0 0.0
        %2277 = vmatpush1.msra.mxu0 0.0
        %2278 = vmatprep.subr.mxu0 0.0
        %2279 = vmatpush1.msra.mxu0 0.0
        %2280 = vmatprep.subr.mxu0 0.0
        %2281 = vmatpush1.msra.mxu0 0.0
        %2282 = vmatprep.subr.mxu0 0.0
        %2283 = vmatpush1.msra.mxu0 0.0
        %2284 = vmatprep.subr.mxu0 0.0
        %2285 = vmatpush1.msra.mxu0 0.0
        %2286 = vmatprep.subr.mxu0 0.0
        %2287 = vmatpush1.msra.mxu0 0.0
        %2288 = vmatprep.subr.mxu0 0.0
        %2289 = vmatpush1.msra.mxu0 0.0
        %2290 = vmatprep.subr.mxu0 0.0
        %2291 = vmatpush1.msra.mxu0 0.0
        %2292 = vmatprep.subr.mxu0 0.0
        %2293 = vmatpush1.msra.mxu0 0.0
        %2294 = vmatprep.subr.mxu0 0.0
        %2295 = vmatpush1.msra.mxu0 0.0
        %2296 = vmatprep.subr.mxu0 0.0
        %2297 = vmatpush1.msra.mxu0 0.0
        %2298 = vmatprep.subr.mxu0 0.0
        %2299 = vmatpush1.msra.mxu0 0.0
        %2300 = vmatprep.subr.mxu0 0.0
        %2301 = vmatpush1.msra.mxu0 0.0
        %2302 = vmatprep.subr.mxu0 0.0
        %2303 = vmatpush1.msra.mxu0 0.0
        %2304 = vmatprep.subr.mxu0 0.0
        %2305 = vmatpush1.msra.mxu0 %v2272
        %2306 = vmatprep.subr.mxu0 0.0
        %2307 = vmatpush2.msra.mxu0 0.0
        %2308 = vmatprep.subr.mxu0 0.0
        %2309 = vmatpush2.msra.mxu0 0.0
        %2310 = vmatprep.subr.mxu0 0.0
        %2311 = vmatpush2.msra.mxu0 0.0
        %2312 = vmatprep.subr.mxu0 0.0
        %2313 = vmatpush2.msra.mxu0 0.0
        %2314 = vmatprep.subr.mxu0 0.0
        %2315 = vmatpush2.msra.mxu0 0.0
        %2316 = vmatprep.subr.mxu0 0.0
        %2317 = vmatpush2.msra.mxu0 0.0
        %2318 = vmatprep.subr.mxu0 0.0
        %2319 = vmatpush2.msra.mxu0 0.0
        %2320 = vmatprep.subr.mxu0 0.0
        %2321 = vmatpush2.msra.mxu0 0.0
        %2322 = vmatprep.subr.mxu0 0.0
        %2323 = vmatpush2.msra.mxu0 0.0
        %2324 = vmatprep.subr.mxu0 0.0
        %2325 = vmatpush2.msra.mxu0 0.0
        %2326 = vmatprep.subr.mxu0 0.0
        %2327 = vmatpush2.msra.mxu0 0.0
        %2328 = vmatprep.subr.mxu0 0.0
        %2329 = vmatpush2.msra.mxu0 0.0
        %2330 = vmatprep.subr.mxu0 0.0
        %2331 = vmatpush2.msra.mxu0 0.0
        %2332 = vmatprep.subr.mxu0 0.0
        %2333 = vmatpush2.msra.mxu0 0.0
        %2334 = vmatprep.subr.mxu0 0.0
        %2335 = vmatpush2.msra.mxu0 0.0
        %2336 = vmatprep.subr.mxu0 0.0
        %2337 = vmatpush2.msra.mxu0 0.0
        %2338 = vmatprep.mubr.f32.mxu0 0.0
        %2339 = vmatmul.mubr.f32.gmra.mxu0 %v2204
        %v2340 = vpop.f32.mrf.mxu0
        %v2341 = vadd.f32 %v2036, %v2340
        %v2342 = vpop.f32.mrf.mxu0
        %2343 = vmatprep.mubr.f32.mxu0 0.0
        %2344 = vmatmul.mubr.f32.gmra.mxu0 %v2206
        %v2345 = vpop.f32.mrf.mxu0
        %v2346 = vadd.f32 %v2041, %v2345
        %v2347 = vpop.f32.mrf.mxu0
        %2348 = vmatprep.mubr.f32.mxu0 0.0
        %2349 = vmatmul.mubr.f32.gmra.mxu0 %v2208
        %v2350 = vpop.f32.mrf.mxu0
        %v2351 = vadd.f32 %v2046, %v2350
        %v2352 = vpop.f32.mrf.mxu0
        %2353 = vmatprep.mubr.f32.mxu0 0.0
        %2354 = vmatmul.mubr.f32.gmra.mxu0 %v2210
        %v2355 = vpop.f32.mrf.mxu0
        %v2356 = vadd.f32 %v2051, %v2355
        %v2357 = vpop.f32.mrf.mxu0
        %2358 = vmatprep.mubr.f32.mxu0 0.0
        %2359 = vmatmul.mubr.f32.gmra.mxu0 %v2212
        %v2360 = vpop.f32.mrf.mxu0
        %v2361 = vadd.f32 %v2056, %v2360
        %v2362 = vpop.f32.mrf.mxu0
        %2363 = vmatprep.mubr.f32.mxu0 0.0
        %2364 = vmatmul.mubr.f32.gmra.mxu0 %v2214
        %v2365 = vpop.f32.mrf.mxu0
        %v2366 = vadd.f32 %v2061, %v2365
        %v2367 = vpop.f32.mrf.mxu0
        %2368 = vmatprep.mubr.f32.mxu0 0.0
        %2369 = vmatmul.mubr.f32.gmra.mxu0 %v2216
        %v2370 = vpop.f32.mrf.mxu0
        %v2371 = vadd.f32 %v2066, %v2370
        %v2372 = vpop.f32.mrf.mxu0
        %2373 = vmatprep.mubr.f32.mxu0 0.0
        %2374 = vmatmul.mubr.f32.gmra.mxu0 %v2218
        %v2375 = vpop.f32.mrf.mxu0
        %v2376 = vadd.f32 %v2071, %v2375
        %v2377 = vpop.f32.mrf.mxu0
        %2378 = vmatprep.mubr.f32.mxu0 0.0
        %2379 = vmatmul.mubr.f32.gmra.mxu0 %v2220
        %v2380 = vpop.f32.mrf.mxu0
        %v2381 = vadd.f32 %v2076, %v2380
        %v2382 = vpop.f32.mrf.mxu0
        %2383 = vmatprep.mubr.f32.mxu0 0.0
        %2384 = vmatmul.mubr.f32.gmra.mxu0 %v2222
        %v2385 = vpop.f32.mrf.mxu0
        %v2386 = vadd.f32 %v2081, %v2385
        %v2387 = vpop.f32.mrf.mxu0
        %2388 = vmatprep.mubr.f32.mxu0 0.0
        %2389 = vmatmul.mubr.f32.gmra.mxu0 %v2224
        %v2390 = vpop.f32.mrf.mxu0
        %v2391 = vadd.f32 %v2086, %v2390
        %v2392 = vpop.f32.mrf.mxu0
        %2393 = vmatprep.mubr.f32.mxu0 0.0
        %2394 = vmatmul.mubr.f32.gmra.mxu0 %v2226
        %v2395 = vpop.f32.mrf.mxu0
        %v2396 = vadd.f32 %v2091, %v2395
        %v2397 = vpop.f32.mrf.mxu0
        %2398 = vmatprep.mubr.f32.mxu0 0.0
        %2399 = vmatmul.mubr.f32.gmra.mxu0 %v2228
        %v2400 = vpop.f32.mrf.mxu0
        %v2401 = vadd.f32 %v2096, %v2400
        %v2402 = vpop.f32.mrf.mxu0
        %2403 = vmatprep.mubr.f32.mxu0 0.0
        %2404 = vmatmul.mubr.f32.gmra.mxu0 %v2230
        %v2405 = vpop.f32.mrf.mxu0
        %v2406 = vadd.f32 %v2101, %v2405
        %v2407 = vpop.f32.mrf.mxu0
        %2408 = vmatprep.mubr.f32.mxu0 0.0
        %2409 = vmatmul.mubr.f32.gmra.mxu0 %v2232
        %v2410 = vpop.f32.mrf.mxu0
        %v2411 = vadd.f32 %v2106, %v2410
        %v2412 = vpop.f32.mrf.mxu0
        %2413 = vmatprep.mubr.f32.mxu0 0.0
        %2414 = vmatmul.mubr.f32.gmra.mxu0 %v2234
        %v2415 = vpop.f32.mrf.mxu0
        %v2416 = vadd.f32 %v2111, %v2415
        %v2417 = vpop.f32.mrf.mxu0
        %2418 = vmatprep.mubr.f32.mxu0 0.0
        %2419 = vmatmul.mubr.f32.gmra.mxu0 %v2236
        %v2420 = vpop.f32.mrf.mxu0
        %v2421 = vadd.f32 %v2116, %v2420
        %v2422 = vpop.f32.mrf.mxu0
        %2423 = vmatprep.mubr.f32.mxu0 0.0
        %2424 = vmatmul.mubr.f32.gmra.mxu0 %v2238
        %v2425 = vpop.f32.mrf.mxu0
        %v2426 = vadd.f32 %v2121, %v2425
        %v2427 = vpop.f32.mrf.mxu0
        %2428 = vmatprep.mubr.f32.mxu0 0.0
        %2429 = vmatmul.mubr.f32.gmra.mxu0 %v2240
        %v2430 = vpop.f32.mrf.mxu0
        %v2431 = vadd.f32 %v2126, %v2430
        %v2432 = vpop.f32.mrf.mxu0
        %2433 = vmatprep.mubr.f32.mxu0 0.0
        %2434 = vmatmul.mubr.f32.gmra.mxu0 %v2242
        %v2435 = vpop.f32.mrf.mxu0
        %v2436 = vadd.f32 %v2131, %v2435
        %v2437 = vpop.f32.mrf.mxu0
        %2438 = vmatprep.mubr.f32.mxu0 0.0
        %2439 = vmatmul.mubr.f32.gmra.mxu0 %v2244
        %v2440 = vpop.f32.mrf.mxu0
        %v2441 = vadd.f32 %v2136, %v2440
        %v2442 = vpop.f32.mrf.mxu0
        %2443 = vmatprep.mubr.f32.mxu0 0.0
        %2444 = vmatmul.mubr.f32.gmra.mxu0 %v2246
        %v2445 = vpop.f32.mrf.mxu0
        %v2446 = vadd.f32 %v2141, %v2445
        %v2447 = vpop.f32.mrf.mxu0
        %2448 = vmatprep.mubr.f32.mxu0 0.0
        %2449 = vmatmul.mubr.f32.gmra.mxu0 %v2248
        %v2450 = vpop.f32.mrf.mxu0
        %v2451 = vadd.f32 %v2146, %v2450
        %v2452 = vpop.f32.mrf.mxu0
        %2453 = vmatprep.mubr.f32.mxu0 0.0
        %2454 = vmatmul.mubr.f32.gmra.mxu0 %v2250
        %v2455 = vpop.f32.mrf.mxu0
        %v2456 = vadd.f32 %v2151, %v2455
        %v2457 = vpop.f32.mrf.mxu0
        %2458 = vmatprep.mubr.f32.mxu0 0.0
        %2459 = vmatmul.mubr.f32.gmra.mxu0 %v2252
        %v2460 = vpop.f32.mrf.mxu0
        %v2461 = vadd.f32 %v2156, %v2460
        %v2462 = vpop.f32.mrf.mxu0
        %2463 = vmatprep.mubr.f32.mxu0 0.0
        %2464 = vmatmul.mubr.f32.gmra.mxu0 %v2254
        %v2465 = vpop.f32.mrf.mxu0
        %v2466 = vadd.f32 %v2161, %v2465
        %v2467 = vpop.f32.mrf.mxu0
        %2468 = vmatprep.mubr.f32.mxu0 0.0
        %2469 = vmatmul.mubr.f32.gmra.mxu0 %v2256
        %v2470 = vpop.f32.mrf.mxu0
        %v2471 = vadd.f32 %v2166, %v2470
        %v2472 = vpop.f32.mrf.mxu0
        %2473 = vmatprep.mubr.f32.mxu0 0.0
        %2474 = vmatmul.mubr.f32.gmra.mxu0 %v2258
        %v2475 = vpop.f32.mrf.mxu0
        %v2476 = vadd.f32 %v2171, %v2475
        %v2477 = vpop.f32.mrf.mxu0
        %2478 = vmatprep.mubr.f32.mxu0 0.0
        %2479 = vmatmul.mubr.f32.gmra.mxu0 %v2260
        %v2480 = vpop.f32.mrf.mxu0
        %v2481 = vadd.f32 %v2176, %v2480
        %v2482 = vpop.f32.mrf.mxu0
        %2483 = vmatprep.mubr.f32.mxu0 0.0
        %2484 = vmatmul.mubr.f32.gmra.mxu0 %v2262
        %v2485 = vpop.f32.mrf.mxu0
        %v2486 = vadd.f32 %v2181, %v2485
        %v2487 = vpop.f32.mrf.mxu0
        %2488 = vmatprep.mubr.f32.mxu0 0.0
        %2489 = vmatmul.mubr.f32.gmra.mxu0 %v2264
        %v2490 = vpop.f32.mrf.mxu0
        %v2491 = vadd.f32 %v2186, %v2490
        %v2492 = vpop.f32.mrf.mxu0
        %2493 = vmatprep.mubr.f32.mxu0 0.0
        %2494 = vmatmul.mubr.f32.gmra.mxu0 %v2266
        %v2495 = vpop.f32.mrf.mxu0
        %v2496 = vadd.f32 %v2191, %v2495
        %v2497 = vpop.f32.mrf.mxu0
        %2498 = vmatprep.mubr.f32.mxu0 0.0
        %2499 = vmatmul.mubr.f32.gmra.mxu0 %v2268
        %v2500 = vpop.f32.mrf.mxu0
        %v2501 = vadd.f32 %v2196, %v2500
        %v2502 = vpop.f32.mrf.mxu0
        %2503 = vmatprep.mubr.f32.mxu0 0.0
        %2504 = vmatmul.mubr.f32.gmra.mxu0 %v2270
        %v2505 = vpop.f32.mrf.mxu0
        %v2506 = vadd.f32 %v2201, %v2505
        %v2507 = vpop.f32.mrf.mxu0
        %2508 = vdwg.mxu0
        %vm2509 = vcmask 1040384
        %v2510 = vrot.slane %v176, 7
        %v2511 = vrot.slane %v177, 7
        %v2512 = vsel %vm2509, %v2510, %v2511
        %v2513 = vrot.slane %v178, 7
        %v2514 = vsel %vm2509, %v2511, %v2513
        %v2515 = vrot.slane %v179, 7
        %v2516 = vsel %vm2509, %v2513, %v2515
        %v2517 = vrot.slane %v180, 7
        %v2518 = vsel %vm2509, %v2515, %v2517
        %v2519 = vrot.slane %v181, 7
        %v2520 = vsel %vm2509, %v2517, %v2519
        %v2521 = vrot.slane %v182, 7
        %v2522 = vsel %vm2509, %v2519, %v2521
        %v2523 = vrot.slane %v183, 7
        %v2524 = vsel %vm2509, %v2521, %v2523
        %v2525 = vrot.slane %v184, 7
        %v2526 = vsel %vm2509, %v2523, %v2525
        %v2527 = vrot.slane %v185, 7
        %v2528 = vsel %vm2509, %v2525, %v2527
        %v2529 = vrot.slane %v186, 7
        %v2530 = vsel %vm2509, %v2527, %v2529
        %v2531 = vrot.slane %v187, 7
        %v2532 = vsel %vm2509, %v2529, %v2531
        %v2533 = vrot.slane %v188, 7
        %v2534 = vsel %vm2509, %v2531, %v2533
        %v2535 = vrot.slane %v189, 7
        %v2536 = vsel %vm2509, %v2533, %v2535
        %v2537 = vrot.slane %v190, 7
        %v2538 = vsel %vm2509, %v2535, %v2537
        %v2539 = vrot.slane %v191, 7
        %v2540 = vsel %vm2509, %v2537, %v2539
        %v2541 = vrot.slane %v192, 7
        %v2542 = vsel %vm2509, %v2539, %v2541
        %v2543 = vrot.slane %v193, 7
        %v2544 = vsel %vm2509, %v2541, %v2543
        %v2545 = vrot.slane %v194, 7
        %v2546 = vrot.slane %v195, 7
        %v2547 = vsel %vm2509, %v2545, %v2546
        %v2548 = vrot.slane %v196, 7
        %v2549 = vsel %vm2509, %v2546, %v2548
        %v2550 = vrot.slane %v197, 7
        %v2551 = vsel %vm2509, %v2548, %v2550
        %v2552 = vrot.slane %v198, 7
        %v2553 = vsel %vm2509, %v2550, %v2552
        %v2554 = vrot.slane %v199, 7
        %v2555 = vsel %vm2509, %v2552, %v2554
        %v2556 = vrot.slane %v200, 7
        %v2557 = vsel %vm2509, %v2554, %v2556
        %v2558 = vrot.slane %v201, 7
        %v2559 = vsel %vm2509, %v2556, %v2558
        %v2560 = vrot.slane %v202, 7
        %v2561 = vsel %vm2509, %v2558, %v2560
        %v2562 = vrot.slane %v203, 7
        %v2563 = vsel %vm2509, %v2560, %v2562
        %v2564 = vrot.slane %v204, 7
        %v2565 = vsel %vm2509, %v2562, %v2564
        %v2566 = vrot.slane %v205, 7
        %v2567 = vsel %vm2509, %v2564, %v2566
        %v2568 = vrot.slane %v206, 7
        %v2569 = vsel %vm2509, %v2566, %v2568
        %v2570 = vrot.slane %v207, 7
        %v2571 = vsel %vm2509, %v2568, %v2570
        %v2572 = vrot.slane %v208, 7
        %v2573 = vsel %vm2509, %v2570, %v2572
        %v2574 = vrot.slane %v209, 7
        %v2575 = vsel %vm2509, %v2572, %v2574
        %v2576 = vrot.slane %v210, 7
        %v2577 = vsel %vm2509, %v2574, %v2576
        %v2578 = vrot.slane %v211, 7
        %v2579 = vsel %vm2509, %v2576, %v2578
        %v2580 = vsel %vm1897, %v2512, 0
        %v2582 = vsel %vm1897, %v2514, 0
        %v2584 = vsel %vm1897, %v2516, 0
        %v2586 = vsel %vm1897, %v2518, 0
        %v2588 = vsel %vm1897, %v2520, 0
        %v2590 = vsel %vm1897, %v2522, 0
        %v2592 = vsel %vm1897, %v2524, 0
        %v2594 = vsel %vm1897, %v2526, 0
        %v2596 = vsel %vm1897, %v2528, 0
        %v2598 = vsel %vm1897, %v2530, 0
        %v2600 = vsel %vm1897, %v2532, 0
        %v2602 = vsel %vm1897, %v2534, 0
        %v2604 = vsel %vm1897, %v2536, 0
        %v2606 = vsel %vm1897, %v2538, 0
        %v2608 = vsel %vm1897, %v2540, 0
        %v2610 = vsel %vm1897, %v2542, 0
        %v2612 = vsel %vm1897, %v2544, 0
        %v2614 = vsel %vm1897, %v2547, 0
        %v2616 = vsel %vm1897, %v2549, 0
        %v2618 = vsel %vm1897, %v2551, 0
        %v2620 = vsel %vm1897, %v2553, 0
        %v2622 = vsel %vm1897, %v2555, 0
        %v2624 = vsel %vm1897, %v2557, 0
        %v2626 = vsel %vm1897, %v2559, 0
        %v2628 = vsel %vm1897, %v2561, 0
        %v2630 = vsel %vm1897, %v2563, 0
        %v2632 = vsel %vm1897, %v2565, 0
        %v2634 = vsel %vm1897, %v2567, 0
        %v2636 = vsel %vm1897, %v2569, 0
        %v2638 = vsel %vm1897, %v2571, 0
        %v2640 = vsel %vm1897, %v2573, 0
        %v2642 = vsel %vm1897, %v2575, 0
        %v2644 = vsel %vm1897, %v2577, 0
        %v2646 = vsel %vm1897, %v2579, 0
        %v2649 = vsel %vm1966, %v1716, 0
        %2651 = vmatprep.subr.mxu0 0.0
        %2652 = vmatpush1.msra.mxu0 0.0
        %2653 = vmatprep.subr.mxu0 0.0
        %2654 = vmatpush1.msra.mxu0 0.0
        %2655 = vmatprep.subr.mxu0 0.0
        %2656 = vmatpush1.msra.mxu0 0.0
        %2657 = vmatprep.subr.mxu0 0.0
        %2658 = vmatpush1.msra.mxu0 0.0
        %2659 = vmatprep.subr.mxu0 0.0
        %2660 = vmatpush1.msra.mxu0 0.0
        %2661 = vmatprep.subr.mxu0 0.0
        %2662 = vmatpush1.msra.mxu0 0.0
        %2663 = vmatprep.subr.mxu0 0.0
        %2664 = vmatpush1.msra.mxu0 0.0
        %2665 = vmatprep.subr.mxu0 0.0
        %2666 = vmatpush1.msra.mxu0 0.0
        %2667 = vmatprep.subr.mxu0 0.0
        %2668 = vmatpush1.msra.mxu0 0.0
        %2669 = vmatprep.subr.mxu0 0.0
        %2670 = vmatpush1.msra.mxu0 0.0
        %2671 = vmatprep.subr.mxu0 0.0
        %2672 = vmatpush1.msra.mxu0 0.0
        %2673 = vmatprep.subr.mxu0 0.0
        %2674 = vmatpush1.msra.mxu0 0.0
        %2675 = vmatprep.subr.mxu0 0.0
        %2676 = vmatpush1.msra.mxu0 0.0
        %2677 = vmatprep.subr.mxu0 0.0
        %2678 = vmatpush1.msra.mxu0 0.0
        %2679 = vmatprep.subr.mxu0 0.0
        %2680 = vmatpush1.msra.mxu0 0.0
        %2681 = vmatprep.subr.mxu0 0.0
        %2682 = vmatpush1.msra.mxu0 %v2649
        %2683 = vmatprep.subr.mxu0 0.0
        %2684 = vmatpush2.msra.mxu0 0.0
        %2685 = vmatprep.subr.mxu0 0.0
        %2686 = vmatpush2.msra.mxu0 0.0
        %2687 = vmatprep.subr.mxu0 0.0
        %2688 = vmatpush2.msra.mxu0 0.0
        %2689 = vmatprep.subr.mxu0 0.0
        %2690 = vmatpush2.msra.mxu0 0.0
        %2691 = vmatprep.subr.mxu0 0.0
        %2692 = vmatpush2.msra.mxu0 0.0
        %2693 = vmatprep.subr.mxu0 0.0
        %2694 = vmatpush2.msra.mxu0 0.0
        %2695 = vmatprep.subr.mxu0 0.0
        %2696 = vmatpush2.msra.mxu0 0.0
        %2697 = vmatprep.subr.mxu0 0.0
        %2698 = vmatpush2.msra.mxu0 0.0
        %2699 = vmatprep.subr.mxu0 0.0
        %2700 = vmatpush2.msra.mxu0 0.0
        %2701 = vmatprep.subr.mxu0 0.0
        %2702 = vmatpush2.msra.mxu0 0.0
        %2703 = vmatprep.subr.mxu0 0.0
        %2704 = vmatpush2.msra.mxu0 0.0
        %2705 = vmatprep.subr.mxu0 0.0
        %2706 = vmatpush2.msra.mxu0 0.0
        %2707 = vmatprep.subr.mxu0 0.0
        %2708 = vmatpush2.msra.mxu0 0.0
        %2709 = vmatprep.subr.mxu0 0.0
        %2710 = vmatpush2.msra.mxu0 0.0
        %2711 = vmatprep.subr.mxu0 0.0
        %2712 = vmatpush2.msra.mxu0 0.0
        %2713 = vmatprep.subr.mxu0 0.0
        %2714 = vmatpush2.msra.mxu0 0.0
        %2715 = vmatprep.mubr.f32.mxu0 0.0
        %2716 = vmatmul.mubr.f32.gmra.mxu0 %v2580
        %v2717 = vpop.f32.mrf.mxu0
        %v2718 = vadd.f32 0.0, %v2717
        %v2719 = vpop.f32.mrf.mxu0
        %2720 = vmatprep.mubr.f32.mxu0 0.0
        %2721 = vmatmul.mubr.f32.gmra.mxu0 %v2582
        %v2722 = vpop.f32.mrf.mxu0
        %v2723 = vadd.f32 0.0, %v2722
        %v2724 = vpop.f32.mrf.mxu0
        %2725 = vmatprep.mubr.f32.mxu0 0.0
        %2726 = vmatmul.mubr.f32.gmra.mxu0 %v2584
        %v2727 = vpop.f32.mrf.mxu0
        %v2728 = vadd.f32 0.0, %v2727
        %v2729 = vpop.f32.mrf.mxu0
        %2730 = vmatprep.mubr.f32.mxu0 0.0
        %2731 = vmatmul.mubr.f32.gmra.mxu0 %v2586
        %v2732 = vpop.f32.mrf.mxu0
        %v2733 = vadd.f32 0.0, %v2732
        %v2734 = vpop.f32.mrf.mxu0
        %2735 = vmatprep.mubr.f32.mxu0 0.0
        %2736 = vmatmul.mubr.f32.gmra.mxu0 %v2588
        %v2737 = vpop.f32.mrf.mxu0
        %v2738 = vadd.f32 0.0, %v2737
        %v2739 = vpop.f32.mrf.mxu0
        %2740 = vmatprep.mubr.f32.mxu0 0.0
        %2741 = vmatmul.mubr.f32.gmra.mxu0 %v2590
        %v2742 = vpop.f32.mrf.mxu0
        %v2743 = vadd.f32 0.0, %v2742
        %v2744 = vpop.f32.mrf.mxu0
        %2745 = vmatprep.mubr.f32.mxu0 0.0
        %2746 = vmatmul.mubr.f32.gmra.mxu0 %v2592
        %v2747 = vpop.f32.mrf.mxu0
        %v2748 = vadd.f32 0.0, %v2747
        %v2749 = vpop.f32.mrf.mxu0
        %2750 = vmatprep.mubr.f32.mxu0 0.0
        %2751 = vmatmul.mubr.f32.gmra.mxu0 %v2594
        %v2752 = vpop.f32.mrf.mxu0
        %v2753 = vadd.f32 0.0, %v2752
        %v2754 = vpop.f32.mrf.mxu0
        %2755 = vmatprep.mubr.f32.mxu0 0.0
        %2756 = vmatmul.mubr.f32.gmra.mxu0 %v2596
        %v2757 = vpop.f32.mrf.mxu0
        %v2758 = vadd.f32 0.0, %v2757
        %v2759 = vpop.f32.mrf.mxu0
        %2760 = vmatprep.mubr.f32.mxu0 0.0
        %2761 = vmatmul.mubr.f32.gmra.mxu0 %v2598
        %v2762 = vpop.f32.mrf.mxu0
        %v2763 = vadd.f32 0.0, %v2762
        %v2764 = vpop.f32.mrf.mxu0
        %2765 = vmatprep.mubr.f32.mxu0 0.0
        %2766 = vmatmul.mubr.f32.gmra.mxu0 %v2600
        %v2767 = vpop.f32.mrf.mxu0
        %v2768 = vadd.f32 0.0, %v2767
        %v2769 = vpop.f32.mrf.mxu0
        %2770 = vmatprep.mubr.f32.mxu0 0.0
        %2771 = vmatmul.mubr.f32.gmra.mxu0 %v2602
        %v2772 = vpop.f32.mrf.mxu0
        %v2773 = vadd.f32 0.0, %v2772
        %v2774 = vpop.f32.mrf.mxu0
        %2775 = vmatprep.mubr.f32.mxu0 0.0
        %2776 = vmatmul.mubr.f32.gmra.mxu0 %v2604
        %v2777 = vpop.f32.mrf.mxu0
        %v2778 = vadd.f32 0.0, %v2777
        %v2779 = vpop.f32.mrf.mxu0
        %2780 = vmatprep.mubr.f32.mxu0 0.0
        %2781 = vmatmul.mubr.f32.gmra.mxu0 %v2606
        %v2782 = vpop.f32.mrf.mxu0
        %v2783 = vadd.f32 0.0, %v2782
        %v2784 = vpop.f32.mrf.mxu0
        %2785 = vmatprep.mubr.f32.mxu0 0.0
        %2786 = vmatmul.mubr.f32.gmra.mxu0 %v2608
        %v2787 = vpop.f32.mrf.mxu0
        %v2788 = vadd.f32 0.0, %v2787
        %v2789 = vpop.f32.mrf.mxu0
        %2790 = vmatprep.mubr.f32.mxu0 0.0
        %2791 = vmatmul.mubr.f32.gmra.mxu0 %v2610
        %v2792 = vpop.f32.mrf.mxu0
        %v2793 = vadd.f32 0.0, %v2792
        %v2794 = vpop.f32.mrf.mxu0
        %2795 = vmatprep.mubr.f32.mxu0 0.0
        %2796 = vmatmul.mubr.f32.gmra.mxu0 %v2612
        %v2797 = vpop.f32.mrf.mxu0
        %v2798 = vadd.f32 0.0, %v2797
        %v2799 = vpop.f32.mrf.mxu0
        %2800 = vmatprep.mubr.f32.mxu0 0.0
        %2801 = vmatmul.mubr.f32.gmra.mxu0 %v2614
        %v2802 = vpop.f32.mrf.mxu0
        %v2803 = vadd.f32 0.0, %v2802
        %v2804 = vpop.f32.mrf.mxu0
        %2805 = vmatprep.mubr.f32.mxu0 0.0
        %2806 = vmatmul.mubr.f32.gmra.mxu0 %v2616
        %v2807 = vpop.f32.mrf.mxu0
        %v2808 = vadd.f32 0.0, %v2807
        %v2809 = vpop.f32.mrf.mxu0
        %2810 = vmatprep.mubr.f32.mxu0 0.0
        %2811 = vmatmul.mubr.f32.gmra.mxu0 %v2618
        %v2812 = vpop.f32.mrf.mxu0
        %v2813 = vadd.f32 0.0, %v2812
        %v2814 = vpop.f32.mrf.mxu0
        %2815 = vmatprep.mubr.f32.mxu0 0.0
        %2816 = vmatmul.mubr.f32.gmra.mxu0 %v2620
        %v2817 = vpop.f32.mrf.mxu0
        %v2818 = vadd.f32 0.0, %v2817
        %v2819 = vpop.f32.mrf.mxu0
        %2820 = vmatprep.mubr.f32.mxu0 0.0
        %2821 = vmatmul.mubr.f32.gmra.mxu0 %v2622
        %v2822 = vpop.f32.mrf.mxu0
        %v2823 = vadd.f32 0.0, %v2822
        %v2824 = vpop.f32.mrf.mxu0
        %2825 = vmatprep.mubr.f32.mxu0 0.0
        %2826 = vmatmul.mubr.f32.gmra.mxu0 %v2624
        %v2827 = vpop.f32.mrf.mxu0
        %v2828 = vadd.f32 0.0, %v2827
        %v2829 = vpop.f32.mrf.mxu0
        %2830 = vmatprep.mubr.f32.mxu0 0.0
        %2831 = vmatmul.mubr.f32.gmra.mxu0 %v2626
        %v2832 = vpop.f32.mrf.mxu0
        %v2833 = vadd.f32 0.0, %v2832
        %v2834 = vpop.f32.mrf.mxu0
        %2835 = vmatprep.mubr.f32.mxu0 0.0
        %2836 = vmatmul.mubr.f32.gmra.mxu0 %v2628
        %v2837 = vpop.f32.mrf.mxu0
        %v2838 = vadd.f32 0.0, %v2837
        %v2839 = vpop.f32.mrf.mxu0
        %2840 = vmatprep.mubr.f32.mxu0 0.0
        %2841 = vmatmul.mubr.f32.gmra.mxu0 %v2630
        %v2842 = vpop.f32.mrf.mxu0
        %v2843 = vadd.f32 0.0, %v2842
        %v2844 = vpop.f32.mrf.mxu0
        %2845 = vmatprep.mubr.f32.mxu0 0.0
        %2846 = vmatmul.mubr.f32.gmra.mxu0 %v2632
        %v2847 = vpop.f32.mrf.mxu0
        %v2848 = vadd.f32 0.0, %v2847
        %v2849 = vpop.f32.mrf.mxu0
        %2850 = vmatprep.mubr.f32.mxu0 0.0
        %2851 = vmatmul.mubr.f32.gmra.mxu0 %v2634
        %v2852 = vpop.f32.mrf.mxu0
        %v2853 = vadd.f32 0.0, %v2852
        %v2854 = vpop.f32.mrf.mxu0
        %2855 = vmatprep.mubr.f32.mxu0 0.0
        %2856 = vmatmul.mubr.f32.gmra.mxu0 %v2636
        %v2857 = vpop.f32.mrf.mxu0
        %v2858 = vadd.f32 0.0, %v2857
        %v2859 = vpop.f32.mrf.mxu0
        %2860 = vmatprep.mubr.f32.mxu0 0.0
        %2861 = vmatmul.mubr.f32.gmra.mxu0 %v2638
        %v2862 = vpop.f32.mrf.mxu0
        %v2863 = vadd.f32 0.0, %v2862
        %v2864 = vpop.f32.mrf.mxu0
        %2865 = vmatprep.mubr.f32.mxu0 0.0
        %2866 = vmatmul.mubr.f32.gmra.mxu0 %v2640
        %v2867 = vpop.f32.mrf.mxu0
        %v2868 = vadd.f32 0.0, %v2867
        %v2869 = vpop.f32.mrf.mxu0
        %2870 = vmatprep.mubr.f32.mxu0 0.0
        %2871 = vmatmul.mubr.f32.gmra.mxu0 %v2642
        %v2872 = vpop.f32.mrf.mxu0
        %v2873 = vadd.f32 0.0, %v2872
        %v2874 = vpop.f32.mrf.mxu0
        %2875 = vmatprep.mubr.f32.mxu0 0.0
        %2876 = vmatmul.mubr.f32.gmra.mxu0 %v2644
        %v2877 = vpop.f32.mrf.mxu0
        %v2878 = vadd.f32 0.0, %v2877
        %v2879 = vpop.f32.mrf.mxu0
        %2880 = vmatprep.mubr.f32.mxu0 0.0
        %2881 = vmatmul.mubr.f32.gmra.mxu0 %v2646
        %v2882 = vpop.f32.mrf.mxu0
        %v2883 = vadd.f32 0.0, %v2882
        %v2884 = vpop.f32.mrf.mxu0
        %2885 = vdwg.mxu0
        %v2886 = vadd.f32 %v2341, %v2718
        %v2887 = vadd.f32 %v2346, %v2723
        %v2888 = vadd.f32 %v2351, %v2728
        %v2889 = vadd.f32 %v2356, %v2733
        %v2890 = vadd.f32 %v2361, %v2738
        %v2891 = vadd.f32 %v2366, %v2743
        %v2892 = vadd.f32 %v2371, %v2748
        %v2893 = vadd.f32 %v2376, %v2753
        %v2894 = vadd.f32 %v2381, %v2758
        %v2895 = vadd.f32 %v2386, %v2763
        %v2896 = vadd.f32 %v2391, %v2768
        %v2897 = vadd.f32 %v2396, %v2773
        %v2898 = vadd.f32 %v2401, %v2778
        %v2899 = vadd.f32 %v2406, %v2783
        %v2900 = vadd.f32 %v2411, %v2788
        %v2901 = vadd.f32 %v2416, %v2793
        %v2902 = vadd.f32 %v2421, %v2798
        %v2903 = vadd.f32 %v2426, %v2803
        %v2904 = vadd.f32 %v2431, %v2808
        %v2905 = vadd.f32 %v2436, %v2813
        %v2906 = vadd.f32 %v2441, %v2818
        %v2907 = vadd.f32 %v2446, %v2823
        %v2908 = vadd.f32 %v2451, %v2828
        %v2909 = vadd.f32 %v2456, %v2833
        %v2910 = vadd.f32 %v2461, %v2838
        %v2911 = vadd.f32 %v2466, %v2843
        %v2912 = vadd.f32 %v2471, %v2848
        %v2913 = vadd.f32 %v2476, %v2853
        %v2914 = vadd.f32 %v2481, %v2858
        %v2915 = vadd.f32 %v2486, %v2863
        %v2916 = vadd.f32 %v2491, %v2868
        %v2917 = vadd.f32 %v2496, %v2873
        %v2918 = vadd.f32 %v2501, %v2878
        %v2919 = vadd.f32 %v2506, %v2883
        %v2920 = vadd.s32 %v213, 128
        %v2921 = vadd.s32 %v229, %v2920
        %v2922 = vsub.s32 %v230, 2
        %v2923 = vsub.s32 %v231, 2
        %v2924 = vsub.s32 %v232, 2
        %v2925 = vsub.s32 %v233, 2
        %v2926 = vsub.s32 %v234, 2
        %v2927 = vsub.s32 %v235, 2
        %v2928 = vsub.s32 %v236, 2
        %v2929 = vsub.s32 %v237, 2
        %v2930 = vsub.s32 %v238, 2
        %v2931 = vsub.s32 %v239, 2
        %v2932 = vsub.s32 %v240, 2
        %v2933 = vsub.s32 %v241, 2
        %v2934 = vsub.s32 %v242, 2
        %v2935 = vsub.s32 %v243, 2
        %v2936 = vsub.s32 %v244, 2
        %v2937 = vsub.s32 %v245, 2
        %v2938 = vsub.s32 %v2921, 2
        %vm2939 = vcmp.ge.s32.totalorder %v2922, 0
        %vm2940 = vcmp.ge.s32.totalorder %v2923, 0
        %vm2941 = vcmp.ge.s32.totalorder %v2924, 0
        %vm2942 = vcmp.ge.s32.totalorder %v2925, 0
        %vm2943 = vcmp.ge.s32.totalorder %v2926, 0
        %vm2944 = vcmp.ge.s32.totalorder %v2927, 0
        %vm2945 = vcmp.ge.s32.totalorder %v2928, 0
        %vm2946 = vcmp.ge.s32.totalorder %v2929, 0
        %vm2947 = vcmp.ge.s32.totalorder %v2930, 0
        %vm2948 = vcmp.ge.s32.totalorder %v2931, 0
        %vm2949 = vcmp.ge.s32.totalorder %v2932, 0
        %vm2950 = vcmp.ge.s32.totalorder %v2933, 0
        %vm2951 = vcmp.ge.s32.totalorder %v2934, 0
        %vm2952 = vcmp.ge.s32.totalorder %v2935, 0
        %vm2953 = vcmp.ge.s32.totalorder %v2936, 0
        %vm2954 = vcmp.ge.s32.totalorder %v2937, 0
        %vm2955 = vcmp.ge.s32.totalorder %v2938, 0
        %vm2956 = vcmp.lt.s32.totalorder %v2922, 626
        %vm2957 = vcmp.lt.s32.totalorder %v2923, 626
        %vm2958 = vcmp.lt.s32.totalorder %v2924, 626
        %vm2959 = vcmp.lt.s32.totalorder %v2925, 626
        %vm2960 = vcmp.lt.s32.totalorder %v2926, 626
        %vm2961 = vcmp.lt.s32.totalorder %v2927, 626
        %vm2962 = vcmp.lt.s32.totalorder %v2928, 626
        %vm2963 = vcmp.lt.s32.totalorder %v2929, 626
        %vm2964 = vcmp.lt.s32.totalorder %v2930, 626
        %vm2965 = vcmp.lt.s32.totalorder %v2931, 626
        %vm2966 = vcmp.lt.s32.totalorder %v2932, 626
        %vm2967 = vcmp.lt.s32.totalorder %v2933, 626
        %vm2968 = vcmp.lt.s32.totalorder %v2934, 626
        %vm2969 = vcmp.lt.s32.totalorder %v2935, 626
        %vm2970 = vcmp.lt.s32.totalorder %v2936, 626
        %vm2971 = vcmp.lt.s32.totalorder %v2937, 626
        %vm2972 = vcmp.lt.s32.totalorder %v2938, 626
        %vm2973 = vmand %vm2939, %vm2956
        %vm2974 = vmand %vm2940, %vm2957
        %vm2975 = vmand %vm2941, %vm2958
        %vm2976 = vmand %vm2942, %vm2959
        %vm2977 = vmand %vm2943, %vm2960
        %vm2978 = vmand %vm2944, %vm2961
        %vm2979 = vmand %vm2945, %vm2962
        %vm2980 = vmand %vm2946, %vm2963
        %vm2981 = vmand %vm2947, %vm2964
        %vm2982 = vmand %vm2948, %vm2965
        %vm2983 = vmand %vm2949, %vm2966
        %vm2984 = vmand %vm2950, %vm2967
        %vm2985 = vmand %vm2951, %vm2968
        %vm2986 = vmand %vm2952, %vm2969
        %vm2987 = vmand %vm2953, %vm2970
        %vm2988 = vmand %vm2954, %vm2971
        %vm2989 = vmand %vm2955, %vm2972
        %v2990 = vld [vmem:[#allocation7] sm:$0x1]
        %v2992 = vlaneseq
        %v2993 = vshrl.u32 %v2992, 7
        %v2994 = vsub.s32 0, %v2993
        %v2995 = vrot.slane %v2990, %v2994
        %v2997 = vsub.f32 %v2886, %v2995
        %v2998 = vsub.f32 %v2887, %v2995
        %v2999 = vsub.f32 %v2888, %v2995
        %v3000 = vsub.f32 %v2889, %v2995
        %v3001 = vsub.f32 %v2890, %v2995
        %v3002 = vsub.f32 %v2891, %v2995
        %v3003 = vsub.f32 %v2892, %v2995
        %v3004 = vsub.f32 %v2893, %v2995
        %v3005 = vsub.f32 %v2894, %v2995
        %v3006 = vsub.f32 %v2895, %v2995
        %v3007 = vsub.f32 %v2896, %v2995
        %v3008 = vsub.f32 %v2897, %v2995
        %v3009 = vsub.f32 %v2898, %v2995
        %v3010 = vsub.f32 %v2899, %v2995
        %v3011 = vsub.f32 %v2900, %v2995
        %v3012 = vsub.f32 %v2901, %v2995
        %v3013 = vsub.f32 %v2902, %v2995
        %v3014 = vsub.f32 %v2903, %v2995
        %v3015 = vsub.f32 %v2904, %v2995
        %v3016 = vsub.f32 %v2905, %v2995
        %v3017 = vsub.f32 %v2906, %v2995
        %v3018 = vsub.f32 %v2907, %v2995
        %v3019 = vsub.f32 %v2908, %v2995
        %v3020 = vsub.f32 %v2909, %v2995
        %v3021 = vsub.f32 %v2910, %v2995
        %v3022 = vsub.f32 %v2911, %v2995
        %v3023 = vsub.f32 %v2912, %v2995
        %v3024 = vsub.f32 %v2913, %v2995
        %v3025 = vsub.f32 %v2914, %v2995
        %v3026 = vsub.f32 %v2915, %v2995
        %v3027 = vsub.f32 %v2916, %v2995
        %v3028 = vsub.f32 %v2917, %v2995
        %v3029 = vsub.f32 %v2918, %v2995
        %v3030 = vsub.f32 %v2919, %v2995
        %v3031 = vmax.f32 %v2997, 0.0
        %v3032 = vmax.f32 %v2998, 0.0
        %v3033 = vmax.f32 %v2999, 0.0
        %v3034 = vmax.f32 %v3000, 0.0
        %v3035 = vmax.f32 %v3001, 0.0
        %v3036 = vmax.f32 %v3002, 0.0
        %v3037 = vmax.f32 %v3003, 0.0
        %v3038 = vmax.f32 %v3004, 0.0
        %v3039 = vmax.f32 %v3005, 0.0
        %v3040 = vmax.f32 %v3006, 0.0
        %v3041 = vmax.f32 %v3007, 0.0
        %v3042 = vmax.f32 %v3008, 0.0
        %v3043 = vmax.f32 %v3009, 0.0
        %v3044 = vmax.f32 %v3010, 0.0
        %v3045 = vmax.f32 %v3011, 0.0
        %v3046 = vmax.f32 %v3012, 0.0
        %v3047 = vmax.f32 %v3013, 0.0
        %v3048 = vmax.f32 %v3014, 0.0
        %v3049 = vmax.f32 %v3015, 0.0
        %v3050 = vmax.f32 %v3016, 0.0
        %v3051 = vmax.f32 %v3017, 0.0
        %v3052 = vmax.f32 %v3018, 0.0
        %v3053 = vmax.f32 %v3019, 0.0
        %v3054 = vmax.f32 %v3020, 0.0
        %v3055 = vmax.f32 %v3021, 0.0
        %v3056 = vmax.f32 %v3022, 0.0
        %v3057 = vmax.f32 %v3023, 0.0
        %v3058 = vmax.f32 %v3024, 0.0
        %v3059 = vmax.f32 %v3025, 0.0
        %v3060 = vmax.f32 %v3026, 0.0
        %v3061 = vmax.f32 %v3027, 0.0
        %v3062 = vmax.f32 %v3028, 0.0
        %v3063 = vmax.f32 %v3029, 0.0
        %v3064 = vmax.f32 %v3030, 0.0
        %v3065 = vsel %vm2973, 1, 0
        %v3066 = vsel %vm2974, 1, 0
        %v3067 = vsel %vm2975, 1, 0
        %v3068 = vsel %vm2976, 1, 0
        %v3069 = vsel %vm2977, 1, 0
        %v3070 = vsel %vm2978, 1, 0
        %v3071 = vsel %vm2979, 1, 0
        %v3072 = vsel %vm2980, 1, 0
        %v3073 = vsel %vm2981, 1, 0
        %v3074 = vsel %vm2982, 1, 0
        %v3075 = vsel %vm2983, 1, 0
        %v3076 = vsel %vm2984, 1, 0
        %v3077 = vsel %vm2985, 1, 0
        %v3078 = vsel %vm2986, 1, 0
        %v3079 = vsel %vm2987, 1, 0
        %v3080 = vsel %vm2988, 1, 0
        %v3081 = vsel %vm2989, 1, 0
        %vm3082 = vcmp.eq.s32.totalorder %v3065, 1
        %vm3083 = vcmp.eq.s32.totalorder %v3066, 1
        %vm3084 = vcmp.eq.s32.totalorder %v3067, 1
        %vm3085 = vcmp.eq.s32.totalorder %v3068, 1
        %vm3086 = vcmp.eq.s32.totalorder %v3069, 1
        %vm3087 = vcmp.eq.s32.totalorder %v3070, 1
        %vm3088 = vcmp.eq.s32.totalorder %v3071, 1
        %vm3089 = vcmp.eq.s32.totalorder %v3072, 1
        %vm3090 = vcmp.eq.s32.totalorder %v3073, 1
        %vm3091 = vcmp.eq.s32.totalorder %v3074, 1
        %vm3092 = vcmp.eq.s32.totalorder %v3075, 1
        %vm3093 = vcmp.eq.s32.totalorder %v3076, 1
        %vm3094 = vcmp.eq.s32.totalorder %v3077, 1
        %vm3095 = vcmp.eq.s32.totalorder %v3078, 1
        %vm3096 = vcmp.eq.s32.totalorder %v3079, 1
        %vm3097 = vcmp.eq.s32.totalorder %v3080, 1
        %vm3098 = vcmp.eq.s32.totalorder %v3081, 1
        %v3099 = vsel %vm3082, %v3031, 0.0
        %v3100 = vsel %vm3083, %v3032, 0.0
        %v3101 = vsel %vm3084, %v3033, 0.0
        %v3102 = vsel %vm3085, %v3034, 0.0
        %v3103 = vsel %vm3086, %v3035, 0.0
        %v3104 = vsel %vm3087, %v3036, 0.0
        %v3105 = vsel %vm3088, %v3037, 0.0
        %v3106 = vsel %vm3089, %v3038, 0.0
        %v3107 = vsel %vm3090, %v3039, 0.0
        %v3108 = vsel %vm3091, %v3040, 0.0
        %v3109 = vsel %vm3092, %v3041, 0.0
        %v3110 = vsel %vm3093, %v3042, 0.0
        %v3111 = vsel %vm3094, %v3043, 0.0
        %v3112 = vsel %vm3095, %v3044, 0.0
        %v3113 = vsel %vm3096, %v3045, 0.0
        %v3114 = vsel %vm3097, %v3046, 0.0
        %v3115 = vsel %vm3098, %v3047, 0.0
        %v3116 = vsel %vm3082, %v3048, 0.0
        %v3117 = vsel %vm3083, %v3049, 0.0
        %v3118 = vsel %vm3084, %v3050, 0.0
        %v3119 = vsel %vm3085, %v3051, 0.0
        %v3120 = vsel %vm3086, %v3052, 0.0
        %v3121 = vsel %vm3087, %v3053, 0.0
        %v3122 = vsel %vm3088, %v3054, 0.0
        %v3123 = vsel %vm3089, %v3055, 0.0
        %v3124 = vsel %vm3090, %v3056, 0.0
        %v3125 = vsel %vm3091, %v3057, 0.0
        %v3126 = vsel %vm3092, %v3058, 0.0
        %v3127 = vsel %vm3093, %v3059, 0.0
        %v3128 = vsel %vm3094, %v3060, 0.0
        %v3129 = vsel %vm3095, %v3061, 0.0
        %v3130 = vsel %vm3096, %v3062, 0.0
        %v3131 = vsel %vm3097, %v3063, 0.0
        %v3132 = vsel %vm3098, %v3064, 0.0
        %v3133 = vld [vmem:[%s2] sm:$0xff]
        %v3134 = vld [vmem:[%s2 + $0x8] sm:$0xff]
        %v3135 = vld [vmem:[%s2 + $0x10] sm:$0xff]
        %vm3170 = vcmask 1045504
        %v3171 = vrot.slane %v3099, 2
        %v3172 = vrot.slane %v3100, 2
        %v3173 = vsel %vm3170, %v3171, %v3172
        %v3174 = vrot.slane %v3101, 2
        %v3175 = vsel %vm3170, %v3172, %v3174
        %v3176 = vrot.slane %v3102, 2
        %v3177 = vsel %vm3170, %v3174, %v3176
        %v3178 = vrot.slane %v3103, 2
        %v3179 = vsel %vm3170, %v3176, %v3178
        %v3180 = vrot.slane %v3104, 2
        %v3181 = vsel %vm3170, %v3178, %v3180
        %v3182 = vrot.slane %v3105, 2
        %v3183 = vsel %vm3170, %v3180, %v3182
        %v3184 = vrot.slane %v3106, 2
        %v3185 = vsel %vm3170, %v3182, %v3184
        %v3186 = vrot.slane %v3107, 2
        %v3187 = vsel %vm3170, %v3184, %v3186
        %v3188 = vrot.slane %v3108, 2
        %v3189 = vsel %vm3170, %v3186, %v3188
        %v3190 = vrot.slane %v3109, 2
        %v3191 = vsel %vm3170, %v3188, %v3190
        %v3192 = vrot.slane %v3110, 2
        %v3193 = vsel %vm3170, %v3190, %v3192
        %v3194 = vrot.slane %v3111, 2
        %v3195 = vsel %vm3170, %v3192, %v3194
        %v3196 = vrot.slane %v3112, 2
        %v3197 = vsel %vm3170, %v3194, %v3196
        %v3198 = vrot.slane %v3113, 2
        %v3199 = vsel %vm3170, %v3196, %v3198
        %v3200 = vrot.slane %v3114, 2
        %v3201 = vsel %vm3170, %v3198, %v3200
        %v3202 = vrot.slane %v3115, 2
        %v3203 = vsel %vm3170, %v3200, %v3202
        %v3204 = vrot.slane %v3116, 2
        %v3205 = vrot.slane %v3117, 2
        %v3206 = vsel %vm3170, %v3204, %v3205
        %v3207 = vrot.slane %v3118, 2
        %v3208 = vsel %vm3170, %v3205, %v3207
        %v3209 = vrot.slane %v3119, 2
        %v3210 = vsel %vm3170, %v3207, %v3209
        %v3211 = vrot.slane %v3120, 2
        %v3212 = vsel %vm3170, %v3209, %v3211
        %v3213 = vrot.slane %v3121, 2
        %v3214 = vsel %vm3170, %v3211, %v3213
        %v3215 = vrot.slane %v3122, 2
        %v3216 = vsel %vm3170, %v3213, %v3215
        %v3217 = vrot.slane %v3123, 2
        %v3218 = vsel %vm3170, %v3215, %v3217
        %v3219 = vrot.slane %v3124, 2
        %v3220 = vsel %vm3170, %v3217, %v3219
        %v3221 = vrot.slane %v3125, 2
        %v3222 = vsel %vm3170, %v3219, %v3221
        %v3223 = vrot.slane %v3126, 2
        %v3224 = vsel %vm3170, %v3221, %v3223
        %v3225 = vrot.slane %v3127, 2
        %v3226 = vsel %vm3170, %v3223, %v3225
        %v3227 = vrot.slane %v3128, 2
        %v3228 = vsel %vm3170, %v3225, %v3227
        %v3229 = vrot.slane %v3129, 2
        %v3230 = vsel %vm3170, %v3227, %v3229
        %v3231 = vrot.slane %v3130, 2
        %v3232 = vsel %vm3170, %v3229, %v3231
        %v3233 = vrot.slane %v3131, 2
        %v3234 = vsel %vm3170, %v3231, %v3233
        %v3235 = vrot.slane %v3132, 2
        %v3236 = vsel %vm3170, %v3233, %v3235
        %vm3237 = vcmask 64512
        %v3238 = vsel %vm3237, %v3173, 0
        %v3240 = vsel %vm3237, %v3175, 0
        %v3242 = vsel %vm3237, %v3177, 0
        %v3244 = vsel %vm3237, %v3179, 0
        %v3246 = vsel %vm3237, %v3181, 0
        %v3248 = vsel %vm3237, %v3183, 0
        %v3250 = vsel %vm3237, %v3185, 0
        %v3252 = vsel %vm3237, %v3187, 0
        %v3254 = vsel %vm3237, %v3189, 0
        %v3256 = vsel %vm3237, %v3191, 0
        %v3258 = vsel %vm3237, %v3193, 0
        %v3260 = vsel %vm3237, %v3195, 0
        %v3262 = vsel %vm3237, %v3197, 0
        %v3264 = vsel %vm3237, %v3199, 0
        %v3266 = vsel %vm3237, %v3201, 0
        %v3268 = vsel %vm3237, %v3203, 0
        %v3270 = vsel %vm3237, %v3206, 0
        %v3272 = vsel %vm3237, %v3208, 0
        %v3274 = vsel %vm3237, %v3210, 0
        %v3276 = vsel %vm3237, %v3212, 0
        %v3278 = vsel %vm3237, %v3214, 0
        %v3280 = vsel %vm3237, %v3216, 0
        %v3282 = vsel %vm3237, %v3218, 0
        %v3284 = vsel %vm3237, %v3220, 0
        %v3286 = vsel %vm3237, %v3222, 0
        %v3288 = vsel %vm3237, %v3224, 0
        %v3290 = vsel %vm3237, %v3226, 0
        %v3292 = vsel %vm3237, %v3228, 0
        %v3294 = vsel %vm3237, %v3230, 0
        %v3296 = vsel %vm3237, %v3232, 0
        %v3298 = vsel %vm3237, %v3234, 0
        %v3300 = vsel %vm3237, %v3236, 0
        %3302 = vmatprep.subr.mxu0 0.0
        %3303 = vmatpush1.msra.mxu0 0.0
        %3304 = vmatprep.subr.mxu0 0.0
        %3305 = vmatpush1.msra.mxu0 0.0
        %3306 = vmatprep.subr.mxu0 0.0
        %3307 = vmatpush1.msra.mxu0 0.0
        %3308 = vmatprep.subr.mxu0 0.0
        %3309 = vmatpush1.msra.mxu0 0.0
        %3310 = vmatprep.subr.mxu0 0.0
        %3311 = vmatpush1.msra.mxu0 0.0
        %3312 = vmatprep.subr.mxu0 0.0
        %3313 = vmatpush1.msra.mxu0 0.0
        %3314 = vmatprep.subr.mxu0 0.0
        %3315 = vmatpush1.msra.mxu0 0.0
        %3316 = vmatprep.subr.mxu0 0.0
        %3317 = vmatpush1.msra.mxu0 0.0
        %3318 = vmatprep.subr.mxu0 0.0
        %3319 = vmatpush1.msra.mxu0 0.0
        %3320 = vmatprep.subr.mxu0 0.0
        %3321 = vmatpush1.msra.mxu0 0.0
        %3322 = vmatprep.subr.mxu0 0.0
        %3323 = vmatpush1.msra.mxu0 0.0
        %3324 = vmatprep.subr.mxu0 0.0
        %3325 = vmatpush1.msra.mxu0 0.0
        %3326 = vmatprep.subr.mxu0 0.0
        %3327 = vmatpush1.msra.mxu0 0.0
        %3328 = vmatprep.subr.mxu0 0.0
        %3329 = vmatpush1.msra.mxu0 0.0
        %3330 = vmatprep.subr.mxu0 0.0
        %3331 = vmatpush1.msra.mxu0 0.0
        %3332 = vmatprep.subr.mxu0 0.0
        %3333 = vmatpush1.msra.mxu0 %v3134
        %3334 = vmatprep.subr.mxu0 0.0
        %3335 = vmatpush2.msra.mxu0 0.0
        %3336 = vmatprep.subr.mxu0 0.0
        %3337 = vmatpush2.msra.mxu0 0.0
        %3338 = vmatprep.subr.mxu0 0.0
        %3339 = vmatpush2.msra.mxu0 0.0
        %3340 = vmatprep.subr.mxu0 0.0
        %3341 = vmatpush2.msra.mxu0 0.0
        %3342 = vmatprep.subr.mxu0 0.0
        %3343 = vmatpush2.msra.mxu0 0.0
        %3344 = vmatprep.subr.mxu0 0.0
        %3345 = vmatpush2.msra.mxu0 0.0
        %3346 = vmatprep.subr.mxu0 0.0
        %3347 = vmatpush2.msra.mxu0 0.0
        %3348 = vmatprep.subr.mxu0 0.0
        %3349 = vmatpush2.msra.mxu0 0.0
        %3350 = vmatprep.subr.mxu0 0.0
        %3351 = vmatpush2.msra.mxu0 0.0
        %3352 = vmatprep.subr.mxu0 0.0
        %3353 = vmatpush2.msra.mxu0 0.0
        %3354 = vmatprep.subr.mxu0 0.0
        %3355 = vmatpush2.msra.mxu0 0.0
        %3356 = vmatprep.subr.mxu0 0.0
        %3357 = vmatpush2.msra.mxu0 0.0
        %3358 = vmatprep.subr.mxu0 0.0
        %3359 = vmatpush2.msra.mxu0 0.0
        %3360 = vmatprep.subr.mxu0 0.0
        %3361 = vmatpush2.msra.mxu0 0.0
        %3362 = vmatprep.subr.mxu0 0.0
        %3363 = vmatpush2.msra.mxu0 0.0
        %3364 = vmatprep.subr.mxu0 0.0
        %3365 = vmatpush2.msra.mxu0 0.0
        %3366 = vmatprep.mubr.f32.mxu0 0.0
        %3367 = vmatmul.mubr.f32.gmra.mxu0 %v3238
        %v3368 = vpop.f32.mrf.mxu0
        %v3369 = vadd.f32 0.0, %v3368
        %v3370 = vpop.f32.mrf.mxu0
        %3371 = vmatprep.mubr.f32.mxu0 0.0
        %3372 = vmatmul.mubr.f32.gmra.mxu0 %v3240
        %v3373 = vpop.f32.mrf.mxu0
        %v3374 = vadd.f32 0.0, %v3373
        %v3375 = vpop.f32.mrf.mxu0
        %3376 = vmatprep.mubr.f32.mxu0 0.0
        %3377 = vmatmul.mubr.f32.gmra.mxu0 %v3242
        %v3378 = vpop.f32.mrf.mxu0
        %v3379 = vadd.f32 0.0, %v3378
        %v3380 = vpop.f32.mrf.mxu0
        %3381 = vmatprep.mubr.f32.mxu0 0.0
        %3382 = vmatmul.mubr.f32.gmra.mxu0 %v3244
        %v3383 = vpop.f32.mrf.mxu0
        %v3384 = vadd.f32 0.0, %v3383
        %v3385 = vpop.f32.mrf.mxu0
        %3386 = vmatprep.mubr.f32.mxu0 0.0
        %3387 = vmatmul.mubr.f32.gmra.mxu0 %v3246
        %v3388 = vpop.f32.mrf.mxu0
        %v3389 = vadd.f32 0.0, %v3388
        %v3390 = vpop.f32.mrf.mxu0
        %3391 = vmatprep.mubr.f32.mxu0 0.0
        %3392 = vmatmul.mubr.f32.gmra.mxu0 %v3248
        %v3393 = vpop.f32.mrf.mxu0
        %v3394 = vadd.f32 0.0, %v3393
        %v3395 = vpop.f32.mrf.mxu0
        %3396 = vmatprep.mubr.f32.mxu0 0.0
        %3397 = vmatmul.mubr.f32.gmra.mxu0 %v3250
        %v3398 = vpop.f32.mrf.mxu0
        %v3399 = vadd.f32 0.0, %v3398
        %v3400 = vpop.f32.mrf.mxu0
        %3401 = vmatprep.mubr.f32.mxu0 0.0
        %3402 = vmatmul.mubr.f32.gmra.mxu0 %v3252
        %v3403 = vpop.f32.mrf.mxu0
        %v3404 = vadd.f32 0.0, %v3403
        %v3405 = vpop.f32.mrf.mxu0
        %3406 = vmatprep.mubr.f32.mxu0 0.0
        %3407 = vmatmul.mubr.f32.gmra.mxu0 %v3254
        %v3408 = vpop.f32.mrf.mxu0
        %v3409 = vadd.f32 0.0, %v3408
        %v3410 = vpop.f32.mrf.mxu0
        %3411 = vmatprep.mubr.f32.mxu0 0.0
        %3412 = vmatmul.mubr.f32.gmra.mxu0 %v3256
        %v3413 = vpop.f32.mrf.mxu0
        %v3414 = vadd.f32 0.0, %v3413
        %v3415 = vpop.f32.mrf.mxu0
        %3416 = vmatprep.mubr.f32.mxu0 0.0
        %3417 = vmatmul.mubr.f32.gmra.mxu0 %v3258
        %v3418 = vpop.f32.mrf.mxu0
        %v3419 = vadd.f32 0.0, %v3418
        %v3420 = vpop.f32.mrf.mxu0
        %3421 = vmatprep.mubr.f32.mxu0 0.0
        %3422 = vmatmul.mubr.f32.gmra.mxu0 %v3260
        %v3423 = vpop.f32.mrf.mxu0
        %v3424 = vadd.f32 0.0, %v3423
        %v3425 = vpop.f32.mrf.mxu0
        %3426 = vmatprep.mubr.f32.mxu0 0.0
        %3427 = vmatmul.mubr.f32.gmra.mxu0 %v3262
        %v3428 = vpop.f32.mrf.mxu0
        %v3429 = vadd.f32 0.0, %v3428
        %v3430 = vpop.f32.mrf.mxu0
        %3431 = vmatprep.mubr.f32.mxu0 0.0
        %3432 = vmatmul.mubr.f32.gmra.mxu0 %v3264
        %v3433 = vpop.f32.mrf.mxu0
        %v3434 = vadd.f32 0.0, %v3433
        %v3435 = vpop.f32.mrf.mxu0
        %3436 = vmatprep.mubr.f32.mxu0 0.0
        %3437 = vmatmul.mubr.f32.gmra.mxu0 %v3266
        %v3438 = vpop.f32.mrf.mxu0
        %v3439 = vadd.f32 0.0, %v3438
        %v3440 = vpop.f32.mrf.mxu0
        %3441 = vmatprep.mubr.f32.mxu0 0.0
        %3442 = vmatmul.mubr.f32.gmra.mxu0 %v3268
        %v3443 = vpop.f32.mrf.mxu0
        %v3444 = vadd.f32 0.0, %v3443
        %v3445 = vpop.f32.mrf.mxu0
        %3446 = vmatprep.mubr.f32.mxu0 0.0
        %3447 = vmatmul.mubr.f32.gmra.mxu0 %v3270
        %v3448 = vpop.f32.mrf.mxu0
        %v3449 = vadd.f32 0.0, %v3448
        %v3450 = vpop.f32.mrf.mxu0
        %3451 = vmatprep.mubr.f32.mxu0 0.0
        %3452 = vmatmul.mubr.f32.gmra.mxu0 %v3272
        %v3453 = vpop.f32.mrf.mxu0
        %v3454 = vadd.f32 0.0, %v3453
        %v3455 = vpop.f32.mrf.mxu0
        %3456 = vmatprep.mubr.f32.mxu0 0.0
        %3457 = vmatmul.mubr.f32.gmra.mxu0 %v3274
        %v3458 = vpop.f32.mrf.mxu0
        %v3459 = vadd.f32 0.0, %v3458
        %v3460 = vpop.f32.mrf.mxu0
        %3461 = vmatprep.mubr.f32.mxu0 0.0
        %3462 = vmatmul.mubr.f32.gmra.mxu0 %v3276
        %v3463 = vpop.f32.mrf.mxu0
        %v3464 = vadd.f32 0.0, %v3463
        %v3465 = vpop.f32.mrf.mxu0
        %3466 = vmatprep.mubr.f32.mxu0 0.0
        %3467 = vmatmul.mubr.f32.gmra.mxu0 %v3278
        %v3468 = vpop.f32.mrf.mxu0
        %v3469 = vadd.f32 0.0, %v3468
        %v3470 = vpop.f32.mrf.mxu0
        %3471 = vmatprep.mubr.f32.mxu0 0.0
        %3472 = vmatmul.mubr.f32.gmra.mxu0 %v3280
        %v3473 = vpop.f32.mrf.mxu0
        %v3474 = vadd.f32 0.0, %v3473
        %v3475 = vpop.f32.mrf.mxu0
        %3476 = vmatprep.mubr.f32.mxu0 0.0
        %3477 = vmatmul.mubr.f32.gmra.mxu0 %v3282
        %v3478 = vpop.f32.mrf.mxu0
        %v3479 = vadd.f32 0.0, %v3478
        %v3480 = vpop.f32.mrf.mxu0
        %3481 = vmatprep.mubr.f32.mxu0 0.0
        %3482 = vmatmul.mubr.f32.gmra.mxu0 %v3284
        %v3483 = vpop.f32.mrf.mxu0
        %v3484 = vadd.f32 0.0, %v3483
        %v3485 = vpop.f32.mrf.mxu0
        %3486 = vmatprep.mubr.f32.mxu0 0.0
        %3487 = vmatmul.mubr.f32.gmra.mxu0 %v3286
        %v3488 = vpop.f32.mrf.mxu0
        %v3489 = vadd.f32 0.0, %v3488
        %v3490 = vpop.f32.mrf.mxu0
        %3491 = vmatprep.mubr.f32.mxu0 0.0
        %3492 = vmatmul.mubr.f32.gmra.mxu0 %v3288
        %v3493 = vpop.f32.mrf.mxu0
        %v3494 = vadd.f32 0.0, %v3493
        %v3495 = vpop.f32.mrf.mxu0
        %3496 = vmatprep.mubr.f32.mxu0 0.0
        %3497 = vmatmul.mubr.f32.gmra.mxu0 %v3290
        %v3498 = vpop.f32.mrf.mxu0
        %v3499 = vadd.f32 0.0, %v3498
        %v3500 = vpop.f32.mrf.mxu0
        %3501 = vmatprep.mubr.f32.mxu0 0.0
        %3502 = vmatmul.mubr.f32.gmra.mxu0 %v3292
        %v3503 = vpop.f32.mrf.mxu0
        %v3504 = vadd.f32 0.0, %v3503
        %v3505 = vpop.f32.mrf.mxu0
        %3506 = vmatprep.mubr.f32.mxu0 0.0
        %3507 = vmatmul.mubr.f32.gmra.mxu0 %v3294
        %v3508 = vpop.f32.mrf.mxu0
        %v3509 = vadd.f32 0.0, %v3508
        %v3510 = vpop.f32.mrf.mxu0
        %3511 = vmatprep.mubr.f32.mxu0 0.0
        %3512 = vmatmul.mubr.f32.gmra.mxu0 %v3296
        %v3513 = vpop.f32.mrf.mxu0
        %v3514 = vadd.f32 0.0, %v3513
        %v3515 = vpop.f32.mrf.mxu0
        %3516 = vmatprep.mubr.f32.mxu0 0.0
        %3517 = vmatmul.mubr.f32.gmra.mxu0 %v3298
        %v3518 = vpop.f32.mrf.mxu0
        %v3519 = vadd.f32 0.0, %v3518
        %v3520 = vpop.f32.mrf.mxu0
        %3521 = vmatprep.mubr.f32.mxu0 0.0
        %3522 = vmatmul.mubr.f32.gmra.mxu0 %v3300
        %v3523 = vpop.f32.mrf.mxu0
        %v3524 = vadd.f32 0.0, %v3523
        %v3525 = vpop.f32.mrf.mxu0
        %3526 = vdwg.mxu0
        %v3527 = vsel %vm3237, %v3099, 0
        %v3529 = vsel %vm3237, %v3100, 0
        %v3531 = vsel %vm3237, %v3101, 0
        %v3533 = vsel %vm3237, %v3102, 0
        %v3535 = vsel %vm3237, %v3103, 0
        %v3537 = vsel %vm3237, %v3104, 0
        %v3539 = vsel %vm3237, %v3105, 0
        %v3541 = vsel %vm3237, %v3106, 0
        %v3543 = vsel %vm3237, %v3107, 0
        %v3545 = vsel %vm3237, %v3108, 0
        %v3547 = vsel %vm3237, %v3109, 0
        %v3549 = vsel %vm3237, %v3110, 0
        %v3551 = vsel %vm3237, %v3111, 0
        %v3553 = vsel %vm3237, %v3112, 0
        %v3555 = vsel %vm3237, %v3113, 0
        %v3557 = vsel %vm3237, %v3114, 0
        %v3559 = vsel %vm3237, %v3116, 0
        %v3561 = vsel %vm3237, %v3117, 0
        %v3563 = vsel %vm3237, %v3118, 0
        %v3565 = vsel %vm3237, %v3119, 0
        %v3567 = vsel %vm3237, %v3120, 0
        %v3569 = vsel %vm3237, %v3121, 0
        %v3571 = vsel %vm3237, %v3122, 0
        %v3573 = vsel %vm3237, %v3123, 0
        %v3575 = vsel %vm3237, %v3124, 0
        %v3577 = vsel %vm3237, %v3125, 0
        %v3579 = vsel %vm3237, %v3126, 0
        %v3581 = vsel %vm3237, %v3127, 0
        %v3583 = vsel %vm3237, %v3128, 0
        %v3585 = vsel %vm3237, %v3129, 0
        %v3587 = vsel %vm3237, %v3130, 0
        %v3589 = vsel %vm3237, %v3131, 0
        %3591 = vmatprep.subr.mxu0 0.0
        %3592 = vmatpush1.msra.mxu0 0.0
        %3593 = vmatprep.subr.mxu0 0.0
        %3594 = vmatpush1.msra.mxu0 0.0
        %3595 = vmatprep.subr.mxu0 0.0
        %3596 = vmatpush1.msra.mxu0 0.0
        %3597 = vmatprep.subr.mxu0 0.0
        %3598 = vmatpush1.msra.mxu0 0.0
        %3599 = vmatprep.subr.mxu0 0.0
        %3600 = vmatpush1.msra.mxu0 0.0
        %3601 = vmatprep.subr.mxu0 0.0
        %3602 = vmatpush1.msra.mxu0 0.0
        %3603 = vmatprep.subr.mxu0 0.0
        %3604 = vmatpush1.msra.mxu0 0.0
        %3605 = vmatprep.subr.mxu0 0.0
        %3606 = vmatpush1.msra.mxu0 0.0
        %3607 = vmatprep.subr.mxu0 0.0
        %3608 = vmatpush1.msra.mxu0 0.0
        %3609 = vmatprep.subr.mxu0 0.0
        %3610 = vmatpush1.msra.mxu0 0.0
        %3611 = vmatprep.subr.mxu0 0.0
        %3612 = vmatpush1.msra.mxu0 0.0
        %3613 = vmatprep.subr.mxu0 0.0
        %3614 = vmatpush1.msra.mxu0 0.0
        %3615 = vmatprep.subr.mxu0 0.0
        %3616 = vmatpush1.msra.mxu0 0.0
        %3617 = vmatprep.subr.mxu0 0.0
        %3618 = vmatpush1.msra.mxu0 0.0
        %3619 = vmatprep.subr.mxu0 0.0
        %3620 = vmatpush1.msra.mxu0 0.0
        %3621 = vmatprep.subr.mxu0 0.0
        %3622 = vmatpush1.msra.mxu0 %v3133
        %3623 = vmatprep.subr.mxu0 0.0
        %3624 = vmatpush2.msra.mxu0 0.0
        %3625 = vmatprep.subr.mxu0 0.0
        %3626 = vmatpush2.msra.mxu0 0.0
        %3627 = vmatprep.subr.mxu0 0.0
        %3628 = vmatpush2.msra.mxu0 0.0
        %3629 = vmatprep.subr.mxu0 0.0
        %3630 = vmatpush2.msra.mxu0 0.0
        %3631 = vmatprep.subr.mxu0 0.0
        %3632 = vmatpush2.msra.mxu0 0.0
        %3633 = vmatprep.subr.mxu0 0.0
        %3634 = vmatpush2.msra.mxu0 0.0
        %3635 = vmatprep.subr.mxu0 0.0
        %3636 = vmatpush2.msra.mxu0 0.0
        %3637 = vmatprep.subr.mxu0 0.0
        %3638 = vmatpush2.msra.mxu0 0.0
        %3639 = vmatprep.subr.mxu0 0.0
        %3640 = vmatpush2.msra.mxu0 0.0
        %3641 = vmatprep.subr.mxu0 0.0
        %3642 = vmatpush2.msra.mxu0 0.0
        %3643 = vmatprep.subr.mxu0 0.0
        %3644 = vmatpush2.msra.mxu0 0.0
        %3645 = vmatprep.subr.mxu0 0.0
        %3646 = vmatpush2.msra.mxu0 0.0
        %3647 = vmatprep.subr.mxu0 0.0
        %3648 = vmatpush2.msra.mxu0 0.0
        %3649 = vmatprep.subr.mxu0 0.0
        %3650 = vmatpush2.msra.mxu0 0.0
        %3651 = vmatprep.subr.mxu0 0.0
        %3652 = vmatpush2.msra.mxu0 0.0
        %3653 = vmatprep.subr.mxu0 0.0
        %3654 = vmatpush2.msra.mxu0 0.0
        %3655 = vmatprep.mubr.f32.mxu0 0.0
        %3656 = vmatmul.mubr.f32.gmra.mxu0 %v3527
        %v3657 = vpop.f32.mrf.mxu0
        %v3658 = vadd.f32 %v3369, %v3657
        %v3659 = vpop.f32.mrf.mxu0
        %3660 = vmatprep.mubr.f32.mxu0 0.0
        %3661 = vmatmul.mubr.f32.gmra.mxu0 %v3529
        %v3662 = vpop.f32.mrf.mxu0
        %v3663 = vadd.f32 %v3374, %v3662
        %v3664 = vpop.f32.mrf.mxu0
        %3665 = vmatprep.mubr.f32.mxu0 0.0
        %3666 = vmatmul.mubr.f32.gmra.mxu0 %v3531
        %v3667 = vpop.f32.mrf.mxu0
        %v3668 = vadd.f32 %v3379, %v3667
        %v3669 = vpop.f32.mrf.mxu0
        %3670 = vmatprep.mubr.f32.mxu0 0.0
        %3671 = vmatmul.mubr.f32.gmra.mxu0 %v3533
        %v3672 = vpop.f32.mrf.mxu0
        %v3673 = vadd.f32 %v3384, %v3672
        %v3674 = vpop.f32.mrf.mxu0
        %3675 = vmatprep.mubr.f32.mxu0 0.0
        %3676 = vmatmul.mubr.f32.gmra.mxu0 %v3535
        %v3677 = vpop.f32.mrf.mxu0
        %v3678 = vadd.f32 %v3389, %v3677
        %v3679 = vpop.f32.mrf.mxu0
        %3680 = vmatprep.mubr.f32.mxu0 0.0
        %3681 = vmatmul.mubr.f32.gmra.mxu0 %v3537
        %v3682 = vpop.f32.mrf.mxu0
        %v3683 = vadd.f32 %v3394, %v3682
        %v3684 = vpop.f32.mrf.mxu0
        %3685 = vmatprep.mubr.f32.mxu0 0.0
        %3686 = vmatmul.mubr.f32.gmra.mxu0 %v3539
        %v3687 = vpop.f32.mrf.mxu0
        %v3688 = vadd.f32 %v3399, %v3687
        %v3689 = vpop.f32.mrf.mxu0
        %3690 = vmatprep.mubr.f32.mxu0 0.0
        %3691 = vmatmul.mubr.f32.gmra.mxu0 %v3541
        %v3692 = vpop.f32.mrf.mxu0
        %v3693 = vadd.f32 %v3404, %v3692
        %v3694 = vpop.f32.mrf.mxu0
        %3695 = vmatprep.mubr.f32.mxu0 0.0
        %3696 = vmatmul.mubr.f32.gmra.mxu0 %v3543
        %v3697 = vpop.f32.mrf.mxu0
        %v3698 = vadd.f32 %v3409, %v3697
        %v3699 = vpop.f32.mrf.mxu0
        %3700 = vmatprep.mubr.f32.mxu0 0.0
        %3701 = vmatmul.mubr.f32.gmra.mxu0 %v3545
        %v3702 = vpop.f32.mrf.mxu0
        %v3703 = vadd.f32 %v3414, %v3702
        %v3704 = vpop.f32.mrf.mxu0
        %3705 = vmatprep.mubr.f32.mxu0 0.0
        %3706 = vmatmul.mubr.f32.gmra.mxu0 %v3547
        %v3707 = vpop.f32.mrf.mxu0
        %v3708 = vadd.f32 %v3419, %v3707
        %v3709 = vpop.f32.mrf.mxu0
        %3710 = vmatprep.mubr.f32.mxu0 0.0
        %3711 = vmatmul.mubr.f32.gmra.mxu0 %v3549
        %v3712 = vpop.f32.mrf.mxu0
        %v3713 = vadd.f32 %v3424, %v3712
        %v3714 = vpop.f32.mrf.mxu0
        %3715 = vmatprep.mubr.f32.mxu0 0.0
        %3716 = vmatmul.mubr.f32.gmra.mxu0 %v3551
        %v3717 = vpop.f32.mrf.mxu0
        %v3718 = vadd.f32 %v3429, %v3717
        %v3719 = vpop.f32.mrf.mxu0
        %3720 = vmatprep.mubr.f32.mxu0 0.0
        %3721 = vmatmul.mubr.f32.gmra.mxu0 %v3553
        %v3722 = vpop.f32.mrf.mxu0
        %v3723 = vadd.f32 %v3434, %v3722
        %v3724 = vpop.f32.mrf.mxu0
        %3725 = vmatprep.mubr.f32.mxu0 0.0
        %3726 = vmatmul.mubr.f32.gmra.mxu0 %v3555
        %v3727 = vpop.f32.mrf.mxu0
        %v3728 = vadd.f32 %v3439, %v3727
        %v3729 = vpop.f32.mrf.mxu0
        %3730 = vmatprep.mubr.f32.mxu0 0.0
        %3731 = vmatmul.mubr.f32.gmra.mxu0 %v3557
        %v3732 = vpop.f32.mrf.mxu0
        %v3733 = vadd.f32 %v3444, %v3732
        %v3734 = vpop.f32.mrf.mxu0
        %3735 = vmatprep.mubr.f32.mxu0 0.0
        %3736 = vmatmul.mubr.f32.gmra.mxu0 %v3559
        %v3737 = vpop.f32.mrf.mxu0
        %v3738 = vadd.f32 %v3449, %v3737
        %v3739 = vpop.f32.mrf.mxu0
        %3740 = vmatprep.mubr.f32.mxu0 0.0
        %3741 = vmatmul.mubr.f32.gmra.mxu0 %v3561
        %v3742 = vpop.f32.mrf.mxu0
        %v3743 = vadd.f32 %v3454, %v3742
        %v3744 = vpop.f32.mrf.mxu0
        %3745 = vmatprep.mubr.f32.mxu0 0.0
        %3746 = vmatmul.mubr.f32.gmra.mxu0 %v3563
        %v3747 = vpop.f32.mrf.mxu0
        %v3748 = vadd.f32 %v3459, %v3747
        %v3749 = vpop.f32.mrf.mxu0
        %3750 = vmatprep.mubr.f32.mxu0 0.0
        %3751 = vmatmul.mubr.f32.gmra.mxu0 %v3565
        %v3752 = vpop.f32.mrf.mxu0
        %v3753 = vadd.f32 %v3464, %v3752
        %v3754 = vpop.f32.mrf.mxu0
        %3755 = vmatprep.mubr.f32.mxu0 0.0
        %3756 = vmatmul.mubr.f32.gmra.mxu0 %v3567
        %v3757 = vpop.f32.mrf.mxu0
        %v3758 = vadd.f32 %v3469, %v3757
        %v3759 = vpop.f32.mrf.mxu0
        %3760 = vmatprep.mubr.f32.mxu0 0.0
        %3761 = vmatmul.mubr.f32.gmra.mxu0 %v3569
        %v3762 = vpop.f32.mrf.mxu0
        %v3763 = vadd.f32 %v3474, %v3762
        %v3764 = vpop.f32.mrf.mxu0
        %3765 = vmatprep.mubr.f32.mxu0 0.0
        %3766 = vmatmul.mubr.f32.gmra.mxu0 %v3571
        %v3767 = vpop.f32.mrf.mxu0
        %v3768 = vadd.f32 %v3479, %v3767
        %v3769 = vpop.f32.mrf.mxu0
        %3770 = vmatprep.mubr.f32.mxu0 0.0
        %3771 = vmatmul.mubr.f32.gmra.mxu0 %v3573
        %v3772 = vpop.f32.mrf.mxu0
        %v3773 = vadd.f32 %v3484, %v3772
        %v3774 = vpop.f32.mrf.mxu0
        %3775 = vmatprep.mubr.f32.mxu0 0.0
        %3776 = vmatmul.mubr.f32.gmra.mxu0 %v3575
        %v3777 = vpop.f32.mrf.mxu0
        %v3778 = vadd.f32 %v3489, %v3777
        %v3779 = vpop.f32.mrf.mxu0
        %3780 = vmatprep.mubr.f32.mxu0 0.0
        %3781 = vmatmul.mubr.f32.gmra.mxu0 %v3577
        %v3782 = vpop.f32.mrf.mxu0
        %v3783 = vadd.f32 %v3494, %v3782
        %v3784 = vpop.f32.mrf.mxu0
        %3785 = vmatprep.mubr.f32.mxu0 0.0
        %3786 = vmatmul.mubr.f32.gmra.mxu0 %v3579
        %v3787 = vpop.f32.mrf.mxu0
        %v3788 = vadd.f32 %v3499, %v3787
        %v3789 = vpop.f32.mrf.mxu0
        %3790 = vmatprep.mubr.f32.mxu0 0.0
        %3791 = vmatmul.mubr.f32.gmra.mxu0 %v3581
        %v3792 = vpop.f32.mrf.mxu0
        %v3793 = vadd.f32 %v3504, %v3792
        %v3794 = vpop.f32.mrf.mxu0
        %3795 = vmatprep.mubr.f32.mxu0 0.0
        %3796 = vmatmul.mubr.f32.gmra.mxu0 %v3583
        %v3797 = vpop.f32.mrf.mxu0
        %v3798 = vadd.f32 %v3509, %v3797
        %v3799 = vpop.f32.mrf.mxu0
        %3800 = vmatprep.mubr.f32.mxu0 0.0
        %3801 = vmatmul.mubr.f32.gmra.mxu0 %v3585
        %v3802 = vpop.f32.mrf.mxu0
        %v3803 = vadd.f32 %v3514, %v3802
        %v3804 = vpop.f32.mrf.mxu0
        %3805 = vmatprep.mubr.f32.mxu0 0.0
        %3806 = vmatmul.mubr.f32.gmra.mxu0 %v3587
        %v3807 = vpop.f32.mrf.mxu0
        %v3808 = vadd.f32 %v3519, %v3807
        %v3809 = vpop.f32.mrf.mxu0
        %3810 = vmatprep.mubr.f32.mxu0 0.0
        %3811 = vmatmul.mubr.f32.gmra.mxu0 %v3589
        %v3812 = vpop.f32.mrf.mxu0
        %v3813 = vadd.f32 %v3524, %v3812
        %v3814 = vpop.f32.mrf.mxu0
        %3815 = vdwg.mxu0
        %v3816 = vrot.slane %v3099, 4
        %v3817 = vrot.slane %v3100, 4
        %v3818 = vsel %vm1966, %v3816, %v3817
        %v3819 = vrot.slane %v3101, 4
        %v3820 = vsel %vm1966, %v3817, %v3819
        %v3821 = vrot.slane %v3102, 4
        %v3822 = vsel %vm1966, %v3819, %v3821
        %v3823 = vrot.slane %v3103, 4
        %v3824 = vsel %vm1966, %v3821, %v3823
        %v3825 = vrot.slane %v3104, 4
        %v3826 = vsel %vm1966, %v3823, %v3825
        %v3827 = vrot.slane %v3105, 4
        %v3828 = vsel %vm1966, %v3825, %v3827
        %v3829 = vrot.slane %v3106, 4
        %v3830 = vsel %vm1966, %v3827, %v3829
        %v3831 = vrot.slane %v3107, 4
        %v3832 = vsel %vm1966, %v3829, %v3831
        %v3833 = vrot.slane %v3108, 4
        %v3834 = vsel %vm1966, %v3831, %v3833
        %v3835 = vrot.slane %v3109, 4
        %v3836 = vsel %vm1966, %v3833, %v3835
        %v3837 = vrot.slane %v3110, 4
        %v3838 = vsel %vm1966, %v3835, %v3837
        %v3839 = vrot.slane %v3111, 4
        %v3840 = vsel %vm1966, %v3837, %v3839
        %v3841 = vrot.slane %v3112, 4
        %v3842 = vsel %vm1966, %v3839, %v3841
        %v3843 = vrot.slane %v3113, 4
        %v3844 = vsel %vm1966, %v3841, %v3843
        %v3845 = vrot.slane %v3114, 4
        %v3846 = vsel %vm1966, %v3843, %v3845
        %v3847 = vrot.slane %v3115, 4
        %v3848 = vsel %vm1966, %v3845, %v3847
        %v3849 = vrot.slane %v3116, 4
        %v3850 = vrot.slane %v3117, 4
        %v3851 = vsel %vm1966, %v3849, %v3850
        %v3852 = vrot.slane %v3118, 4
        %v3853 = vsel %vm1966, %v3850, %v3852
        %v3854 = vrot.slane %v3119, 4
        %v3855 = vsel %vm1966, %v3852, %v3854
        %v3856 = vrot.slane %v3120, 4
        %v3857 = vsel %vm1966, %v3854, %v3856
        %v3858 = vrot.slane %v3121, 4
        %v3859 = vsel %vm1966, %v3856, %v3858
        %v3860 = vrot.slane %v3122, 4
        %v3861 = vsel %vm1966, %v3858, %v3860
        %v3862 = vrot.slane %v3123, 4
        %v3863 = vsel %vm1966, %v3860, %v3862
        %v3864 = vrot.slane %v3124, 4
        %v3865 = vsel %vm1966, %v3862, %v3864
        %v3866 = vrot.slane %v3125, 4
        %v3867 = vsel %vm1966, %v3864, %v3866
        %v3868 = vrot.slane %v3126, 4
        %v3869 = vsel %vm1966, %v3866, %v3868
        %v3870 = vrot.slane %v3127, 4
        %v3871 = vsel %vm1966, %v3868, %v3870
        %v3872 = vrot.slane %v3128, 4
        %v3873 = vsel %vm1966, %v3870, %v3872
        %v3874 = vrot.slane %v3129, 4
        %v3875 = vsel %vm1966, %v3872, %v3874
        %v3876 = vrot.slane %v3130, 4
        %v3877 = vsel %vm1966, %v3874, %v3876
        %v3878 = vrot.slane %v3131, 4
        %v3879 = vsel %vm1966, %v3876, %v3878
        %v3880 = vrot.slane %v3132, 4
        %v3881 = vsel %vm1966, %v3878, %v3880
        %v3882 = vsel %vm3237, %v3818, 0
        %v3884 = vsel %vm3237, %v3820, 0
        %v3886 = vsel %vm3237, %v3822, 0
        %v3888 = vsel %vm3237, %v3824, 0
        %v3890 = vsel %vm3237, %v3826, 0
        %v3892 = vsel %vm3237, %v3828, 0
        %v3894 = vsel %vm3237, %v3830, 0
        %v3896 = vsel %vm3237, %v3832, 0
        %v3898 = vsel %vm3237, %v3834, 0
        %v3900 = vsel %vm3237, %v3836, 0
        %v3902 = vsel %vm3237, %v3838, 0
        %v3904 = vsel %vm3237, %v3840, 0
        %v3906 = vsel %vm3237, %v3842, 0
        %v3908 = vsel %vm3237, %v3844, 0
        %v3910 = vsel %vm3237, %v3846, 0
        %v3912 = vsel %vm3237, %v3848, 0
        %v3914 = vsel %vm3237, %v3851, 0
        %v3916 = vsel %vm3237, %v3853, 0
        %v3918 = vsel %vm3237, %v3855, 0
        %v3920 = vsel %vm3237, %v3857, 0
        %v3922 = vsel %vm3237, %v3859, 0
        %v3924 = vsel %vm3237, %v3861, 0
        %v3926 = vsel %vm3237, %v3863, 0
        %v3928 = vsel %vm3237, %v3865, 0
        %v3930 = vsel %vm3237, %v3867, 0
        %v3932 = vsel %vm3237, %v3869, 0
        %v3934 = vsel %vm3237, %v3871, 0
        %v3936 = vsel %vm3237, %v3873, 0
        %v3938 = vsel %vm3237, %v3875, 0
        %v3940 = vsel %vm3237, %v3877, 0
        %v3942 = vsel %vm3237, %v3879, 0
        %v3944 = vsel %vm3237, %v3881, 0
        %3946 = vmatprep.subr.mxu0 0.0
        %3947 = vmatpush1.msra.mxu0 0.0
        %3948 = vmatprep.subr.mxu0 0.0
        %3949 = vmatpush1.msra.mxu0 0.0
        %3950 = vmatprep.subr.mxu0 0.0
        %3951 = vmatpush1.msra.mxu0 0.0
        %3952 = vmatprep.subr.mxu0 0.0
        %3953 = vmatpush1.msra.mxu0 0.0
        %3954 = vmatprep.subr.mxu0 0.0
        %3955 = vmatpush1.msra.mxu0 0.0
        %3956 = vmatprep.subr.mxu0 0.0
        %3957 = vmatpush1.msra.mxu0 0.0
        %3958 = vmatprep.subr.mxu0 0.0
        %3959 = vmatpush1.msra.mxu0 0.0
        %3960 = vmatprep.subr.mxu0 0.0
        %3961 = vmatpush1.msra.mxu0 0.0
        %3962 = vmatprep.subr.mxu0 0.0
        %3963 = vmatpush1.msra.mxu0 0.0
        %3964 = vmatprep.subr.mxu0 0.0
        %3965 = vmatpush1.msra.mxu0 0.0
        %3966 = vmatprep.subr.mxu0 0.0
        %3967 = vmatpush1.msra.mxu0 0.0
        %3968 = vmatprep.subr.mxu0 0.0
        %3969 = vmatpush1.msra.mxu0 0.0
        %3970 = vmatprep.subr.mxu0 0.0
        %3971 = vmatpush1.msra.mxu0 0.0
        %3972 = vmatprep.subr.mxu0 0.0
        %3973 = vmatpush1.msra.mxu0 0.0
        %3974 = vmatprep.subr.mxu0 0.0
        %3975 = vmatpush1.msra.mxu0 0.0
        %3976 = vmatprep.subr.mxu0 0.0
        %3977 = vmatpush1.msra.mxu0 %v3135
        %3978 = vmatprep.subr.mxu0 0.0
        %3979 = vmatpush2.msra.mxu0 0.0
        %3980 = vmatprep.subr.mxu0 0.0
        %3981 = vmatpush2.msra.mxu0 0.0
        %3982 = vmatprep.subr.mxu0 0.0
        %3983 = vmatpush2.msra.mxu0 0.0
        %3984 = vmatprep.subr.mxu0 0.0
        %3985 = vmatpush2.msra.mxu0 0.0
        %3986 = vmatprep.subr.mxu0 0.0
        %3987 = vmatpush2.msra.mxu0 0.0
        %3988 = vmatprep.subr.mxu0 0.0
        %3989 = vmatpush2.msra.mxu0 0.0
        %3990 = vmatprep.subr.mxu0 0.0
        %3991 = vmatpush2.msra.mxu0 0.0
        %3992 = vmatprep.subr.mxu0 0.0
        %3993 = vmatpush2.msra.mxu0 0.0
        %3994 = vmatprep.subr.mxu0 0.0
        %3995 = vmatpush2.msra.mxu0 0.0
        %3996 = vmatprep.subr.mxu0 0.0
        %3997 = vmatpush2.msra.mxu0 0.0
        %3998 = vmatprep.subr.mxu0 0.0
        %3999 = vmatpush2.msra.mxu0 0.0
        %4000 = vmatprep.subr.mxu0 0.0
        %4001 = vmatpush2.msra.mxu0 0.0
        %4002 = vmatprep.subr.mxu0 0.0
        %4003 = vmatpush2.msra.mxu0 0.0
        %4004 = vmatprep.subr.mxu0 0.0
        %4005 = vmatpush2.msra.mxu0 0.0
        %4006 = vmatprep.subr.mxu0 0.0
        %4007 = vmatpush2.msra.mxu0 0.0
        %4008 = vmatprep.subr.mxu0 0.0
        %4009 = vmatpush2.msra.mxu0 0.0
        %4010 = vmatprep.mubr.f32.mxu0 0.0
        %4011 = vmatmul.mubr.f32.gmra.mxu0 %v3882
        %v4012 = vpop.f32.mrf.mxu0
        %v4013 = vadd.f32 0.0, %v4012
        %v4014 = vpop.f32.mrf.mxu0
        %4015 = vmatprep.mubr.f32.mxu0 0.0
        %4016 = vmatmul.mubr.f32.gmra.mxu0 %v3884
        %v4017 = vpop.f32.mrf.mxu0
        %v4018 = vadd.f32 0.0, %v4017
        %v4019 = vpop.f32.mrf.mxu0
        %4020 = vmatprep.mubr.f32.mxu0 0.0
        %4021 = vmatmul.mubr.f32.gmra.mxu0 %v3886
        %v4022 = vpop.f32.mrf.mxu0
        %v4023 = vadd.f32 0.0, %v4022
        %v4024 = vpop.f32.mrf.mxu0
        %4025 = vmatprep.mubr.f32.mxu0 0.0
        %4026 = vmatmul.mubr.f32.gmra.mxu0 %v3888
        %v4027 = vpop.f32.mrf.mxu0
        %v4028 = vadd.f32 0.0, %v4027
        %v4029 = vpop.f32.mrf.mxu0
        %4030 = vmatprep.mubr.f32.mxu0 0.0
        %4031 = vmatmul.mubr.f32.gmra.mxu0 %v3890
        %v4032 = vpop.f32.mrf.mxu0
        %v4033 = vadd.f32 0.0, %v4032
        %v4034 = vpop.f32.mrf.mxu0
        %4035 = vmatprep.mubr.f32.mxu0 0.0
        %4036 = vmatmul.mubr.f32.gmra.mxu0 %v3892
        %v4037 = vpop.f32.mrf.mxu0
        %v4038 = vadd.f32 0.0, %v4037
        %v4039 = vpop.f32.mrf.mxu0
        %4040 = vmatprep.mubr.f32.mxu0 0.0
        %4041 = vmatmul.mubr.f32.gmra.mxu0 %v3894
        %v4042 = vpop.f32.mrf.mxu0
        %v4043 = vadd.f32 0.0, %v4042
        %v4044 = vpop.f32.mrf.mxu0
        %4045 = vmatprep.mubr.f32.mxu0 0.0
        %4046 = vmatmul.mubr.f32.gmra.mxu0 %v3896
        %v4047 = vpop.f32.mrf.mxu0
        %v4048 = vadd.f32 0.0, %v4047
        %v4049 = vpop.f32.mrf.mxu0
        %4050 = vmatprep.mubr.f32.mxu0 0.0
        %4051 = vmatmul.mubr.f32.gmra.mxu0 %v3898
        %v4052 = vpop.f32.mrf.mxu0
        %v4053 = vadd.f32 0.0, %v4052
        %v4054 = vpop.f32.mrf.mxu0
        %4055 = vmatprep.mubr.f32.mxu0 0.0
        %4056 = vmatmul.mubr.f32.gmra.mxu0 %v3900
        %v4057 = vpop.f32.mrf.mxu0
        %v4058 = vadd.f32 0.0, %v4057
        %v4059 = vpop.f32.mrf.mxu0
        %4060 = vmatprep.mubr.f32.mxu0 0.0
        %4061 = vmatmul.mubr.f32.gmra.mxu0 %v3902
        %v4062 = vpop.f32.mrf.mxu0
        %v4063 = vadd.f32 0.0, %v4062
        %v4064 = vpop.f32.mrf.mxu0
        %4065 = vmatprep.mubr.f32.mxu0 0.0
        %4066 = vmatmul.mubr.f32.gmra.mxu0 %v3904
        %v4067 = vpop.f32.mrf.mxu0
        %v4068 = vadd.f32 0.0, %v4067
        %v4069 = vpop.f32.mrf.mxu0
        %4070 = vmatprep.mubr.f32.mxu0 0.0
        %4071 = vmatmul.mubr.f32.gmra.mxu0 %v3906
        %v4072 = vpop.f32.mrf.mxu0
        %v4073 = vadd.f32 0.0, %v4072
        %v4074 = vpop.f32.mrf.mxu0
        %4075 = vmatprep.mubr.f32.mxu0 0.0
        %4076 = vmatmul.mubr.f32.gmra.mxu0 %v3908
        %v4077 = vpop.f32.mrf.mxu0
        %v4078 = vadd.f32 0.0, %v4077
        %v4079 = vpop.f32.mrf.mxu0
        %4080 = vmatprep.mubr.f32.mxu0 0.0
        %4081 = vmatmul.mubr.f32.gmra.mxu0 %v3910
        %v4082 = vpop.f32.mrf.mxu0
        %v4083 = vadd.f32 0.0, %v4082
        %v4084 = vpop.f32.mrf.mxu0
        %4085 = vmatprep.mubr.f32.mxu0 0.0
        %4086 = vmatmul.mubr.f32.gmra.mxu0 %v3912
        %v4087 = vpop.f32.mrf.mxu0
        %v4088 = vadd.f32 0.0, %v4087
        %v4089 = vpop.f32.mrf.mxu0
        %4090 = vmatprep.mubr.f32.mxu0 0.0
        %4091 = vmatmul.mubr.f32.gmra.mxu0 %v3914
        %v4092 = vpop.f32.mrf.mxu0
        %v4093 = vadd.f32 0.0, %v4092
        %v4094 = vpop.f32.mrf.mxu0
        %4095 = vmatprep.mubr.f32.mxu0 0.0
        %4096 = vmatmul.mubr.f32.gmra.mxu0 %v3916
        %v4097 = vpop.f32.mrf.mxu0
        %v4098 = vadd.f32 0.0, %v4097
        %v4099 = vpop.f32.mrf.mxu0
        %4100 = vmatprep.mubr.f32.mxu0 0.0
        %4101 = vmatmul.mubr.f32.gmra.mxu0 %v3918
        %v4102 = vpop.f32.mrf.mxu0
        %v4103 = vadd.f32 0.0, %v4102
        %v4104 = vpop.f32.mrf.mxu0
        %4105 = vmatprep.mubr.f32.mxu0 0.0
        %4106 = vmatmul.mubr.f32.gmra.mxu0 %v3920
        %v4107 = vpop.f32.mrf.mxu0
        %v4108 = vadd.f32 0.0, %v4107
        %v4109 = vpop.f32.mrf.mxu0
        %4110 = vmatprep.mubr.f32.mxu0 0.0
        %4111 = vmatmul.mubr.f32.gmra.mxu0 %v3922
        %v4112 = vpop.f32.mrf.mxu0
        %v4113 = vadd.f32 0.0, %v4112
        %v4114 = vpop.f32.mrf.mxu0
        %4115 = vmatprep.mubr.f32.mxu0 0.0
        %4116 = vmatmul.mubr.f32.gmra.mxu0 %v3924
        %v4117 = vpop.f32.mrf.mxu0
        %v4118 = vadd.f32 0.0, %v4117
        %v4119 = vpop.f32.mrf.mxu0
        %4120 = vmatprep.mubr.f32.mxu0 0.0
        %4121 = vmatmul.mubr.f32.gmra.mxu0 %v3926
        %v4122 = vpop.f32.mrf.mxu0
        %v4123 = vadd.f32 0.0, %v4122
        %v4124 = vpop.f32.mrf.mxu0
        %4125 = vmatprep.mubr.f32.mxu0 0.0
        %4126 = vmatmul.mubr.f32.gmra.mxu0 %v3928
        %v4127 = vpop.f32.mrf.mxu0
        %v4128 = vadd.f32 0.0, %v4127
        %v4129 = vpop.f32.mrf.mxu0
        %4130 = vmatprep.mubr.f32.mxu0 0.0
        %4131 = vmatmul.mubr.f32.gmra.mxu0 %v3930
        %v4132 = vpop.f32.mrf.mxu0
        %v4133 = vadd.f32 0.0, %v4132
        %v4134 = vpop.f32.mrf.mxu0
        %4135 = vmatprep.mubr.f32.mxu0 0.0
        %4136 = vmatmul.mubr.f32.gmra.mxu0 %v3932
        %v4137 = vpop.f32.mrf.mxu0
        %v4138 = vadd.f32 0.0, %v4137
        %v4139 = vpop.f32.mrf.mxu0
        %4140 = vmatprep.mubr.f32.mxu0 0.0
        %4141 = vmatmul.mubr.f32.gmra.mxu0 %v3934
        %v4142 = vpop.f32.mrf.mxu0
        %v4143 = vadd.f32 0.0, %v4142
        %v4144 = vpop.f32.mrf.mxu0
        %4145 = vmatprep.mubr.f32.mxu0 0.0
        %4146 = vmatmul.mubr.f32.gmra.mxu0 %v3936
        %v4147 = vpop.f32.mrf.mxu0
        %v4148 = vadd.f32 0.0, %v4147
        %v4149 = vpop.f32.mrf.mxu0
        %4150 = vmatprep.mubr.f32.mxu0 0.0
        %4151 = vmatmul.mubr.f32.gmra.mxu0 %v3938
        %v4152 = vpop.f32.mrf.mxu0
        %v4153 = vadd.f32 0.0, %v4152
        %v4154 = vpop.f32.mrf.mxu0
        %4155 = vmatprep.mubr.f32.mxu0 0.0
        %4156 = vmatmul.mubr.f32.gmra.mxu0 %v3940
        %v4157 = vpop.f32.mrf.mxu0
        %v4158 = vadd.f32 0.0, %v4157
        %v4159 = vpop.f32.mrf.mxu0
        %4160 = vmatprep.mubr.f32.mxu0 0.0
        %4161 = vmatmul.mubr.f32.gmra.mxu0 %v3942
        %v4162 = vpop.f32.mrf.mxu0
        %v4163 = vadd.f32 0.0, %v4162
        %v4164 = vpop.f32.mrf.mxu0
        %4165 = vmatprep.mubr.f32.mxu0 0.0
        %4166 = vmatmul.mubr.f32.gmra.mxu0 %v3944
        %v4167 = vpop.f32.mrf.mxu0
        %v4168 = vadd.f32 0.0, %v4167
        %v4169 = vpop.f32.mrf.mxu0
        %4170 = vdwg.mxu0
        %v4171 = vadd.f32 %v3658, %v4013
        %v4172 = vadd.f32 %v3663, %v4018
        %v4173 = vadd.f32 %v3668, %v4023
        %v4174 = vadd.f32 %v3673, %v4028
        %v4175 = vadd.f32 %v3678, %v4033
        %v4176 = vadd.f32 %v3683, %v4038
        %v4177 = vadd.f32 %v3688, %v4043
        %v4178 = vadd.f32 %v3693, %v4048
        %v4179 = vadd.f32 %v3698, %v4053
        %v4180 = vadd.f32 %v3703, %v4058
        %v4181 = vadd.f32 %v3708, %v4063
        %v4182 = vadd.f32 %v3713, %v4068
        %v4183 = vadd.f32 %v3718, %v4073
        %v4184 = vadd.f32 %v3723, %v4078
        %v4185 = vadd.f32 %v3728, %v4083
        %v4186 = vadd.f32 %v3733, %v4088
        %v4187 = vadd.f32 %v3738, %v4093
        %v4188 = vadd.f32 %v3743, %v4098
        %v4189 = vadd.f32 %v3748, %v4103
        %v4190 = vadd.f32 %v3753, %v4108
        %v4191 = vadd.f32 %v3758, %v4113
        %v4192 = vadd.f32 %v3763, %v4118
        %v4193 = vadd.f32 %v3768, %v4123
        %v4194 = vadd.f32 %v3773, %v4128
        %v4195 = vadd.f32 %v3778, %v4133
        %v4196 = vadd.f32 %v3783, %v4138
        %v4197 = vadd.f32 %v3788, %v4143
        %v4198 = vadd.f32 %v3793, %v4148
        %v4199 = vadd.f32 %v3798, %v4153
        %v4200 = vadd.f32 %v3803, %v4158
        %v4201 = vadd.f32 %v3808, %v4163
        %v4202 = vadd.f32 %v3813, %v4168
        %v4203 = vsel %vm246, 1, 0
        %v4204 = vsel %vm247, 1, 0
        %v4205 = vsel %vm248, 1, 0
        %v4206 = vsel %vm249, 1, 0
        %v4207 = vsel %vm250, 1, 0
        %v4208 = vsel %vm251, 1, 0
        %v4209 = vsel %vm252, 1, 0
        %v4210 = vsel %vm253, 1, 0
        %v4211 = vsel %vm254, 1, 0
        %v4212 = vsel %vm255, 1, 0
        %v4213 = vsel %vm256, 1, 0
        %v4214 = vsel %vm257, 1, 0
        %v4215 = vsel %vm258, 1, 0
        %v4216 = vsel %vm259, 1, 0
        %v4217 = vsel %vm260, 1, 0
        %v4218 = vsel %vm261, 1, 0
        %vm4219 = vcmp.eq.s32.totalorder %v4203, 1
        %vm4220 = vcmp.eq.s32.totalorder %v4204, 1
        %vm4221 = vcmp.eq.s32.totalorder %v4205, 1
        %vm4222 = vcmp.eq.s32.totalorder %v4206, 1
        %vm4223 = vcmp.eq.s32.totalorder %v4207, 1
        %vm4224 = vcmp.eq.s32.totalorder %v4208, 1
        %vm4225 = vcmp.eq.s32.totalorder %v4209, 1
        %vm4226 = vcmp.eq.s32.totalorder %v4210, 1
        %vm4227 = vcmp.eq.s32.totalorder %v4211, 1
        %vm4228 = vcmp.eq.s32.totalorder %v4212, 1
        %vm4229 = vcmp.eq.s32.totalorder %v4213, 1
        %vm4230 = vcmp.eq.s32.totalorder %v4214, 1
        %vm4231 = vcmp.eq.s32.totalorder %v4215, 1
        %vm4232 = vcmp.eq.s32.totalorder %v4216, 1
        %vm4233 = vcmp.eq.s32.totalorder %v4217, 1
        %vm4234 = vcmp.eq.s32.totalorder %v4218, 1
        %v4235 = vsel %vm4219, %v4171, 0.0
        %v4236 = vsel %vm4220, %v4172, 0.0
        %v4237 = vsel %vm4221, %v4173, 0.0
        %v4238 = vsel %vm4222, %v4174, 0.0
        %v4239 = vsel %vm4223, %v4175, 0.0
        %v4240 = vsel %vm4224, %v4176, 0.0
        %v4241 = vsel %vm4225, %v4177, 0.0
        %v4242 = vsel %vm4226, %v4178, 0.0
        %v4243 = vsel %vm4227, %v4179, 0.0
        %v4244 = vsel %vm4228, %v4180, 0.0
        %v4245 = vsel %vm4229, %v4181, 0.0
        %v4246 = vsel %vm4230, %v4182, 0.0
        %v4247 = vsel %vm4231, %v4183, 0.0
        %v4248 = vsel %vm4232, %v4184, 0.0
        %v4249 = vsel %vm4233, %v4185, 0.0
        %v4250 = vsel %vm4234, %v4186, 0.0
        %v4251 = vsel %vm4219, %v4187, 0.0
        %v4252 = vsel %vm4220, %v4188, 0.0
        %v4253 = vsel %vm4221, %v4189, 0.0
        %v4254 = vsel %vm4222, %v4190, 0.0
        %v4255 = vsel %vm4223, %v4191, 0.0
        %v4256 = vsel %vm4224, %v4192, 0.0
        %v4257 = vsel %vm4225, %v4193, 0.0
        %v4258 = vsel %vm4226, %v4194, 0.0
        %v4259 = vsel %vm4227, %v4195, 0.0
        %v4260 = vsel %vm4228, %v4196, 0.0
        %v4261 = vsel %vm4229, %v4197, 0.0
        %v4262 = vsel %vm4230, %v4198, 0.0
        %v4263 = vsel %vm4231, %v4199, 0.0
        %v4264 = vsel %vm4232, %v4200, 0.0
        %v4265 = vsel %vm4233, %v4201, 0.0
        %v4266 = vsel %vm4234, %v4202, 0.0
        %v4267 = vsel %vm3237, %v4235, 0.0
        %v4268 = vsel %vm3237, %v4236, 0.0
        %v4269 = vadd.f32 %v4267, %v4268
        %v4270 = vsel %vm3237, %v4237, 0.0
        %v4271 = vadd.f32 %v4269, %v4270
        %v4272 = vsel %vm3237, %v4238, 0.0
        %v4273 = vadd.f32 %v4271, %v4272
        %v4274 = vsel %vm3237, %v4239, 0.0
        %v4275 = vadd.f32 %v4273, %v4274
        %v4276 = vsel %vm3237, %v4240, 0.0
        %v4277 = vadd.f32 %v4275, %v4276
        %v4278 = vsel %vm3237, %v4241, 0.0
        %v4279 = vadd.f32 %v4277, %v4278
        %v4280 = vsel %vm3237, %v4242, 0.0
        %v4281 = vadd.f32 %v4279, %v4280
        %v4282 = vsel %vm3237, %v4243, 0.0
        %v4283 = vadd.f32 %v4281, %v4282
        %v4284 = vsel %vm3237, %v4244, 0.0
        %v4285 = vadd.f32 %v4283, %v4284
        %v4286 = vsel %vm3237, %v4245, 0.0
        %v4287 = vadd.f32 %v4285, %v4286
        %v4288 = vsel %vm3237, %v4246, 0.0
        %v4289 = vadd.f32 %v4287, %v4288
        %v4290 = vsel %vm3237, %v4247, 0.0
        %v4291 = vadd.f32 %v4289, %v4290
        %v4292 = vsel %vm3237, %v4248, 0.0
        %v4293 = vadd.f32 %v4291, %v4292
        %v4294 = vsel %vm3237, %v4249, 0.0
        %v4295 = vadd.f32 %v4293, %v4294
        %v4296 = vsel %vm3237, %v4250, 0.0
        %v4297 = vadd.f32 %v4295, %v4296
        %v4298 = vsel %vm3237, %v4251, 0.0
        %v4299 = vadd.f32 %v4297, %v4298
        %v4300 = vsel %vm3237, %v4252, 0.0
        %v4301 = vadd.f32 %v4299, %v4300
        %v4302 = vsel %vm3237, %v4253, 0.0
        %v4303 = vadd.f32 %v4301, %v4302
        %v4304 = vsel %vm3237, %v4254, 0.0
        %v4305 = vadd.f32 %v4303, %v4304
        %v4306 = vsel %vm3237, %v4255, 0.0
        %v4307 = vadd.f32 %v4305, %v4306
        %v4308 = vsel %vm3237, %v4256, 0.0
        %v4309 = vadd.f32 %v4307, %v4308
        %v4310 = vsel %vm3237, %v4257, 0.0
        %v4311 = vadd.f32 %v4309, %v4310
        %v4312 = vsel %vm3237, %v4258, 0.0
        %v4313 = vadd.f32 %v4311, %v4312
        %v4314 = vsel %vm3237, %v4259, 0.0
        %v4315 = vadd.f32 %v4313, %v4314
        %v4316 = vsel %vm3237, %v4260, 0.0
        %v4317 = vadd.f32 %v4315, %v4316
        %v4318 = vsel %vm3237, %v4261, 0.0
        %v4319 = vadd.f32 %v4317, %v4318
        %v4320 = vsel %vm3237, %v4262, 0.0
        %v4321 = vadd.f32 %v4319, %v4320
        %v4322 = vsel %vm3237, %v4263, 0.0
        %v4323 = vadd.f32 %v4321, %v4322
        %v4324 = vsel %vm3237, %v4264, 0.0
        %v4325 = vadd.f32 %v4323, %v4324
        %v4326 = vsel %vm3237, %v4265, 0.0
        %v4327 = vadd.f32 %v4325, %v4326
        %v4328 = vsel %vm3237, %v4266, 0.0
        %v4329 = vadd.f32 %v4327, %v4328
        %v4330 = vrot.slane %v4329, 4
        %v4331 = vadd.f32 %v4329, %v4330
        %v4332 = vrot.slane %v4331, 2
        %v4333 = vadd.f32 %v4331, %v4332
        %v4334 = vrot.slane %v4333, 1
        %v4335 = vadd.f32 %v4333, %v4334
        %v4336 = vstv %s173
        %v4337 = vrcp.pop %v4336
        %v4338 = vmul.f32 %v4335, %v4337
        %v4339 = vsub.f32 %v4171, %v4338
        %v4340 = vsub.f32 %v4172, %v4338
        %v4341 = vsub.f32 %v4173, %v4338
        %v4342 = vsub.f32 %v4174, %v4338
        %v4343 = vsub.f32 %v4175, %v4338
        %v4344 = vsub.f32 %v4176, %v4338
        %v4345 = vsub.f32 %v4177, %v4338
        %v4346 = vsub.f32 %v4178, %v4338
        %v4347 = vsub.f32 %v4179, %v4338
        %v4348 = vsub.f32 %v4180, %v4338
        %v4349 = vsub.f32 %v4181, %v4338
        %v4350 = vsub.f32 %v4182, %v4338
        %v4351 = vsub.f32 %v4183, %v4338
        %v4352 = vsub.f32 %v4184, %v4338
        %v4353 = vsub.f32 %v4185, %v4338
        %v4354 = vsub.f32 %v4186, %v4338
        %v4355 = vsub.f32 %v4187, %v4338
        %v4356 = vsub.f32 %v4188, %v4338
        %v4357 = vsub.f32 %v4189, %v4338
        %v4358 = vsub.f32 %v4190, %v4338
        %v4359 = vsub.f32 %v4191, %v4338
        %v4360 = vsub.f32 %v4192, %v4338
        %v4361 = vsub.f32 %v4193, %v4338
        %v4362 = vsub.f32 %v4194, %v4338
        %v4363 = vsub.f32 %v4195, %v4338
        %v4364 = vsub.f32 %v4196, %v4338
        %v4365 = vsub.f32 %v4197, %v4338
        %v4366 = vsub.f32 %v4198, %v4338
        %v4367 = vsub.f32 %v4199, %v4338
        %v4368 = vsub.f32 %v4200, %v4338
        %v4369 = vsub.f32 %v4201, %v4338
        %v4370 = vsub.f32 %v4202, %v4338
        %v4371 = vsel %vm4219, %v4339, 0.0
        %v4372 = vsel %vm4220, %v4340, 0.0
        %v4373 = vsel %vm4221, %v4341, 0.0
        %v4374 = vsel %vm4222, %v4342, 0.0
        %v4375 = vsel %vm4223, %v4343, 0.0
        %v4376 = vsel %vm4224, %v4344, 0.0
        %v4377 = vsel %vm4225, %v4345, 0.0
        %v4378 = vsel %vm4226, %v4346, 0.0
        %v4379 = vsel %vm4227, %v4347, 0.0
        %v4380 = vsel %vm4228, %v4348, 0.0
        %v4381 = vsel %vm4229, %v4349, 0.0
        %v4382 = vsel %vm4230, %v4350, 0.0
        %v4383 = vsel %vm4231, %v4351, 0.0
        %v4384 = vsel %vm4232, %v4352, 0.0
        %v4385 = vsel %vm4233, %v4353, 0.0
        %v4386 = vsel %vm4234, %v4354, 0.0
        %v4387 = vsel %vm4219, %v4355, 0.0
        %v4388 = vsel %vm4220, %v4356, 0.0
        %v4389 = vsel %vm4221, %v4357, 0.0
        %v4390 = vsel %vm4222, %v4358, 0.0
        %v4391 = vsel %vm4223, %v4359, 0.0
        %v4392 = vsel %vm4224, %v4360, 0.0
        %v4393 = vsel %vm4225, %v4361, 0.0
        %v4394 = vsel %vm4226, %v4362, 0.0
        %v4395 = vsel %vm4227, %v4363, 0.0
        %v4396 = vsel %vm4228, %v4364, 0.0
        %v4397 = vsel %vm4229, %v4365, 0.0
        %v4398 = vsel %vm4230, %v4366, 0.0
        %v4399 = vsel %vm4231, %v4367, 0.0
        %v4400 = vsel %vm4232, %v4368, 0.0
        %v4401 = vsel %vm4233, %v4369, 0.0
        %v4402 = vsel %vm4234, %v4370, 0.0
        %v4403 = vmul.f32 %v4371, %v4371
        %v4404 = vmul.f32 %v4372, %v4372
        %v4405 = vmul.f32 %v4373, %v4373
        %v4406 = vmul.f32 %v4374, %v4374
        %v4407 = vmul.f32 %v4375, %v4375
        %v4408 = vmul.f32 %v4376, %v4376
        %v4409 = vmul.f32 %v4377, %v4377
        %v4410 = vmul.f32 %v4378, %v4378
        %v4411 = vmul.f32 %v4379, %v4379
        %v4412 = vmul.f32 %v4380, %v4380
        %v4413 = vmul.f32 %v4381, %v4381
        %v4414 = vmul.f32 %v4382, %v4382
        %v4415 = vmul.f32 %v4383, %v4383
        %v4416 = vmul.f32 %v4384, %v4384
        %v4417 = vmul.f32 %v4385, %v4385
        %v4418 = vmul.f32 %v4386, %v4386
        %v4419 = vmul.f32 %v4387, %v4387
        %v4420 = vmul.f32 %v4388, %v4388
        %v4421 = vmul.f32 %v4389, %v4389
        %v4422 = vmul.f32 %v4390, %v4390
        %v4423 = vmul.f32 %v4391, %v4391
        %v4424 = vmul.f32 %v4392, %v4392
        %v4425 = vmul.f32 %v4393, %v4393
        %v4426 = vmul.f32 %v4394, %v4394
        %v4427 = vmul.f32 %v4395, %v4395
        %v4428 = vmul.f32 %v4396, %v4396
        %v4429 = vmul.f32 %v4397, %v4397
        %v4430 = vmul.f32 %v4398, %v4398
        %v4431 = vmul.f32 %v4399, %v4399
        %v4432 = vmul.f32 %v4400, %v4400
        %v4433 = vmul.f32 %v4401, %v4401
        %v4434 = vmul.f32 %v4402, %v4402
        %v4435 = vsel %vm3237, %v4403, 0.0
        %v4436 = vsel %vm3237, %v4404, 0.0
        %v4437 = vadd.f32 %v4435, %v4436
        %v4438 = vsel %vm3237, %v4405, 0.0
        %v4439 = vadd.f32 %v4437, %v4438
        %v4440 = vsel %vm3237, %v4406, 0.0
        %v4441 = vadd.f32 %v4439, %v4440
        %v4442 = vsel %vm3237, %v4407, 0.0
        %v4443 = vadd.f32 %v4441, %v4442
        %v4444 = vsel %vm3237, %v4408, 0.0
        %v4445 = vadd.f32 %v4443, %v4444
        %v4446 = vsel %vm3237, %v4409, 0.0
        %v4447 = vadd.f32 %v4445, %v4446
        %v4448 = vsel %vm3237, %v4410, 0.0
        %v4449 = vadd.f32 %v4447, %v4448
        %v4450 = vsel %vm3237, %v4411, 0.0
        %v4451 = vadd.f32 %v4449, %v4450
        %v4452 = vsel %vm3237, %v4412, 0.0
        %v4453 = vadd.f32 %v4451, %v4452
        %v4454 = vsel %vm3237, %v4413, 0.0
        %v4455 = vadd.f32 %v4453, %v4454
        %v4456 = vsel %vm3237, %v4414, 0.0
        %v4457 = vadd.f32 %v4455, %v4456
        %v4458 = vsel %vm3237, %v4415, 0.0
        %v4459 = vadd.f32 %v4457, %v4458
        %v4460 = vsel %vm3237, %v4416, 0.0
        %v4461 = vadd.f32 %v4459, %v4460
        %v4462 = vsel %vm3237, %v4417, 0.0
        %v4463 = vadd.f32 %v4461, %v4462
        %v4464 = vsel %vm3237, %v4418, 0.0
        %v4465 = vadd.f32 %v4463, %v4464
        %v4466 = vsel %vm3237, %v4419, 0.0
        %v4467 = vadd.f32 %v4465, %v4466
        %v4468 = vsel %vm3237, %v4420, 0.0
        %v4469 = vadd.f32 %v4467, %v4468
        %v4470 = vsel %vm3237, %v4421, 0.0
        %v4471 = vadd.f32 %v4469, %v4470
        %v4472 = vsel %vm3237, %v4422, 0.0
        %v4473 = vadd.f32 %v4471, %v4472
        %v4474 = vsel %vm3237, %v4423, 0.0
        %v4475 = vadd.f32 %v4473, %v4474
        %v4476 = vsel %vm3237, %v4424, 0.0
        %v4477 = vadd.f32 %v4475, %v4476
        %v4478 = vsel %vm3237, %v4425, 0.0
        %v4479 = vadd.f32 %v4477, %v4478
        %v4480 = vsel %vm3237, %v4426, 0.0
        %v4481 = vadd.f32 %v4479, %v4480
        %v4482 = vsel %vm3237, %v4427, 0.0
        %v4483 = vadd.f32 %v4481, %v4482
        %v4484 = vsel %vm3237, %v4428, 0.0
        %v4485 = vadd.f32 %v4483, %v4484
        %v4486 = vsel %vm3237, %v4429, 0.0
        %v4487 = vadd.f32 %v4485, %v4486
        %v4488 = vsel %vm3237, %v4430, 0.0
        %v4489 = vadd.f32 %v4487, %v4488
        %v4490 = vsel %vm3237, %v4431, 0.0
        %v4491 = vadd.f32 %v4489, %v4490
        %v4492 = vsel %vm3237, %v4432, 0.0
        %v4493 = vadd.f32 %v4491, %v4492
        %v4494 = vsel %vm3237, %v4433, 0.0
        %v4495 = vadd.f32 %v4493, %v4494
        %v4496 = vsel %vm3237, %v4434, 0.0
        %v4497 = vadd.f32 %v4495, %v4496
        %v4498 = vrot.slane %v4497, 4
        %v4499 = vadd.f32 %v4497, %v4498
        %v4500 = vrot.slane %v4499, 2
        %v4501 = vadd.f32 %v4499, %v4500
        %v4502 = vrot.slane %v4501, 1
        %v4503 = vadd.f32 %v4501, %v4502
        %s4504 = sadd.f32 %s175, %s173
        %v4505 = vld [vmem:[#allocation4] sm:$0x1]
        %v4506 = vsub.f32 %v4338, %v4505
        %v4507 = vstv %s4504
        %v4508 = vrcp.pop %v4507
        %s4509 = vtos %v4508
        %s4510 = smul.f32 %s173, %s4509
        %v4511 = vstv %s4510
        %v4512 = vmul.f32 %v4506, %v4511
        %v4513 = vadd.f32 %v4505, %v4512
        %vm4514 = vcmask 57344
        %4515 = vst.msk [vmem:[#allocation4] sm:$0x1] %vm4514, %v4513
        %v4516 = vld [vmem:[#allocation5] sm:$0x1]
        %v4517 = vadd.f32 %v4516, %v4503
        %v4518 = vmul.f32 %v4506, %v4506
        %s4519 = smul.f32 %s175, %s173
        %v4520 = vstv %s4504
        %v4521 = vrcp.pop %v4520
        %s4522 = vtos %v4521
        %s4523 = smul.f32 %s4519, %s4522
        %v4524 = vstv %s4523
        %v4525 = vmul.f32 %v4518, %v4524
        %v4526 = vadd.f32 %v4517, %v4525
        %4527 = vst.msk [vmem:[#allocation5] sm:$0x1] %vm4514, %v4526
        %v4560 = vcombine.high %v4171, %v4171
        %v4562 = vunpack.c.l.s4 1983009808
        %v4563 = vunpack.c.0.s8 %v4562
        %v4564 = vlaneseq
        %v4565 = vshrl.u32 %v4564, 7
        %v4566 = vsub.s32 %v4563, %v4565
        %v4567 = vrot.slane %v4171, %v4566
        %v4569 = vunpack.c.l.s4 1983009808
        %v4570 = vunpack.c.0.s8 %v4569
        %v4571 = vlaneseq
        %v4572 = vshrl.u32 %v4571, 7
        %v4573 = vsub.s32 %v4570, %v4572
        %v4574 = vrot.slane %v4560, %v4573
        %v4575 = vcombine.high %v4567, %v4567
        %v4576 = vcombine.high %v4574, %v4574
        %v4577 = vcombine.high %v4172, %v4172
        %v4579 = vunpack.c.l.s4 1983009808
        %v4580 = vunpack.c.0.s8 %v4579
        %v4581 = vlaneseq
        %v4582 = vshrl.u32 %v4581, 7
        %v4583 = vsub.s32 %v4580, %v4582
        %v4584 = vrot.slane %v4172, %v4583
        %v4586 = vunpack.c.l.s4 1983009808
        %v4587 = vunpack.c.0.s8 %v4586
        %v4588 = vlaneseq
        %v4589 = vshrl.u32 %v4588, 7
        %v4590 = vsub.s32 %v4587, %v4589
        %v4591 = vrot.slane %v4577, %v4590
        %v4592 = vcombine.high %v4584, %v4584
        %v4593 = vcombine.high %v4591, %v4591
        %v4594 = vcombine.high %v4173, %v4173
        %v4596 = vunpack.c.l.s4 1983009808
        %v4597 = vunpack.c.0.s8 %v4596
        %v4598 = vlaneseq
        %v4599 = vshrl.u32 %v4598, 7
        %v4600 = vsub.s32 %v4597, %v4599
        %v4601 = vrot.slane %v4173, %v4600
        %v4603 = vunpack.c.l.s4 1983009808
        %v4604 = vunpack.c.0.s8 %v4603
        %v4605 = vlaneseq
        %v4606 = vshrl.u32 %v4605, 7
        %v4607 = vsub.s32 %v4604, %v4606
        %v4608 = vrot.slane %v4594, %v4607
        %v4609 = vcombine.high %v4601, %v4601
        %v4610 = vcombine.high %v4608, %v4608
        %v4611 = vcombine.high %v4174, %v4174
        %v4613 = vunpack.c.l.s4 1983009808
        %v4614 = vunpack.c.0.s8 %v4613
        %v4615 = vlaneseq
        %v4616 = vshrl.u32 %v4615, 7
        %v4617 = vsub.s32 %v4614, %v4616
        %v4618 = vrot.slane %v4174, %v4617
        %v4620 = vunpack.c.l.s4 1983009808
        %v4621 = vunpack.c.0.s8 %v4620
        %v4622 = vlaneseq
        %v4623 = vshrl.u32 %v4622, 7
        %v4624 = vsub.s32 %v4621, %v4623
        %v4625 = vrot.slane %v4611, %v4624
        %v4626 = vcombine.high %v4618, %v4618
        %v4627 = vcombine.high %v4625, %v4625
        %v4628 = vcombine.high %v4175, %v4175
        %v4630 = vunpack.c.l.s4 1983009808
        %v4631 = vunpack.c.0.s8 %v4630
        %v4632 = vlaneseq
        %v4633 = vshrl.u32 %v4632, 7
        %v4634 = vsub.s32 %v4631, %v4633
        %v4635 = vrot.slane %v4175, %v4634
        %v4637 = vunpack.c.l.s4 1983009808
        %v4638 = vunpack.c.0.s8 %v4637
        %v4639 = vlaneseq
        %v4640 = vshrl.u32 %v4639, 7
        %v4641 = vsub.s32 %v4638, %v4640
        %v4642 = vrot.slane %v4628, %v4641
        %v4643 = vcombine.high %v4635, %v4635
        %v4644 = vcombine.high %v4642, %v4642
        %v4645 = vcombine.high %v4176, %v4176
        %v4647 = vunpack.c.l.s4 1983009808
        %v4648 = vunpack.c.0.s8 %v4647
        %v4649 = vlaneseq
        %v4650 = vshrl.u32 %v4649, 7
        %v4651 = vsub.s32 %v4648, %v4650
        %v4652 = vrot.slane %v4176, %v4651
        %v4654 = vunpack.c.l.s4 1983009808
        %v4655 = vunpack.c.0.s8 %v4654
        %v4656 = vlaneseq
        %v4657 = vshrl.u32 %v4656, 7
        %v4658 = vsub.s32 %v4655, %v4657
        %v4659 = vrot.slane %v4645, %v4658
        %v4660 = vcombine.high %v4652, %v4652
        %v4661 = vcombine.high %v4659, %v4659
        %v4662 = vcombine.high %v4177, %v4177
        %v4664 = vunpack.c.l.s4 1983009808
        %v4665 = vunpack.c.0.s8 %v4664
        %v4666 = vlaneseq
        %v4667 = vshrl.u32 %v4666, 7
        %v4668 = vsub.s32 %v4665, %v4667
        %v4669 = vrot.slane %v4177, %v4668
        %v4671 = vunpack.c.l.s4 1983009808
        %v4672 = vunpack.c.0.s8 %v4671
        %v4673 = vlaneseq
        %v4674 = vshrl.u32 %v4673, 7
        %v4675 = vsub.s32 %v4672, %v4674
        %v4676 = vrot.slane %v4662, %v4675
        %v4677 = vcombine.high %v4669, %v4669
        %v4678 = vcombine.high %v4676, %v4676
        %v4679 = vcombine.high %v4178, %v4178
        %v4681 = vunpack.c.l.s4 1983009808
        %v4682 = vunpack.c.0.s8 %v4681
        %v4683 = vlaneseq
        %v4684 = vshrl.u32 %v4683, 7
        %v4685 = vsub.s32 %v4682, %v4684
        %v4686 = vrot.slane %v4178, %v4685
        %v4688 = vunpack.c.l.s4 1983009808
        %v4689 = vunpack.c.0.s8 %v4688
        %v4690 = vlaneseq
        %v4691 = vshrl.u32 %v4690, 7
        %v4692 = vsub.s32 %v4689, %v4691
        %v4693 = vrot.slane %v4679, %v4692
        %v4694 = vcombine.high %v4686, %v4686
        %v4695 = vcombine.high %v4693, %v4693
        %v4696 = vcombine.high %v4179, %v4179
        %v4698 = vunpack.c.l.s4 1983009808
        %v4699 = vunpack.c.0.s8 %v4698
        %v4700 = vlaneseq
        %v4701 = vshrl.u32 %v4700, 7
        %v4702 = vsub.s32 %v4699, %v4701
        %v4703 = vrot.slane %v4179, %v4702
        %v4705 = vunpack.c.l.s4 1983009808
        %v4706 = vunpack.c.0.s8 %v4705
        %v4707 = vlaneseq
        %v4708 = vshrl.u32 %v4707, 7
        %v4709 = vsub.s32 %v4706, %v4708
        %v4710 = vrot.slane %v4696, %v4709
        %v4711 = vcombine.high %v4703, %v4703
        %v4712 = vcombine.high %v4710, %v4710
        %v4713 = vcombine.high %v4180, %v4180
        %v4715 = vunpack.c.l.s4 1983009808
        %v4716 = vunpack.c.0.s8 %v4715
        %v4717 = vlaneseq
        %v4718 = vshrl.u32 %v4717, 7
        %v4719 = vsub.s32 %v4716, %v4718
        %v4720 = vrot.slane %v4180, %v4719
        %v4722 = vunpack.c.l.s4 1983009808
        %v4723 = vunpack.c.0.s8 %v4722
        %v4724 = vlaneseq
        %v4725 = vshrl.u32 %v4724, 7
        %v4726 = vsub.s32 %v4723, %v4725
        %v4727 = vrot.slane %v4713, %v4726
        %v4728 = vcombine.high %v4720, %v4720
        %v4729 = vcombine.high %v4727, %v4727
        %v4730 = vcombine.high %v4181, %v4181
        %v4732 = vunpack.c.l.s4 1983009808
        %v4733 = vunpack.c.0.s8 %v4732
        %v4734 = vlaneseq
        %v4735 = vshrl.u32 %v4734, 7
        %v4736 = vsub.s32 %v4733, %v4735
        %v4737 = vrot.slane %v4181, %v4736
        %v4739 = vunpack.c.l.s4 1983009808
        %v4740 = vunpack.c.0.s8 %v4739
        %v4741 = vlaneseq
        %v4742 = vshrl.u32 %v4741, 7
        %v4743 = vsub.s32 %v4740, %v4742
        %v4744 = vrot.slane %v4730, %v4743
        %v4745 = vcombine.high %v4737, %v4737
        %v4746 = vcombine.high %v4744, %v4744
        %v4747 = vcombine.high %v4182, %v4182
        %v4749 = vunpack.c.l.s4 1983009808
        %v4750 = vunpack.c.0.s8 %v4749
        %v4751 = vlaneseq
        %v4752 = vshrl.u32 %v4751, 7
        %v4753 = vsub.s32 %v4750, %v4752
        %v4754 = vrot.slane %v4182, %v4753
        %v4756 = vunpack.c.l.s4 1983009808
        %v4757 = vunpack.c.0.s8 %v4756
        %v4758 = vlaneseq
        %v4759 = vshrl.u32 %v4758, 7
        %v4760 = vsub.s32 %v4757, %v4759
        %v4761 = vrot.slane %v4747, %v4760
        %v4762 = vcombine.high %v4754, %v4754
        %v4763 = vcombine.high %v4761, %v4761
        %v4764 = vcombine.high %v4183, %v4183
        %v4766 = vunpack.c.l.s4 1983009808
        %v4767 = vunpack.c.0.s8 %v4766
        %v4768 = vlaneseq
        %v4769 = vshrl.u32 %v4768, 7
        %v4770 = vsub.s32 %v4767, %v4769
        %v4771 = vrot.slane %v4183, %v4770
        %v4773 = vunpack.c.l.s4 1983009808
        %v4774 = vunpack.c.0.s8 %v4773
        %v4775 = vlaneseq
        %v4776 = vshrl.u32 %v4775, 7
        %v4777 = vsub.s32 %v4774, %v4776
        %v4778 = vrot.slane %v4764, %v4777
        %v4779 = vcombine.high %v4771, %v4771
        %v4780 = vcombine.high %v4778, %v4778
        %v4781 = vcombine.high %v4184, %v4184
        %v4783 = vunpack.c.l.s4 1983009808
        %v4784 = vunpack.c.0.s8 %v4783
        %v4785 = vlaneseq
        %v4786 = vshrl.u32 %v4785, 7
        %v4787 = vsub.s32 %v4784, %v4786
        %v4788 = vrot.slane %v4184, %v4787
        %v4790 = vunpack.c.l.s4 1983009808
        %v4791 = vunpack.c.0.s8 %v4790
        %v4792 = vlaneseq
        %v4793 = vshrl.u32 %v4792, 7
        %v4794 = vsub.s32 %v4791, %v4793
        %v4795 = vrot.slane %v4781, %v4794
        %v4796 = vcombine.high %v4788, %v4788
        %v4797 = vcombine.high %v4795, %v4795
        %v4798 = vcombine.high %v4185, %v4185
        %v4800 = vunpack.c.l.s4 1983009808
        %v4801 = vunpack.c.0.s8 %v4800
        %v4802 = vlaneseq
        %v4803 = vshrl.u32 %v4802, 7
        %v4804 = vsub.s32 %v4801, %v4803
        %v4805 = vrot.slane %v4185, %v4804
        %v4807 = vunpack.c.l.s4 1983009808
        %v4808 = vunpack.c.0.s8 %v4807
        %v4809 = vlaneseq
        %v4810 = vshrl.u32 %v4809, 7
        %v4811 = vsub.s32 %v4808, %v4810
        %v4812 = vrot.slane %v4798, %v4811
        %v4813 = vcombine.high %v4805, %v4805
        %v4814 = vcombine.high %v4812, %v4812
        %v4815 = vcombine.high %v4186, %v4186
        %v4817 = vunpack.c.l.s4 1983009808
        %v4818 = vunpack.c.0.s8 %v4817
        %v4819 = vlaneseq
        %v4820 = vshrl.u32 %v4819, 7
        %v4821 = vsub.s32 %v4818, %v4820
        %v4822 = vrot.slane %v4186, %v4821
        %v4824 = vunpack.c.l.s4 1983009808
        %v4825 = vunpack.c.0.s8 %v4824
        %v4826 = vlaneseq
        %v4827 = vshrl.u32 %v4826, 7
        %v4828 = vsub.s32 %v4825, %v4827
        %v4829 = vrot.slane %v4815, %v4828
        %v4830 = vcombine.high %v4822, %v4822
        %v4831 = vcombine.high %v4829, %v4829
        %v4832 = vcombine.high %v4187, %v4187
        %v4834 = vunpack.c.l.s4 1983009808
        %v4835 = vunpack.c.0.s8 %v4834
        %v4836 = vlaneseq
        %v4837 = vshrl.u32 %v4836, 7
        %v4838 = vsub.s32 %v4835, %v4837
        %v4839 = vrot.slane %v4187, %v4838
        %v4841 = vunpack.c.l.s4 1983009808
        %v4842 = vunpack.c.0.s8 %v4841
        %v4843 = vlaneseq
        %v4844 = vshrl.u32 %v4843, 7
        %v4845 = vsub.s32 %v4842, %v4844
        %v4846 = vrot.slane %v4832, %v4845
        %v4847 = vcombine.high %v4839, %v4839
        %v4848 = vcombine.high %v4846, %v4846
        %v4849 = vcombine.high %v4188, %v4188
        %v4851 = vunpack.c.l.s4 1983009808
        %v4852 = vunpack.c.0.s8 %v4851
        %v4853 = vlaneseq
        %v4854 = vshrl.u32 %v4853, 7
        %v4855 = vsub.s32 %v4852, %v4854
        %v4856 = vrot.slane %v4188, %v4855
        %v4858 = vunpack.c.l.s4 1983009808
        %v4859 = vunpack.c.0.s8 %v4858
        %v4860 = vlaneseq
        %v4861 = vshrl.u32 %v4860, 7
        %v4862 = vsub.s32 %v4859, %v4861
        %v4863 = vrot.slane %v4849, %v4862
        %v4864 = vcombine.high %v4856, %v4856
        %v4865 = vcombine.high %v4863, %v4863
        %v4866 = vcombine.high %v4189, %v4189
        %v4868 = vunpack.c.l.s4 1983009808
        %v4869 = vunpack.c.0.s8 %v4868
        %v4870 = vlaneseq
        %v4871 = vshrl.u32 %v4870, 7
        %v4872 = vsub.s32 %v4869, %v4871
        %v4873 = vrot.slane %v4189, %v4872
        %v4875 = vunpack.c.l.s4 1983009808
        %v4876 = vunpack.c.0.s8 %v4875
        %v4877 = vlaneseq
        %v4878 = vshrl.u32 %v4877, 7
        %v4879 = vsub.s32 %v4876, %v4878
        %v4880 = vrot.slane %v4866, %v4879
        %v4881 = vcombine.high %v4873, %v4873
        %v4882 = vcombine.high %v4880, %v4880
        %v4883 = vcombine.high %v4190, %v4190
        %v4885 = vunpack.c.l.s4 1983009808
        %v4886 = vunpack.c.0.s8 %v4885
        %v4887 = vlaneseq
        %v4888 = vshrl.u32 %v4887, 7
        %v4889 = vsub.s32 %v4886, %v4888
        %v4890 = vrot.slane %v4190, %v4889
        %v4892 = vunpack.c.l.s4 1983009808
        %v4893 = vunpack.c.0.s8 %v4892
        %v4894 = vlaneseq
        %v4895 = vshrl.u32 %v4894, 7
        %v4896 = vsub.s32 %v4893, %v4895
        %v4897 = vrot.slane %v4883, %v4896
        %v4898 = vcombine.high %v4890, %v4890
        %v4899 = vcombine.high %v4897, %v4897
        %v4900 = vcombine.high %v4191, %v4191
        %v4902 = vunpack.c.l.s4 1983009808
        %v4903 = vunpack.c.0.s8 %v4902
        %v4904 = vlaneseq
        %v4905 = vshrl.u32 %v4904, 7
        %v4906 = vsub.s32 %v4903, %v4905
        %v4907 = vrot.slane %v4191, %v4906
        %v4909 = vunpack.c.l.s4 1983009808
        %v4910 = vunpack.c.0.s8 %v4909
        %v4911 = vlaneseq
        %v4912 = vshrl.u32 %v4911, 7
        %v4913 = vsub.s32 %v4910, %v4912
        %v4914 = vrot.slane %v4900, %v4913
        %v4915 = vcombine.high %v4907, %v4907
        %v4916 = vcombine.high %v4914, %v4914
        %v4917 = vcombine.high %v4192, %v4192
        %v4919 = vunpack.c.l.s4 1983009808
        %v4920 = vunpack.c.0.s8 %v4919
        %v4921 = vlaneseq
        %v4922 = vshrl.u32 %v4921, 7
        %v4923 = vsub.s32 %v4920, %v4922
        %v4924 = vrot.slane %v4192, %v4923
        %v4926 = vunpack.c.l.s4 1983009808
        %v4927 = vunpack.c.0.s8 %v4926
        %v4928 = vlaneseq
        %v4929 = vshrl.u32 %v4928, 7
        %v4930 = vsub.s32 %v4927, %v4929
        %v4931 = vrot.slane %v4917, %v4930
        %v4932 = vcombine.high %v4924, %v4924
        %v4933 = vcombine.high %v4931, %v4931
        %v4934 = vcombine.high %v4193, %v4193
        %v4936 = vunpack.c.l.s4 1983009808
        %v4937 = vunpack.c.0.s8 %v4936
        %v4938 = vlaneseq
        %v4939 = vshrl.u32 %v4938, 7
        %v4940 = vsub.s32 %v4937, %v4939
        %v4941 = vrot.slane %v4193, %v4940
        %v4943 = vunpack.c.l.s4 1983009808
        %v4944 = vunpack.c.0.s8 %v4943
        %v4945 = vlaneseq
        %v4946 = vshrl.u32 %v4945, 7
        %v4947 = vsub.s32 %v4944, %v4946
        %v4948 = vrot.slane %v4934, %v4947
        %v4949 = vcombine.high %v4941, %v4941
        %v4950 = vcombine.high %v4948, %v4948
        %v4951 = vcombine.high %v4194, %v4194
        %v4953 = vunpack.c.l.s4 1983009808
        %v4954 = vunpack.c.0.s8 %v4953
        %v4955 = vlaneseq
        %v4956 = vshrl.u32 %v4955, 7
        %v4957 = vsub.s32 %v4954, %v4956
        %v4958 = vrot.slane %v4194, %v4957
        %v4960 = vunpack.c.l.s4 1983009808
        %v4961 = vunpack.c.0.s8 %v4960
        %v4962 = vlaneseq
        %v4963 = vshrl.u32 %v4962, 7
        %v4964 = vsub.s32 %v4961, %v4963
        %v4965 = vrot.slane %v4951, %v4964
        %v4966 = vcombine.high %v4958, %v4958
        %v4967 = vcombine.high %v4965, %v4965
        %v4968 = vcombine.high %v4195, %v4195
        %v4970 = vunpack.c.l.s4 1983009808
        %v4971 = vunpack.c.0.s8 %v4970
        %v4972 = vlaneseq
        %v4973 = vshrl.u32 %v4972, 7
        %v4974 = vsub.s32 %v4971, %v4973
        %v4975 = vrot.slane %v4195, %v4974
        %v4977 = vunpack.c.l.s4 1983009808
        %v4978 = vunpack.c.0.s8 %v4977
        %v4979 = vlaneseq
        %v4980 = vshrl.u32 %v4979, 7
        %v4981 = vsub.s32 %v4978, %v4980
        %v4982 = vrot.slane %v4968, %v4981
        %v4983 = vcombine.high %v4975, %v4975
        %v4984 = vcombine.high %v4982, %v4982
        %v4985 = vcombine.high %v4196, %v4196
        %v4987 = vunpack.c.l.s4 1983009808
        %v4988 = vunpack.c.0.s8 %v4987
        %v4989 = vlaneseq
        %v4990 = vshrl.u32 %v4989, 7
        %v4991 = vsub.s32 %v4988, %v4990
        %v4992 = vrot.slane %v4196, %v4991
        %v4994 = vunpack.c.l.s4 1983009808
        %v4995 = vunpack.c.0.s8 %v4994
        %v4996 = vlaneseq
        %v4997 = vshrl.u32 %v4996, 7
        %v4998 = vsub.s32 %v4995, %v4997
        %v4999 = vrot.slane %v4985, %v4998
        %v5000 = vcombine.high %v4992, %v4992
        %v5001 = vcombine.high %v4999, %v4999
        %v5002 = vcombine.high %v4197, %v4197
        %v5004 = vunpack.c.l.s4 1983009808
        %v5005 = vunpack.c.0.s8 %v5004
        %v5006 = vlaneseq
        %v5007 = vshrl.u32 %v5006, 7
        %v5008 = vsub.s32 %v5005, %v5007
        %v5009 = vrot.slane %v4197, %v5008
        %v5011 = vunpack.c.l.s4 1983009808
        %v5012 = vunpack.c.0.s8 %v5011
        %v5013 = vlaneseq
        %v5014 = vshrl.u32 %v5013, 7
        %v5015 = vsub.s32 %v5012, %v5014
        %v5016 = vrot.slane %v5002, %v5015
        %v5017 = vcombine.high %v5009, %v5009
        %v5018 = vcombine.high %v5016, %v5016
        %v5019 = vcombine.high %v4198, %v4198
        %v5021 = vunpack.c.l.s4 1983009808
        %v5022 = vunpack.c.0.s8 %v5021
        %v5023 = vlaneseq
        %v5024 = vshrl.u32 %v5023, 7
        %v5025 = vsub.s32 %v5022, %v5024
        %v5026 = vrot.slane %v4198, %v5025
        %v5028 = vunpack.c.l.s4 1983009808
        %v5029 = vunpack.c.0.s8 %v5028
        %v5030 = vlaneseq
        %v5031 = vshrl.u32 %v5030, 7
        %v5032 = vsub.s32 %v5029, %v5031
        %v5033 = vrot.slane %v5019, %v5032
        %v5034 = vcombine.high %v5026, %v5026
        %v5035 = vcombine.high %v5033, %v5033
        %v5036 = vcombine.high %v4199, %v4199
        %v5038 = vunpack.c.l.s4 1983009808
        %v5039 = vunpack.c.0.s8 %v5038
        %v5040 = vlaneseq
        %v5041 = vshrl.u32 %v5040, 7
        %v5042 = vsub.s32 %v5039, %v5041
        %v5043 = vrot.slane %v4199, %v5042
        %v5045 = vunpack.c.l.s4 1983009808
        %v5046 = vunpack.c.0.s8 %v5045
        %v5047 = vlaneseq
        %v5048 = vshrl.u32 %v5047, 7
        %v5049 = vsub.s32 %v5046, %v5048
        %v5050 = vrot.slane %v5036, %v5049
        %v5051 = vcombine.high %v5043, %v5043
        %v5052 = vcombine.high %v5050, %v5050
        %v5053 = vcombine.high %v4200, %v4200
        %v5055 = vunpack.c.l.s4 1983009808
        %v5056 = vunpack.c.0.s8 %v5055
        %v5057 = vlaneseq
        %v5058 = vshrl.u32 %v5057, 7
        %v5059 = vsub.s32 %v5056, %v5058
        %v5060 = vrot.slane %v4200, %v5059
        %v5062 = vunpack.c.l.s4 1983009808
        %v5063 = vunpack.c.0.s8 %v5062
        %v5064 = vlaneseq
        %v5065 = vshrl.u32 %v5064, 7
        %v5066 = vsub.s32 %v5063, %v5065
        %v5067 = vrot.slane %v5053, %v5066
        %v5068 = vcombine.high %v5060, %v5060
        %v5069 = vcombine.high %v5067, %v5067
        %v5070 = vcombine.high %v4201, %v4201
        %v5072 = vunpack.c.l.s4 1983009808
        %v5073 = vunpack.c.0.s8 %v5072
        %v5074 = vlaneseq
        %v5075 = vshrl.u32 %v5074, 7
        %v5076 = vsub.s32 %v5073, %v5075
        %v5077 = vrot.slane %v4201, %v5076
        %v5079 = vunpack.c.l.s4 1983009808
        %v5080 = vunpack.c.0.s8 %v5079
        %v5081 = vlaneseq
        %v5082 = vshrl.u32 %v5081, 7
        %v5083 = vsub.s32 %v5080, %v5082
        %v5084 = vrot.slane %v5070, %v5083
        %v5085 = vcombine.high %v5077, %v5077
        %v5086 = vcombine.high %v5084, %v5084
        %v5087 = vcombine.high %v4202, %v4202
        %v5089 = vunpack.c.l.s4 1983009808
        %v5090 = vunpack.c.0.s8 %v5089
        %v5091 = vlaneseq
        %v5092 = vshrl.u32 %v5091, 7
        %v5093 = vsub.s32 %v5090, %v5092
        %v5094 = vrot.slane %v4202, %v5093
        %v5096 = vunpack.c.l.s4 1983009808
        %v5097 = vunpack.c.0.s8 %v5096
        %v5098 = vlaneseq
        %v5099 = vshrl.u32 %v5098, 7
        %v5100 = vsub.s32 %v5097, %v5099
        %v5101 = vrot.slane %v5087, %v5100
        %v5102 = vcombine.high %v5094, %v5094
        %v5103 = vcombine.high %v5101, %v5101
        %vm5232 = vcmask 58368
        %v5233 = vsel %vm5232, %v4567, -inf
        %v5234 = vrot.slane %v5233, 4
        %v5235 = vmax.f32 %v5233, %v5234
        %v5236 = vrot.slane %v5235, 2
        %v5237 = vmax.f32 %v5235, %v5236
        %v5238 = vrot.slane %v5237, 1
        %v5239 = vmax.f32 %v5237, %v5238
        %v5240 = vsel %vm5232, %v4575, -inf
        %v5241 = vrot.slane %v5240, 4
        %v5242 = vmax.f32 %v5240, %v5241
        %v5243 = vrot.slane %v5242, 2
        %v5244 = vmax.f32 %v5242, %v5243
        %v5245 = vrot.slane %v5244, 1
        %v5246 = vmax.f32 %v5244, %v5245
        %v5247 = vsel %vm5232, %v4574, -inf
        %v5248 = vrot.slane %v5247, 4
        %v5249 = vmax.f32 %v5247, %v5248
        %v5250 = vrot.slane %v5249, 2
        %v5251 = vmax.f32 %v5249, %v5250
        %v5252 = vrot.slane %v5251, 1
        %v5253 = vmax.f32 %v5251, %v5252
        %v5254 = vsel %vm5232, %v4576, -inf
        %v5255 = vrot.slane %v5254, 4
        %v5256 = vmax.f32 %v5254, %v5255
        %v5257 = vrot.slane %v5256, 2
        %v5258 = vmax.f32 %v5256, %v5257
        %v5259 = vrot.slane %v5258, 1
        %v5260 = vmax.f32 %v5258, %v5259
        %v5261 = vsel %vm5232, %v4584, -inf
        %v5262 = vrot.slane %v5261, 4
        %v5263 = vmax.f32 %v5261, %v5262
        %v5264 = vrot.slane %v5263, 2
        %v5265 = vmax.f32 %v5263, %v5264
        %v5266 = vrot.slane %v5265, 1
        %v5267 = vmax.f32 %v5265, %v5266
        %v5268 = vsel %vm5232, %v4592, -inf
        %v5269 = vrot.slane %v5268, 4
        %v5270 = vmax.f32 %v5268, %v5269
        %v5271 = vrot.slane %v5270, 2
        %v5272 = vmax.f32 %v5270, %v5271
        %v5273 = vrot.slane %v5272, 1
        %v5274 = vmax.f32 %v5272, %v5273
        %v5275 = vsel %vm5232, %v4591, -inf
        %v5276 = vrot.slane %v5275, 4
        %v5277 = vmax.f32 %v5275, %v5276
        %v5278 = vrot.slane %v5277, 2
        %v5279 = vmax.f32 %v5277, %v5278
        %v5280 = vrot.slane %v5279, 1
        %v5281 = vmax.f32 %v5279, %v5280
        %v5282 = vsel %vm5232, %v4593, -inf
        %v5283 = vrot.slane %v5282, 4
        %v5284 = vmax.f32 %v5282, %v5283
        %v5285 = vrot.slane %v5284, 2
        %v5286 = vmax.f32 %v5284, %v5285
        %v5287 = vrot.slane %v5286, 1
        %v5288 = vmax.f32 %v5286, %v5287
        %v5289 = vsel %vm5232, %v4601, -inf
        %v5290 = vrot.slane %v5289, 4
        %v5291 = vmax.f32 %v5289, %v5290
        %v5292 = vrot.slane %v5291, 2
        %v5293 = vmax.f32 %v5291, %v5292
        %v5294 = vrot.slane %v5293, 1
        %v5295 = vmax.f32 %v5293, %v5294
        %v5296 = vsel %vm5232, %v4609, -inf
        %v5297 = vrot.slane %v5296, 4
        %v5298 = vmax.f32 %v5296, %v5297
        %v5299 = vrot.slane %v5298, 2
        %v5300 = vmax.f32 %v5298, %v5299
        %v5301 = vrot.slane %v5300, 1
        %v5302 = vmax.f32 %v5300, %v5301
        %v5303 = vsel %vm5232, %v4608, -inf
        %v5304 = vrot.slane %v5303, 4
        %v5305 = vmax.f32 %v5303, %v5304
        %v5306 = vrot.slane %v5305, 2
        %v5307 = vmax.f32 %v5305, %v5306
        %v5308 = vrot.slane %v5307, 1
        %v5309 = vmax.f32 %v5307, %v5308
        %v5310 = vsel %vm5232, %v4610, -inf
        %v5311 = vrot.slane %v5310, 4
        %v5312 = vmax.f32 %v5310, %v5311
        %v5313 = vrot.slane %v5312, 2
        %v5314 = vmax.f32 %v5312, %v5313
        %v5315 = vrot.slane %v5314, 1
        %v5316 = vmax.f32 %v5314, %v5315
        %v5317 = vsel %vm5232, %v4618, -inf
        %v5318 = vrot.slane %v5317, 4
        %v5319 = vmax.f32 %v5317, %v5318
        %v5320 = vrot.slane %v5319, 2
        %v5321 = vmax.f32 %v5319, %v5320
        %v5322 = vrot.slane %v5321, 1
        %v5323 = vmax.f32 %v5321, %v5322
        %v5324 = vsel %vm5232, %v4626, -inf
        %v5325 = vrot.slane %v5324, 4
        %v5326 = vmax.f32 %v5324, %v5325
        %v5327 = vrot.slane %v5326, 2
        %v5328 = vmax.f32 %v5326, %v5327
        %v5329 = vrot.slane %v5328, 1
        %v5330 = vmax.f32 %v5328, %v5329
        %v5331 = vsel %vm5232, %v4625, -inf
        %v5332 = vrot.slane %v5331, 4
        %v5333 = vmax.f32 %v5331, %v5332
        %v5334 = vrot.slane %v5333, 2
        %v5335 = vmax.f32 %v5333, %v5334
        %v5336 = vrot.slane %v5335, 1
        %v5337 = vmax.f32 %v5335, %v5336
        %v5338 = vsel %vm5232, %v4627, -inf
        %v5339 = vrot.slane %v5338, 4
        %v5340 = vmax.f32 %v5338, %v5339
        %v5341 = vrot.slane %v5340, 2
        %v5342 = vmax.f32 %v5340, %v5341
        %v5343 = vrot.slane %v5342, 1
        %v5344 = vmax.f32 %v5342, %v5343
        %v5345 = vsel %vm5232, %v4635, -inf
        %v5346 = vrot.slane %v5345, 4
        %v5347 = vmax.f32 %v5345, %v5346
        %v5348 = vrot.slane %v5347, 2
        %v5349 = vmax.f32 %v5347, %v5348
        %v5350 = vrot.slane %v5349, 1
        %v5351 = vmax.f32 %v5349, %v5350
        %v5352 = vsel %vm5232, %v4643, -inf
        %v5353 = vrot.slane %v5352, 4
        %v5354 = vmax.f32 %v5352, %v5353
        %v5355 = vrot.slane %v5354, 2
        %v5356 = vmax.f32 %v5354, %v5355
        %v5357 = vrot.slane %v5356, 1
        %v5358 = vmax.f32 %v5356, %v5357
        %v5359 = vsel %vm5232, %v4642, -inf
        %v5360 = vrot.slane %v5359, 4
        %v5361 = vmax.f32 %v5359, %v5360
        %v5362 = vrot.slane %v5361, 2
        %v5363 = vmax.f32 %v5361, %v5362
        %v5364 = vrot.slane %v5363, 1
        %v5365 = vmax.f32 %v5363, %v5364
        %v5366 = vsel %vm5232, %v4644, -inf
        %v5367 = vrot.slane %v5366, 4
        %v5368 = vmax.f32 %v5366, %v5367
        %v5369 = vrot.slane %v5368, 2
        %v5370 = vmax.f32 %v5368, %v5369
        %v5371 = vrot.slane %v5370, 1
        %v5372 = vmax.f32 %v5370, %v5371
        %v5373 = vsel %vm5232, %v4652, -inf
        %v5374 = vrot.slane %v5373, 4
        %v5375 = vmax.f32 %v5373, %v5374
        %v5376 = vrot.slane %v5375, 2
        %v5377 = vmax.f32 %v5375, %v5376
        %v5378 = vrot.slane %v5377, 1
        %v5379 = vmax.f32 %v5377, %v5378
        %v5380 = vsel %vm5232, %v4660, -inf
        %v5381 = vrot.slane %v5380, 4
        %v5382 = vmax.f32 %v5380, %v5381
        %v5383 = vrot.slane %v5382, 2
        %v5384 = vmax.f32 %v5382, %v5383
        %v5385 = vrot.slane %v5384, 1
        %v5386 = vmax.f32 %v5384, %v5385
        %v5387 = vsel %vm5232, %v4659, -inf
        %v5388 = vrot.slane %v5387, 4
        %v5389 = vmax.f32 %v5387, %v5388
        %v5390 = vrot.slane %v5389, 2
        %v5391 = vmax.f32 %v5389, %v5390
        %v5392 = vrot.slane %v5391, 1
        %v5393 = vmax.f32 %v5391, %v5392
        %v5394 = vsel %vm5232, %v4661, -inf
        %v5395 = vrot.slane %v5394, 4
        %v5396 = vmax.f32 %v5394, %v5395
        %v5397 = vrot.slane %v5396, 2
        %v5398 = vmax.f32 %v5396, %v5397
        %v5399 = vrot.slane %v5398, 1
        %v5400 = vmax.f32 %v5398, %v5399
        %v5401 = vsel %vm5232, %v4669, -inf
        %v5402 = vrot.slane %v5401, 4
        %v5403 = vmax.f32 %v5401, %v5402
        %v5404 = vrot.slane %v5403, 2
        %v5405 = vmax.f32 %v5403, %v5404
        %v5406 = vrot.slane %v5405, 1
        %v5407 = vmax.f32 %v5405, %v5406
        %v5408 = vsel %vm5232, %v4677, -inf
        %v5409 = vrot.slane %v5408, 4
        %v5410 = vmax.f32 %v5408, %v5409
        %v5411 = vrot.slane %v5410, 2
        %v5412 = vmax.f32 %v5410, %v5411
        %v5413 = vrot.slane %v5412, 1
        %v5414 = vmax.f32 %v5412, %v5413
        %v5415 = vsel %vm5232, %v4676, -inf
        %v5416 = vrot.slane %v5415, 4
        %v5417 = vmax.f32 %v5415, %v5416
        %v5418 = vrot.slane %v5417, 2
        %v5419 = vmax.f32 %v5417, %v5418
        %v5420 = vrot.slane %v5419, 1
        %v5421 = vmax.f32 %v5419, %v5420
        %v5422 = vsel %vm5232, %v4678, -inf
        %v5423 = vrot.slane %v5422, 4
        %v5424 = vmax.f32 %v5422, %v5423
        %v5425 = vrot.slane %v5424, 2
        %v5426 = vmax.f32 %v5424, %v5425
        %v5427 = vrot.slane %v5426, 1
        %v5428 = vmax.f32 %v5426, %v5427
        %v5429 = vsel %vm5232, %v4686, -inf
        %v5430 = vrot.slane %v5429, 4
        %v5431 = vmax.f32 %v5429, %v5430
        %v5432 = vrot.slane %v5431, 2
        %v5433 = vmax.f32 %v5431, %v5432
        %v5434 = vrot.slane %v5433, 1
        %v5435 = vmax.f32 %v5433, %v5434
        %v5436 = vsel %vm5232, %v4694, -inf
        %v5437 = vrot.slane %v5436, 4
        %v5438 = vmax.f32 %v5436, %v5437
        %v5439 = vrot.slane %v5438, 2
        %v5440 = vmax.f32 %v5438, %v5439
        %v5441 = vrot.slane %v5440, 1
        %v5442 = vmax.f32 %v5440, %v5441
        %v5443 = vsel %vm5232, %v4693, -inf
        %v5444 = vrot.slane %v5443, 4
        %v5445 = vmax.f32 %v5443, %v5444
        %v5446 = vrot.slane %v5445, 2
        %v5447 = vmax.f32 %v5445, %v5446
        %v5448 = vrot.slane %v5447, 1
        %v5449 = vmax.f32 %v5447, %v5448
        %v5450 = vsel %vm5232, %v4695, -inf
        %v5451 = vrot.slane %v5450, 4
        %v5452 = vmax.f32 %v5450, %v5451
        %v5453 = vrot.slane %v5452, 2
        %v5454 = vmax.f32 %v5452, %v5453
        %v5455 = vrot.slane %v5454, 1
        %v5456 = vmax.f32 %v5454, %v5455
        %v5457 = vsel %vm5232, %v4703, -inf
        %v5458 = vrot.slane %v5457, 4
        %v5459 = vmax.f32 %v5457, %v5458
        %v5460 = vrot.slane %v5459, 2
        %v5461 = vmax.f32 %v5459, %v5460
        %v5462 = vrot.slane %v5461, 1
        %v5463 = vmax.f32 %v5461, %v5462
        %v5464 = vsel %vm5232, %v4711, -inf
        %v5465 = vrot.slane %v5464, 4
        %v5466 = vmax.f32 %v5464, %v5465
        %v5467 = vrot.slane %v5466, 2
        %v5468 = vmax.f32 %v5466, %v5467
        %v5469 = vrot.slane %v5468, 1
        %v5470 = vmax.f32 %v5468, %v5469
        %v5471 = vsel %vm5232, %v4710, -inf
        %v5472 = vrot.slane %v5471, 4
        %v5473 = vmax.f32 %v5471, %v5472
        %v5474 = vrot.slane %v5473, 2
        %v5475 = vmax.f32 %v5473, %v5474
        %v5476 = vrot.slane %v5475, 1
        %v5477 = vmax.f32 %v5475, %v5476
        %v5478 = vsel %vm5232, %v4712, -inf
        %v5479 = vrot.slane %v5478, 4
        %v5480 = vmax.f32 %v5478, %v5479
        %v5481 = vrot.slane %v5480, 2
        %v5482 = vmax.f32 %v5480, %v5481
        %v5483 = vrot.slane %v5482, 1
        %v5484 = vmax.f32 %v5482, %v5483
        %v5485 = vsel %vm5232, %v4720, -inf
        %v5486 = vrot.slane %v5485, 4
        %v5487 = vmax.f32 %v5485, %v5486
        %v5488 = vrot.slane %v5487, 2
        %v5489 = vmax.f32 %v5487, %v5488
        %v5490 = vrot.slane %v5489, 1
        %v5491 = vmax.f32 %v5489, %v5490
        %v5492 = vsel %vm5232, %v4728, -inf
        %v5493 = vrot.slane %v5492, 4
        %v5494 = vmax.f32 %v5492, %v5493
        %v5495 = vrot.slane %v5494, 2
        %v5496 = vmax.f32 %v5494, %v5495
        %v5497 = vrot.slane %v5496, 1
        %v5498 = vmax.f32 %v5496, %v5497
        %v5499 = vsel %vm5232, %v4727, -inf
        %v5500 = vrot.slane %v5499, 4
        %v5501 = vmax.f32 %v5499, %v5500
        %v5502 = vrot.slane %v5501, 2
        %v5503 = vmax.f32 %v5501, %v5502
        %v5504 = vrot.slane %v5503, 1
        %v5505 = vmax.f32 %v5503, %v5504
        %v5506 = vsel %vm5232, %v4729, -inf
        %v5507 = vrot.slane %v5506, 4
        %v5508 = vmax.f32 %v5506, %v5507
        %v5509 = vrot.slane %v5508, 2
        %v5510 = vmax.f32 %v5508, %v5509
        %v5511 = vrot.slane %v5510, 1
        %v5512 = vmax.f32 %v5510, %v5511
        %v5513 = vsel %vm5232, %v4737, -inf
        %v5514 = vrot.slane %v5513, 4
        %v5515 = vmax.f32 %v5513, %v5514
        %v5516 = vrot.slane %v5515, 2
        %v5517 = vmax.f32 %v5515, %v5516
        %v5518 = vrot.slane %v5517, 1
        %v5519 = vmax.f32 %v5517, %v5518
        %v5520 = vsel %vm5232, %v4745, -inf
        %v5521 = vrot.slane %v5520, 4
        %v5522 = vmax.f32 %v5520, %v5521
        %v5523 = vrot.slane %v5522, 2
        %v5524 = vmax.f32 %v5522, %v5523
        %v5525 = vrot.slane %v5524, 1
        %v5526 = vmax.f32 %v5524, %v5525
        %v5527 = vsel %vm5232, %v4744, -inf
        %v5528 = vrot.slane %v5527, 4
        %v5529 = vmax.f32 %v5527, %v5528
        %v5530 = vrot.slane %v5529, 2
        %v5531 = vmax.f32 %v5529, %v5530
        %v5532 = vrot.slane %v5531, 1
        %v5533 = vmax.f32 %v5531, %v5532
        %v5534 = vsel %vm5232, %v4746, -inf
        %v5535 = vrot.slane %v5534, 4
        %v5536 = vmax.f32 %v5534, %v5535
        %v5537 = vrot.slane %v5536, 2
        %v5538 = vmax.f32 %v5536, %v5537
        %v5539 = vrot.slane %v5538, 1
        %v5540 = vmax.f32 %v5538, %v5539
        %v5541 = vsel %vm5232, %v4754, -inf
        %v5542 = vrot.slane %v5541, 4
        %v5543 = vmax.f32 %v5541, %v5542
        %v5544 = vrot.slane %v5543, 2
        %v5545 = vmax.f32 %v5543, %v5544
        %v5546 = vrot.slane %v5545, 1
        %v5547 = vmax.f32 %v5545, %v5546
        %v5548 = vsel %vm5232, %v4762, -inf
        %v5549 = vrot.slane %v5548, 4
        %v5550 = vmax.f32 %v5548, %v5549
        %v5551 = vrot.slane %v5550, 2
        %v5552 = vmax.f32 %v5550, %v5551
        %v5553 = vrot.slane %v5552, 1
        %v5554 = vmax.f32 %v5552, %v5553
        %v5555 = vsel %vm5232, %v4761, -inf
        %v5556 = vrot.slane %v5555, 4
        %v5557 = vmax.f32 %v5555, %v5556
        %v5558 = vrot.slane %v5557, 2
        %v5559 = vmax.f32 %v5557, %v5558
        %v5560 = vrot.slane %v5559, 1
        %v5561 = vmax.f32 %v5559, %v5560
        %v5562 = vsel %vm5232, %v4763, -inf
        %v5563 = vrot.slane %v5562, 4
        %v5564 = vmax.f32 %v5562, %v5563
        %v5565 = vrot.slane %v5564, 2
        %v5566 = vmax.f32 %v5564, %v5565
        %v5567 = vrot.slane %v5566, 1
        %v5568 = vmax.f32 %v5566, %v5567
        %v5569 = vsel %vm5232, %v4771, -inf
        %v5570 = vrot.slane %v5569, 4
        %v5571 = vmax.f32 %v5569, %v5570
        %v5572 = vrot.slane %v5571, 2
        %v5573 = vmax.f32 %v5571, %v5572
        %v5574 = vrot.slane %v5573, 1
        %v5575 = vmax.f32 %v5573, %v5574
        %v5576 = vsel %vm5232, %v4779, -inf
        %v5577 = vrot.slane %v5576, 4
        %v5578 = vmax.f32 %v5576, %v5577
        %v5579 = vrot.slane %v5578, 2
        %v5580 = vmax.f32 %v5578, %v5579
        %v5581 = vrot.slane %v5580, 1
        %v5582 = vmax.f32 %v5580, %v5581
        %v5583 = vsel %vm5232, %v4778, -inf
        %v5584 = vrot.slane %v5583, 4
        %v5585 = vmax.f32 %v5583, %v5584
        %v5586 = vrot.slane %v5585, 2
        %v5587 = vmax.f32 %v5585, %v5586
        %v5588 = vrot.slane %v5587, 1
        %v5589 = vmax.f32 %v5587, %v5588
        %v5590 = vsel %vm5232, %v4780, -inf
        %v5591 = vrot.slane %v5590, 4
        %v5592 = vmax.f32 %v5590, %v5591
        %v5593 = vrot.slane %v5592, 2
        %v5594 = vmax.f32 %v5592, %v5593
        %v5595 = vrot.slane %v5594, 1
        %v5596 = vmax.f32 %v5594, %v5595
        %v5597 = vsel %vm5232, %v4788, -inf
        %v5598 = vrot.slane %v5597, 4
        %v5599 = vmax.f32 %v5597, %v5598
        %v5600 = vrot.slane %v5599, 2
        %v5601 = vmax.f32 %v5599, %v5600
        %v5602 = vrot.slane %v5601, 1
        %v5603 = vmax.f32 %v5601, %v5602
        %v5604 = vsel %vm5232, %v4796, -inf
        %v5605 = vrot.slane %v5604, 4
        %v5606 = vmax.f32 %v5604, %v5605
        %v5607 = vrot.slane %v5606, 2
        %v5608 = vmax.f32 %v5606, %v5607
        %v5609 = vrot.slane %v5608, 1
        %v5610 = vmax.f32 %v5608, %v5609
        %v5611 = vsel %vm5232, %v4795, -inf
        %v5612 = vrot.slane %v5611, 4
        %v5613 = vmax.f32 %v5611, %v5612
        %v5614 = vrot.slane %v5613, 2
        %v5615 = vmax.f32 %v5613, %v5614
        %v5616 = vrot.slane %v5615, 1
        %v5617 = vmax.f32 %v5615, %v5616
        %v5618 = vsel %vm5232, %v4797, -inf
        %v5619 = vrot.slane %v5618, 4
        %v5620 = vmax.f32 %v5618, %v5619
        %v5621 = vrot.slane %v5620, 2
        %v5622 = vmax.f32 %v5620, %v5621
        %v5623 = vrot.slane %v5622, 1
        %v5624 = vmax.f32 %v5622, %v5623
        %v5625 = vsel %vm5232, %v4805, -inf
        %v5626 = vrot.slane %v5625, 4
        %v5627 = vmax.f32 %v5625, %v5626
        %v5628 = vrot.slane %v5627, 2
        %v5629 = vmax.f32 %v5627, %v5628
        %v5630 = vrot.slane %v5629, 1
        %v5631 = vmax.f32 %v5629, %v5630
        %v5632 = vsel %vm5232, %v4813, -inf
        %v5633 = vrot.slane %v5632, 4
        %v5634 = vmax.f32 %v5632, %v5633
        %v5635 = vrot.slane %v5634, 2
        %v5636 = vmax.f32 %v5634, %v5635
        %v5637 = vrot.slane %v5636, 1
        %v5638 = vmax.f32 %v5636, %v5637
        %v5639 = vsel %vm5232, %v4812, -inf
        %v5640 = vrot.slane %v5639, 4
        %v5641 = vmax.f32 %v5639, %v5640
        %v5642 = vrot.slane %v5641, 2
        %v5643 = vmax.f32 %v5641, %v5642
        %v5644 = vrot.slane %v5643, 1
        %v5645 = vmax.f32 %v5643, %v5644
        %v5646 = vsel %vm5232, %v4814, -inf
        %v5647 = vrot.slane %v5646, 4
        %v5648 = vmax.f32 %v5646, %v5647
        %v5649 = vrot.slane %v5648, 2
        %v5650 = vmax.f32 %v5648, %v5649
        %v5651 = vrot.slane %v5650, 1
        %v5652 = vmax.f32 %v5650, %v5651
        %v5653 = vsel %vm5232, %v4822, -inf
        %v5654 = vrot.slane %v5653, 4
        %v5655 = vmax.f32 %v5653, %v5654
        %v5656 = vrot.slane %v5655, 2
        %v5657 = vmax.f32 %v5655, %v5656
        %v5658 = vrot.slane %v5657, 1
        %v5659 = vmax.f32 %v5657, %v5658
        %v5660 = vsel %vm5232, %v4830, -inf
        %v5661 = vrot.slane %v5660, 4
        %v5662 = vmax.f32 %v5660, %v5661
        %v5663 = vrot.slane %v5662, 2
        %v5664 = vmax.f32 %v5662, %v5663
        %v5665 = vrot.slane %v5664, 1
        %v5666 = vmax.f32 %v5664, %v5665
        %v5667 = vsel %vm5232, %v4829, -inf
        %v5668 = vrot.slane %v5667, 4
        %v5669 = vmax.f32 %v5667, %v5668
        %v5670 = vrot.slane %v5669, 2
        %v5671 = vmax.f32 %v5669, %v5670
        %v5672 = vrot.slane %v5671, 1
        %v5673 = vmax.f32 %v5671, %v5672
        %v5674 = vsel %vm5232, %v4831, -inf
        %v5675 = vrot.slane %v5674, 4
        %v5676 = vmax.f32 %v5674, %v5675
        %v5677 = vrot.slane %v5676, 2
        %v5678 = vmax.f32 %v5676, %v5677
        %v5679 = vrot.slane %v5678, 1
        %v5680 = vmax.f32 %v5678, %v5679
        %v5681 = vsel %vm5232, %v4839, -inf
        %v5682 = vrot.slane %v5681, 4
        %v5683 = vmax.f32 %v5681, %v5682
        %v5684 = vrot.slane %v5683, 2
        %v5685 = vmax.f32 %v5683, %v5684
        %v5686 = vrot.slane %v5685, 1
        %v5687 = vmax.f32 %v5685, %v5686
        %v5688 = vsel %vm5232, %v4847, -inf
        %v5689 = vrot.slane %v5688, 4
        %v5690 = vmax.f32 %v5688, %v5689
        %v5691 = vrot.slane %v5690, 2
        %v5692 = vmax.f32 %v5690, %v5691
        %v5693 = vrot.slane %v5692, 1
        %v5694 = vmax.f32 %v5692, %v5693
        %v5695 = vsel %vm5232, %v4846, -inf
        %v5696 = vrot.slane %v5695, 4
        %v5697 = vmax.f32 %v5695, %v5696
        %v5698 = vrot.slane %v5697, 2
        %v5699 = vmax.f32 %v5697, %v5698
        %v5700 = vrot.slane %v5699, 1
        %v5701 = vmax.f32 %v5699, %v5700
        %v5702 = vsel %vm5232, %v4848, -inf
        %v5703 = vrot.slane %v5702, 4
        %v5704 = vmax.f32 %v5702, %v5703
        %v5705 = vrot.slane %v5704, 2
        %v5706 = vmax.f32 %v5704, %v5705
        %v5707 = vrot.slane %v5706, 1
        %v5708 = vmax.f32 %v5706, %v5707
        %v5709 = vsel %vm5232, %v4856, -inf
        %v5710 = vrot.slane %v5709, 4
        %v5711 = vmax.f32 %v5709, %v5710
        %v5712 = vrot.slane %v5711, 2
        %v5713 = vmax.f32 %v5711, %v5712
        %v5714 = vrot.slane %v5713, 1
        %v5715 = vmax.f32 %v5713, %v5714
        %v5716 = vsel %vm5232, %v4864, -inf
        %v5717 = vrot.slane %v5716, 4
        %v5718 = vmax.f32 %v5716, %v5717
        %v5719 = vrot.slane %v5718, 2
        %v5720 = vmax.f32 %v5718, %v5719
        %v5721 = vrot.slane %v5720, 1
        %v5722 = vmax.f32 %v5720, %v5721
        %v5723 = vsel %vm5232, %v4863, -inf
        %v5724 = vrot.slane %v5723, 4
        %v5725 = vmax.f32 %v5723, %v5724
        %v5726 = vrot.slane %v5725, 2
        %v5727 = vmax.f32 %v5725, %v5726
        %v5728 = vrot.slane %v5727, 1
        %v5729 = vmax.f32 %v5727, %v5728
        %v5730 = vsel %vm5232, %v4865, -inf
        %v5731 = vrot.slane %v5730, 4
        %v5732 = vmax.f32 %v5730, %v5731
        %v5733 = vrot.slane %v5732, 2
        %v5734 = vmax.f32 %v5732, %v5733
        %v5735 = vrot.slane %v5734, 1
        %v5736 = vmax.f32 %v5734, %v5735
        %v5737 = vsel %vm5232, %v4873, -inf
        %v5738 = vrot.slane %v5737, 4
        %v5739 = vmax.f32 %v5737, %v5738
        %v5740 = vrot.slane %v5739, 2
        %v5741 = vmax.f32 %v5739, %v5740
        %v5742 = vrot.slane %v5741, 1
        %v5743 = vmax.f32 %v5741, %v5742
        %v5744 = vsel %vm5232, %v4881, -inf
        %v5745 = vrot.slane %v5744, 4
        %v5746 = vmax.f32 %v5744, %v5745
        %v5747 = vrot.slane %v5746, 2
        %v5748 = vmax.f32 %v5746, %v5747
        %v5749 = vrot.slane %v5748, 1
        %v5750 = vmax.f32 %v5748, %v5749
        %v5751 = vsel %vm5232, %v4880, -inf
        %v5752 = vrot.slane %v5751, 4
        %v5753 = vmax.f32 %v5751, %v5752
        %v5754 = vrot.slane %v5753, 2
        %v5755 = vmax.f32 %v5753, %v5754
        %v5756 = vrot.slane %v5755, 1
        %v5757 = vmax.f32 %v5755, %v5756
        %v5758 = vsel %vm5232, %v4882, -inf
        %v5759 = vrot.slane %v5758, 4
        %v5760 = vmax.f32 %v5758, %v5759
        %v5761 = vrot.slane %v5760, 2
        %v5762 = vmax.f32 %v5760, %v5761
        %v5763 = vrot.slane %v5762, 1
        %v5764 = vmax.f32 %v5762, %v5763
        %v5765 = vsel %vm5232, %v4890, -inf
        %v5766 = vrot.slane %v5765, 4
        %v5767 = vmax.f32 %v5765, %v5766
        %v5768 = vrot.slane %v5767, 2
        %v5769 = vmax.f32 %v5767, %v5768
        %v5770 = vrot.slane %v5769, 1
        %v5771 = vmax.f32 %v5769, %v5770
        %v5772 = vsel %vm5232, %v4898, -inf
        %v5773 = vrot.slane %v5772, 4
        %v5774 = vmax.f32 %v5772, %v5773
        %v5775 = vrot.slane %v5774, 2
        %v5776 = vmax.f32 %v5774, %v5775
        %v5777 = vrot.slane %v5776, 1
        %v5778 = vmax.f32 %v5776, %v5777
        %v5779 = vsel %vm5232, %v4897, -inf
        %v5780 = vrot.slane %v5779, 4
        %v5781 = vmax.f32 %v5779, %v5780
        %v5782 = vrot.slane %v5781, 2
        %v5783 = vmax.f32 %v5781, %v5782
        %v5784 = vrot.slane %v5783, 1
        %v5785 = vmax.f32 %v5783, %v5784
        %v5786 = vsel %vm5232, %v4899, -inf
        %v5787 = vrot.slane %v5786, 4
        %v5788 = vmax.f32 %v5786, %v5787
        %v5789 = vrot.slane %v5788, 2
        %v5790 = vmax.f32 %v5788, %v5789
        %v5791 = vrot.slane %v5790, 1
        %v5792 = vmax.f32 %v5790, %v5791
        %v5793 = vsel %vm5232, %v4907, -inf
        %v5794 = vrot.slane %v5793, 4
        %v5795 = vmax.f32 %v5793, %v5794
        %v5796 = vrot.slane %v5795, 2
        %v5797 = vmax.f32 %v5795, %v5796
        %v5798 = vrot.slane %v5797, 1
        %v5799 = vmax.f32 %v5797, %v5798
        %v5800 = vsel %vm5232, %v4915, -inf
        %v5801 = vrot.slane %v5800, 4
        %v5802 = vmax.f32 %v5800, %v5801
        %v5803 = vrot.slane %v5802, 2
        %v5804 = vmax.f32 %v5802, %v5803
        %v5805 = vrot.slane %v5804, 1
        %v5806 = vmax.f32 %v5804, %v5805
        %v5807 = vsel %vm5232, %v4914, -inf
        %v5808 = vrot.slane %v5807, 4
        %v5809 = vmax.f32 %v5807, %v5808
        %v5810 = vrot.slane %v5809, 2
        %v5811 = vmax.f32 %v5809, %v5810
        %v5812 = vrot.slane %v5811, 1
        %v5813 = vmax.f32 %v5811, %v5812
        %v5814 = vsel %vm5232, %v4916, -inf
        %v5815 = vrot.slane %v5814, 4
        %v5816 = vmax.f32 %v5814, %v5815
        %v5817 = vrot.slane %v5816, 2
        %v5818 = vmax.f32 %v5816, %v5817
        %v5819 = vrot.slane %v5818, 1
        %v5820 = vmax.f32 %v5818, %v5819
        %v5821 = vsel %vm5232, %v4924, -inf
        %v5822 = vrot.slane %v5821, 4
        %v5823 = vmax.f32 %v5821, %v5822
        %v5824 = vrot.slane %v5823, 2
        %v5825 = vmax.f32 %v5823, %v5824
        %v5826 = vrot.slane %v5825, 1
        %v5827 = vmax.f32 %v5825, %v5826
        %v5828 = vsel %vm5232, %v4932, -inf
        %v5829 = vrot.slane %v5828, 4
        %v5830 = vmax.f32 %v5828, %v5829
        %v5831 = vrot.slane %v5830, 2
        %v5832 = vmax.f32 %v5830, %v5831
        %v5833 = vrot.slane %v5832, 1
        %v5834 = vmax.f32 %v5832, %v5833
        %v5835 = vsel %vm5232, %v4931, -inf
        %v5836 = vrot.slane %v5835, 4
        %v5837 = vmax.f32 %v5835, %v5836
        %v5838 = vrot.slane %v5837, 2
        %v5839 = vmax.f32 %v5837, %v5838
        %v5840 = vrot.slane %v5839, 1
        %v5841 = vmax.f32 %v5839, %v5840
        %v5842 = vsel %vm5232, %v4933, -inf
        %v5843 = vrot.slane %v5842, 4
        %v5844 = vmax.f32 %v5842, %v5843
        %v5845 = vrot.slane %v5844, 2
        %v5846 = vmax.f32 %v5844, %v5845
        %v5847 = vrot.slane %v5846, 1
        %v5848 = vmax.f32 %v5846, %v5847
        %v5849 = vsel %vm5232, %v4941, -inf
        %v5850 = vrot.slane %v5849, 4
        %v5851 = vmax.f32 %v5849, %v5850
        %v5852 = vrot.slane %v5851, 2
        %v5853 = vmax.f32 %v5851, %v5852
        %v5854 = vrot.slane %v5853, 1
        %v5855 = vmax.f32 %v5853, %v5854
        %v5856 = vsel %vm5232, %v4949, -inf
        %v5857 = vrot.slane %v5856, 4
        %v5858 = vmax.f32 %v5856, %v5857
        %v5859 = vrot.slane %v5858, 2
        %v5860 = vmax.f32 %v5858, %v5859
        %v5861 = vrot.slane %v5860, 1
        %v5862 = vmax.f32 %v5860, %v5861
        %v5863 = vsel %vm5232, %v4948, -inf
        %v5864 = vrot.slane %v5863, 4
        %v5865 = vmax.f32 %v5863, %v5864
        %v5866 = vrot.slane %v5865, 2
        %v5867 = vmax.f32 %v5865, %v5866
        %v5868 = vrot.slane %v5867, 1
        %v5869 = vmax.f32 %v5867, %v5868
        %v5870 = vsel %vm5232, %v4950, -inf
        %v5871 = vrot.slane %v5870, 4
        %v5872 = vmax.f32 %v5870, %v5871
        %v5873 = vrot.slane %v5872, 2
        %v5874 = vmax.f32 %v5872, %v5873
        %v5875 = vrot.slane %v5874, 1
        %v5876 = vmax.f32 %v5874, %v5875
        %v5877 = vsel %vm5232, %v4958, -inf
        %v5878 = vrot.slane %v5877, 4
        %v5879 = vmax.f32 %v5877, %v5878
        %v5880 = vrot.slane %v5879, 2
        %v5881 = vmax.f32 %v5879, %v5880
        %v5882 = vrot.slane %v5881, 1
        %v5883 = vmax.f32 %v5881, %v5882
        %v5884 = vsel %vm5232, %v4966, -inf
        %v5885 = vrot.slane %v5884, 4
        %v5886 = vmax.f32 %v5884, %v5885
        %v5887 = vrot.slane %v5886, 2
        %v5888 = vmax.f32 %v5886, %v5887
        %v5889 = vrot.slane %v5888, 1
        %v5890 = vmax.f32 %v5888, %v5889
        %v5891 = vsel %vm5232, %v4965, -inf
        %v5892 = vrot.slane %v5891, 4
        %v5893 = vmax.f32 %v5891, %v5892
        %v5894 = vrot.slane %v5893, 2
        %v5895 = vmax.f32 %v5893, %v5894
        %v5896 = vrot.slane %v5895, 1
        %v5897 = vmax.f32 %v5895, %v5896
        %v5898 = vsel %vm5232, %v4967, -inf
        %v5899 = vrot.slane %v5898, 4
        %v5900 = vmax.f32 %v5898, %v5899
        %v5901 = vrot.slane %v5900, 2
        %v5902 = vmax.f32 %v5900, %v5901
        %v5903 = vrot.slane %v5902, 1
        %v5904 = vmax.f32 %v5902, %v5903
        %v5905 = vsel %vm5232, %v4975, -inf
        %v5906 = vrot.slane %v5905, 4
        %v5907 = vmax.f32 %v5905, %v5906
        %v5908 = vrot.slane %v5907, 2
        %v5909 = vmax.f32 %v5907, %v5908
        %v5910 = vrot.slane %v5909, 1
        %v5911 = vmax.f32 %v5909, %v5910
        %v5912 = vsel %vm5232, %v4983, -inf
        %v5913 = vrot.slane %v5912, 4
        %v5914 = vmax.f32 %v5912, %v5913
        %v5915 = vrot.slane %v5914, 2
        %v5916 = vmax.f32 %v5914, %v5915
        %v5917 = vrot.slane %v5916, 1
        %v5918 = vmax.f32 %v5916, %v5917
        %v5919 = vsel %vm5232, %v4982, -inf
        %v5920 = vrot.slane %v5919, 4
        %v5921 = vmax.f32 %v5919, %v5920
        %v5922 = vrot.slane %v5921, 2
        %v5923 = vmax.f32 %v5921, %v5922
        %v5924 = vrot.slane %v5923, 1
        %v5925 = vmax.f32 %v5923, %v5924
        %v5926 = vsel %vm5232, %v4984, -inf
        %v5927 = vrot.slane %v5926, 4
        %v5928 = vmax.f32 %v5926, %v5927
        %v5929 = vrot.slane %v5928, 2
        %v5930 = vmax.f32 %v5928, %v5929
        %v5931 = vrot.slane %v5930, 1
        %v5932 = vmax.f32 %v5930, %v5931
        %v5933 = vsel %vm5232, %v4992, -inf
        %v5934 = vrot.slane %v5933, 4
        %v5935 = vmax.f32 %v5933, %v5934
        %v5936 = vrot.slane %v5935, 2
        %v5937 = vmax.f32 %v5935, %v5936
        %v5938 = vrot.slane %v5937, 1
        %v5939 = vmax.f32 %v5937, %v5938
        %v5940 = vsel %vm5232, %v5000, -inf
        %v5941 = vrot.slane %v5940, 4
        %v5942 = vmax.f32 %v5940, %v5941
        %v5943 = vrot.slane %v5942, 2
        %v5944 = vmax.f32 %v5942, %v5943
        %v5945 = vrot.slane %v5944, 1
        %v5946 = vmax.f32 %v5944, %v5945
        %v5947 = vsel %vm5232, %v4999, -inf
        %v5948 = vrot.slane %v5947, 4
        %v5949 = vmax.f32 %v5947, %v5948
        %v5950 = vrot.slane %v5949, 2
        %v5951 = vmax.f32 %v5949, %v5950
        %v5952 = vrot.slane %v5951, 1
        %v5953 = vmax.f32 %v5951, %v5952
        %v5954 = vsel %vm5232, %v5001, -inf
        %v5955 = vrot.slane %v5954, 4
        %v5956 = vmax.f32 %v5954, %v5955
        %v5957 = vrot.slane %v5956, 2
        %v5958 = vmax.f32 %v5956, %v5957
        %v5959 = vrot.slane %v5958, 1
        %v5960 = vmax.f32 %v5958, %v5959
        %v5961 = vsel %vm5232, %v5009, -inf
        %v5962 = vrot.slane %v5961, 4
        %v5963 = vmax.f32 %v5961, %v5962
        %v5964 = vrot.slane %v5963, 2
        %v5965 = vmax.f32 %v5963, %v5964
        %v5966 = vrot.slane %v5965, 1
        %v5967 = vmax.f32 %v5965, %v5966
        %v5968 = vsel %vm5232, %v5017, -inf
        %v5969 = vrot.slane %v5968, 4
        %v5970 = vmax.f32 %v5968, %v5969
        %v5971 = vrot.slane %v5970, 2
        %v5972 = vmax.f32 %v5970, %v5971
        %v5973 = vrot.slane %v5972, 1
        %v5974 = vmax.f32 %v5972, %v5973
        %v5975 = vsel %vm5232, %v5016, -inf
        %v5976 = vrot.slane %v5975, 4
        %v5977 = vmax.f32 %v5975, %v5976
        %v5978 = vrot.slane %v5977, 2
        %v5979 = vmax.f32 %v5977, %v5978
        %v5980 = vrot.slane %v5979, 1
        %v5981 = vmax.f32 %v5979, %v5980
        %v5982 = vsel %vm5232, %v5018, -inf
        %v5983 = vrot.slane %v5982, 4
        %v5984 = vmax.f32 %v5982, %v5983
        %v5985 = vrot.slane %v5984, 2
        %v5986 = vmax.f32 %v5984, %v5985
        %v5987 = vrot.slane %v5986, 1
        %v5988 = vmax.f32 %v5986, %v5987
        %v5989 = vsel %vm5232, %v5026, -inf
        %v5990 = vrot.slane %v5989, 4
        %v5991 = vmax.f32 %v5989, %v5990
        %v5992 = vrot.slane %v5991, 2
        %v5993 = vmax.f32 %v5991, %v5992
        %v5994 = vrot.slane %v5993, 1
        %v5995 = vmax.f32 %v5993, %v5994
        %v5996 = vsel %vm5232, %v5034, -inf
        %v5997 = vrot.slane %v5996, 4
        %v5998 = vmax.f32 %v5996, %v5997
        %v5999 = vrot.slane %v5998, 2
        %v6000 = vmax.f32 %v5998, %v5999
        %v6001 = vrot.slane %v6000, 1
        %v6002 = vmax.f32 %v6000, %v6001
        %v6003 = vsel %vm5232, %v5033, -inf
        %v6004 = vrot.slane %v6003, 4
        %v6005 = vmax.f32 %v6003, %v6004
        %v6006 = vrot.slane %v6005, 2
        %v6007 = vmax.f32 %v6005, %v6006
        %v6008 = vrot.slane %v6007, 1
        %v6009 = vmax.f32 %v6007, %v6008
        %v6010 = vsel %vm5232, %v5035, -inf
        %v6011 = vrot.slane %v6010, 4
        %v6012 = vmax.f32 %v6010, %v6011
        %v6013 = vrot.slane %v6012, 2
        %v6014 = vmax.f32 %v6012, %v6013
        %v6015 = vrot.slane %v6014, 1
        %v6016 = vmax.f32 %v6014, %v6015
        %v6017 = vsel %vm5232, %v5043, -inf
        %v6018 = vrot.slane %v6017, 4
        %v6019 = vmax.f32 %v6017, %v6018
        %v6020 = vrot.slane %v6019, 2
        %v6021 = vmax.f32 %v6019, %v6020
        %v6022 = vrot.slane %v6021, 1
        %v6023 = vmax.f32 %v6021, %v6022
        %v6024 = vsel %vm5232, %v5051, -inf
        %v6025 = vrot.slane %v6024, 4
        %v6026 = vmax.f32 %v6024, %v6025
        %v6027 = vrot.slane %v6026, 2
        %v6028 = vmax.f32 %v6026, %v6027
        %v6029 = vrot.slane %v6028, 1
        %v6030 = vmax.f32 %v6028, %v6029
        %v6031 = vsel %vm5232, %v5050, -inf
        %v6032 = vrot.slane %v6031, 4
        %v6033 = vmax.f32 %v6031, %v6032
        %v6034 = vrot.slane %v6033, 2
        %v6035 = vmax.f32 %v6033, %v6034
        %v6036 = vrot.slane %v6035, 1
        %v6037 = vmax.f32 %v6035, %v6036
        %v6038 = vsel %vm5232, %v5052, -inf
        %v6039 = vrot.slane %v6038, 4
        %v6040 = vmax.f32 %v6038, %v6039
        %v6041 = vrot.slane %v6040, 2
        %v6042 = vmax.f32 %v6040, %v6041
        %v6043 = vrot.slane %v6042, 1
        %v6044 = vmax.f32 %v6042, %v6043
        %v6045 = vsel %vm5232, %v5060, -inf
        %v6046 = vrot.slane %v6045, 4
        %v6047 = vmax.f32 %v6045, %v6046
        %v6048 = vrot.slane %v6047, 2
        %v6049 = vmax.f32 %v6047, %v6048
        %v6050 = vrot.slane %v6049, 1
        %v6051 = vmax.f32 %v6049, %v6050
        %v6052 = vsel %vm5232, %v5068, -inf
        %v6053 = vrot.slane %v6052, 4
        %v6054 = vmax.f32 %v6052, %v6053
        %v6055 = vrot.slane %v6054, 2
        %v6056 = vmax.f32 %v6054, %v6055
        %v6057 = vrot.slane %v6056, 1
        %v6058 = vmax.f32 %v6056, %v6057
        %v6059 = vsel %vm5232, %v5067, -inf
        %v6060 = vrot.slane %v6059, 4
        %v6061 = vmax.f32 %v6059, %v6060
        %v6062 = vrot.slane %v6061, 2
        %v6063 = vmax.f32 %v6061, %v6062
        %v6064 = vrot.slane %v6063, 1
        %v6065 = vmax.f32 %v6063, %v6064
        %v6066 = vsel %vm5232, %v5069, -inf
        %v6067 = vrot.slane %v6066, 4
        %v6068 = vmax.f32 %v6066, %v6067
        %v6069 = vrot.slane %v6068, 2
        %v6070 = vmax.f32 %v6068, %v6069
        %v6071 = vrot.slane %v6070, 1
        %v6072 = vmax.f32 %v6070, %v6071
        %v6073 = vsel %vm5232, %v5077, -inf
        %v6074 = vrot.slane %v6073, 4
        %v6075 = vmax.f32 %v6073, %v6074
        %v6076 = vrot.slane %v6075, 2
        %v6077 = vmax.f32 %v6075, %v6076
        %v6078 = vrot.slane %v6077, 1
        %v6079 = vmax.f32 %v6077, %v6078
        %v6080 = vsel %vm5232, %v5085, -inf
        %v6081 = vrot.slane %v6080, 4
        %v6082 = vmax.f32 %v6080, %v6081
        %v6083 = vrot.slane %v6082, 2
        %v6084 = vmax.f32 %v6082, %v6083
        %v6085 = vrot.slane %v6084, 1
        %v6086 = vmax.f32 %v6084, %v6085
        %v6087 = vsel %vm5232, %v5084, -inf
        %v6088 = vrot.slane %v6087, 4
        %v6089 = vmax.f32 %v6087, %v6088
        %v6090 = vrot.slane %v6089, 2
        %v6091 = vmax.f32 %v6089, %v6090
        %v6092 = vrot.slane %v6091, 1
        %v6093 = vmax.f32 %v6091, %v6092
        %v6094 = vsel %vm5232, %v5086, -inf
        %v6095 = vrot.slane %v6094, 4
        %v6096 = vmax.f32 %v6094, %v6095
        %v6097 = vrot.slane %v6096, 2
        %v6098 = vmax.f32 %v6096, %v6097
        %v6099 = vrot.slane %v6098, 1
        %v6100 = vmax.f32 %v6098, %v6099
        %v6101 = vsel %vm5232, %v5094, -inf
        %v6102 = vrot.slane %v6101, 4
        %v6103 = vmax.f32 %v6101, %v6102
        %v6104 = vrot.slane %v6103, 2
        %v6105 = vmax.f32 %v6103, %v6104
        %v6106 = vrot.slane %v6105, 1
        %v6107 = vmax.f32 %v6105, %v6106
        %v6108 = vsel %vm5232, %v5102, -inf
        %v6109 = vrot.slane %v6108, 4
        %v6110 = vmax.f32 %v6108, %v6109
        %v6111 = vrot.slane %v6110, 2
        %v6112 = vmax.f32 %v6110, %v6111
        %v6113 = vrot.slane %v6112, 1
        %v6114 = vmax.f32 %v6112, %v6113
        %v6115 = vsel %vm5232, %v5101, -inf
        %v6116 = vrot.slane %v6115, 4
        %v6117 = vmax.f32 %v6115, %v6116
        %v6118 = vrot.slane %v6117, 2
        %v6119 = vmax.f32 %v6117, %v6118
        %v6120 = vrot.slane %v6119, 1
        %v6121 = vmax.f32 %v6119, %v6120
        %v6122 = vsel %vm5232, %v5103, -inf
        %v6123 = vrot.slane %v6122, 4
        %v6124 = vmax.f32 %v6122, %v6123
        %v6125 = vrot.slane %v6124, 2
        %v6126 = vmax.f32 %v6124, %v6125
        %v6127 = vrot.slane %v6126, 1
        %v6128 = vmax.f32 %v6126, %v6127
        %s6129 = smul.u32 %s19, 64
        %vm6258 = vcmask 1041409
        %v6259 = vsel %vm6258, %v5246, %v5239
        %vm6260 = vcmask 1042434
        %v6261 = vsel %vm6260, %v5253, %v6259
        %vm6262 = vcmask 1043459
        %v6263 = vsel %vm6262, %v5260, %v6261
        %vm6264 = vcmask 1044484
        %v6265 = vsel %vm6264, %v5267, %v6263
        %vm6266 = vcmask 1045509
        %v6267 = vsel %vm6266, %v5274, %v6265
        %vm6268 = vcmask 1046534
        %v6269 = vsel %vm6268, %v5281, %v6267
        %vm6270 = vcmask 1047559
        %v6271 = vsel %vm6270, %v5288, %v6269
        %v6272 = vsel %vm6258, %v5302, %v5295
        %v6273 = vsel %vm6260, %v5309, %v6272
        %v6274 = vsel %vm6262, %v5316, %v6273
        %v6275 = vsel %vm6264, %v5323, %v6274
        %v6276 = vsel %vm6266, %v5330, %v6275
        %v6277 = vsel %vm6268, %v5337, %v6276
        %v6278 = vsel %vm6270, %v5344, %v6277
        %v6279 = vsel %vm6258, %v5358, %v5351
        %v6280 = vsel %vm6260, %v5365, %v6279
        %v6281 = vsel %vm6262, %v5372, %v6280
        %v6282 = vsel %vm6264, %v5379, %v6281
        %v6283 = vsel %vm6266, %v5386, %v6282
        %v6284 = vsel %vm6268, %v5393, %v6283
        %v6285 = vsel %vm6270, %v5400, %v6284
        %v6286 = vsel %vm6258, %v5414, %v5407
        %v6287 = vsel %vm6260, %v5421, %v6286
        %v6288 = vsel %vm6262, %v5428, %v6287
        %v6289 = vsel %vm6264, %v5435, %v6288
        %v6290 = vsel %vm6266, %v5442, %v6289
        %v6291 = vsel %vm6268, %v5449, %v6290
        %v6292 = vsel %vm6270, %v5456, %v6291
        %v6293 = vsel %vm6258, %v5470, %v5463
        %v6294 = vsel %vm6260, %v5477, %v6293
        %v6295 = vsel %vm6262, %v5484, %v6294
        %v6296 = vsel %vm6264, %v5491, %v6295
        %v6297 = vsel %vm6266, %v5498, %v6296
        %v6298 = vsel %vm6268, %v5505, %v6297
        %v6299 = vsel %vm6270, %v5512, %v6298
        %v6300 = vsel %vm6258, %v5526, %v5519
        %v6301 = vsel %vm6260, %v5533, %v6300
        %v6302 = vsel %vm6262, %v5540, %v6301
        %v6303 = vsel %vm6264, %v5547, %v6302
        %v6304 = vsel %vm6266, %v5554, %v6303
        %v6305 = vsel %vm6268, %v5561, %v6304
        %v6306 = vsel %vm6270, %v5568, %v6305
        %v6307 = vsel %vm6258, %v5582, %v5575
        %v6308 = vsel %vm6260, %v5589, %v6307
        %v6309 = vsel %vm6262, %v5596, %v6308
        %v6310 = vsel %vm6264, %v5603, %v6309
        %v6311 = vsel %vm6266, %v5610, %v6310
        %v6312 = vsel %vm6268, %v5617, %v6311
        %v6313 = vsel %vm6270, %v5624, %v6312
        %v6314 = vsel %vm6258, %v5638, %v5631
        %v6315 = vsel %vm6260, %v5645, %v6314
        %v6316 = vsel %vm6262, %v5652, %v6315
        %v6317 = vsel %vm6264, %v5659, %v6316
        %v6318 = vsel %vm6266, %v5666, %v6317
        %v6319 = vsel %vm6268, %v5673, %v6318
        %v6320 = vsel %vm6270, %v5680, %v6319
        %v6321 = vsel %vm6258, %v5694, %v5687
        %v6322 = vsel %vm6260, %v5701, %v6321
        %v6323 = vsel %vm6262, %v5708, %v6322
        %v6324 = vsel %vm6264, %v5715, %v6323
        %v6325 = vsel %vm6266, %v5722, %v6324
        %v6326 = vsel %vm6268, %v5729, %v6325
        %v6327 = vsel %vm6270, %v5736, %v6326
        %v6328 = vsel %vm6258, %v5750, %v5743
        %v6329 = vsel %vm6260, %v5757, %v6328
        %v6330 = vsel %vm6262, %v5764, %v6329
        %v6331 = vsel %vm6264, %v5771, %v6330
        %v6332 = vsel %vm6266, %v5778, %v6331
        %v6333 = vsel %vm6268, %v5785, %v6332
        %v6334 = vsel %vm6270, %v5792, %v6333
        %v6335 = vsel %vm6258, %v5806, %v5799
        %v6336 = vsel %vm6260, %v5813, %v6335
        %v6337 = vsel %vm6262, %v5820, %v6336
        %v6338 = vsel %vm6264, %v5827, %v6337
        %v6339 = vsel %vm6266, %v5834, %v6338
        %v6340 = vsel %vm6268, %v5841, %v6339
        %v6341 = vsel %vm6270, %v5848, %v6340
        %v6342 = vsel %vm6258, %v5862, %v5855
        %v6343 = vsel %vm6260, %v5869, %v6342
        %v6344 = vsel %vm6262, %v5876, %v6343
        %v6345 = vsel %vm6264, %v5883, %v6344
        %v6346 = vsel %vm6266, %v5890, %v6345
        %v6347 = vsel %vm6268, %v5897, %v6346
        %v6348 = vsel %vm6270, %v5904, %v6347
        %v6349 = vsel %vm6258, %v5918, %v5911
        %v6350 = vsel %vm6260, %v5925, %v6349
        %v6351 = vsel %vm6262, %v5932, %v6350
        %v6352 = vsel %vm6264, %v5939, %v6351
        %v6353 = vsel %vm6266, %v5946, %v6352
        %v6354 = vsel %vm6268, %v5953, %v6353
        %v6355 = vsel %vm6270, %v5960, %v6354
        %v6356 = vsel %vm6258, %v5974, %v5967
        %v6357 = vsel %vm6260, %v5981, %v6356
        %v6358 = vsel %vm6262, %v5988, %v6357
        %v6359 = vsel %vm6264, %v5995, %v6358
        %v6360 = vsel %vm6266, %v6002, %v6359
        %v6361 = vsel %vm6268, %v6009, %v6360
        %v6362 = vsel %vm6270, %v6016, %v6361
        %v6363 = vsel %vm6258, %v6030, %v6023
        %v6364 = vsel %vm6260, %v6037, %v6363
        %v6365 = vsel %vm6262, %v6044, %v6364
        %v6366 = vsel %vm6264, %v6051, %v6365
        %v6367 = vsel %vm6266, %v6058, %v6366
        %v6368 = vsel %vm6268, %v6065, %v6367
        %v6369 = vsel %vm6270, %v6072, %v6368
        %v6370 = vsel %vm6258, %v6086, %v6079
        %v6371 = vsel %vm6260, %v6093, %v6370
        %v6372 = vsel %vm6262, %v6100, %v6371
        %v6373 = vsel %vm6264, %v6107, %v6372
        %v6374 = vsel %vm6266, %v6114, %v6373
        %v6375 = vsel %vm6268, %v6121, %v6374
        %v6376 = vsel %vm6270, %v6128, %v6375
        %s6393 = scalar_lea.vmem %s3, %s6129
        %6394 = vst.msk [vmem:[%s6393] sm:$0xff] %vm3237, %v6271
        %6395 = vst.msk [vmem:[%s6393 + $0x8] sm:$0xff] %vm3237, %v6278
        %6396 = vst.msk [vmem:[%s6393 + $0x10] sm:$0xff] %vm3237, %v6285
        %6397 = vst.msk [vmem:[%s6393 + $0x18] sm:$0xff] %vm3237, %v6292
        %6398 = vst.msk [vmem:[%s6393 + $0x20] sm:$0xff] %vm3237, %v6299
        %6399 = vst.msk [vmem:[%s6393 + $0x28] sm:$0xff] %vm3237, %v6306
        %6400 = vst.msk [vmem:[%s6393 + $0x30] sm:$0xff] %vm3237, %v6313
        %6401 = vst.msk [vmem:[%s6393 + $0x38] sm:$0xff] %vm3237, %v6320
        %6402 = vst.msk [vmem:[%s6393 + $0x140] sm:$0xff] %vm3237, %v6327
        %6403 = vst.msk [vmem:[%s6393 + $0x148] sm:$0xff] %vm3237, %v6334
        %6404 = vst.msk [vmem:[%s6393 + $0x150] sm:$0xff] %vm3237, %v6341
        %6405 = vst.msk [vmem:[%s6393 + $0x158] sm:$0xff] %vm3237, %v6348
        %6406 = vst.msk [vmem:[%s6393 + $0x160] sm:$0xff] %vm3237, %v6355
        %6407 = vst.msk [vmem:[%s6393 + $0x168] sm:$0xff] %vm3237, %v6362
        %6408 = vst.msk [vmem:[%s6393 + $0x170] sm:$0xff] %vm3237, %v6369
        %6409 = vst.msk [vmem:[%s6393 + $0x178] sm:$0xff] %vm3237, %v6376
      $region48: #{conv_pre_wav_block.1} parent=31 // pred_fallthru
        _
      %p6410 = scmp.eq.s32.totalorder %s19, 4
      %p6411 = pnand %p1684, %p6410
      %p6412 = pneg %p6411
      // Predicated region
      $region49: #{conv_pre_wav_block.1} parent=31 // pred_check
        _
      $region50: #{conv_pre_wav_block.1} parent=31 // pred_check_branch
        %6414 = sbr.rel (%p6411) target = $region52
      $region51: #{conv_pre_wav_block.1} parent=31 // pred_region
        %v6415 = vld [vmem:[#allocation5] sm:$0x1]
        %v6416 = vrcp.pop 1252.0
        %v6417 = vmul.f32 %v6415, %v6416
        %v6418 = vadd.f32 %v6417, 1e-05
        %v6419 = vrsqrt.pop %v6418
        %v6420 = vld [vmem:[#allocation4] sm:$0x1]
        %v6421 = vmul.f32 %v6420, %v6419
        %v6422 = vld [vmem:[%s3] sm:$0xff]
        %v6423 = vld [vmem:[%s3 + $0x8] sm:$0xff]
        %v6424 = vld [vmem:[%s3 + $0x10] sm:$0xff]
        %v6425 = vld [vmem:[%s3 + $0x18] sm:$0xff]
        %v6426 = vld [vmem:[%s3 + $0x20] sm:$0xff]
        %v6427 = vld [vmem:[%s3 + $0x28] sm:$0xff]
        %v6428 = vld [vmem:[%s3 + $0x30] sm:$0xff]
        %v6429 = vld [vmem:[%s3 + $0x38] sm:$0xff]
        %v6430 = vld [vmem:[%s3 + $0x40] sm:$0xff]
        %v6431 = vld [vmem:[%s3 + $0x48] sm:$0xff]
        %v6432 = vld [vmem:[%s3 + $0x50] sm:$0xff]
        %v6433 = vld [vmem:[%s3 + $0x58] sm:$0xff]
        %v6434 = vld [vmem:[%s3 + $0x60] sm:$0xff]
        %v6435 = vld [vmem:[%s3 + $0x68] sm:$0xff]
        %v6436 = vld [vmem:[%s3 + $0x70] sm:$0xff]
        %v6437 = vld [vmem:[%s3 + $0x78] sm:$0xff]
        %v6438 = vld [vmem:[%s3 + $0x80] sm:$0xff]
        %v6439 = vld [vmem:[%s3 + $0x88] sm:$0xff]
        %v6440 = vld [vmem:[%s3 + $0x90] sm:$0xff]
        %v6441 = vld [vmem:[%s3 + $0x98] sm:$0xff]
        %v6442 = vld [vmem:[%s3 + $0xa0] sm:$0xff]
        %v6443 = vld [vmem:[%s3 + $0xa8] sm:$0xff]
        %v6444 = vld [vmem:[%s3 + $0xb0] sm:$0xff]
        %v6445 = vld [vmem:[%s3 + $0xb8] sm:$0xff]
        %v6446 = vld [vmem:[%s3 + $0xc0] sm:$0xff]
        %v6447 = vld [vmem:[%s3 + $0xc8] sm:$0xff]
        %v6448 = vld [vmem:[%s3 + $0xd0] sm:$0xff]
        %v6449 = vld [vmem:[%s3 + $0xd8] sm:$0xff]
        %v6450 = vld [vmem:[%s3 + $0xe0] sm:$0xff]
        %v6451 = vld [vmem:[%s3 + $0xe8] sm:$0xff]
        %v6452 = vld [vmem:[%s3 + $0xf0] sm:$0xff]
        %v6453 = vld [vmem:[%s3 + $0xf8] sm:$0xff]
        %v6454 = vld [vmem:[%s3 + $0x100] sm:$0xff]
        %v6455 = vld [vmem:[%s3 + $0x108] sm:$0xff]
        %v6456 = vld [vmem:[%s3 + $0x110] sm:$0xff]
        %v6457 = vld [vmem:[%s3 + $0x118] sm:$0xff]
        %v6458 = vld [vmem:[%s3 + $0x120] sm:$0xff]
        %v6459 = vld [vmem:[%s3 + $0x128] sm:$0xff]
        %v6460 = vld [vmem:[%s3 + $0x130] sm:$0xff]
        %v6461 = vld [vmem:[%s3 + $0x138] sm:$0xff]
        %v6462 = vld [vmem:[%s3 + $0x140] sm:$0xff]
        %v6463 = vld [vmem:[%s3 + $0x148] sm:$0xff]
        %v6464 = vld [vmem:[%s3 + $0x150] sm:$0xff]
        %v6465 = vld [vmem:[%s3 + $0x158] sm:$0xff]
        %v6466 = vld [vmem:[%s3 + $0x160] sm:$0xff]
        %v6467 = vld [vmem:[%s3 + $0x168] sm:$0xff]
        %v6468 = vld [vmem:[%s3 + $0x170] sm:$0xff]
        %v6469 = vld [vmem:[%s3 + $0x178] sm:$0xff]
        %v6470 = vld [vmem:[%s3 + $0x180] sm:$0xff]
        %v6471 = vld [vmem:[%s3 + $0x188] sm:$0xff]
        %v6472 = vld [vmem:[%s3 + $0x190] sm:$0xff]
        %v6473 = vld [vmem:[%s3 + $0x198] sm:$0xff]
        %v6474 = vld [vmem:[%s3 + $0x1a0] sm:$0xff]
        %v6475 = vld [vmem:[%s3 + $0x1a8] sm:$0xff]
        %v6476 = vld [vmem:[%s3 + $0x1b0] sm:$0xff]
        %v6477 = vld [vmem:[%s3 + $0x1b8] sm:$0xff]
        %v6478 = vld [vmem:[%s3 + $0x1c0] sm:$0xff]
        %v6479 = vld [vmem:[%s3 + $0x1c8] sm:$0xff]
        %v6480 = vld [vmem:[%s3 + $0x1d0] sm:$0xff]
        %v6481 = vld [vmem:[%s3 + $0x1d8] sm:$0xff]
        %v6482 = vld [vmem:[%s3 + $0x1e0] sm:$0xff]
        %v6483 = vld [vmem:[%s3 + $0x1e8] sm:$0xff]
        %v6484 = vld [vmem:[%s3 + $0x1f0] sm:$0xff]
        %v6485 = vld [vmem:[%s3 + $0x1f8] sm:$0xff]
        %v6486 = vld [vmem:[%s3 + $0x200] sm:$0xff]
        %v6487 = vld [vmem:[%s3 + $0x208] sm:$0xff]
        %v6488 = vld [vmem:[%s3 + $0x210] sm:$0xff]
        %v6489 = vld [vmem:[%s3 + $0x218] sm:$0xff]
        %v6490 = vld [vmem:[%s3 + $0x220] sm:$0xff]
        %v6491 = vld [vmem:[%s3 + $0x228] sm:$0xff]
        %v6492 = vld [vmem:[%s3 + $0x230] sm:$0xff]
        %v6493 = vld [vmem:[%s3 + $0x238] sm:$0xff]
        %v6494 = vld [vmem:[%s3 + $0x240] sm:$0xff]
        %v6495 = vld [vmem:[%s3 + $0x248] sm:$0xff]
        %v6496 = vld [vmem:[%s3 + $0x250] sm:$0xff]
        %v6497 = vld [vmem:[%s3 + $0x258] sm:$0xff]
        %v6498 = vld [vmem:[%s3 + $0x260] sm:$0xff]
        %v6499 = vld [vmem:[%s3 + $0x268] sm:$0xff]
        %v6500 = vld [vmem:[%s3 + $0x270] sm:$0xff]
        %v6501 = vld [vmem:[%s3 + $0x278] sm:$0xff]
        %v6503 = vlaneseq
        %v6504 = vshrl.u32 %v6503, 7
        %v6505 = vsub.s32 0, %v6504
        %v6506 = vrot.slane %v6419, %v6505
        %v6508 = vmul.f32 %v6422, %v6506
        %v6509 = vmul.f32 %v6423, %v6506
        %v6510 = vmul.f32 %v6424, %v6506
        %v6511 = vmul.f32 %v6425, %v6506
        %v6512 = vmul.f32 %v6426, %v6506
        %v6513 = vmul.f32 %v6427, %v6506
        %v6514 = vmul.f32 %v6428, %v6506
        %v6515 = vmul.f32 %v6429, %v6506
        %v6516 = vmul.f32 %v6430, %v6506
        %v6517 = vmul.f32 %v6431, %v6506
        %v6518 = vmul.f32 %v6432, %v6506
        %v6519 = vmul.f32 %v6433, %v6506
        %v6520 = vmul.f32 %v6434, %v6506
        %v6521 = vmul.f32 %v6435, %v6506
        %v6522 = vmul.f32 %v6436, %v6506
        %v6523 = vmul.f32 %v6437, %v6506
        %v6524 = vmul.f32 %v6438, %v6506
        %v6525 = vmul.f32 %v6439, %v6506
        %v6526 = vmul.f32 %v6440, %v6506
        %v6527 = vmul.f32 %v6441, %v6506
        %v6528 = vmul.f32 %v6442, %v6506
        %v6529 = vmul.f32 %v6443, %v6506
        %v6530 = vmul.f32 %v6444, %v6506
        %v6531 = vmul.f32 %v6445, %v6506
        %v6532 = vmul.f32 %v6446, %v6506
        %v6533 = vmul.f32 %v6447, %v6506
        %v6534 = vmul.f32 %v6448, %v6506
        %v6535 = vmul.f32 %v6449, %v6506
        %v6536 = vmul.f32 %v6450, %v6506
        %v6537 = vmul.f32 %v6451, %v6506
        %v6538 = vmul.f32 %v6452, %v6506
        %v6539 = vmul.f32 %v6453, %v6506
        %v6540 = vmul.f32 %v6454, %v6506
        %v6541 = vmul.f32 %v6455, %v6506
        %v6542 = vmul.f32 %v6456, %v6506
        %v6543 = vmul.f32 %v6457, %v6506
        %v6544 = vmul.f32 %v6458, %v6506
        %v6545 = vmul.f32 %v6459, %v6506
        %v6546 = vmul.f32 %v6460, %v6506
        %v6547 = vmul.f32 %v6461, %v6506
        %v6548 = vmul.f32 %v6462, %v6506
        %v6549 = vmul.f32 %v6463, %v6506
        %v6550 = vmul.f32 %v6464, %v6506
        %v6551 = vmul.f32 %v6465, %v6506
        %v6552 = vmul.f32 %v6466, %v6506
        %v6553 = vmul.f32 %v6467, %v6506
        %v6554 = vmul.f32 %v6468, %v6506
        %v6555 = vmul.f32 %v6469, %v6506
        %v6556 = vmul.f32 %v6470, %v6506
        %v6557 = vmul.f32 %v6471, %v6506
        %v6558 = vmul.f32 %v6472, %v6506
        %v6559 = vmul.f32 %v6473, %v6506
        %v6560 = vmul.f32 %v6474, %v6506
        %v6561 = vmul.f32 %v6475, %v6506
        %v6562 = vmul.f32 %v6476, %v6506
        %v6563 = vmul.f32 %v6477, %v6506
        %v6564 = vmul.f32 %v6478, %v6506
        %v6565 = vmul.f32 %v6479, %v6506
        %v6566 = vmul.f32 %v6480, %v6506
        %v6567 = vmul.f32 %v6481, %v6506
        %v6568 = vmul.f32 %v6482, %v6506
        %v6569 = vmul.f32 %v6483, %v6506
        %v6570 = vmul.f32 %v6484, %v6506
        %v6571 = vmul.f32 %v6485, %v6506
        %v6572 = vmul.f32 %v6486, %v6506
        %v6573 = vmul.f32 %v6487, %v6506
        %v6574 = vmul.f32 %v6488, %v6506
        %v6575 = vmul.f32 %v6489, %v6506
        %v6576 = vmul.f32 %v6490, %v6506
        %v6577 = vmul.f32 %v6491, %v6506
        %v6578 = vmul.f32 %v6492, %v6506
        %v6579 = vmul.f32 %v6493, %v6506
        %v6580 = vmul.f32 %v6494, %v6506
        %v6581 = vmul.f32 %v6495, %v6506
        %v6582 = vmul.f32 %v6496, %v6506
        %v6583 = vmul.f32 %v6497, %v6506
        %v6584 = vmul.f32 %v6498, %v6506
        %v6585 = vmul.f32 %v6499, %v6506
        %v6586 = vmul.f32 %v6500, %v6506
        %v6587 = vmul.f32 %v6501, %v6506
        %v6589 = vlaneseq
        %v6590 = vshrl.u32 %v6589, 7
        %v6591 = vsub.s32 0, %v6590
        %v6592 = vrot.slane %v6421, %v6591
        %v6594 = vsub.f32 %v6508, %v6592
        %v6595 = vsub.f32 %v6509, %v6592
        %v6596 = vsub.f32 %v6510, %v6592
        %v6597 = vsub.f32 %v6511, %v6592
        %v6598 = vsub.f32 %v6512, %v6592
        %v6599 = vsub.f32 %v6513, %v6592
        %v6600 = vsub.f32 %v6514, %v6592
        %v6601 = vsub.f32 %v6515, %v6592
        %v6602 = vsub.f32 %v6516, %v6592
        %v6603 = vsub.f32 %v6517, %v6592
        %v6604 = vsub.f32 %v6518, %v6592
        %v6605 = vsub.f32 %v6519, %v6592
        %v6606 = vsub.f32 %v6520, %v6592
        %v6607 = vsub.f32 %v6521, %v6592
        %v6608 = vsub.f32 %v6522, %v6592
        %v6609 = vsub.f32 %v6523, %v6592
        %v6610 = vsub.f32 %v6524, %v6592
        %v6611 = vsub.f32 %v6525, %v6592
        %v6612 = vsub.f32 %v6526, %v6592
        %v6613 = vsub.f32 %v6527, %v6592
        %v6614 = vsub.f32 %v6528, %v6592
        %v6615 = vsub.f32 %v6529, %v6592
        %v6616 = vsub.f32 %v6530, %v6592
        %v6617 = vsub.f32 %v6531, %v6592
        %v6618 = vsub.f32 %v6532, %v6592
        %v6619 = vsub.f32 %v6533, %v6592
        %v6620 = vsub.f32 %v6534, %v6592
        %v6621 = vsub.f32 %v6535, %v6592
        %v6622 = vsub.f32 %v6536, %v6592
        %v6623 = vsub.f32 %v6537, %v6592
        %v6624 = vsub.f32 %v6538, %v6592
        %v6625 = vsub.f32 %v6539, %v6592
        %v6626 = vsub.f32 %v6540, %v6592
        %v6627 = vsub.f32 %v6541, %v6592
        %v6628 = vsub.f32 %v6542, %v6592
        %v6629 = vsub.f32 %v6543, %v6592
        %v6630 = vsub.f32 %v6544, %v6592
        %v6631 = vsub.f32 %v6545, %v6592
        %v6632 = vsub.f32 %v6546, %v6592
        %v6633 = vsub.f32 %v6547, %v6592
        %v6634 = vsub.f32 %v6548, %v6592
        %v6635 = vsub.f32 %v6549, %v6592
        %v6636 = vsub.f32 %v6550, %v6592
        %v6637 = vsub.f32 %v6551, %v6592
        %v6638 = vsub.f32 %v6552, %v6592
        %v6639 = vsub.f32 %v6553, %v6592
        %v6640 = vsub.f32 %v6554, %v6592
        %v6641 = vsub.f32 %v6555, %v6592
        %v6642 = vsub.f32 %v6556, %v6592
        %v6643 = vsub.f32 %v6557, %v6592
        %v6644 = vsub.f32 %v6558, %v6592
        %v6645 = vsub.f32 %v6559, %v6592
        %v6646 = vsub.f32 %v6560, %v6592
        %v6647 = vsub.f32 %v6561, %v6592
        %v6648 = vsub.f32 %v6562, %v6592
        %v6649 = vsub.f32 %v6563, %v6592
        %v6650 = vsub.f32 %v6564, %v6592
        %v6651 = vsub.f32 %v6565, %v6592
        %v6652 = vsub.f32 %v6566, %v6592
        %v6653 = vsub.f32 %v6567, %v6592
        %v6654 = vsub.f32 %v6568, %v6592
        %v6655 = vsub.f32 %v6569, %v6592
        %v6656 = vsub.f32 %v6570, %v6592
        %v6657 = vsub.f32 %v6571, %v6592
        %v6658 = vsub.f32 %v6572, %v6592
        %v6659 = vsub.f32 %v6573, %v6592
        %v6660 = vsub.f32 %v6574, %v6592
        %v6661 = vsub.f32 %v6575, %v6592
        %v6662 = vsub.f32 %v6576, %v6592
        %v6663 = vsub.f32 %v6577, %v6592
        %v6664 = vsub.f32 %v6578, %v6592
        %v6665 = vsub.f32 %v6579, %v6592
        %v6666 = vsub.f32 %v6580, %v6592
        %v6667 = vsub.f32 %v6581, %v6592
        %v6668 = vsub.f32 %v6582, %v6592
        %v6669 = vsub.f32 %v6583, %v6592
        %v6670 = vsub.f32 %v6584, %v6592
        %v6671 = vsub.f32 %v6585, %v6592
        %v6672 = vsub.f32 %v6586, %v6592
        %v6673 = vsub.f32 %v6587, %v6592
        %v6674 = vmax.f32 %v6594, 0.0
        %v6675 = vmax.f32 %v6595, 0.0
        %v6676 = vmax.f32 %v6596, 0.0
        %v6677 = vmax.f32 %v6597, 0.0
        %v6678 = vmax.f32 %v6598, 0.0
        %v6679 = vmax.f32 %v6599, 0.0
        %v6680 = vmax.f32 %v6600, 0.0
        %v6681 = vmax.f32 %v6601, 0.0
        %v6682 = vmax.f32 %v6602, 0.0
        %v6683 = vmax.f32 %v6603, 0.0
        %v6684 = vmax.f32 %v6604, 0.0
        %v6685 = vmax.f32 %v6605, 0.0
        %v6686 = vmax.f32 %v6606, 0.0
        %v6687 = vmax.f32 %v6607, 0.0
        %v6688 = vmax.f32 %v6608, 0.0
        %v6689 = vmax.f32 %v6609, 0.0
        %v6690 = vmax.f32 %v6610, 0.0
        %v6691 = vmax.f32 %v6611, 0.0
        %v6692 = vmax.f32 %v6612, 0.0
        %v6693 = vmax.f32 %v6613, 0.0
        %v6694 = vmax.f32 %v6614, 0.0
        %v6695 = vmax.f32 %v6615, 0.0
        %v6696 = vmax.f32 %v6616, 0.0
        %v6697 = vmax.f32 %v6617, 0.0
        %v6698 = vmax.f32 %v6618, 0.0
        %v6699 = vmax.f32 %v6619, 0.0
        %v6700 = vmax.f32 %v6620, 0.0
        %v6701 = vmax.f32 %v6621, 0.0
        %v6702 = vmax.f32 %v6622, 0.0
        %v6703 = vmax.f32 %v6623, 0.0
        %v6704 = vmax.f32 %v6624, 0.0
        %v6705 = vmax.f32 %v6625, 0.0
        %v6706 = vmax.f32 %v6626, 0.0
        %v6707 = vmax.f32 %v6627, 0.0
        %v6708 = vmax.f32 %v6628, 0.0
        %v6709 = vmax.f32 %v6629, 0.0
        %v6710 = vmax.f32 %v6630, 0.0
        %v6711 = vmax.f32 %v6631, 0.0
        %v6712 = vmax.f32 %v6632, 0.0
        %v6713 = vmax.f32 %v6633, 0.0
        %v6714 = vmax.f32 %v6634, 0.0
        %v6715 = vmax.f32 %v6635, 0.0
        %v6716 = vmax.f32 %v6636, 0.0
        %v6717 = vmax.f32 %v6637, 0.0
        %v6718 = vmax.f32 %v6638, 0.0
        %v6719 = vmax.f32 %v6639, 0.0
        %v6720 = vmax.f32 %v6640, 0.0
        %v6721 = vmax.f32 %v6641, 0.0
        %v6722 = vmax.f32 %v6642, 0.0
        %v6723 = vmax.f32 %v6643, 0.0
        %v6724 = vmax.f32 %v6644, 0.0
        %v6725 = vmax.f32 %v6645, 0.0
        %v6726 = vmax.f32 %v6646, 0.0
        %v6727 = vmax.f32 %v6647, 0.0
        %v6728 = vmax.f32 %v6648, 0.0
        %v6729 = vmax.f32 %v6649, 0.0
        %v6730 = vmax.f32 %v6650, 0.0
        %v6731 = vmax.f32 %v6651, 0.0
        %v6732 = vmax.f32 %v6652, 0.0
        %v6733 = vmax.f32 %v6653, 0.0
        %v6734 = vmax.f32 %v6654, 0.0
        %v6735 = vmax.f32 %v6655, 0.0
        %v6736 = vmax.f32 %v6656, 0.0
        %v6737 = vmax.f32 %v6657, 0.0
        %v6738 = vmax.f32 %v6658, 0.0
        %v6739 = vmax.f32 %v6659, 0.0
        %v6740 = vmax.f32 %v6660, 0.0
        %v6741 = vmax.f32 %v6661, 0.0
        %v6742 = vmax.f32 %v6662, 0.0
        %v6743 = vmax.f32 %v6663, 0.0
        %v6744 = vmax.f32 %v6664, 0.0
        %v6745 = vmax.f32 %v6665, 0.0
        %v6746 = vmax.f32 %v6666, 0.0
        %v6747 = vmax.f32 %v6667, 0.0
        %v6748 = vmax.f32 %v6668, 0.0
        %v6749 = vmax.f32 %v6669, 0.0
        %v6750 = vmax.f32 %v6670, 0.0
        %v6751 = vmax.f32 %v6671, 0.0
        %v6752 = vmax.f32 %v6672, 0.0
        %v6753 = vmax.f32 %v6673, 0.0
        %vm6754 = vcmask 64512
        %6755 = vst.msk [vmem:[%s3] sm:$0xff] %vm6754, %v6674
        %6756 = vst.msk [vmem:[%s3 + $0x8] sm:$0xff] %vm6754, %v6675
        %6757 = vst.msk [vmem:[%s3 + $0x10] sm:$0xff] %vm6754, %v6676
        %6758 = vst.msk [vmem:[%s3 + $0x18] sm:$0xff] %vm6754, %v6677
        %6759 = vst.msk [vmem:[%s3 + $0x20] sm:$0xff] %vm6754, %v6678
        %6760 = vst.msk [vmem:[%s3 + $0x28] sm:$0xff] %vm6754, %v6679
        %6761 = vst.msk [vmem:[%s3 + $0x30] sm:$0xff] %vm6754, %v6680
        %6762 = vst.msk [vmem:[%s3 + $0x38] sm:$0xff] %vm6754, %v6681
        %6763 = vst.msk [vmem:[%s3 + $0x40] sm:$0xff] %vm6754, %v6682
        %6764 = vst.msk [vmem:[%s3 + $0x48] sm:$0xff] %vm6754, %v6683
        %6765 = vst.msk [vmem:[%s3 + $0x50] sm:$0xff] %vm6754, %v6684
        %6766 = vst.msk [vmem:[%s3 + $0x58] sm:$0xff] %vm6754, %v6685
        %6767 = vst.msk [vmem:[%s3 + $0x60] sm:$0xff] %vm6754, %v6686
        %6768 = vst.msk [vmem:[%s3 + $0x68] sm:$0xff] %vm6754, %v6687
        %6769 = vst.msk [vmem:[%s3 + $0x70] sm:$0xff] %vm6754, %v6688
        %6770 = vst.msk [vmem:[%s3 + $0x78] sm:$0xff] %vm6754, %v6689
        %6771 = vst.msk [vmem:[%s3 + $0x80] sm:$0xff] %vm6754, %v6690
        %6772 = vst.msk [vmem:[%s3 + $0x88] sm:$0xff] %vm6754, %v6691
        %6773 = vst.msk [vmem:[%s3 + $0x90] sm:$0xff] %vm6754, %v6692
        %6774 = vst.msk [vmem:[%s3 + $0x98] sm:$0xff] %vm6754, %v6693
        %6775 = vst.msk [vmem:[%s3 + $0xa0] sm:$0xff] %vm6754, %v6694
        %6776 = vst.msk [vmem:[%s3 + $0xa8] sm:$0xff] %vm6754, %v6695
        %6777 = vst.msk [vmem:[%s3 + $0xb0] sm:$0xff] %vm6754, %v6696
        %6778 = vst.msk [vmem:[%s3 + $0xb8] sm:$0xff] %vm6754, %v6697
        %6779 = vst.msk [vmem:[%s3 + $0xc0] sm:$0xff] %vm6754, %v6698
        %6780 = vst.msk [vmem:[%s3 + $0xc8] sm:$0xff] %vm6754, %v6699
        %6781 = vst.msk [vmem:[%s3 + $0xd0] sm:$0xff] %vm6754, %v6700
        %6782 = vst.msk [vmem:[%s3 + $0xd8] sm:$0xff] %vm6754, %v6701
        %6783 = vst.msk [vmem:[%s3 + $0xe0] sm:$0xff] %vm6754, %v6702
        %6784 = vst.msk [vmem:[%s3 + $0xe8] sm:$0xff] %vm6754, %v6703
        %6785 = vst.msk [vmem:[%s3 + $0xf0] sm:$0xff] %vm6754, %v6704
        %6786 = vst.msk [vmem:[%s3 + $0xf8] sm:$0xff] %vm6754, %v6705
        %6787 = vst.msk [vmem:[%s3 + $0x100] sm:$0xff] %vm6754, %v6706
        %6788 = vst.msk [vmem:[%s3 + $0x108] sm:$0xff] %vm6754, %v6707
        %6789 = vst.msk [vmem:[%s3 + $0x110] sm:$0xff] %vm6754, %v6708
        %6790 = vst.msk [vmem:[%s3 + $0x118] sm:$0xff] %vm6754, %v6709
        %6791 = vst.msk [vmem:[%s3 + $0x120] sm:$0xff] %vm6754, %v6710
        %6792 = vst.msk [vmem:[%s3 + $0x128] sm:$0xff] %vm6754, %v6711
        %6793 = vst.msk [vmem:[%s3 + $0x130] sm:$0xff] %vm6754, %v6712
        %6794 = vst.msk [vmem:[%s3 + $0x138] sm:$0xff] %vm6754, %v6713
        %6795 = vst.msk [vmem:[%s3 + $0x140] sm:$0xff] %vm6754, %v6714
        %6796 = vst.msk [vmem:[%s3 + $0x148] sm:$0xff] %vm6754, %v6715
        %6797 = vst.msk [vmem:[%s3 + $0x150] sm:$0xff] %vm6754, %v6716
        %6798 = vst.msk [vmem:[%s3 + $0x158] sm:$0xff] %vm6754, %v6717
        %6799 = vst.msk [vmem:[%s3 + $0x160] sm:$0xff] %vm6754, %v6718
        %6800 = vst.msk [vmem:[%s3 + $0x168] sm:$0xff] %vm6754, %v6719
        %6801 = vst.msk [vmem:[%s3 + $0x170] sm:$0xff] %vm6754, %v6720
        %6802 = vst.msk [vmem:[%s3 + $0x178] sm:$0xff] %vm6754, %v6721
        %6803 = vst.msk [vmem:[%s3 + $0x180] sm:$0xff] %vm6754, %v6722
        %6804 = vst.msk [vmem:[%s3 + $0x188] sm:$0xff] %vm6754, %v6723
        %6805 = vst.msk [vmem:[%s3 + $0x190] sm:$0xff] %vm6754, %v6724
        %6806 = vst.msk [vmem:[%s3 + $0x198] sm:$0xff] %vm6754, %v6725
        %6807 = vst.msk [vmem:[%s3 + $0x1a0] sm:$0xff] %vm6754, %v6726
        %6808 = vst.msk [vmem:[%s3 + $0x1a8] sm:$0xff] %vm6754, %v6727
        %6809 = vst.msk [vmem:[%s3 + $0x1b0] sm:$0xff] %vm6754, %v6728
        %6810 = vst.msk [vmem:[%s3 + $0x1b8] sm:$0xff] %vm6754, %v6729
        %6811 = vst.msk [vmem:[%s3 + $0x1c0] sm:$0xff] %vm6754, %v6730
        %6812 = vst.msk [vmem:[%s3 + $0x1c8] sm:$0xff] %vm6754, %v6731
        %6813 = vst.msk [vmem:[%s3 + $0x1d0] sm:$0xff] %vm6754, %v6732
        %6814 = vst.msk [vmem:[%s3 + $0x1d8] sm:$0xff] %vm6754, %v6733
        %6815 = vst.msk [vmem:[%s3 + $0x1e0] sm:$0xff] %vm6754, %v6734
        %6816 = vst.msk [vmem:[%s3 + $0x1e8] sm:$0xff] %vm6754, %v6735
        %6817 = vst.msk [vmem:[%s3 + $0x1f0] sm:$0xff] %vm6754, %v6736
        %6818 = vst.msk [vmem:[%s3 + $0x1f8] sm:$0xff] %vm6754, %v6737
        %6819 = vst.msk [vmem:[%s3 + $0x200] sm:$0xff] %vm6754, %v6738
        %6820 = vst.msk [vmem:[%s3 + $0x208] sm:$0xff] %vm6754, %v6739
        %6821 = vst.msk [vmem:[%s3 + $0x210] sm:$0xff] %vm6754, %v6740
        %6822 = vst.msk [vmem:[%s3 + $0x218] sm:$0xff] %vm6754, %v6741
        %6823 = vst.msk [vmem:[%s3 + $0x220] sm:$0xff] %vm6754, %v6742
        %6824 = vst.msk [vmem:[%s3 + $0x228] sm:$0xff] %vm6754, %v6743
        %6825 = vst.msk [vmem:[%s3 + $0x230] sm:$0xff] %vm6754, %v6744
        %6826 = vst.msk [vmem:[%s3 + $0x238] sm:$0xff] %vm6754, %v6745
        %6827 = vst.msk [vmem:[%s3 + $0x240] sm:$0xff] %vm6754, %v6746
        %6828 = vst.msk [vmem:[%s3 + $0x248] sm:$0xff] %vm6754, %v6747
        %6829 = vst.msk [vmem:[%s3 + $0x250] sm:$0xff] %vm6754, %v6748
        %6830 = vst.msk [vmem:[%s3 + $0x258] sm:$0xff] %vm6754, %v6749
        %6831 = vst.msk [vmem:[%s3 + $0x260] sm:$0xff] %vm6754, %v6750
        %6832 = vst.msk [vmem:[%s3 + $0x268] sm:$0xff] %vm6754, %v6751
        %6833 = vst.msk [vmem:[%s3 + $0x270] sm:$0xff] %vm6754, %v6752
        %6834 = vst.msk [vmem:[%s3 + $0x278] sm:$0xff] %vm6754, %v6753
      $region52: #{conv_pre_wav_block.1} parent=31 // pred_fallthru
        _
      // Predicated region
      $region53: #{conv_pre_wav_block.1} parent=31 // pred_check
        %p6835 = pneg %p107
      $region54: #{conv_pre_wav_block.1} parent=31 // pred_check_branch
        %6837 = sbr.rel (%p6835) target = $region56
      $region55: #{conv_pre_wav_block.1} parent=31 // pred_region
        _
      $region56: #{conv_pre_wav_block.1} parent=31 // pred_fallthru
        _
      // Predicated region
      $region57: #{conv_pre_wav_block.1} parent=31 // pred_check
        %p6838 = pneg %p107
      $region58: #{conv_pre_wav_block.1} parent=31 // pred_check_branch
        %6840 = sbr.rel (%p6838) target = $region60
      $region59: #{conv_pre_wav_block.1} parent=31 // pred_region
        _
      $region60: #{conv_pre_wav_block.1} parent=31 // pred_fallthru
        _
    $region32: #{conv_pre_wav_block.1} parent=5 // pred_fallthru
      _
    %p6841 = scmp.le.s32.totalorder 2, %s9
    // Predicated region
    $region61: #{conv_pre_wav_block.1} parent=5 // pred_check
      %p6842 = pneg %p6841
    $region62: #{conv_pre_wav_block.1} parent=5 // pred_check_branch
      %6844 = sbr.rel (%p6842) target = $region64
    $region63: #{conv_pre_wav_block.1} parent=5 // pred_region
      %s6845 = ssub.s32 %s9, 2
    $region64: #{conv_pre_wav_block.1} parent=5 // pred_fallthru
      _
  $region6: #{conv_pre_wav_block.1} parent=0 // loop_footer
    %s13 = sadd.s32 1, %s9
  $region7: #{conv_pre_wav_block.1} parent=0 // loop_footer_branch
    %8 = sbr.rel target = $region3
  $region8: #{conv_pre_wav_block.1} parent=0 // loop_exit
    _

</llo_original>
